<compile_context>
chip_gen: v7x
topology: tpu7x:2x2x1
jax: 0.10.0
libtpu: 0.0.40
codegen_flags: <defaults>
</compile_context>

<pallas_src>
import jax
import jax.numpy as jnp
from jax.experimental import pallas as pl
from jax.experimental.pallas import tpu as pltpu

WIDTH = 32                     # self.width
MODES1 = 6                     # modes1
MODES2 = 6                     # modes2
NMODES = 2 * MODES1 * MODES2   # 72 kept (kx, ky) modes (top + bottom kx blocks)
NLAYERS = 6


# --------------------------------------------------------------------------
# In-kernel math helpers
# --------------------------------------------------------------------------

def _gelu_erf(x):
    # exact-erf GELU (torch F.gelu default) via A&S 7.1.26 polynomial; uses only
    # exp / abs / where, all of which lower on the VPU/EUP.
    a1, a2, a3, a4, a5 = (0.254829592, -0.284496736, 1.421413741,
                          -1.453152027, 1.061405429)
    p = 0.3275911
    z = x * 0.7071067811865476                     # x / sqrt(2)
    az = jnp.abs(z)
    t = 1.0 / (1.0 + p * az)
    poly = ((((a5 * t + a4) * t + a3) * t + a2) * t + a1) * t
    erf_abs = 1.0 - poly * jnp.exp(-az * az)
    erf = jnp.where(z < 0.0, -erf_abs, erf_abs)
    return 0.5 * x * (1.0 + erf)


# --------------------------------------------------------------------------
# Kernel 1: fused FNO trunk (fc0 + 6 Fourier blocks), grid = (batch, layer)
# --------------------------------------------------------------------------

def _trunk_kernel(xt_ref, gm_ref, w0_ref, b0_ref,
                  frT_ref, fiT_ref, grT_ref, giT_ref,
                  swr_ref, swi_ref, ww_ref, wbc_ref, bias_ref,
                  h_ref, xr_s, xi_s):
    layer = pl.program_id(1)

    # fc0 lift, only on the first layer step of each batch block.
    @pl.when(layer == 0)
    def _():
        h_ref[...] = (jnp.dot(w0_ref[...], xt_ref[...],
                              preferred_element_type=jnp.float32)
                      + b0_ref[...])

    h = h_ref[...]                                           # (C, P) channels-major

    # ---- spectral conv: truncated forward DFT as two matmuls --------------
    xr_s[...] = jnp.dot(h, frT_ref[...], preferred_element_type=jnp.float32)
    xi_s[...] = jnp.dot(h, fiT_ref[...], preferred_element_type=jnp.float32)

    # ---- per-mode complex channel mix on the VPU (modes on the lane axis) --
    yr = jnp.zeros((WIDTH, NMODES), dtype=jnp.float32)
    yi = jnp.zeros((WIDTH, NMODES), dtype=jnp.float32)
    for c in range(WIDTH):                                   # static unroll (32)
        xr_c = xr_s[c:c + 1, :]                              # (1, M) row, sublane-bcast
        xi_c = xi_s[c:c + 1, :]
        wr_c = swr_ref[0, c]                                 # (Cout, M)
        wi_c = swi_ref[0, c]
        yr = yr + wr_c * xr_c - wi_c * xi_c
        yi = yi + wr_c * xi_c + wi_c * xr_c

    # ---- inverse truncated DFT (real part), as two matmuls -----------------
    spec = (jnp.dot(yr, grT_ref[...], preferred_element_type=jnp.float32)
            - jnp.dot(yi, giT_ref[...], preferred_element_type=jnp.float32))

    # ---- 1x1 convs: w_l(h) + b_l(grid) + c_l(mesh), biases pre-summed ------
    pw = (jnp.dot(ww_ref[0], h, preferred_element_type=jnp.float32)
          + jnp.dot(wbc_ref[0], gm_ref[...], preferred_element_type=jnp.float32)
          + bias_ref[0])

    h_ref[...] = _gelu_erf(spec + pw)


def fno_trunk(params, x_t, gm_t, batch, pspatial):
    n = batch * pspatial
    return pl.pallas_call(
        _trunk_kernel,
        out_shape=jax.ShapeDtypeStruct((WIDTH, n), jnp.float32),
        grid_spec=pltpu.PrefetchScalarGridSpec(
            num_scalar_prefetch=0,
            grid=(batch, NLAYERS),
            in_specs=[
                pl.BlockSpec((4, pspatial), lambda b, l: (0, b)),            # x_t
                pl.BlockSpec((5, pspatial), lambda b, l: (0, b)),            # gm_t
                pl.BlockSpec((WIDTH, 4), lambda b, l: (0, 0)),               # fc0 W^T
                pl.BlockSpec((WIDTH, 1), lambda b, l: (0, 0)),               # fc0 b
                pl.BlockSpec((pspatial, NMODES), lambda b, l: (0, 0)),       # fwd DFT re
                pl.BlockSpec((pspatial, NMODES), lambda b, l: (0, 0)),       # fwd DFT im
                pl.BlockSpec((NMODES, pspatial), lambda b, l: (0, 0)),       # inv DFT re
                pl.BlockSpec((NMODES, pspatial), lambda b, l: (0, 0)),       # inv DFT im
                pl.BlockSpec((1, WIDTH, WIDTH, NMODES),
                             lambda b, l: (l, 0, 0, 0)),                     # spec W re
                pl.BlockSpec((1, WIDTH, WIDTH, NMODES),
                             lambda b, l: (l, 0, 0, 0)),                     # spec W im
                pl.BlockSpec((1, WIDTH, WIDTH), lambda b, l: (l, 0, 0)),     # w_l
                pl.BlockSpec((1, WIDTH, 5), lambda b, l: (l, 0, 0)),         # [b_l|c_l]
                pl.BlockSpec((1, WIDTH, 1), lambda b, l: (l, 0, 0)),         # summed bias
            ],
            out_specs=pl.BlockSpec((WIDTH, pspatial), lambda b, l: (0, b)),
            scratch_shapes=[pltpu.VMEM((WIDTH, NMODES), jnp.float32),
                            pltpu.VMEM((WIDTH, NMODES), jnp.float32)],
        ),
        compiler_params=pltpu.CompilerParams(
            dimension_semantics=("parallel", "arbitrary")),
    )(x_t, gm_t, params['fc0_wt'], params['fc0_b'],
      params['frT'], params['fiT'], params['grT'], params['giT'],
      params['swr'], params['swi'], params['ww'], params['wbc'], params['bias'])


# --------------------------------------------------------------------------
# Kernel 2: fused projection head fc1 -> gelu -> fc3 -> gelu -> fc4 -> fc5
# --------------------------------------------------------------------------

def _head_kernel(h_ref, w1_ref, b1_ref, w3_ref, b3_ref, w4_ref, b4_ref,
                 w5_ref, b5_ref, o_ref):
    z = _gelu_erf(jnp.dot(w1_ref[...], h_ref[...],
                          preferred_element_type=jnp.float32) + b1_ref[...])
    z = _gelu_erf(jnp.dot(w3_ref[...], z,
                          preferred_element_type=jnp.float32) + b3_ref[...])
    z = jnp.dot(w4_ref[...], z, preferred_element_type=jnp.float32) + b4_ref[...]
    # final 128 -> 1 projection; output is a lane-dense (1, tile) slab
    o_ref[...] = (jnp.dot(w5_ref[...], z, preferred_element_type=jnp.float32)
                  + b5_ref[...])


def fno_head(params, h_t, tile=256):
    n = h_t.shape[1]
    return pl.pallas_call(
        _head_kernel,
        out_shape=jax.ShapeDtypeStruct((1, n), jnp.float32),
        grid=(n // tile,),
        in_specs=[
            pl.BlockSpec((WIDTH, tile), lambda i: (0, i)),
            pl.BlockSpec((256, WIDTH), lambda i: (0, 0)),
            pl.BlockSpec((256, 1), lambda i: (0, 0)),
            pl.BlockSpec((128, 256), lambda i: (0, 0)),
            pl.BlockSpec((128, 1), lambda i: (0, 0)),
            pl.BlockSpec((128, 128), lambda i: (0, 0)),
            pl.BlockSpec((128, 1), lambda i: (0, 0)),
            pl.BlockSpec((1, 128), lambda i: (0, 0)),
            pl.BlockSpec((1, 1), lambda i: (0, 0)),
        ],
        out_specs=pl.BlockSpec((1, tile), lambda i: (0, i)),
        compiler_params=pltpu.CompilerParams(dimension_semantics=("parallel",)),
    )(h_t, params['fc1_wt'], params['fc1_b'], params['fc3_wt'], params['fc3_b'],
      params['fc4_wt'], params['fc4_b'], params['fc5_wt'], params['fc5_b'])


# --------------------------------------------------------------------------
# Parameters: synthetic init in torch-like shapes, packed ONCE for the kernels
# --------------------------------------------------------------------------

def init_params(key):
    keys = iter(jax.random.split(key, 128))

    def uni(shape, scale=0.1):
        return scale * jax.random.uniform(next(keys), shape, dtype=jnp.float32,
                                          minval=-1.0, maxval=1.0)

    p = {}
    p['fc0_w'] = uni((WIDTH, 4)); p['fc0_b'] = uni((WIDTH,))
    spec_scale = 1.0 / (WIDTH * WIDTH)
    for l in range(NLAYERS):
        for tag in ('w1', 'w2'):
            p[f'conv{l}_{tag}r'] = spec_scale * jax.random.uniform(
                next(keys), (WIDTH, WIDTH, MODES1, MODES2), dtype=jnp.float32)
            p[f'conv{l}_{tag}i'] = spec_scale * jax.random.uniform(
                next(keys), (WIDTH, WIDTH, MODES1, MODES2), dtype=jnp.float32)
        p[f'w{l}_w'] = uni((WIDTH, WIDTH)); p[f'w{l}_b'] = uni((WIDTH,))
        p[f'b{l}_w'] = uni((WIDTH, 2));     p[f'b{l}_b'] = uni((WIDTH,))
        p[f'c{l}_w'] = uni((WIDTH, 3));     p[f'c{l}_b'] = uni((WIDTH,))
    p['fc1_w'] = uni((256, WIDTH)); p['fc1_b'] = uni((256,))
    p['fc3_w'] = uni((128, 256));   p['fc3_b'] = uni((128,))
    p['fc4_w'] = uni((128, 128));   p['fc4_b'] = uni((128,))
    p['fc5_w'] = uni((1, 128));     p['fc5_b'] = uni((1,))
    return p


def make_dft_mats(hdim, wdim, m1, m2):
    # Truncated real-DFT matrices reproducing rfft2 + (:m1 / -m1:) x (:m2) mode
    # selection and the zero-padded irfft2 exactly (incl. 1/(H*W) and the factor-2
    # Hermitian weighting for ky>0; ky=Nyquist never kept since m2 <= W/2).
    kx = jnp.concatenate([jnp.arange(m1), jnp.arange(hdim - m1, hdim)]
                         ).astype(jnp.float32)                      # (2*m1,)
    ky = jnp.arange(m2, dtype=jnp.float32)                          # (m2,)
    hh = jnp.arange(hdim, dtype=jnp.float32)
    ww = jnp.arange(wdim, dtype=jnp.float32)
    ph_h = 2.0 * jnp.pi * kx[:, None] * hh[None, :] / hdim          # (2*m1, H)
    ph_w = 2.0 * jnp.pi * ky[:, None] * ww[None, :] / wdim          # (m2, W)
    phase = (ph_h[:, None, :, None] + ph_w[None, :, None, :]).reshape(
        2 * m1 * m2, hdim * wdim)                                   # (M, P)
    scale = jnp.tile(jnp.where(ky == 0, 1.0, 2.0), 2 * m1)[:, None]  # (M, 1)
    frT = jnp.cos(phase).T                                          # (P, M)
    fiT = (-jnp.sin(phase)).T                                       # (P, M)
    grT = scale * jnp.cos(phase) / float(hdim * wdim)               # (M, P)
    giT = scale * jnp.sin(phase) / float(hdim * wdim)               # (M, P)
    return frT, fiT, grT, giT


def pack_params(p, hdim, wdim):
    # One-time packing: weight transposes/concats and DFT matrices hoisted here.
    q = {}
    q['fc0_wt'] = p['fc0_w']                       # (out, in) = (32, 4)
    q['fc0_b'] = p['fc0_b'].reshape(WIDTH, 1)
    nm = MODES1 * MODES2
    swr, swi, ww, wbc, bias = [], [], [], [], []
    for l in range(NLAYERS):
        wr = jnp.concatenate([p[f'conv{l}_w1r'].reshape(WIDTH, WIDTH, nm),
                              p[f'conv{l}_w2r'].reshape(WIDTH, WIDTH, nm)],
                             axis=-1)              # (Cin, Cout, 72)
        wi = jnp.concatenate([p[f'conv{l}_w1i'].reshape(WIDTH, WIDTH, nm),
                              p[f'conv{l}_w2i'].reshape(WIDTH, WIDTH, nm)],
                             axis=-1)
        swr.append(wr); swi.append(wi)
        ww.append(p[f'w{l}_w'])                                        # (out, in)
        wbc.append(jnp.concatenate([p[f'b{l}_w'], p[f'c{l}_w']], axis=1))  # (32, 5)
        bias.append((p[f'w{l}_b'] + p[f'b{l}_b'] + p[f'c{l}_b']).reshape(WIDTH, 1))
    q['swr'] = jnp.stack(swr); q['swi'] = jnp.stack(swi)    # (6, 32, 32, 72)
    q['ww'] = jnp.stack(ww); q['wbc'] = jnp.stack(wbc); q['bias'] = jnp.stack(bias)
    q['fc1_wt'] = p['fc1_w']; q['fc1_b'] = p['fc1_b'].reshape(-1, 1)
    q['fc3_wt'] = p['fc3_w']; q['fc3_b'] = p['fc3_b'].reshape(-1, 1)
    q['fc4_wt'] = p['fc4_w']; q['fc4_b'] = p['fc4_b'].reshape(-1, 1)
    q['fc5_wt'] = p['fc5_w']; q['fc5_b'] = p['fc5_b'].reshape(1, 1)
    frT, fiT, grT, giT = make_dft_mats(hdim, wdim, MODES1, MODES2)
    q['frT'], q['fiT'], q['grT'], q['giT'] = frT, fiT, grT, giT
    return q


# --------------------------------------------------------------------------
# FNO2d forward
# --------------------------------------------------------------------------

def fno2d_forward(params, x):
    # x: (B, H, W, 4) float32 (channels-last, as fed to torch fc0)
    b, hdim, wdim, _ = x.shape
    n = b * hdim * wdim
    pspatial = hdim * wdim

    # Channels-major inputs (built once per call; columns ordered (b, h, w)).
    x_t = x.reshape(n, 4).T                                     # (4, N)
    gx = jnp.broadcast_to(
        jnp.linspace(0.0, 1.0, hdim, dtype=jnp.float32)[None, :, None, None],
        (b, hdim, wdim, 1))
    gy = jnp.broadcast_to(
        jnp.linspace(0.0, 1.0, wdim, dtype=jnp.float32)[None, None, :, None],
        (b, hdim, wdim, 1))
    gm = jnp.concatenate([gx, gy, x[..., 1:4]], axis=-1)        # (B, H, W, 5)
    gm_t = gm.reshape(n, 5).T                                   # (5, N)

    h_t = fno_trunk(params, x_t, gm_t, b, pspatial)             # (32, N)
    y_t = fno_head(params, h_t, tile=pspatial)                  # (1, N), lane-dense
    return y_t.reshape(b, hdim, wdim, 1)


# --------------------------------------------------------------------------

if __name__ == "__main__":
    key = jax.random.PRNGKey(0)
    key_p, key_x = jax.random.split(key)

    params = pack_params(init_params(key_p), 16, 16)
    x = jax.random.normal(key_x, (2, 16, 16, 4), dtype=jnp.float32)

    fwd = jax.jit(fno2d_forward)
    out = jax.block_until_ready(fwd(params, x))

    assert out.shape == (2, 16, 16, 1), out.shape
    assert out.dtype == jnp.float32
    assert bool(jnp.all(jnp.isfinite(out)))
    print("KERNEL_OK")
</pallas_src>

<mosaic_0001>
module attributes {stable_mosaic.version = 11 : i64} {
  func.func @_trunk_kernel(%arg0: i32, %arg1: i32, %arg2: memref<4x256xf32, #tpu.memory_space<vmem>>, %arg3: memref<5x256xf32, #tpu.memory_space<vmem>>, %arg4: memref<32x4xf32, #tpu.memory_space<vmem>>, %arg5: memref<32x1xf32, #tpu.memory_space<vmem>>, %arg6: memref<256x72xf32, #tpu.memory_space<vmem>>, %arg7: memref<256x72xf32, #tpu.memory_space<vmem>>, %arg8: memref<72x256xf32, #tpu.memory_space<vmem>>, %arg9: memref<72x256xf32, #tpu.memory_space<vmem>>, %arg10: memref<1x32x32x72xf32, #tpu.memory_space<vmem>>, %arg11: memref<1x32x32x72xf32, #tpu.memory_space<vmem>>, %arg12: memref<1x32x32xf32, #tpu.memory_space<vmem>>, %arg13: memref<1x32x5xf32, #tpu.memory_space<vmem>>, %arg14: memref<1x32x1xf32, #tpu.memory_space<vmem>>, %arg15: memref<32x256xf32, #tpu.memory_space<vmem>>, %arg16: memref<32x72xf32, #tpu.memory_space<vmem>>, %arg17: memref<32x72xf32, #tpu.memory_space<vmem>>) attributes {dimension_semantics = [#tpu.dimension_semantics<parallel>, #tpu.dimension_semantics<arbitrary>], iteration_bounds = array<i64: 2, 6>, scalar_prefetch = 0 : i64, scratch_operands = 2 : i64, tpu.core_type = #tpu.core_type<tc>, window_params = [{transform_indices = @transform_0, window_bounds = array<i64: 4, 256>}, {transform_indices = @transform_1, window_bounds = array<i64: 5, 256>}, {pipeline_mode = #tpu.pipeline_mode<synchronous>, transform_indices = @transform_2, window_bounds = array<i64: 32, 4>}, {pipeline_mode = #tpu.pipeline_mode<synchronous>, transform_indices = @transform_3, window_bounds = array<i64: 32, 1>}, {pipeline_mode = #tpu.pipeline_mode<synchronous>, transform_indices = @transform_4, window_bounds = array<i64: 256, 72>}, {pipeline_mode = #tpu.pipeline_mode<synchronous>, transform_indices = @transform_5, window_bounds = array<i64: 256, 72>}, {pipeline_mode = #tpu.pipeline_mode<synchronous>, transform_indices = @transform_6, window_bounds = array<i64: 72, 256>}, {pipeline_mode = #tpu.pipeline_mode<synchronous>, transform_indices = @transform_7, window_bounds = array<i64: 72, 256>}, {transform_indices = @transform_8, window_bounds = array<i64: 1, 32, 32, 72>}, {transform_indices = @transform_9, window_bounds = array<i64: 1, 32, 32, 72>}, {transform_indices = @transform_10, window_bounds = array<i64: 1, 32, 32>}, {transform_indices = @transform_11, window_bounds = array<i64: 1, 32, 5>}, {transform_indices = @transform_12, window_bounds = array<i64: 1, 32, 1>}, {transform_indices = @transform_13, window_bounds = array<i64: 32, 256>}]} {
    %c0_i32 = arith.constant 0 : i32
    %0 = arith.cmpi eq, %arg1, %c0_i32 : i32
    %1 = arith.extui %0 : i1 to i32
    %c0_i32_0 = arith.constant 0 : i32
    %2 = arith.cmpi ne, %1, %c0_i32_0 : i32
    scf.if %2 {
      %c0_402 = arith.constant 0 : index
      %c0_403 = arith.constant 0 : index
      %647 = vector.load %arg4[%c0_402, %c0_403] : memref<32x4xf32, #tpu.memory_space<vmem>>, vector<32x4xf32>
      %c0_404 = arith.constant 0 : index
      %c0_405 = arith.constant 0 : index
      %648 = vector.load %arg2[%c0_404, %c0_405] : memref<4x256xf32, #tpu.memory_space<vmem>>, vector<4x256xf32>
      %cst_406 = arith.constant dense<0.000000e+00> : vector<32x256xf32>
      %649 = tpu.matmul %647, %648, %cst_406 {dimension_numbers = #tpu.dot_dimension_numbers<[1], [0], [0], [1], [0, 0, 1, 1], [], []>} : vector<32x4xf32>, vector<4x256xf32>, vector<32x256xf32> -> vector<32x256xf32>
      %c0_407 = arith.constant 0 : index
      %c0_408 = arith.constant 0 : index
      %650 = vector.load %arg5[%c0_407, %c0_408] : memref<32x1xf32, #tpu.memory_space<vmem>>, vector<32x1xf32>
      %651 = vector.broadcast %650 : vector<32x1xf32> to vector<32x256xf32>
      %652 = arith.addf %649, %651 : vector<32x256xf32>
      %c0_409 = arith.constant 0 : index
      %c0_410 = arith.constant 0 : index
      %653 = vector.load %arg15[%c0_409, %c0_410] : memref<32x256xf32, #tpu.memory_space<vmem>>, vector<32x256xf32>
      tpu.vector_store %arg15[%c0_409, %c0_410], %652 {strides = array<i32>} : memref<32x256xf32, #tpu.memory_space<vmem>>, vector<32x256xf32>,
    } else {
    }
    %c0 = arith.constant 0 : index
    %c0_1 = arith.constant 0 : index
    %3 = vector.load %arg15[%c0, %c0_1] : memref<32x256xf32, #tpu.memory_space<vmem>>, vector<32x256xf32>
    %c0_2 = arith.constant 0 : index
    %c0_3 = arith.constant 0 : index
    %4 = vector.load %arg6[%c0_2, %c0_3] : memref<256x72xf32, #tpu.memory_space<vmem>>, vector<256x72xf32>
    %cst = arith.constant dense<0.000000e+00> : vector<32x72xf32>
    %5 = tpu.matmul %3, %4, %cst {dimension_numbers = #tpu.dot_dimension_numbers<[1], [0], [0], [1], [0, 0, 1, 1], [], []>} : vector<32x256xf32>, vector<256x72xf32>, vector<32x72xf32> -> vector<32x72xf32>
    %c0_4 = arith.constant 0 : index
    %c0_5 = arith.constant 0 : index
    %6 = vector.load %arg16[%c0_4, %c0_5] : memref<32x72xf32, #tpu.memory_space<vmem>>, vector<32x72xf32>
    tpu.vector_store %arg16[%c0_4, %c0_5], %5 {strides = array<i32>} : memref<32x72xf32, #tpu.memory_space<vmem>>, vector<32x72xf32>,
    %c0_6 = arith.constant 0 : index
    %c0_7 = arith.constant 0 : index
    %7 = vector.load %arg7[%c0_6, %c0_7] : memref<256x72xf32, #tpu.memory_space<vmem>>, vector<256x72xf32>
    %cst_8 = arith.constant dense<0.000000e+00> : vector<32x72xf32>
    %8 = tpu.matmul %3, %7, %cst_8 {dimension_numbers = #tpu.dot_dimension_numbers<[1], [0], [0], [1], [0, 0, 1, 1], [], []>} : vector<32x256xf32>, vector<256x72xf32>, vector<32x72xf32> -> vector<32x72xf32>
    %c0_9 = arith.constant 0 : index
    %c0_10 = arith.constant 0 : index
    %9 = vector.load %arg17[%c0_9, %c0_10] : memref<32x72xf32, #tpu.memory_space<vmem>>, vector<32x72xf32>
    tpu.vector_store %arg17[%c0_9, %c0_10], %8 {strides = array<i32>} : memref<32x72xf32, #tpu.memory_space<vmem>>, vector<32x72xf32>,
    %cst_11 = arith.constant 0.000000e+00 : f32
    %10 = vector.broadcast %cst_11 : f32 to vector<32x72xf32>
    %cst_12 = arith.constant 0.000000e+00 : f32
    %11 = vector.broadcast %cst_12 : f32 to vector<32x72xf32>
    %c0_13 = arith.constant 0 : index
    %c0_14 = arith.constant 0 : index
    %12 = vector.load %arg16[%c0_13, %c0_14] : memref<32x72xf32, #tpu.memory_space<vmem>>, vector<1x72xf32>
    %c0_15 = arith.constant 0 : index
    %c0_16 = arith.constant 0 : index
    %13 = vector.load %arg17[%c0_15, %c0_16] : memref<32x72xf32, #tpu.memory_space<vmem>>, vector<1x72xf32>
    %c0_17 = arith.constant 0 : index
    %c0_18 = arith.constant 0 : index
    %c0_19 = arith.constant 0 : index
    %c0_20 = arith.constant 0 : index
    %14 = vector.load %arg10[%c0_17, %c0_18, %c0_19, %c0_20] : memref<1x32x32x72xf32, #tpu.memory_space<vmem>>, vector<1x1x32x72xf32>
    %15 = vector.shape_cast %14 : vector<1x1x32x72xf32> to vector<32x72xf32>
    %c0_21 = arith.constant 0 : index
    %c0_22 = arith.constant 0 : index
    %c0_23 = arith.constant 0 : index
    %c0_24 = arith.constant 0 : index
    %16 = vector.load %arg11[%c0_21, %c0_22, %c0_23, %c0_24] : memref<1x32x32x72xf32, #tpu.memory_space<vmem>>, vector<1x1x32x72xf32>
    %17 = vector.shape_cast %16 : vector<1x1x32x72xf32> to vector<32x72xf32>
    %18 = vector.broadcast %12 : vector<1x72xf32> to vector<32x72xf32>
    %19 = arith.mulf %15, %18 : vector<32x72xf32>
    %20 = arith.addf %10, %19 : vector<32x72xf32>
    %21 = vector.broadcast %13 : vector<1x72xf32> to vector<32x72xf32>
    %22 = arith.mulf %17, %21 : vector<32x72xf32>
    %23 = arith.subf %20, %22 : vector<32x72xf32>
    %24 = vector.broadcast %13 : vector<1x72xf32> to vector<32x72xf32>
    %25 = arith.mulf %15, %24 : vector<32x72xf32>
    %26 = arith.addf %11, %25 : vector<32x72xf32>
    %27 = vector.broadcast %12 : vector<1x72xf32> to vector<32x72xf32>
    %28 = arith.mulf %17, %27 : vector<32x72xf32>
    %29 = arith.addf %26, %28 : vector<32x72xf32>
    %c1 = arith.constant 1 : index
    %c0_25 = arith.constant 0 : index
    %30 = vector.load %arg16[%c1, %c0_25] : memref<32x72xf32, #tpu.memory_space<vmem>>, vector<1x72xf32>
    %c1_26 = arith.constant 1 : index
    %c0_27 = arith.constant 0 : index
    %31 = vector.load %arg17[%c1_26, %c0_27] : memref<32x72xf32, #tpu.memory_space<vmem>>, vector<1x72xf32>
    %c0_28 = arith.constant 0 : index
    %c1_29 = arith.constant 1 : index
    %c0_30 = arith.constant 0 : index
    %c0_31 = arith.constant 0 : index
    %32 = vector.load %arg10[%c0_28, %c1_29, %c0_30, %c0_31] : memref<1x32x32x72xf32, #tpu.memory_space<vmem>>, vector<1x1x32x72xf32>
    %33 = vector.shape_cast %32 : vector<1x1x32x72xf32> to vector<32x72xf32>
    %c0_32 = arith.constant 0 : index
    %c1_33 = arith.constant 1 : index
    %c0_34 = arith.constant 0 : index
    %c0_35 = arith.constant 0 : index
    %34 = vector.load %arg11[%c0_32, %c1_33, %c0_34, %c0_35] : memref<1x32x32x72xf32, #tpu.memory_space<vmem>>, vector<1x1x32x72xf32>
    %35 = vector.shape_cast %34 : vector<1x1x32x72xf32> to vector<32x72xf32>
    %36 = vector.broadcast %30 : vector<1x72xf32> to vector<32x72xf32>
    %37 = arith.mulf %33, %36 : vector<32x72xf32>
    %38 = arith.addf %23, %37 : vector<32x72xf32>
    %39 = vector.broadcast %31 : vector<1x72xf32> to vector<32x72xf32>
    %40 = arith.mulf %35, %39 : vector<32x72xf32>
    %41 = arith.subf %38, %40 : vector<32x72xf32>
    %42 = vector.broadcast %31 : vector<1x72xf32> to vector<32x72xf32>
    %43 = arith.mulf %33, %42 : vector<32x72xf32>
    %44 = arith.addf %29, %43 : vector<32x72xf32>
    %45 = vector.broadcast %30 : vector<1x72xf32> to vector<32x72xf32>
    %46 = arith.mulf %35, %45 : vector<32x72xf32>
    %47 = arith.addf %44, %46 : vector<32x72xf32>
    %c2 = arith.constant 2 : index
    %c0_36 = arith.constant 0 : index
    %48 = vector.load %arg16[%c2, %c0_36] : memref<32x72xf32, #tpu.memory_space<vmem>>, vector<1x72xf32>
    %c2_37 = arith.constant 2 : index
    %c0_38 = arith.constant 0 : index
    %49 = vector.load %arg17[%c2_37, %c0_38] : memref<32x72xf32, #tpu.memory_space<vmem>>, vector<1x72xf32>
    %c0_39 = arith.constant 0 : index
    %c2_40 = arith.constant 2 : index
    %c0_41 = arith.constant 0 : index
    %c0_42 = arith.constant 0 : index
    %50 = vector.load %arg10[%c0_39, %c2_40, %c0_41, %c0_42] : memref<1x32x32x72xf32, #tpu.memory_space<vmem>>, vector<1x1x32x72xf32>
    %51 = vector.shape_cast %50 : vector<1x1x32x72xf32> to vector<32x72xf32>
    %c0_43 = arith.constant 0 : index
    %c2_44 = arith.constant 2 : index
    %c0_45 = arith.constant 0 : index
    %c0_46 = arith.constant 0 : index
    %52 = vector.load %arg11[%c0_43, %c2_44, %c0_45, %c0_46] : memref<1x32x32x72xf32, #tpu.memory_space<vmem>>, vector<1x1x32x72xf32>
    %53 = vector.shape_cast %52 : vector<1x1x32x72xf32> to vector<32x72xf32>
    %54 = vector.broadcast %48 : vector<1x72xf32> to vector<32x72xf32>
    %55 = arith.mulf %51, %54 : vector<32x72xf32>
    %56 = arith.addf %41, %55 : vector<32x72xf32>
    %57 = vector.broadcast %49 : vector<1x72xf32> to vector<32x72xf32>
    %58 = arith.mulf %53, %57 : vector<32x72xf32>
    %59 = arith.subf %56, %58 : vector<32x72xf32>
    %60 = vector.broadcast %49 : vector<1x72xf32> to vector<32x72xf32>
    %61 = arith.mulf %51, %60 : vector<32x72xf32>
    %62 = arith.addf %47, %61 : vector<32x72xf32>
    %63 = vector.broadcast %48 : vector<1x72xf32> to vector<32x72xf32>
    %64 = arith.mulf %53, %63 : vector<32x72xf32>
    %65 = arith.addf %62, %64 : vector<32x72xf32>
    %c3 = arith.constant 3 : index
    %c0_47 = arith.constant 0 : index
    %66 = vector.load %arg16[%c3, %c0_47] : memref<32x72xf32, #tpu.memory_space<vmem>>, vector<1x72xf32>
    %c3_48 = arith.constant 3 : index
    %c0_49 = arith.constant 0 : index
    %67 = vector.load %arg17[%c3_48, %c0_49] : memref<32x72xf32, #tpu.memory_space<vmem>>, vector<1x72xf32>
    %c0_50 = arith.constant 0 : index
    %c3_51 = arith.constant 3 : index
    %c0_52 = arith.constant 0 : index
    %c0_53 = arith.constant 0 : index
    %68 = vector.load %arg10[%c0_50, %c3_51, %c0_52, %c0_53] : memref<1x32x32x72xf32, #tpu.memory_space<vmem>>, vector<1x1x32x72xf32>
    %69 = vector.shape_cast %68 : vector<1x1x32x72xf32> to vector<32x72xf32>
    %c0_54 = arith.constant 0 : index
    %c3_55 = arith.constant 3 : index
    %c0_56 = arith.constant 0 : index
    %c0_57 = arith.constant 0 : index
    %70 = vector.load %arg11[%c0_54, %c3_55, %c0_56, %c0_57] : memref<1x32x32x72xf32, #tpu.memory_space<vmem>>, vector<1x1x32x72xf32>
    %71 = vector.shape_cast %70 : vector<1x1x32x72xf32> to vector<32x72xf32>
    %72 = vector.broadcast %66 : vector<1x72xf32> to vector<32x72xf32>
    %73 = arith.mulf %69, %72 : vector<32x72xf32>
    %74 = arith.addf %59, %73 : vector<32x72xf32>
    %75 = vector.broadcast %67 : vector<1x72xf32> to vector<32x72xf32>
    %76 = arith.mulf %71, %75 : vector<32x72xf32>
    %77 = arith.subf %74, %76 : vector<32x72xf32>
    %78 = vector.broadcast %67 : vector<1x72xf32> to vector<32x72xf32>
    %79 = arith.mulf %69, %78 : vector<32x72xf32>
    %80 = arith.addf %65, %79 : vector<32x72xf32>
    %81 = vector.broadcast %66 : vector<1x72xf32> to vector<32x72xf32>
    %82 = arith.mulf %71, %81 : vector<32x72xf32>
    %83 = arith.addf %80, %82 : vector<32x72xf32>
    %c4 = arith.constant 4 : index
    %c0_58 = arith.constant 0 : index
    %84 = vector.load %arg16[%c4, %c0_58] : memref<32x72xf32, #tpu.memory_space<vmem>>, vector<1x72xf32>
    %c4_59 = arith.constant 4 : index
    %c0_60 = arith.constant 0 : index
    %85 = vector.load %arg17[%c4_59, %c0_60] : memref<32x72xf32, #tpu.memory_space<vmem>>, vector<1x72xf32>
    %c0_61 = arith.constant 0 : index
    %c4_62 = arith.constant 4 : index
    %c0_63 = arith.constant 0 : index
    %c0_64 = arith.constant 0 : index
    %86 = vector.load %arg10[%c0_61, %c4_62, %c0_63, %c0_64] : memref<1x32x32x72xf32, #tpu.memory_space<vmem>>, vector<1x1x32x72xf32>
    %87 = vector.shape_cast %86 : vector<1x1x32x72xf32> to vector<32x72xf32>
    %c0_65 = arith.constant 0 : index
    %c4_66 = arith.constant 4 : index
    %c0_67 = arith.constant 0 : index
    %c0_68 = arith.constant 0 : index
    %88 = vector.load %arg11[%c0_65, %c4_66, %c0_67, %c0_68] : memref<1x32x32x72xf32, #tpu.memory_space<vmem>>, vector<1x1x32x72xf32>
    %89 = vector.shape_cast %88 : vector<1x1x32x72xf32> to vector<32x72xf32>
    %90 = vector.broadcast %84 : vector<1x72xf32> to vector<32x72xf32>
    %91 = arith.mulf %87, %90 : vector<32x72xf32>
    %92 = arith.addf %77, %91 : vector<32x72xf32>
    %93 = vector.broadcast %85 : vector<1x72xf32> to vector<32x72xf32>
    %94 = arith.mulf %89, %93 : vector<32x72xf32>
    %95 = arith.subf %92, %94 : vector<32x72xf32>
    %96 = vector.broadcast %85 : vector<1x72xf32> to vector<32x72xf32>
    %97 = arith.mulf %87, %96 : vector<32x72xf32>
    %98 = arith.addf %83, %97 : vector<32x72xf32>
    %99 = vector.broadcast %84 : vector<1x72xf32> to vector<32x72xf32>
    %100 = arith.mulf %89, %99 : vector<32x72xf32>
    %101 = arith.addf %98, %100 : vector<32x72xf32>
    %c5 = arith.constant 5 : index
    %c0_69 = arith.constant 0 : index
    %102 = vector.load %arg16[%c5, %c0_69] : memref<32x72xf32, #tpu.memory_space<vmem>>, vector<1x72xf32>
    %c5_70 = arith.constant 5 : index
    %c0_71 = arith.constant 0 : index
    %103 = vector.load %arg17[%c5_70, %c0_71] : memref<32x72xf32, #tpu.memory_space<vmem>>, vector<1x72xf32>
    %c0_72 = arith.constant 0 : index
    %c5_73 = arith.constant 5 : index
    %c0_74 = arith.constant 0 : index
    %c0_75 = arith.constant 0 : index
    %104 = vector.load %arg10[%c0_72, %c5_73, %c0_74, %c0_75] : memref<1x32x32x72xf32, #tpu.memory_space<vmem>>, vector<1x1x32x72xf32>
    %105 = vector.shape_cast %104 : vector<1x1x32x72xf32> to vector<32x72xf32>
    %c0_76 = arith.constant 0 : index
    %c5_77 = arith.constant 5 : index
    %c0_78 = arith.constant 0 : index
    %c0_79 = arith.constant 0 : index
    %106 = vector.load %arg11[%c0_76, %c5_77, %c0_78, %c0_79] : memref<1x32x32x72xf32, #tpu.memory_space<vmem>>, vector<1x1x32x72xf32>
    %107 = vector.shape_cast %106 : vector<1x1x32x72xf32> to vector<32x72xf32>
    %108 = vector.broadcast %102 : vector<1x72xf32> to vector<32x72xf32>
    %109 = arith.mulf %105, %108 : vector<32x72xf32>
    %110 = arith.addf %95, %109 : vector<32x72xf32>
    %111 = vector.broadcast %103 : vector<1x72xf32> to vector<32x72xf32>
    %112 = arith.mulf %107, %111 : vector<32x72xf32>
    %113 = arith.subf %110, %112 : vector<32x72xf32>
    %114 = vector.broadcast %103 : vector<1x72xf32> to vector<32x72xf32>
    %115 = arith.mulf %105, %114 : vector<32x72xf32>
    %116 = arith.addf %101, %115 : vector<32x72xf32>
    %117 = vector.broadcast %102 : vector<1x72xf32> to vector<32x72xf32>
    %118 = arith.mulf %107, %117 : vector<32x72xf32>
    %119 = arith.addf %116, %118 : vector<32x72xf32>
    %c6 = arith.constant 6 : index
    %c0_80 = arith.constant 0 : index
    %120 = vector.load %arg16[%c6, %c0_80] : memref<32x72xf32, #tpu.memory_space<vmem>>, vector<1x72xf32>
    %c6_81 = arith.constant 6 : index
    %c0_82 = arith.constant 0 : index
    %121 = vector.load %arg17[%c6_81, %c0_82] : memref<32x72xf32, #tpu.memory_space<vmem>>, vector<1x72xf32>
    %c0_83 = arith.constant 0 : index
    %c6_84 = arith.constant 6 : index
    %c0_85 = arith.constant 0 : index
    %c0_86 = arith.constant 0 : index
    %122 = vector.load %arg10[%c0_83, %c6_84, %c0_85, %c0_86] : memref<1x32x32x72xf32, #tpu.memory_space<vmem>>, vector<1x1x32x72xf32>
    %123 = vector.shape_cast %122 : vector<1x1x32x72xf32> to vector<32x72xf32>
    %c0_87 = arith.constant 0 : index
    %c6_88 = arith.constant 6 : index
    %c0_89 = arith.constant 0 : index
    %c0_90 = arith.constant 0 : index
    %124 = vector.load %arg11[%c0_87, %c6_88, %c0_89, %c0_90] : memref<1x32x32x72xf32, #tpu.memory_space<vmem>>, vector<1x1x32x72xf32>
    %125 = vector.shape_cast %124 : vector<1x1x32x72xf32> to vector<32x72xf32>
    %126 = vector.broadcast %120 : vector<1x72xf32> to vector<32x72xf32>
    %127 = arith.mulf %123, %126 : vector<32x72xf32>
    %128 = arith.addf %113, %127 : vector<32x72xf32>
    %129 = vector.broadcast %121 : vector<1x72xf32> to vector<32x72xf32>
    %130 = arith.mulf %125, %129 : vector<32x72xf32>
    %131 = arith.subf %128, %130 : vector<32x72xf32>
    %132 = vector.broadcast %121 : vector<1x72xf32> to vector<32x72xf32>
    %133 = arith.mulf %123, %132 : vector<32x72xf32>
    %134 = arith.addf %119, %133 : vector<32x72xf32>
    %135 = vector.broadcast %120 : vector<1x72xf32> to vector<32x72xf32>
    %136 = arith.mulf %125, %135 : vector<32x72xf32>
    %137 = arith.addf %134, %136 : vector<32x72xf32>
    %c7 = arith.constant 7 : index
    %c0_91 = arith.constant 0 : index
    %138 = vector.load %arg16[%c7, %c0_91] : memref<32x72xf32, #tpu.memory_space<vmem>>, vector<1x72xf32>
    %c7_92 = arith.constant 7 : index
    %c0_93 = arith.constant 0 : index
    %139 = vector.load %arg17[%c7_92, %c0_93] : memref<32x72xf32, #tpu.memory_space<vmem>>, vector<1x72xf32>
    %c0_94 = arith.constant 0 : index
    %c7_95 = arith.constant 7 : index
    %c0_96 = arith.constant 0 : index
    %c0_97 = arith.constant 0 : index
    %140 = vector.load %arg10[%c0_94, %c7_95, %c0_96, %c0_97] : memref<1x32x32x72xf32, #tpu.memory_space<vmem>>, vector<1x1x32x72xf32>
    %141 = vector.shape_cast %140 : vector<1x1x32x72xf32> to vector<32x72xf32>
    %c0_98 = arith.constant 0 : index
    %c7_99 = arith.constant 7 : index
    %c0_100 = arith.constant 0 : index
    %c0_101 = arith.constant 0 : index
    %142 = vector.load %arg11[%c0_98, %c7_99, %c0_100, %c0_101] : memref<1x32x32x72xf32, #tpu.memory_space<vmem>>, vector<1x1x32x72xf32>
    %143 = vector.shape_cast %142 : vector<1x1x32x72xf32> to vector<32x72xf32>
    %144 = vector.broadcast %138 : vector<1x72xf32> to vector<32x72xf32>
    %145 = arith.mulf %141, %144 : vector<32x72xf32>
    %146 = arith.addf %131, %145 : vector<32x72xf32>
    %147 = vector.broadcast %139 : vector<1x72xf32> to vector<32x72xf32>
    %148 = arith.mulf %143, %147 : vector<32x72xf32>
    %149 = arith.subf %146, %148 : vector<32x72xf32>
    %150 = vector.broadcast %139 : vector<1x72xf32> to vector<32x72xf32>
    %151 = arith.mulf %141, %150 : vector<32x72xf32>
    %152 = arith.addf %137, %151 : vector<32x72xf32>
    %153 = vector.broadcast %138 : vector<1x72xf32> to vector<32x72xf32>
    %154 = arith.mulf %143, %153 : vector<32x72xf32>
    %155 = arith.addf %152, %154 : vector<32x72xf32>
    %c8 = arith.constant 8 : index
    %c0_102 = arith.constant 0 : index
    %156 = vector.load %arg16[%c8, %c0_102] : memref<32x72xf32, #tpu.memory_space<vmem>>, vector<1x72xf32>
    %c8_103 = arith.constant 8 : index
    %c0_104 = arith.constant 0 : index
    %157 = vector.load %arg17[%c8_103, %c0_104] : memref<32x72xf32, #tpu.memory_space<vmem>>, vector<1x72xf32>
    %c0_105 = arith.constant 0 : index
    %c8_106 = arith.constant 8 : index
    %c0_107 = arith.constant 0 : index
    %c0_108 = arith.constant 0 : index
    %158 = vector.load %arg10[%c0_105, %c8_106, %c0_107, %c0_108] : memref<1x32x32x72xf32, #tpu.memory_space<vmem>>, vector<1x1x32x72xf32>
    %159 = vector.shape_cast %158 : vector<1x1x32x72xf32> to vector<32x72xf32>
    %c0_109 = arith.constant 0 : index
    %c8_110 = arith.constant 8 : index
    %c0_111 = arith.constant 0 : index
    %c0_112 = arith.constant 0 : index
    %160 = vector.load %arg11[%c0_109, %c8_110, %c0_111, %c0_112] : memref<1x32x32x72xf32, #tpu.memory_space<vmem>>, vector<1x1x32x72xf32>
    %161 = vector.shape_cast %160 : vector<1x1x32x72xf32> to vector<32x72xf32>
    %162 = vector.broadcast %156 : vector<1x72xf32> to vector<32x72xf32>
    %163 = arith.mulf %159, %162 : vector<32x72xf32>
    %164 = arith.addf %149, %163 : vector<32x72xf32>
    %165 = vector.broadcast %157 : vector<1x72xf32> to vector<32x72xf32>
    %166 = arith.mulf %161, %165 : vector<32x72xf32>
    %167 = arith.subf %164, %166 : vector<32x72xf32>
    %168 = vector.broadcast %157 : vector<1x72xf32> to vector<32x72xf32>
    %169 = arith.mulf %159, %168 : vector<32x72xf32>
    %170 = arith.addf %155, %169 : vector<32x72xf32>
    %171 = vector.broadcast %156 : vector<1x72xf32> to vector<32x72xf32>
    %172 = arith.mulf %161, %171 : vector<32x72xf32>
    %173 = arith.addf %170, %172 : vector<32x72xf32>
    %c9 = arith.constant 9 : index
    %c0_113 = arith.constant 0 : index
    %174 = vector.load %arg16[%c9, %c0_113] : memref<32x72xf32, #tpu.memory_space<vmem>>, vector<1x72xf32>
    %c9_114 = arith.constant 9 : index
    %c0_115 = arith.constant 0 : index
    %175 = vector.load %arg17[%c9_114, %c0_115] : memref<32x72xf32, #tpu.memory_space<vmem>>, vector<1x72xf32>
    %c0_116 = arith.constant 0 : index
    %c9_117 = arith.constant 9 : index
    %c0_118 = arith.constant 0 : index
    %c0_119 = arith.constant 0 : index
    %176 = vector.load %arg10[%c0_116, %c9_117, %c0_118, %c0_119] : memref<1x32x32x72xf32, #tpu.memory_space<vmem>>, vector<1x1x32x72xf32>
    %177 = vector.shape_cast %176 : vector<1x1x32x72xf32> to vector<32x72xf32>
    %c0_120 = arith.constant 0 : index
    %c9_121 = arith.constant 9 : index
    %c0_122 = arith.constant 0 : index
    %c0_123 = arith.constant 0 : index
    %178 = vector.load %arg11[%c0_120, %c9_121, %c0_122, %c0_123] : memref<1x32x32x72xf32, #tpu.memory_space<vmem>>, vector<1x1x32x72xf32>
    %179 = vector.shape_cast %178 : vector<1x1x32x72xf32> to vector<32x72xf32>
    %180 = vector.broadcast %174 : vector<1x72xf32> to vector<32x72xf32>
    %181 = arith.mulf %177, %180 : vector<32x72xf32>
    %182 = arith.addf %167, %181 : vector<32x72xf32>
    %183 = vector.broadcast %175 : vector<1x72xf32> to vector<32x72xf32>
    %184 = arith.mulf %179, %183 : vector<32x72xf32>
    %185 = arith.subf %182, %184 : vector<32x72xf32>
    %186 = vector.broadcast %175 : vector<1x72xf32> to vector<32x72xf32>
    %187 = arith.mulf %177, %186 : vector<32x72xf32>
    %188 = arith.addf %173, %187 : vector<32x72xf32>
    %189 = vector.broadcast %174 : vector<1x72xf32> to vector<32x72xf32>
    %190 = arith.mulf %179, %189 : vector<32x72xf32>
    %191 = arith.addf %188, %190 : vector<32x72xf32>
    %c10 = arith.constant 10 : index
    %c0_124 = arith.constant 0 : index
    %192 = vector.load %arg16[%c10, %c0_124] : memref<32x72xf32, #tpu.memory_space<vmem>>, vector<1x72xf32>
    %c10_125 = arith.constant 10 : index
    %c0_126 = arith.constant 0 : index
    %193 = vector.load %arg17[%c10_125, %c0_126] : memref<32x72xf32, #tpu.memory_space<vmem>>, vector<1x72xf32>
    %c0_127 = arith.constant 0 : index
    %c10_128 = arith.constant 10 : index
    %c0_129 = arith.constant 0 : index
    %c0_130 = arith.constant 0 : index
    %194 = vector.load %arg10[%c0_127, %c10_128, %c0_129, %c0_130] : memref<1x32x32x72xf32, #tpu.memory_space<vmem>>, vector<1x1x32x72xf32>
    %195 = vector.shape_cast %194 : vector<1x1x32x72xf32> to vector<32x72xf32>
    %c0_131 = arith.constant 0 : index
    %c10_132 = arith.constant 10 : index
    %c0_133 = arith.constant 0 : index
    %c0_134 = arith.constant 0 : index
    %196 = vector.load %arg11[%c0_131, %c10_132, %c0_133, %c0_134] : memref<1x32x32x72xf32, #tpu.memory_space<vmem>>, vector<1x1x32x72xf32>
    %197 = vector.shape_cast %196 : vector<1x1x32x72xf32> to vector<32x72xf32>
    %198 = vector.broadcast %192 : vector<1x72xf32> to vector<32x72xf32>
    %199 = arith.mulf %195, %198 : vector<32x72xf32>
    %200 = arith.addf %185, %199 : vector<32x72xf32>
    %201 = vector.broadcast %193 : vector<1x72xf32> to vector<32x72xf32>
    %202 = arith.mulf %197, %201 : vector<32x72xf32>
    %203 = arith.subf %200, %202 : vector<32x72xf32>
    %204 = vector.broadcast %193 : vector<1x72xf32> to vector<32x72xf32>
    %205 = arith.mulf %195, %204 : vector<32x72xf32>
    %206 = arith.addf %191, %205 : vector<32x72xf32>
    %207 = vector.broadcast %192 : vector<1x72xf32> to vector<32x72xf32>
    %208 = arith.mulf %197, %207 : vector<32x72xf32>
    %209 = arith.addf %206, %208 : vector<32x72xf32>
    %c11 = arith.constant 11 : index
    %c0_135 = arith.constant 0 : index
    %210 = vector.load %arg16[%c11, %c0_135] : memref<32x72xf32, #tpu.memory_space<vmem>>, vector<1x72xf32>
    %c11_136 = arith.constant 11 : index
    %c0_137 = arith.constant 0 : index
    %211 = vector.load %arg17[%c11_136, %c0_137] : memref<32x72xf32, #tpu.memory_space<vmem>>, vector<1x72xf32>
    %c0_138 = arith.constant 0 : index
    %c11_139 = arith.constant 11 : index
    %c0_140 = arith.constant 0 : index
    %c0_141 = arith.constant 0 : index
    %212 = vector.load %arg10[%c0_138, %c11_139, %c0_140, %c0_141] : memref<1x32x32x72xf32, #tpu.memory_space<vmem>>, vector<1x1x32x72xf32>
    %213 = vector.shape_cast %212 : vector<1x1x32x72xf32> to vector<32x72xf32>
    %c0_142 = arith.constant 0 : index
    %c11_143 = arith.constant 11 : index
    %c0_144 = arith.constant 0 : index
    %c0_145 = arith.constant 0 : index
    %214 = vector.load %arg11[%c0_142, %c11_143, %c0_144, %c0_145] : memref<1x32x32x72xf32, #tpu.memory_space<vmem>>, vector<1x1x32x72xf32>
    %215 = vector.shape_cast %214 : vector<1x1x32x72xf32> to vector<32x72xf32>
    %216 = vector.broadcast %210 : vector<1x72xf32> to vector<32x72xf32>
    %217 = arith.mulf %213, %216 : vector<32x72xf32>
    %218 = arith.addf %203, %217 : vector<32x72xf32>
    %219 = vector.broadcast %211 : vector<1x72xf32> to vector<32x72xf32>
    %220 = arith.mulf %215, %219 : vector<32x72xf32>
    %221 = arith.subf %218, %220 : vector<32x72xf32>
    %222 = vector.broadcast %211 : vector<1x72xf32> to vector<32x72xf32>
    %223 = arith.mulf %213, %222 : vector<32x72xf32>
    %224 = arith.addf %209, %223 : vector<32x72xf32>
    %225 = vector.broadcast %210 : vector<1x72xf32> to vector<32x72xf32>
    %226 = arith.mulf %215, %225 : vector<32x72xf32>
    %227 = arith.addf %224, %226 : vector<32x72xf32>
    %c12 = arith.constant 12 : index
    %c0_146 = arith.constant 0 : index
    %228 = vector.load %arg16[%c12, %c0_146] : memref<32x72xf32, #tpu.memory_space<vmem>>, vector<1x72xf32>
    %c12_147 = arith.constant 12 : index
    %c0_148 = arith.constant 0 : index
    %229 = vector.load %arg17[%c12_147, %c0_148] : memref<32x72xf32, #tpu.memory_space<vmem>>, vector<1x72xf32>
    %c0_149 = arith.constant 0 : index
    %c12_150 = arith.constant 12 : index
    %c0_151 = arith.constant 0 : index
    %c0_152 = arith.constant 0 : index
    %230 = vector.load %arg10[%c0_149, %c12_150, %c0_151, %c0_152] : memref<1x32x32x72xf32, #tpu.memory_space<vmem>>, vector<1x1x32x72xf32>
    %231 = vector.shape_cast %230 : vector<1x1x32x72xf32> to vector<32x72xf32>
    %c0_153 = arith.constant 0 : index
    %c12_154 = arith.constant 12 : index
    %c0_155 = arith.constant 0 : index
    %c0_156 = arith.constant 0 : index
    %232 = vector.load %arg11[%c0_153, %c12_154, %c0_155, %c0_156] : memref<1x32x32x72xf32, #tpu.memory_space<vmem>>, vector<1x1x32x72xf32>
    %233 = vector.shape_cast %232 : vector<1x1x32x72xf32> to vector<32x72xf32>
    %234 = vector.broadcast %228 : vector<1x72xf32> to vector<32x72xf32>
    %235 = arith.mulf %231, %234 : vector<32x72xf32>
    %236 = arith.addf %221, %235 : vector<32x72xf32>
    %237 = vector.broadcast %229 : vector<1x72xf32> to vector<32x72xf32>
    %238 = arith.mulf %233, %237 : vector<32x72xf32>
    %239 = arith.subf %236, %238 : vector<32x72xf32>
    %240 = vector.broadcast %229 : vector<1x72xf32> to vector<32x72xf32>
    %241 = arith.mulf %231, %240 : vector<32x72xf32>
    %242 = arith.addf %227, %241 : vector<32x72xf32>
    %243 = vector.broadcast %228 : vector<1x72xf32> to vector<32x72xf32>
    %244 = arith.mulf %233, %243 : vector<32x72xf32>
    %245 = arith.addf %242, %244 : vector<32x72xf32>
    %c13 = arith.constant 13 : index
    %c0_157 = arith.constant 0 : index
    %246 = vector.load %arg16[%c13, %c0_157] : memref<32x72xf32, #tpu.memory_space<vmem>>, vector<1x72xf32>
    %c13_158 = arith.constant 13 : index
    %c0_159 = arith.constant 0 : index
    %247 = vector.load %arg17[%c13_158, %c0_159] : memref<32x72xf32, #tpu.memory_space<vmem>>, vector<1x72xf32>
    %c0_160 = arith.constant 0 : index
    %c13_161 = arith.constant 13 : index
    %c0_162 = arith.constant 0 : index
    %c0_163 = arith.constant 0 : index
    %248 = vector.load %arg10[%c0_160, %c13_161, %c0_162, %c0_163] : memref<1x32x32x72xf32, #tpu.memory_space<vmem>>, vector<1x1x32x72xf32>
    %249 = vector.shape_cast %248 : vector<1x1x32x72xf32> to vector<32x72xf32>
    %c0_164 = arith.constant 0 : index
    %c13_165 = arith.constant 13 : index
    %c0_166 = arith.constant 0 : index
    %c0_167 = arith.constant 0 : index
    %250 = vector.load %arg11[%c0_164, %c13_165, %c0_166, %c0_167] : memref<1x32x32x72xf32, #tpu.memory_space<vmem>>, vector<1x1x32x72xf32>
    %251 = vector.shape_cast %250 : vector<1x1x32x72xf32> to vector<32x72xf32>
    %252 = vector.broadcast %246 : vector<1x72xf32> to vector<32x72xf32>
    %253 = arith.mulf %249, %252 : vector<32x72xf32>
    %254 = arith.addf %239, %253 : vector<32x72xf32>
    %255 = vector.broadcast %247 : vector<1x72xf32> to vector<32x72xf32>
    %256 = arith.mulf %251, %255 : vector<32x72xf32>
    %257 = arith.subf %254, %256 : vector<32x72xf32>
    %258 = vector.broadcast %247 : vector<1x72xf32> to vector<32x72xf32>
    %259 = arith.mulf %249, %258 : vector<32x72xf32>
    %260 = arith.addf %245, %259 : vector<32x72xf32>
    %261 = vector.broadcast %246 : vector<1x72xf32> to vector<32x72xf32>
    %262 = arith.mulf %251, %261 : vector<32x72xf32>
    %263 = arith.addf %260, %262 : vector<32x72xf32>
    %c14 = arith.constant 14 : index
    %c0_168 = arith.constant 0 : index
    %264 = vector.load %arg16[%c14, %c0_168] : memref<32x72xf32, #tpu.memory_space<vmem>>, vector<1x72xf32>
    %c14_169 = arith.constant 14 : index
    %c0_170 = arith.constant 0 : index
    %265 = vector.load %arg17[%c14_169, %c0_170] : memref<32x72xf32, #tpu.memory_space<vmem>>, vector<1x72xf32>
    %c0_171 = arith.constant 0 : index
    %c14_172 = arith.constant 14 : index
    %c0_173 = arith.constant 0 : index
    %c0_174 = arith.constant 0 : index
    %266 = vector.load %arg10[%c0_171, %c14_172, %c0_173, %c0_174] : memref<1x32x32x72xf32, #tpu.memory_space<vmem>>, vector<1x1x32x72xf32>
    %267 = vector.shape_cast %266 : vector<1x1x32x72xf32> to vector<32x72xf32>
    %c0_175 = arith.constant 0 : index
    %c14_176 = arith.constant 14 : index
    %c0_177 = arith.constant 0 : index
    %c0_178 = arith.constant 0 : index
    %268 = vector.load %arg11[%c0_175, %c14_176, %c0_177, %c0_178] : memref<1x32x32x72xf32, #tpu.memory_space<vmem>>, vector<1x1x32x72xf32>
    %269 = vector.shape_cast %268 : vector<1x1x32x72xf32> to vector<32x72xf32>
    %270 = vector.broadcast %264 : vector<1x72xf32> to vector<32x72xf32>
    %271 = arith.mulf %267, %270 : vector<32x72xf32>
    %272 = arith.addf %257, %271 : vector<32x72xf32>
    %273 = vector.broadcast %265 : vector<1x72xf32> to vector<32x72xf32>
    %274 = arith.mulf %269, %273 : vector<32x72xf32>
    %275 = arith.subf %272, %274 : vector<32x72xf32>
    %276 = vector.broadcast %265 : vector<1x72xf32> to vector<32x72xf32>
    %277 = arith.mulf %267, %276 : vector<32x72xf32>
    %278 = arith.addf %263, %277 : vector<32x72xf32>
    %279 = vector.broadcast %264 : vector<1x72xf32> to vector<32x72xf32>
    %280 = arith.mulf %269, %279 : vector<32x72xf32>
    %281 = arith.addf %278, %280 : vector<32x72xf32>
    %c15 = arith.constant 15 : index
    %c0_179 = arith.constant 0 : index
    %282 = vector.load %arg16[%c15, %c0_179] : memref<32x72xf32, #tpu.memory_space<vmem>>, vector<1x72xf32>
    %c15_180 = arith.constant 15 : index
    %c0_181 = arith.constant 0 : index
    %283 = vector.load %arg17[%c15_180, %c0_181] : memref<32x72xf32, #tpu.memory_space<vmem>>, vector<1x72xf32>
    %c0_182 = arith.constant 0 : index
    %c15_183 = arith.constant 15 : index
    %c0_184 = arith.constant 0 : index
    %c0_185 = arith.constant 0 : index
    %284 = vector.load %arg10[%c0_182, %c15_183, %c0_184, %c0_185] : memref<1x32x32x72xf32, #tpu.memory_space<vmem>>, vector<1x1x32x72xf32>
    %285 = vector.shape_cast %284 : vector<1x1x32x72xf32> to vector<32x72xf32>
    %c0_186 = arith.constant 0 : index
    %c15_187 = arith.constant 15 : index
    %c0_188 = arith.constant 0 : index
    %c0_189 = arith.constant 0 : index
    %286 = vector.load %arg11[%c0_186, %c15_187, %c0_188, %c0_189] : memref<1x32x32x72xf32, #tpu.memory_space<vmem>>, vector<1x1x32x72xf32>
    %287 = vector.shape_cast %286 : vector<1x1x32x72xf32> to vector<32x72xf32>
    %288 = vector.broadcast %282 : vector<1x72xf32> to vector<32x72xf32>
    %289 = arith.mulf %285, %288 : vector<32x72xf32>
    %290 = arith.addf %275, %289 : vector<32x72xf32>
    %291 = vector.broadcast %283 : vector<1x72xf32> to vector<32x72xf32>
    %292 = arith.mulf %287, %291 : vector<32x72xf32>
    %293 = arith.subf %290, %292 : vector<32x72xf32>
    %294 = vector.broadcast %283 : vector<1x72xf32> to vector<32x72xf32>
    %295 = arith.mulf %285, %294 : vector<32x72xf32>
    %296 = arith.addf %281, %295 : vector<32x72xf32>
    %297 = vector.broadcast %282 : vector<1x72xf32> to vector<32x72xf32>
    %298 = arith.mulf %287, %297 : vector<32x72xf32>
    %299 = arith.addf %296, %298 : vector<32x72xf32>
    %c16 = arith.constant 16 : index
    %c0_190 = arith.constant 0 : index
    %300 = vector.load %arg16[%c16, %c0_190] : memref<32x72xf32, #tpu.memory_space<vmem>>, vector<1x72xf32>
    %c16_191 = arith.constant 16 : index
    %c0_192 = arith.constant 0 : index
    %301 = vector.load %arg17[%c16_191, %c0_192] : memref<32x72xf32, #tpu.memory_space<vmem>>, vector<1x72xf32>
    %c0_193 = arith.constant 0 : index
    %c16_194 = arith.constant 16 : index
    %c0_195 = arith.constant 0 : index
    %c0_196 = arith.constant 0 : index
    %302 = vector.load %arg10[%c0_193, %c16_194, %c0_195, %c0_196] : memref<1x32x32x72xf32, #tpu.memory_space<vmem>>, vector<1x1x32x72xf32>
    %303 = vector.shape_cast %302 : vector<1x1x32x72xf32> to vector<32x72xf32>
    %c0_197 = arith.constant 0 : index
    %c16_198 = arith.constant 16 : index
    %c0_199 = arith.constant 0 : index
    %c0_200 = arith.constant 0 : index
    %304 = vector.load %arg11[%c0_197, %c16_198, %c0_199, %c0_200] : memref<1x32x32x72xf32, #tpu.memory_space<vmem>>, vector<1x1x32x72xf32>
    %305 = vector.shape_cast %304 : vector<1x1x32x72xf32> to vector<32x72xf32>
    %306 = vector.broadcast %300 : vector<1x72xf32> to vector<32x72xf32>
    %307 = arith.mulf %303, %306 : vector<32x72xf32>
    %308 = arith.addf %293, %307 : vector<32x72xf32>
    %309 = vector.broadcast %301 : vector<1x72xf32> to vector<32x72xf32>
    %310 = arith.mulf %305, %309 : vector<32x72xf32>
    %311 = arith.subf %308, %310 : vector<32x72xf32>
    %312 = vector.broadcast %301 : vector<1x72xf32> to vector<32x72xf32>
    %313 = arith.mulf %303, %312 : vector<32x72xf32>
    %314 = arith.addf %299, %313 : vector<32x72xf32>
    %315 = vector.broadcast %300 : vector<1x72xf32> to vector<32x72xf32>
    %316 = arith.mulf %305, %315 : vector<32x72xf32>
    %317 = arith.addf %314, %316 : vector<32x72xf32>
    %c17 = arith.constant 17 : index
    %c0_201 = arith.constant 0 : index
    %318 = vector.load %arg16[%c17, %c0_201] : memref<32x72xf32, #tpu.memory_space<vmem>>, vector<1x72xf32>
    %c17_202 = arith.constant 17 : index
    %c0_203 = arith.constant 0 : index
    %319 = vector.load %arg17[%c17_202, %c0_203] : memref<32x72xf32, #tpu.memory_space<vmem>>, vector<1x72xf32>
    %c0_204 = arith.constant 0 : index
    %c17_205 = arith.constant 17 : index
    %c0_206 = arith.constant 0 : index
    %c0_207 = arith.constant 0 : index
    %320 = vector.load %arg10[%c0_204, %c17_205, %c0_206, %c0_207] : memref<1x32x32x72xf32, #tpu.memory_space<vmem>>, vector<1x1x32x72xf32>
    %321 = vector.shape_cast %320 : vector<1x1x32x72xf32> to vector<32x72xf32>
    %c0_208 = arith.constant 0 : index
    %c17_209 = arith.constant 17 : index
    %c0_210 = arith.constant 0 : index
    %c0_211 = arith.constant 0 : index
    %322 = vector.load %arg11[%c0_208, %c17_209, %c0_210, %c0_211] : memref<1x32x32x72xf32, #tpu.memory_space<vmem>>, vector<1x1x32x72xf32>
    %323 = vector.shape_cast %322 : vector<1x1x32x72xf32> to vector<32x72xf32>
    %324 = vector.broadcast %318 : vector<1x72xf32> to vector<32x72xf32>
    %325 = arith.mulf %321, %324 : vector<32x72xf32>
    %326 = arith.addf %311, %325 : vector<32x72xf32>
    %327 = vector.broadcast %319 : vector<1x72xf32> to vector<32x72xf32>
    %328 = arith.mulf %323, %327 : vector<32x72xf32>
    %329 = arith.subf %326, %328 : vector<32x72xf32>
    %330 = vector.broadcast %319 : vector<1x72xf32> to vector<32x72xf32>
    %331 = arith.mulf %321, %330 : vector<32x72xf32>
    %332 = arith.addf %317, %331 : vector<32x72xf32>
    %333 = vector.broadcast %318 : vector<1x72xf32> to vector<32x72xf32>
    %334 = arith.mulf %323, %333 : vector<32x72xf32>
    %335 = arith.addf %332, %334 : vector<32x72xf32>
    %c18 = arith.constant 18 : index
    %c0_212 = arith.constant 0 : index
    %336 = vector.load %arg16[%c18, %c0_212] : memref<32x72xf32, #tpu.memory_space<vmem>>, vector<1x72xf32>
    %c18_213 = arith.constant 18 : index
    %c0_214 = arith.constant 0 : index
    %337 = vector.load %arg17[%c18_213, %c0_214] : memref<32x72xf32, #tpu.memory_space<vmem>>, vector<1x72xf32>
    %c0_215 = arith.constant 0 : index
    %c18_216 = arith.constant 18 : index
    %c0_217 = arith.constant 0 : index
    %c0_218 = arith.constant 0 : index
    %338 = vector.load %arg10[%c0_215, %c18_216, %c0_217, %c0_218] : memref<1x32x32x72xf32, #tpu.memory_space<vmem>>, vector<1x1x32x72xf32>
    %339 = vector.shape_cast %338 : vector<1x1x32x72xf32> to vector<32x72xf32>
    %c0_219 = arith.constant 0 : index
    %c18_220 = arith.constant 18 : index
    %c0_221 = arith.constant 0 : index
    %c0_222 = arith.constant 0 : index
    %340 = vector.load %arg11[%c0_219, %c18_220, %c0_221, %c0_222] : memref<1x32x32x72xf32, #tpu.memory_space<vmem>>, vector<1x1x32x72xf32>
    %341 = vector.shape_cast %340 : vector<1x1x32x72xf32> to vector<32x72xf32>
    %342 = vector.broadcast %336 : vector<1x72xf32> to vector<32x72xf32>
    %343 = arith.mulf %339, %342 : vector<32x72xf32>
    %344 = arith.addf %329, %343 : vector<32x72xf32>
    %345 = vector.broadcast %337 : vector<1x72xf32> to vector<32x72xf32>
    %346 = arith.mulf %341, %345 : vector<32x72xf32>
    %347 = arith.subf %344, %346 : vector<32x72xf32>
    %348 = vector.broadcast %337 : vector<1x72xf32> to vector<32x72xf32>
    %349 = arith.mulf %339, %348 : vector<32x72xf32>
    %350 = arith.addf %335, %349 : vector<32x72xf32>
    %351 = vector.broadcast %336 : vector<1x72xf32> to vector<32x72xf32>
    %352 = arith.mulf %341, %351 : vector<32x72xf32>
    %353 = arith.addf %350, %352 : vector<32x72xf32>
    %c19 = arith.constant 19 : index
    %c0_223 = arith.constant 0 : index
    %354 = vector.load %arg16[%c19, %c0_223] : memref<32x72xf32, #tpu.memory_space<vmem>>, vector<1x72xf32>
    %c19_224 = arith.constant 19 : index
    %c0_225 = arith.constant 0 : index
    %355 = vector.load %arg17[%c19_224, %c0_225] : memref<32x72xf32, #tpu.memory_space<vmem>>, vector<1x72xf32>
    %c0_226 = arith.constant 0 : index
    %c19_227 = arith.constant 19 : index
    %c0_228 = arith.constant 0 : index
    %c0_229 = arith.constant 0 : index
    %356 = vector.load %arg10[%c0_226, %c19_227, %c0_228, %c0_229] : memref<1x32x32x72xf32, #tpu.memory_space<vmem>>, vector<1x1x32x72xf32>
    %357 = vector.shape_cast %356 : vector<1x1x32x72xf32> to vector<32x72xf32>
    %c0_230 = arith.constant 0 : index
    %c19_231 = arith.constant 19 : index
    %c0_232 = arith.constant 0 : index
    %c0_233 = arith.constant 0 : index
    %358 = vector.load %arg11[%c0_230, %c19_231, %c0_232, %c0_233] : memref<1x32x32x72xf32, #tpu.memory_space<vmem>>, vector<1x1x32x72xf32>
    %359 = vector.shape_cast %358 : vector<1x1x32x72xf32> to vector<32x72xf32>
    %360 = vector.broadcast %354 : vector<1x72xf32> to vector<32x72xf32>
    %361 = arith.mulf %357, %360 : vector<32x72xf32>
    %362 = arith.addf %347, %361 : vector<32x72xf32>
    %363 = vector.broadcast %355 : vector<1x72xf32> to vector<32x72xf32>
    %364 = arith.mulf %359, %363 : vector<32x72xf32>
    %365 = arith.subf %362, %364 : vector<32x72xf32>
    %366 = vector.broadcast %355 : vector<1x72xf32> to vector<32x72xf32>
    %367 = arith.mulf %357, %366 : vector<32x72xf32>
    %368 = arith.addf %353, %367 : vector<32x72xf32>
    %369 = vector.broadcast %354 : vector<1x72xf32> to vector<32x72xf32>
    %370 = arith.mulf %359, %369 : vector<32x72xf32>
    %371 = arith.addf %368, %370 : vector<32x72xf32>
    %c20 = arith.constant 20 : index
    %c0_234 = arith.constant 0 : index
    %372 = vector.load %arg16[%c20, %c0_234] : memref<32x72xf32, #tpu.memory_space<vmem>>, vector<1x72xf32>
    %c20_235 = arith.constant 20 : index
    %c0_236 = arith.constant 0 : index
    %373 = vector.load %arg17[%c20_235, %c0_236] : memref<32x72xf32, #tpu.memory_space<vmem>>, vector<1x72xf32>
    %c0_237 = arith.constant 0 : index
    %c20_238 = arith.constant 20 : index
    %c0_239 = arith.constant 0 : index
    %c0_240 = arith.constant 0 : index
    %374 = vector.load %arg10[%c0_237, %c20_238, %c0_239, %c0_240] : memref<1x32x32x72xf32, #tpu.memory_space<vmem>>, vector<1x1x32x72xf32>
    %375 = vector.shape_cast %374 : vector<1x1x32x72xf32> to vector<32x72xf32>
    %c0_241 = arith.constant 0 : index
    %c20_242 = arith.constant 20 : index
    %c0_243 = arith.constant 0 : index
    %c0_244 = arith.constant 0 : index
    %376 = vector.load %arg11[%c0_241, %c20_242, %c0_243, %c0_244] : memref<1x32x32x72xf32, #tpu.memory_space<vmem>>, vector<1x1x32x72xf32>
    %377 = vector.shape_cast %376 : vector<1x1x32x72xf32> to vector<32x72xf32>
    %378 = vector.broadcast %372 : vector<1x72xf32> to vector<32x72xf32>
    %379 = arith.mulf %375, %378 : vector<32x72xf32>
    %380 = arith.addf %365, %379 : vector<32x72xf32>
    %381 = vector.broadcast %373 : vector<1x72xf32> to vector<32x72xf32>
    %382 = arith.mulf %377, %381 : vector<32x72xf32>
    %383 = arith.subf %380, %382 : vector<32x72xf32>
    %384 = vector.broadcast %373 : vector<1x72xf32> to vector<32x72xf32>
    %385 = arith.mulf %375, %384 : vector<32x72xf32>
    %386 = arith.addf %371, %385 : vector<32x72xf32>
    %387 = vector.broadcast %372 : vector<1x72xf32> to vector<32x72xf32>
    %388 = arith.mulf %377, %387 : vector<32x72xf32>
    %389 = arith.addf %386, %388 : vector<32x72xf32>
    %c21 = arith.constant 21 : index
    %c0_245 = arith.constant 0 : index
    %390 = vector.load %arg16[%c21, %c0_245] : memref<32x72xf32, #tpu.memory_space<vmem>>, vector<1x72xf32>
    %c21_246 = arith.constant 21 : index
    %c0_247 = arith.constant 0 : index
    %391 = vector.load %arg17[%c21_246, %c0_247] : memref<32x72xf32, #tpu.memory_space<vmem>>, vector<1x72xf32>
    %c0_248 = arith.constant 0 : index
    %c21_249 = arith.constant 21 : index
    %c0_250 = arith.constant 0 : index
    %c0_251 = arith.constant 0 : index
    %392 = vector.load %arg10[%c0_248, %c21_249, %c0_250, %c0_251] : memref<1x32x32x72xf32, #tpu.memory_space<vmem>>, vector<1x1x32x72xf32>
    %393 = vector.shape_cast %392 : vector<1x1x32x72xf32> to vector<32x72xf32>
    %c0_252 = arith.constant 0 : index
    %c21_253 = arith.constant 21 : index
    %c0_254 = arith.constant 0 : index
    %c0_255 = arith.constant 0 : index
    %394 = vector.load %arg11[%c0_252, %c21_253, %c0_254, %c0_255] : memref<1x32x32x72xf32, #tpu.memory_space<vmem>>, vector<1x1x32x72xf32>
    %395 = vector.shape_cast %394 : vector<1x1x32x72xf32> to vector<32x72xf32>
    %396 = vector.broadcast %390 : vector<1x72xf32> to vector<32x72xf32>
    %397 = arith.mulf %393, %396 : vector<32x72xf32>
    %398 = arith.addf %383, %397 : vector<32x72xf32>
    %399 = vector.broadcast %391 : vector<1x72xf32> to vector<32x72xf32>
    %400 = arith.mulf %395, %399 : vector<32x72xf32>
    %401 = arith.subf %398, %400 : vector<32x72xf32>
    %402 = vector.broadcast %391 : vector<1x72xf32> to vector<32x72xf32>
    %403 = arith.mulf %393, %402 : vector<32x72xf32>
    %404 = arith.addf %389, %403 : vector<32x72xf32>
    %405 = vector.broadcast %390 : vector<1x72xf32> to vector<32x72xf32>
    %406 = arith.mulf %395, %405 : vector<32x72xf32>
    %407 = arith.addf %404, %406 : vector<32x72xf32>
    %c22 = arith.constant 22 : index
    %c0_256 = arith.constant 0 : index
    %408 = vector.load %arg16[%c22, %c0_256] : memref<32x72xf32, #tpu.memory_space<vmem>>, vector<1x72xf32>
    %c22_257 = arith.constant 22 : index
    %c0_258 = arith.constant 0 : index
    %409 = vector.load %arg17[%c22_257, %c0_258] : memref<32x72xf32, #tpu.memory_space<vmem>>, vector<1x72xf32>
    %c0_259 = arith.constant 0 : index
    %c22_260 = arith.constant 22 : index
    %c0_261 = arith.constant 0 : index
    %c0_262 = arith.constant 0 : index
    %410 = vector.load %arg10[%c0_259, %c22_260, %c0_261, %c0_262] : memref<1x32x32x72xf32, #tpu.memory_space<vmem>>, vector<1x1x32x72xf32>
    %411 = vector.shape_cast %410 : vector<1x1x32x72xf32> to vector<32x72xf32>
    %c0_263 = arith.constant 0 : index
    %c22_264 = arith.constant 22 : index
    %c0_265 = arith.constant 0 : index
    %c0_266 = arith.constant 0 : index
    %412 = vector.load %arg11[%c0_263, %c22_264, %c0_265, %c0_266] : memref<1x32x32x72xf32, #tpu.memory_space<vmem>>, vector<1x1x32x72xf32>
    %413 = vector.shape_cast %412 : vector<1x1x32x72xf32> to vector<32x72xf32>
    %414 = vector.broadcast %408 : vector<1x72xf32> to vector<32x72xf32>
    %415 = arith.mulf %411, %414 : vector<32x72xf32>
    %416 = arith.addf %401, %415 : vector<32x72xf32>
    %417 = vector.broadcast %409 : vector<1x72xf32> to vector<32x72xf32>
    %418 = arith.mulf %413, %417 : vector<32x72xf32>
    %419 = arith.subf %416, %418 : vector<32x72xf32>
    %420 = vector.broadcast %409 : vector<1x72xf32> to vector<32x72xf32>
    %421 = arith.mulf %411, %420 : vector<32x72xf32>
    %422 = arith.addf %407, %421 : vector<32x72xf32>
    %423 = vector.broadcast %408 : vector<1x72xf32> to vector<32x72xf32>
    %424 = arith.mulf %413, %423 : vector<32x72xf32>
    %425 = arith.addf %422, %424 : vector<32x72xf32>
    %c23 = arith.constant 23 : index
    %c0_267 = arith.constant 0 : index
    %426 = vector.load %arg16[%c23, %c0_267] : memref<32x72xf32, #tpu.memory_space<vmem>>, vector<1x72xf32>
    %c23_268 = arith.constant 23 : index
    %c0_269 = arith.constant 0 : index
    %427 = vector.load %arg17[%c23_268, %c0_269] : memref<32x72xf32, #tpu.memory_space<vmem>>, vector<1x72xf32>
    %c0_270 = arith.constant 0 : index
    %c23_271 = arith.constant 23 : index
    %c0_272 = arith.constant 0 : index
    %c0_273 = arith.constant 0 : index
    %428 = vector.load %arg10[%c0_270, %c23_271, %c0_272, %c0_273] : memref<1x32x32x72xf32, #tpu.memory_space<vmem>>, vector<1x1x32x72xf32>
    %429 = vector.shape_cast %428 : vector<1x1x32x72xf32> to vector<32x72xf32>
    %c0_274 = arith.constant 0 : index
    %c23_275 = arith.constant 23 : index
    %c0_276 = arith.constant 0 : index
    %c0_277 = arith.constant 0 : index
    %430 = vector.load %arg11[%c0_274, %c23_275, %c0_276, %c0_277] : memref<1x32x32x72xf32, #tpu.memory_space<vmem>>, vector<1x1x32x72xf32>
    %431 = vector.shape_cast %430 : vector<1x1x32x72xf32> to vector<32x72xf32>
    %432 = vector.broadcast %426 : vector<1x72xf32> to vector<32x72xf32>
    %433 = arith.mulf %429, %432 : vector<32x72xf32>
    %434 = arith.addf %419, %433 : vector<32x72xf32>
    %435 = vector.broadcast %427 : vector<1x72xf32> to vector<32x72xf32>
    %436 = arith.mulf %431, %435 : vector<32x72xf32>
    %437 = arith.subf %434, %436 : vector<32x72xf32>
    %438 = vector.broadcast %427 : vector<1x72xf32> to vector<32x72xf32>
    %439 = arith.mulf %429, %438 : vector<32x72xf32>
    %440 = arith.addf %425, %439 : vector<32x72xf32>
    %441 = vector.broadcast %426 : vector<1x72xf32> to vector<32x72xf32>
    %442 = arith.mulf %431, %441 : vector<32x72xf32>
    %443 = arith.addf %440, %442 : vector<32x72xf32>
    %c24 = arith.constant 24 : index
    %c0_278 = arith.constant 0 : index
    %444 = vector.load %arg16[%c24, %c0_278] : memref<32x72xf32, #tpu.memory_space<vmem>>, vector<1x72xf32>
    %c24_279 = arith.constant 24 : index
    %c0_280 = arith.constant 0 : index
    %445 = vector.load %arg17[%c24_279, %c0_280] : memref<32x72xf32, #tpu.memory_space<vmem>>, vector<1x72xf32>
    %c0_281 = arith.constant 0 : index
    %c24_282 = arith.constant 24 : index
    %c0_283 = arith.constant 0 : index
    %c0_284 = arith.constant 0 : index
    %446 = vector.load %arg10[%c0_281, %c24_282, %c0_283, %c0_284] : memref<1x32x32x72xf32, #tpu.memory_space<vmem>>, vector<1x1x32x72xf32>
    %447 = vector.shape_cast %446 : vector<1x1x32x72xf32> to vector<32x72xf32>
    %c0_285 = arith.constant 0 : index
    %c24_286 = arith.constant 24 : index
    %c0_287 = arith.constant 0 : index
    %c0_288 = arith.constant 0 : index
    %448 = vector.load %arg11[%c0_285, %c24_286, %c0_287, %c0_288] : memref<1x32x32x72xf32, #tpu.memory_space<vmem>>, vector<1x1x32x72xf32>
    %449 = vector.shape_cast %448 : vector<1x1x32x72xf32> to vector<32x72xf32>
    %450 = vector.broadcast %444 : vector<1x72xf32> to vector<32x72xf32>
    %451 = arith.mulf %447, %450 : vector<32x72xf32>
    %452 = arith.addf %437, %451 : vector<32x72xf32>
    %453 = vector.broadcast %445 : vector<1x72xf32> to vector<32x72xf32>
    %454 = arith.mulf %449, %453 : vector<32x72xf32>
    %455 = arith.subf %452, %454 : vector<32x72xf32>
    %456 = vector.broadcast %445 : vector<1x72xf32> to vector<32x72xf32>
    %457 = arith.mulf %447, %456 : vector<32x72xf32>
    %458 = arith.addf %443, %457 : vector<32x72xf32>
    %459 = vector.broadcast %444 : vector<1x72xf32> to vector<32x72xf32>
    %460 = arith.mulf %449, %459 : vector<32x72xf32>
    %461 = arith.addf %458, %460 : vector<32x72xf32>
    %c25 = arith.constant 25 : index
    %c0_289 = arith.constant 0 : index
    %462 = vector.load %arg16[%c25, %c0_289] : memref<32x72xf32, #tpu.memory_space<vmem>>, vector<1x72xf32>
    %c25_290 = arith.constant 25 : index
    %c0_291 = arith.constant 0 : index
    %463 = vector.load %arg17[%c25_290, %c0_291] : memref<32x72xf32, #tpu.memory_space<vmem>>, vector<1x72xf32>
    %c0_292 = arith.constant 0 : index
    %c25_293 = arith.constant 25 : index
    %c0_294 = arith.constant 0 : index
    %c0_295 = arith.constant 0 : index
    %464 = vector.load %arg10[%c0_292, %c25_293, %c0_294, %c0_295] : memref<1x32x32x72xf32, #tpu.memory_space<vmem>>, vector<1x1x32x72xf32>
    %465 = vector.shape_cast %464 : vector<1x1x32x72xf32> to vector<32x72xf32>
    %c0_296 = arith.constant 0 : index
    %c25_297 = arith.constant 25 : index
    %c0_298 = arith.constant 0 : index
    %c0_299 = arith.constant 0 : index
    %466 = vector.load %arg11[%c0_296, %c25_297, %c0_298, %c0_299] : memref<1x32x32x72xf32, #tpu.memory_space<vmem>>, vector<1x1x32x72xf32>
    %467 = vector.shape_cast %466 : vector<1x1x32x72xf32> to vector<32x72xf32>
    %468 = vector.broadcast %462 : vector<1x72xf32> to vector<32x72xf32>
    %469 = arith.mulf %465, %468 : vector<32x72xf32>
    %470 = arith.addf %455, %469 : vector<32x72xf32>
    %471 = vector.broadcast %463 : vector<1x72xf32> to vector<32x72xf32>
    %472 = arith.mulf %467, %471 : vector<32x72xf32>
    %473 = arith.subf %470, %472 : vector<32x72xf32>
    %474 = vector.broadcast %463 : vector<1x72xf32> to vector<32x72xf32>
    %475 = arith.mulf %465, %474 : vector<32x72xf32>
    %476 = arith.addf %461, %475 : vector<32x72xf32>
    %477 = vector.broadcast %462 : vector<1x72xf32> to vector<32x72xf32>
    %478 = arith.mulf %467, %477 : vector<32x72xf32>
    %479 = arith.addf %476, %478 : vector<32x72xf32>
    %c26 = arith.constant 26 : index
    %c0_300 = arith.constant 0 : index
    %480 = vector.load %arg16[%c26, %c0_300] : memref<32x72xf32, #tpu.memory_space<vmem>>, vector<1x72xf32>
    %c26_301 = arith.constant 26 : index
    %c0_302 = arith.constant 0 : index
    %481 = vector.load %arg17[%c26_301, %c0_302] : memref<32x72xf32, #tpu.memory_space<vmem>>, vector<1x72xf32>
    %c0_303 = arith.constant 0 : index
    %c26_304 = arith.constant 26 : index
    %c0_305 = arith.constant 0 : index
    %c0_306 = arith.constant 0 : index
    %482 = vector.load %arg10[%c0_303, %c26_304, %c0_305, %c0_306] : memref<1x32x32x72xf32, #tpu.memory_space<vmem>>, vector<1x1x32x72xf32>
    %483 = vector.shape_cast %482 : vector<1x1x32x72xf32> to vector<32x72xf32>
    %c0_307 = arith.constant 0 : index
    %c26_308 = arith.constant 26 : index
    %c0_309 = arith.constant 0 : index
    %c0_310 = arith.constant 0 : index
    %484 = vector.load %arg11[%c0_307, %c26_308, %c0_309, %c0_310] : memref<1x32x32x72xf32, #tpu.memory_space<vmem>>, vector<1x1x32x72xf32>
    %485 = vector.shape_cast %484 : vector<1x1x32x72xf32> to vector<32x72xf32>
    %486 = vector.broadcast %480 : vector<1x72xf32> to vector<32x72xf32>
    %487 = arith.mulf %483, %486 : vector<32x72xf32>
    %488 = arith.addf %473, %487 : vector<32x72xf32>
    %489 = vector.broadcast %481 : vector<1x72xf32> to vector<32x72xf32>
    %490 = arith.mulf %485, %489 : vector<32x72xf32>
    %491 = arith.subf %488, %490 : vector<32x72xf32>
    %492 = vector.broadcast %481 : vector<1x72xf32> to vector<32x72xf32>
    %493 = arith.mulf %483, %492 : vector<32x72xf32>
    %494 = arith.addf %479, %493 : vector<32x72xf32>
    %495 = vector.broadcast %480 : vector<1x72xf32> to vector<32x72xf32>
    %496 = arith.mulf %485, %495 : vector<32x72xf32>
    %497 = arith.addf %494, %496 : vector<32x72xf32>
    %c27 = arith.constant 27 : index
    %c0_311 = arith.constant 0 : index
    %498 = vector.load %arg16[%c27, %c0_311] : memref<32x72xf32, #tpu.memory_space<vmem>>, vector<1x72xf32>
    %c27_312 = arith.constant 27 : index
    %c0_313 = arith.constant 0 : index
    %499 = vector.load %arg17[%c27_312, %c0_313] : memref<32x72xf32, #tpu.memory_space<vmem>>, vector<1x72xf32>
    %c0_314 = arith.constant 0 : index
    %c27_315 = arith.constant 27 : index
    %c0_316 = arith.constant 0 : index
    %c0_317 = arith.constant 0 : index
    %500 = vector.load %arg10[%c0_314, %c27_315, %c0_316, %c0_317] : memref<1x32x32x72xf32, #tpu.memory_space<vmem>>, vector<1x1x32x72xf32>
    %501 = vector.shape_cast %500 : vector<1x1x32x72xf32> to vector<32x72xf32>
    %c0_318 = arith.constant 0 : index
    %c27_319 = arith.constant 27 : index
    %c0_320 = arith.constant 0 : index
    %c0_321 = arith.constant 0 : index
    %502 = vector.load %arg11[%c0_318, %c27_319, %c0_320, %c0_321] : memref<1x32x32x72xf32, #tpu.memory_space<vmem>>, vector<1x1x32x72xf32>
    %503 = vector.shape_cast %502 : vector<1x1x32x72xf32> to vector<32x72xf32>
    %504 = vector.broadcast %498 : vector<1x72xf32> to vector<32x72xf32>
    %505 = arith.mulf %501, %504 : vector<32x72xf32>
    %506 = arith.addf %491, %505 : vector<32x72xf32>
    %507 = vector.broadcast %499 : vector<1x72xf32> to vector<32x72xf32>
    %508 = arith.mulf %503, %507 : vector<32x72xf32>
    %509 = arith.subf %506, %508 : vector<32x72xf32>
    %510 = vector.broadcast %499 : vector<1x72xf32> to vector<32x72xf32>
    %511 = arith.mulf %501, %510 : vector<32x72xf32>
    %512 = arith.addf %497, %511 : vector<32x72xf32>
    %513 = vector.broadcast %498 : vector<1x72xf32> to vector<32x72xf32>
    %514 = arith.mulf %503, %513 : vector<32x72xf32>
    %515 = arith.addf %512, %514 : vector<32x72xf32>
    %c28 = arith.constant 28 : index
    %c0_322 = arith.constant 0 : index
    %516 = vector.load %arg16[%c28, %c0_322] : memref<32x72xf32, #tpu.memory_space<vmem>>, vector<1x72xf32>
    %c28_323 = arith.constant 28 : index
    %c0_324 = arith.constant 0 : index
    %517 = vector.load %arg17[%c28_323, %c0_324] : memref<32x72xf32, #tpu.memory_space<vmem>>, vector<1x72xf32>
    %c0_325 = arith.constant 0 : index
    %c28_326 = arith.constant 28 : index
    %c0_327 = arith.constant 0 : index
    %c0_328 = arith.constant 0 : index
    %518 = vector.load %arg10[%c0_325, %c28_326, %c0_327, %c0_328] : memref<1x32x32x72xf32, #tpu.memory_space<vmem>>, vector<1x1x32x72xf32>
    %519 = vector.shape_cast %518 : vector<1x1x32x72xf32> to vector<32x72xf32>
    %c0_329 = arith.constant 0 : index
    %c28_330 = arith.constant 28 : index
    %c0_331 = arith.constant 0 : index
    %c0_332 = arith.constant 0 : index
    %520 = vector.load %arg11[%c0_329, %c28_330, %c0_331, %c0_332] : memref<1x32x32x72xf32, #tpu.memory_space<vmem>>, vector<1x1x32x72xf32>
    %521 = vector.shape_cast %520 : vector<1x1x32x72xf32> to vector<32x72xf32>
    %522 = vector.broadcast %516 : vector<1x72xf32> to vector<32x72xf32>
    %523 = arith.mulf %519, %522 : vector<32x72xf32>
    %524 = arith.addf %509, %523 : vector<32x72xf32>
    %525 = vector.broadcast %517 : vector<1x72xf32> to vector<32x72xf32>
    %526 = arith.mulf %521, %525 : vector<32x72xf32>
    %527 = arith.subf %524, %526 : vector<32x72xf32>
    %528 = vector.broadcast %517 : vector<1x72xf32> to vector<32x72xf32>
    %529 = arith.mulf %519, %528 : vector<32x72xf32>
    %530 = arith.addf %515, %529 : vector<32x72xf32>
    %531 = vector.broadcast %516 : vector<1x72xf32> to vector<32x72xf32>
    %532 = arith.mulf %521, %531 : vector<32x72xf32>
    %533 = arith.addf %530, %532 : vector<32x72xf32>
    %c29 = arith.constant 29 : index
    %c0_333 = arith.constant 0 : index
    %534 = vector.load %arg16[%c29, %c0_333] : memref<32x72xf32, #tpu.memory_space<vmem>>, vector<1x72xf32>
    %c29_334 = arith.constant 29 : index
    %c0_335 = arith.constant 0 : index
    %535 = vector.load %arg17[%c29_334, %c0_335] : memref<32x72xf32, #tpu.memory_space<vmem>>, vector<1x72xf32>
    %c0_336 = arith.constant 0 : index
    %c29_337 = arith.constant 29 : index
    %c0_338 = arith.constant 0 : index
    %c0_339 = arith.constant 0 : index
    %536 = vector.load %arg10[%c0_336, %c29_337, %c0_338, %c0_339] : memref<1x32x32x72xf32, #tpu.memory_space<vmem>>, vector<1x1x32x72xf32>
    %537 = vector.shape_cast %536 : vector<1x1x32x72xf32> to vector<32x72xf32>
    %c0_340 = arith.constant 0 : index
    %c29_341 = arith.constant 29 : index
    %c0_342 = arith.constant 0 : index
    %c0_343 = arith.constant 0 : index
    %538 = vector.load %arg11[%c0_340, %c29_341, %c0_342, %c0_343] : memref<1x32x32x72xf32, #tpu.memory_space<vmem>>, vector<1x1x32x72xf32>
    %539 = vector.shape_cast %538 : vector<1x1x32x72xf32> to vector<32x72xf32>
    %540 = vector.broadcast %534 : vector<1x72xf32> to vector<32x72xf32>
    %541 = arith.mulf %537, %540 : vector<32x72xf32>
    %542 = arith.addf %527, %541 : vector<32x72xf32>
    %543 = vector.broadcast %535 : vector<1x72xf32> to vector<32x72xf32>
    %544 = arith.mulf %539, %543 : vector<32x72xf32>
    %545 = arith.subf %542, %544 : vector<32x72xf32>
    %546 = vector.broadcast %535 : vector<1x72xf32> to vector<32x72xf32>
    %547 = arith.mulf %537, %546 : vector<32x72xf32>
    %548 = arith.addf %533, %547 : vector<32x72xf32>
    %549 = vector.broadcast %534 : vector<1x72xf32> to vector<32x72xf32>
    %550 = arith.mulf %539, %549 : vector<32x72xf32>
    %551 = arith.addf %548, %550 : vector<32x72xf32>
    %c30 = arith.constant 30 : index
    %c0_344 = arith.constant 0 : index
    %552 = vector.load %arg16[%c30, %c0_344] : memref<32x72xf32, #tpu.memory_space<vmem>>, vector<1x72xf32>
    %c30_345 = arith.constant 30 : index
    %c0_346 = arith.constant 0 : index
    %553 = vector.load %arg17[%c30_345, %c0_346] : memref<32x72xf32, #tpu.memory_space<vmem>>, vector<1x72xf32>
    %c0_347 = arith.constant 0 : index
    %c30_348 = arith.constant 30 : index
    %c0_349 = arith.constant 0 : index
    %c0_350 = arith.constant 0 : index
    %554 = vector.load %arg10[%c0_347, %c30_348, %c0_349, %c0_350] : memref<1x32x32x72xf32, #tpu.memory_space<vmem>>, vector<1x1x32x72xf32>
    %555 = vector.shape_cast %554 : vector<1x1x32x72xf32> to vector<32x72xf32>
    %c0_351 = arith.constant 0 : index
    %c30_352 = arith.constant 30 : index
    %c0_353 = arith.constant 0 : index
    %c0_354 = arith.constant 0 : index
    %556 = vector.load %arg11[%c0_351, %c30_352, %c0_353, %c0_354] : memref<1x32x32x72xf32, #tpu.memory_space<vmem>>, vector<1x1x32x72xf32>
    %557 = vector.shape_cast %556 : vector<1x1x32x72xf32> to vector<32x72xf32>
    %558 = vector.broadcast %552 : vector<1x72xf32> to vector<32x72xf32>
    %559 = arith.mulf %555, %558 : vector<32x72xf32>
    %560 = arith.addf %545, %559 : vector<32x72xf32>
    %561 = vector.broadcast %553 : vector<1x72xf32> to vector<32x72xf32>
    %562 = arith.mulf %557, %561 : vector<32x72xf32>
    %563 = arith.subf %560, %562 : vector<32x72xf32>
    %564 = vector.broadcast %553 : vector<1x72xf32> to vector<32x72xf32>
    %565 = arith.mulf %555, %564 : vector<32x72xf32>
    %566 = arith.addf %551, %565 : vector<32x72xf32>
    %567 = vector.broadcast %552 : vector<1x72xf32> to vector<32x72xf32>
    %568 = arith.mulf %557, %567 : vector<32x72xf32>
    %569 = arith.addf %566, %568 : vector<32x72xf32>
    %c31 = arith.constant 31 : index
    %c0_355 = arith.constant 0 : index
    %570 = vector.load %arg16[%c31, %c0_355] : memref<32x72xf32, #tpu.memory_space<vmem>>, vector<1x72xf32>
    %c31_356 = arith.constant 31 : index
    %c0_357 = arith.constant 0 : index
    %571 = vector.load %arg17[%c31_356, %c0_357] : memref<32x72xf32, #tpu.memory_space<vmem>>, vector<1x72xf32>
    %c0_358 = arith.constant 0 : index
    %c31_359 = arith.constant 31 : index
    %c0_360 = arith.constant 0 : index
    %c0_361 = arith.constant 0 : index
    %572 = vector.load %arg10[%c0_358, %c31_359, %c0_360, %c0_361] : memref<1x32x32x72xf32, #tpu.memory_space<vmem>>, vector<1x1x32x72xf32>
    %573 = vector.shape_cast %572 : vector<1x1x32x72xf32> to vector<32x72xf32>
    %c0_362 = arith.constant 0 : index
    %c31_363 = arith.constant 31 : index
    %c0_364 = arith.constant 0 : index
    %c0_365 = arith.constant 0 : index
    %574 = vector.load %arg11[%c0_362, %c31_363, %c0_364, %c0_365] : memref<1x32x32x72xf32, #tpu.memory_space<vmem>>, vector<1x1x32x72xf32>
    %575 = vector.shape_cast %574 : vector<1x1x32x72xf32> to vector<32x72xf32>
    %576 = vector.broadcast %570 : vector<1x72xf32> to vector<32x72xf32>
    %577 = arith.mulf %573, %576 : vector<32x72xf32>
    %578 = arith.addf %563, %577 : vector<32x72xf32>
    %579 = vector.broadcast %571 : vector<1x72xf32> to vector<32x72xf32>
    %580 = arith.mulf %575, %579 : vector<32x72xf32>
    %581 = arith.subf %578, %580 : vector<32x72xf32>
    %582 = vector.broadcast %571 : vector<1x72xf32> to vector<32x72xf32>
    %583 = arith.mulf %573, %582 : vector<32x72xf32>
    %584 = arith.addf %569, %583 : vector<32x72xf32>
    %585 = vector.broadcast %570 : vector<1x72xf32> to vector<32x72xf32>
    %586 = arith.mulf %575, %585 : vector<32x72xf32>
    %587 = arith.addf %584, %586 : vector<32x72xf32>
    %c0_366 = arith.constant 0 : index
    %c0_367 = arith.constant 0 : index
    %588 = vector.load %arg8[%c0_366, %c0_367] : memref<72x256xf32, #tpu.memory_space<vmem>>, vector<72x256xf32>
    %cst_368 = arith.constant dense<0.000000e+00> : vector<32x256xf32>
    %589 = tpu.matmul %581, %588, %cst_368 {dimension_numbers = #tpu.dot_dimension_numbers<[1], [0], [0], [1], [0, 0, 1, 1], [], []>} : vector<32x72xf32>, vector<72x256xf32>, vector<32x256xf32> -> vector<32x256xf32>
    %c0_369 = arith.constant 0 : index
    %c0_370 = arith.constant 0 : index
    %590 = vector.load %arg9[%c0_369, %c0_370] : memref<72x256xf32, #tpu.memory_space<vmem>>, vector<72x256xf32>
    %cst_371 = arith.constant dense<0.000000e+00> : vector<32x256xf32>
    %591 = tpu.matmul %587, %590, %cst_371 {dimension_numbers = #tpu.dot_dimension_numbers<[1], [0], [0], [1], [0, 0, 1, 1], [], []>} : vector<32x72xf32>, vector<72x256xf32>, vector<32x256xf32> -> vector<32x256xf32>
    %592 = arith.subf %589, %591 : vector<32x256xf32>
    %c0_372 = arith.constant 0 : index
    %c0_373 = arith.constant 0 : index
    %c0_374 = arith.constant 0 : index
    %593 = vector.load %arg12[%c0_372, %c0_373, %c0_374] : memref<1x32x32xf32, #tpu.memory_space<vmem>>, vector<1x32x32xf32>
    %594 = vector.shape_cast %593 : vector<1x32x32xf32> to vector<32x32xf32>
    %cst_375 = arith.constant dense<0.000000e+00> : vector<32x256xf32>
    %595 = tpu.matmul %594, %3, %cst_375 {dimension_numbers = #tpu.dot_dimension_numbers<[1], [0], [0], [1], [0, 0, 1, 1], [], []>} : vector<32x32xf32>, vector<32x256xf32>, vector<32x256xf32> -> vector<32x256xf32>
    %c0_376 = arith.constant 0 : index
    %c0_377 = arith.constant 0 : index
    %c0_378 = arith.constant 0 : index
    %596 = vector.load %arg13[%c0_376, %c0_377, %c0_378] : memref<1x32x5xf32, #tpu.memory_space<vmem>>, vector<1x32x5xf32>
    %597 = vector.shape_cast %596 : vector<1x32x5xf32> to vector<32x5xf32>
    %c0_379 = arith.constant 0 : index
    %c0_380 = arith.constant 0 : index
    %598 = vector.load %arg3[%c0_379, %c0_380] : memref<5x256xf32, #tpu.memory_space<vmem>>, vector<5x256xf32>
    %cst_381 = arith.constant dense<0.000000e+00> : vector<32x256xf32>
    %599 = tpu.matmul %597, %598, %cst_381 {dimension_numbers = #tpu.dot_dimension_numbers<[1], [0], [0], [1], [0, 0, 1, 1], [], []>} : vector<32x5xf32>, vector<5x256xf32>, vector<32x256xf32> -> vector<32x256xf32>
    %600 = arith.addf %595, %599 : vector<32x256xf32>
    %c0_382 = arith.constant 0 : index
    %c0_383 = arith.constant 0 : index
    %c0_384 = arith.constant 0 : index
    %601 = vector.load %arg14[%c0_382, %c0_383, %c0_384] : memref<1x32x1xf32, #tpu.memory_space<vmem>>, vector<1x32x1xf32>
    %602 = vector.shape_cast %601 : vector<1x32x1xf32> to vector<32x1xf32>
    %603 = vector.broadcast %602 : vector<32x1xf32> to vector<32x256xf32>
    %604 = arith.addf %600, %603 : vector<32x256xf32>
    %605 = arith.addf %592, %604 : vector<32x256xf32>
    %cst_385 = arith.constant 0.707106769 : f32
    %606 = vector.broadcast %cst_385 : f32 to vector<32x256xf32>
    %607 = arith.mulf %605, %606 : vector<32x256xf32>
    %608 = math.absf %607 : vector<32x256xf32>
    %cst_386 = arith.constant 0.327591091 : f32
    %609 = vector.broadcast %cst_386 : f32 to vector<32x256xf32>
    %610 = arith.mulf %609, %608 : vector<32x256xf32>
    %cst_387 = arith.constant 1.000000e+00 : f32
    %611 = vector.broadcast %cst_387 : f32 to vector<32x256xf32>
    %612 = arith.addf %611, %610 : vector<32x256xf32>
    %cst_388 = arith.constant 1.000000e+00 : f32
    %613 = vector.broadcast %cst_388 : f32 to vector<32x256xf32>
    %614 = arith.divf %613, %612 : vector<32x256xf32>
    %cst_389 = arith.constant 1.06140542 : f32
    %615 = vector.broadcast %cst_389 : f32 to vector<32x256xf32>
    %616 = arith.mulf %615, %614 : vector<32x256xf32>
    %cst_390 = arith.constant -1.45315206 : f32
    %617 = vector.broadcast %cst_390 : f32 to vector<32x256xf32>
    %618 = arith.addf %616, %617 : vector<32x256xf32>
    %619 = arith.mulf %618, %614 : vector<32x256xf32>
    %cst_391 = arith.constant 1.42141378 : f32
    %620 = vector.broadcast %cst_391 : f32 to vector<32x256xf32>
    %621 = arith.addf %619, %620 : vector<32x256xf32>
    %622 = arith.mulf %621, %614 : vector<32x256xf32>
    %cst_392 = arith.constant -0.284496725 : f32
    %623 = vector.broadcast %cst_392 : f32 to vector<32x256xf32>
    %624 = arith.addf %622, %623 : vector<32x256xf32>
    %625 = arith.mulf %624, %614 : vector<32x256xf32>
    %cst_393 = arith.constant 0.254829586 : f32
    %626 = vector.broadcast %cst_393 : f32 to vector<32x256xf32>
    %627 = arith.addf %625, %626 : vector<32x256xf32>
    %628 = arith.mulf %627, %614 : vector<32x256xf32>
    %cst_394 = arith.constant 0.000000e+00 : f32
    %629 = vector.broadcast %cst_394 : f32 to vector<32x256xf32>
    %630 = arith.subf %629, %608 : vector<32x256xf32>
    %631 = arith.mulf %630, %608 : vector<32x256xf32>
    %632 = math.exp %631 : vector<32x256xf32>
    %633 = arith.mulf %628, %632 : vector<32x256xf32>
    %cst_395 = arith.constant 1.000000e+00 : f32
    %634 = vector.broadcast %cst_395 : f32 to vector<32x256xf32>
    %635 = arith.subf %634, %633 : vector<32x256xf32>
    %cst_396 = arith.constant 0.000000e+00 : f32
    %636 = vector.broadcast %cst_396 : f32 to vector<32x256xf32>
    %637 = arith.cmpf olt, %607, %636 : vector<32x256xf32>
    %cst_397 = arith.constant 0.000000e+00 : f32
    %638 = vector.broadcast %cst_397 : f32 to vector<32x256xf32>
    %639 = arith.subf %638, %635 : vector<32x256xf32>
    %640 = arith.select %637, %639, %635 : vector<32x256xi1>, vector<32x256xf32>
    %cst_398 = arith.constant 5.000000e-01 : f32
    %641 = vector.broadcast %cst_398 : f32 to vector<32x256xf32>
    %642 = arith.mulf %641, %605 : vector<32x256xf32>
    %cst_399 = arith.constant 1.000000e+00 : f32
    %643 = vector.broadcast %cst_399 : f32 to vector<32x256xf32>
    %644 = arith.addf %643, %640 : vector<32x256xf32>
    %645 = arith.mulf %642, %644 : vector<32x256xf32>
    %c0_400 = arith.constant 0 : index
    %c0_401 = arith.constant 0 : index
    %646 = vector.load %arg15[%c0_400, %c0_401] : memref<32x256xf32, #tpu.memory_space<vmem>>, vector<32x256xf32>
    tpu.vector_store %arg15[%c0_400, %c0_401], %645 {strides = array<i32>} : memref<32x256xf32, #tpu.memory_space<vmem>>, vector<32x256xf32>,
    return
  }
  func.func @transform_0(%arg0: i32, %arg1: i32) -> (i32, i32) {
    %c0_i32 = arith.constant 0 : i32
    %c0_i32_0 = arith.constant 0 : i32
    return %c0_i32, %arg0 : i32, i32
  }
  func.func @transform_1(%arg0: i32, %arg1: i32) -> (i32, i32) {
    %c0_i32 = arith.constant 0 : i32
    %c0_i32_0 = arith.constant 0 : i32
    return %c0_i32, %arg0 : i32, i32
  }
  func.func @transform_2(%arg0: i32, %arg1: i32) -> (i32, i32) {
    %c0_i32 = arith.constant 0 : i32
    %c0_i32_0 = arith.constant 0 : i32
    %c0_i32_1 = arith.constant 0 : i32
    return %c0_i32, %c0_i32_0 : i32, i32
  }
  func.func @transform_3(%arg0: i32, %arg1: i32) -> (i32, i32) {
    %c0_i32 = arith.constant 0 : i32
    %c0_i32_0 = arith.constant 0 : i32
    %c0_i32_1 = arith.constant 0 : i32
    return %c0_i32, %c0_i32_0 : i32, i32
  }
  func.func @transform_4(%arg0: i32, %arg1: i32) -> (i32, i32) {
    %c0_i32 = arith.constant 0 : i32
    %c0_i32_0 = arith.constant 0 : i32
    %c0_i32_1 = arith.constant 0 : i32
    return %c0_i32, %c0_i32_0 : i32, i32
  }
  func.func @transform_5(%arg0: i32, %arg1: i32) -> (i32, i32) {
    %c0_i32 = arith.constant 0 : i32
    %c0_i32_0 = arith.constant 0 : i32
    %c0_i32_1 = arith.constant 0 : i32
    return %c0_i32, %c0_i32_0 : i32, i32
  }
  func.func @transform_6(%arg0: i32, %arg1: i32) -> (i32, i32) {
    %c0_i32 = arith.constant 0 : i32
    %c0_i32_0 = arith.constant 0 : i32
    %c0_i32_1 = arith.constant 0 : i32
    return %c0_i32, %c0_i32_0 : i32, i32
  }
  func.func @transform_7(%arg0: i32, %arg1: i32) -> (i32, i32) {
    %c0_i32 = arith.constant 0 : i32
    %c0_i32_0 = arith.constant 0 : i32
    %c0_i32_1 = arith.constant 0 : i32
    return %c0_i32, %c0_i32_0 : i32, i32
  }
  func.func @transform_8(%arg0: i32, %arg1: i32) -> (i32, i32, i32, i32) {
    %c0_i32 = arith.constant 0 : i32
    %c0_i32_0 = arith.constant 0 : i32
    %c0_i32_1 = arith.constant 0 : i32
    %c0_i32_2 = arith.constant 0 : i32
    return %arg1, %c0_i32, %c0_i32_0, %c0_i32_1 : i32, i32, i32, i32
  }
  func.func @transform_9(%arg0: i32, %arg1: i32) -> (i32, i32, i32, i32) {
    %c0_i32 = arith.constant 0 : i32
    %c0_i32_0 = arith.constant 0 : i32
    %c0_i32_1 = arith.constant 0 : i32
    %c0_i32_2 = arith.constant 0 : i32
    return %arg1, %c0_i32, %c0_i32_0, %c0_i32_1 : i32, i32, i32, i32
  }
  func.func @transform_10(%arg0: i32, %arg1: i32) -> (i32, i32, i32) {
    %c0_i32 = arith.constant 0 : i32
    %c0_i32_0 = arith.constant 0 : i32
    %c0_i32_1 = arith.constant 0 : i32
    return %arg1, %c0_i32, %c0_i32_0 : i32, i32, i32
  }
  func.func @transform_11(%arg0: i32, %arg1: i32) -> (i32, i32, i32) {
    %c0_i32 = arith.constant 0 : i32
    %c0_i32_0 = arith.constant 0 : i32
    %c0_i32_1 = arith.constant 0 : i32
    return %arg1, %c0_i32, %c0_i32_0 : i32, i32, i32
  }
  func.func @transform_12(%arg0: i32, %arg1: i32) -> (i32, i32, i32) {
    %c0_i32 = arith.constant 0 : i32
    %c0_i32_0 = arith.constant 0 : i32
    %c0_i32_1 = arith.constant 0 : i32
    return %arg1, %c0_i32, %c0_i32_0 : i32, i32, i32
  }
  func.func @transform_13(%arg0: i32, %arg1: i32) -> (i32, i32) {
    %c0_i32 = arith.constant 0 : i32
    %c0_i32_0 = arith.constant 0 : i32
    return %c0_i32, %arg0 : i32, i32
  }
}

module attributes {stable_mosaic.version = 11 : i64} {
  func.func @_head_kernel(%arg0: i32, %arg1: memref<32x256xf32, #tpu.memory_space<vmem>>, %arg2: memref<256x32xf32, #tpu.memory_space<vmem>>, %arg3: memref<256x1xf32, #tpu.memory_space<vmem>>, %arg4: memref<128x256xf32, #tpu.memory_space<vmem>>, %arg5: memref<128x1xf32, #tpu.memory_space<vmem>>, %arg6: memref<128x128xf32, #tpu.memory_space<vmem>>, %arg7: memref<128x1xf32, #tpu.memory_space<vmem>>, %arg8: memref<1x128xf32, #tpu.memory_space<vmem>>, %arg9: memref<1x1xf32, #tpu.memory_space<vmem>>, %arg10: memref<1x256xf32, #tpu.memory_space<vmem>>) attributes {dimension_semantics = [#tpu.dimension_semantics<parallel>], iteration_bounds = array<i64: 2>, scalar_prefetch = 0 : i64, scratch_operands = 0 : i64, tpu.core_type = #tpu.core_type<tc>, window_params = [{transform_indices = @transform_0, window_bounds = array<i64: 32, 256>}, {pipeline_mode = #tpu.pipeline_mode<synchronous>, transform_indices = @transform_1, window_bounds = array<i64: 256, 32>}, {pipeline_mode = #tpu.pipeline_mode<synchronous>, transform_indices = @transform_2, window_bounds = array<i64: 256, 1>}, {pipeline_mode = #tpu.pipeline_mode<synchronous>, transform_indices = @transform_3, window_bounds = array<i64: 128, 256>}, {pipeline_mode = #tpu.pipeline_mode<synchronous>, transform_indices = @transform_4, window_bounds = array<i64: 128, 1>}, {pipeline_mode = #tpu.pipeline_mode<synchronous>, transform_indices = @transform_5, window_bounds = array<i64: 128, 128>}, {pipeline_mode = #tpu.pipeline_mode<synchronous>, transform_indices = @transform_6, window_bounds = array<i64: 128, 1>}, {pipeline_mode = #tpu.pipeline_mode<synchronous>, transform_indices = @transform_7, window_bounds = array<i64: 1, 128>}, {pipeline_mode = #tpu.pipeline_mode<synchronous>, transform_indices = @transform_8, window_bounds = array<i64: 1, 1>}, {transform_indices = @transform_9, window_bounds = array<i64: 1, 256>}]} {
    %c0 = arith.constant 0 : index
    %c0_0 = arith.constant 0 : index
    %0 = vector.load %arg2[%c0, %c0_0] : memref<256x32xf32, #tpu.memory_space<vmem>>, vector<256x32xf32>
    %c0_1 = arith.constant 0 : index
    %c0_2 = arith.constant 0 : index
    %1 = vector.load %arg1[%c0_1, %c0_2] : memref<32x256xf32, #tpu.memory_space<vmem>>, vector<32x256xf32>
    %cst = arith.constant dense<0.000000e+00> : vector<256x256xf32>
    %2 = tpu.matmul %0, %1, %cst {dimension_numbers = #tpu.dot_dimension_numbers<[1], [0], [0], [1], [0, 0, 1, 1], [], []>} : vector<256x32xf32>, vector<32x256xf32>, vector<256x256xf32> -> vector<256x256xf32>
    %c0_3 = arith.constant 0 : index
    %c0_4 = arith.constant 0 : index
    %3 = vector.load %arg3[%c0_3, %c0_4] : memref<256x1xf32, #tpu.memory_space<vmem>>, vector<256x1xf32>
    %4 = vector.broadcast %3 : vector<256x1xf32> to vector<256x256xf32>
    %5 = arith.addf %2, %4 : vector<256x256xf32>
    %cst_5 = arith.constant 0.707106769 : f32
    %6 = vector.broadcast %cst_5 : f32 to vector<256x256xf32>
    %7 = arith.mulf %5, %6 : vector<256x256xf32>
    %8 = math.absf %7 : vector<256x256xf32>
    %cst_6 = arith.constant 0.327591091 : f32
    %9 = vector.broadcast %cst_6 : f32 to vector<256x256xf32>
    %10 = arith.mulf %9, %8 : vector<256x256xf32>
    %cst_7 = arith.constant 1.000000e+00 : f32
    %11 = vector.broadcast %cst_7 : f32 to vector<256x256xf32>
    %12 = arith.addf %11, %10 : vector<256x256xf32>
    %cst_8 = arith.constant 1.000000e+00 : f32
    %13 = vector.broadcast %cst_8 : f32 to vector<256x256xf32>
    %14 = arith.divf %13, %12 : vector<256x256xf32>
    %cst_9 = arith.constant 1.06140542 : f32
    %15 = vector.broadcast %cst_9 : f32 to vector<256x256xf32>
    %16 = arith.mulf %15, %14 : vector<256x256xf32>
    %cst_10 = arith.constant -1.45315206 : f32
    %17 = vector.broadcast %cst_10 : f32 to vector<256x256xf32>
    %18 = arith.addf %16, %17 : vector<256x256xf32>
    %19 = arith.mulf %18, %14 : vector<256x256xf32>
    %cst_11 = arith.constant 1.42141378 : f32
    %20 = vector.broadcast %cst_11 : f32 to vector<256x256xf32>
    %21 = arith.addf %19, %20 : vector<256x256xf32>
    %22 = arith.mulf %21, %14 : vector<256x256xf32>
    %cst_12 = arith.constant -0.284496725 : f32
    %23 = vector.broadcast %cst_12 : f32 to vector<256x256xf32>
    %24 = arith.addf %22, %23 : vector<256x256xf32>
    %25 = arith.mulf %24, %14 : vector<256x256xf32>
    %cst_13 = arith.constant 0.254829586 : f32
    %26 = vector.broadcast %cst_13 : f32 to vector<256x256xf32>
    %27 = arith.addf %25, %26 : vector<256x256xf32>
    %28 = arith.mulf %27, %14 : vector<256x256xf32>
    %cst_14 = arith.constant 0.000000e+00 : f32
    %29 = vector.broadcast %cst_14 : f32 to vector<256x256xf32>
    %30 = arith.subf %29, %8 : vector<256x256xf32>
    %31 = arith.mulf %30, %8 : vector<256x256xf32>
    %32 = math.exp %31 : vector<256x256xf32>
    %33 = arith.mulf %28, %32 : vector<256x256xf32>
    %cst_15 = arith.constant 1.000000e+00 : f32
    %34 = vector.broadcast %cst_15 : f32 to vector<256x256xf32>
    %35 = arith.subf %34, %33 : vector<256x256xf32>
    %cst_16 = arith.constant 0.000000e+00 : f32
    %36 = vector.broadcast %cst_16 : f32 to vector<256x256xf32>
    %37 = arith.cmpf olt, %7, %36 : vector<256x256xf32>
    %cst_17 = arith.constant 0.000000e+00 : f32
    %38 = vector.broadcast %cst_17 : f32 to vector<256x256xf32>
    %39 = arith.subf %38, %35 : vector<256x256xf32>
    %40 = arith.select %37, %39, %35 : vector<256x256xi1>, vector<256x256xf32>
    %cst_18 = arith.constant 5.000000e-01 : f32
    %41 = vector.broadcast %cst_18 : f32 to vector<256x256xf32>
    %42 = arith.mulf %41, %5 : vector<256x256xf32>
    %cst_19 = arith.constant 1.000000e+00 : f32
    %43 = vector.broadcast %cst_19 : f32 to vector<256x256xf32>
    %44 = arith.addf %43, %40 : vector<256x256xf32>
    %45 = arith.mulf %42, %44 : vector<256x256xf32>
    %c0_20 = arith.constant 0 : index
    %c0_21 = arith.constant 0 : index
    %46 = vector.load %arg4[%c0_20, %c0_21] : memref<128x256xf32, #tpu.memory_space<vmem>>, vector<128x256xf32>
    %cst_22 = arith.constant dense<0.000000e+00> : vector<128x256xf32>
    %47 = tpu.matmul %46, %45, %cst_22 {dimension_numbers = #tpu.dot_dimension_numbers<[1], [0], [0], [1], [0, 0, 1, 1], [], []>} : vector<128x256xf32>, vector<256x256xf32>, vector<128x256xf32> -> vector<128x256xf32>
    %c0_23 = arith.constant 0 : index
    %c0_24 = arith.constant 0 : index
    %48 = vector.load %arg5[%c0_23, %c0_24] : memref<128x1xf32, #tpu.memory_space<vmem>>, vector<128x1xf32>
    %49 = vector.broadcast %48 : vector<128x1xf32> to vector<128x256xf32>
    %50 = arith.addf %47, %49 : vector<128x256xf32>
    %cst_25 = arith.constant 0.707106769 : f32
    %51 = vector.broadcast %cst_25 : f32 to vector<128x256xf32>
    %52 = arith.mulf %50, %51 : vector<128x256xf32>
    %53 = math.absf %52 : vector<128x256xf32>
    %cst_26 = arith.constant 0.327591091 : f32
    %54 = vector.broadcast %cst_26 : f32 to vector<128x256xf32>
    %55 = arith.mulf %54, %53 : vector<128x256xf32>
    %cst_27 = arith.constant 1.000000e+00 : f32
    %56 = vector.broadcast %cst_27 : f32 to vector<128x256xf32>
    %57 = arith.addf %56, %55 : vector<128x256xf32>
    %cst_28 = arith.constant 1.000000e+00 : f32
    %58 = vector.broadcast %cst_28 : f32 to vector<128x256xf32>
    %59 = arith.divf %58, %57 : vector<128x256xf32>
    %cst_29 = arith.constant 1.06140542 : f32
    %60 = vector.broadcast %cst_29 : f32 to vector<128x256xf32>
    %61 = arith.mulf %60, %59 : vector<128x256xf32>
    %cst_30 = arith.constant -1.45315206 : f32
    %62 = vector.broadcast %cst_30 : f32 to vector<128x256xf32>
    %63 = arith.addf %61, %62 : vector<128x256xf32>
    %64 = arith.mulf %63, %59 : vector<128x256xf32>
    %cst_31 = arith.constant 1.42141378 : f32
    %65 = vector.broadcast %cst_31 : f32 to vector<128x256xf32>
    %66 = arith.addf %64, %65 : vector<128x256xf32>
    %67 = arith.mulf %66, %59 : vector<128x256xf32>
    %cst_32 = arith.constant -0.284496725 : f32
    %68 = vector.broadcast %cst_32 : f32 to vector<128x256xf32>
    %69 = arith.addf %67, %68 : vector<128x256xf32>
    %70 = arith.mulf %69, %59 : vector<128x256xf32>
    %cst_33 = arith.constant 0.254829586 : f32
    %71 = vector.broadcast %cst_33 : f32 to vector<128x256xf32>
    %72 = arith.addf %70, %71 : vector<128x256xf32>
    %73 = arith.mulf %72, %59 : vector<128x256xf32>
    %cst_34 = arith.constant 0.000000e+00 : f32
    %74 = vector.broadcast %cst_34 : f32 to vector<128x256xf32>
    %75 = arith.subf %74, %53 : vector<128x256xf32>
    %76 = arith.mulf %75, %53 : vector<128x256xf32>
    %77 = math.exp %76 : vector<128x256xf32>
    %78 = arith.mulf %73, %77 : vector<128x256xf32>
    %cst_35 = arith.constant 1.000000e+00 : f32
    %79 = vector.broadcast %cst_35 : f32 to vector<128x256xf32>
    %80 = arith.subf %79, %78 : vector<128x256xf32>
    %cst_36 = arith.constant 0.000000e+00 : f32
    %81 = vector.broadcast %cst_36 : f32 to vector<128x256xf32>
    %82 = arith.cmpf olt, %52, %81 : vector<128x256xf32>
    %cst_37 = arith.constant 0.000000e+00 : f32
    %83 = vector.broadcast %cst_37 : f32 to vector<128x256xf32>
    %84 = arith.subf %83, %80 : vector<128x256xf32>
    %85 = arith.select %82, %84, %80 : vector<128x256xi1>, vector<128x256xf32>
    %cst_38 = arith.constant 5.000000e-01 : f32
    %86 = vector.broadcast %cst_38 : f32 to vector<128x256xf32>
    %87 = arith.mulf %86, %50 : vector<128x256xf32>
    %cst_39 = arith.constant 1.000000e+00 : f32
    %88 = vector.broadcast %cst_39 : f32 to vector<128x256xf32>
    %89 = arith.addf %88, %85 : vector<128x256xf32>
    %90 = arith.mulf %87, %89 : vector<128x256xf32>
    %c0_40 = arith.constant 0 : index
    %c0_41 = arith.constant 0 : index
    %91 = vector.load %arg6[%c0_40, %c0_41] : memref<128x128xf32, #tpu.memory_space<vmem>>, vector<128x128xf32>
    %cst_42 = arith.constant dense<0.000000e+00> : vector<128x256xf32>
    %92 = tpu.matmul %91, %90, %cst_42 {dimension_numbers = #tpu.dot_dimension_numbers<[1], [0], [0], [1], [0, 0, 1, 1], [], []>} : vector<128x128xf32>, vector<128x256xf32>, vector<128x256xf32> -> vector<128x256xf32>
    %c0_43 = arith.constant 0 : index
    %c0_44 = arith.constant 0 : index
    %93 = vector.load %arg7[%c0_43, %c0_44] : memref<128x1xf32, #tpu.memory_space<vmem>>, vector<128x1xf32>
    %94 = vector.broadcast %93 : vector<128x1xf32> to vector<128x256xf32>
    %95 = arith.addf %92, %94 : vector<128x256xf32>
    %c0_45 = arith.constant 0 : index
    %c0_46 = arith.constant 0 : index
    %96 = vector.load %arg8[%c0_45, %c0_46] : memref<1x128xf32, #tpu.memory_space<vmem>>, vector<1x128xf32>
    %cst_47 = arith.constant dense<0.000000e+00> : vector<1x256xf32>
    %97 = tpu.matmul %96, %95, %cst_47 {dimension_numbers = #tpu.dot_dimension_numbers<[1], [0], [0], [1], [0, 0, 1, 1], [], []>} : vector<1x128xf32>, vector<128x256xf32>, vector<1x256xf32> -> vector<1x256xf32>
    %c0_48 = arith.constant 0 : index
    %c0_49 = arith.constant 0 : index
    %98 = vector.load %arg9[%c0_48, %c0_49] : memref<1x1xf32, #tpu.memory_space<vmem>>, vector<1x1xf32>
    %99 = vector.broadcast %98 : vector<1x1xf32> to vector<1x256xf32>
    %100 = arith.addf %97, %99 : vector<1x256xf32>
    %c0_50 = arith.constant 0 : index
    %c0_51 = arith.constant 0 : index
    %101 = vector.load %arg10[%c0_50, %c0_51] : memref<1x256xf32, #tpu.memory_space<vmem>>, vector<1x256xf32>
    tpu.vector_store %arg10[%c0_50, %c0_51], %100 {strides = array<i32>} : memref<1x256xf32, #tpu.memory_space<vmem>>, vector<1x256xf32>,
    return
  }
  func.func @transform_0(%arg0: i32) -> (i32, i32) {
    %c0_i32 = arith.constant 0 : i32
    %c0_i32_0 = arith.constant 0 : i32
    return %c0_i32, %arg0 : i32, i32
  }
  func.func @transform_1(%arg0: i32) -> (i32, i32) {
    %c0_i32 = arith.constant 0 : i32
    %c0_i32_0 = arith.constant 0 : i32
    %c0_i32_1 = arith.constant 0 : i32
    return %c0_i32, %c0_i32_0 : i32, i32
  }
  func.func @transform_2(%arg0: i32) -> (i32, i32) {
    %c0_i32 = arith.constant 0 : i32
    %c0_i32_0 = arith.constant 0 : i32
    %c0_i32_1 = arith.constant 0 : i32
    return %c0_i32, %c0_i32_0 : i32, i32
  }
  func.func @transform_3(%arg0: i32) -> (i32, i32) {
    %c0_i32 = arith.constant 0 : i32
    %c0_i32_0 = arith.constant 0 : i32
    %c0_i32_1 = arith.constant 0 : i32
    return %c0_i32, %c0_i32_0 : i32, i32
  }
  func.func @transform_4(%arg0: i32) -> (i32, i32) {
    %c0_i32 = arith.constant 0 : i32
    %c0_i32_0 = arith.constant 0 : i32
    %c0_i32_1 = arith.constant 0 : i32
    return %c0_i32, %c0_i32_0 : i32, i32
  }
  func.func @transform_5(%arg0: i32) -> (i32, i32) {
    %c0_i32 = arith.constant 0 : i32
    %c0_i32_0 = arith.constant 0 : i32
    %c0_i32_1 = arith.constant 0 : i32
    return %c0_i32, %c0_i32_0 : i32, i32
  }
  func.func @transform_6(%arg0: i32) -> (i32, i32) {
    %c0_i32 = arith.constant 0 : i32
    %c0_i32_0 = arith.constant 0 : i32
    %c0_i32_1 = arith.constant 0 : i32
    return %c0_i32, %c0_i32_0 : i32, i32
  }
  func.func @transform_7(%arg0: i32) -> (i32, i32) {
    %c0_i32 = arith.constant 0 : i32
    %c0_i32_0 = arith.constant 0 : i32
    %c0_i32_1 = arith.constant 0 : i32
    return %c0_i32, %c0_i32_0 : i32, i32
  }
  func.func @transform_8(%arg0: i32) -> (i32, i32) {
    %c0_i32 = arith.constant 0 : i32
    %c0_i32_0 = arith.constant 0 : i32
    %c0_i32_1 = arith.constant 0 : i32
    return %c0_i32, %c0_i32_0 : i32, i32
  }
  func.func @transform_9(%arg0: i32) -> (i32, i32) {
    %c0_i32 = arith.constant 0 : i32
    %c0_i32_0 = arith.constant 0 : i32
    return %c0_i32, %arg0 : i32, i32
  }
}

</mosaic_0001>

<llo_original>
// kernel: fno2d_forward.3
$region0: #{fno2d_forward.3}
  #allocation0 [shape = 'u32[]', space=smem, size = 0x4, offset = 0x4, fixed_abs, tag = 'smem constant byte address 0x4 - core index']
  #allocation1 [shape = 'u32[144,128]{1,0:T(1,128)}', space=vmem, size = 0x12000, scoped, tag = 'internal scratch']
  #allocation2 [shape = 'f32[1,1]{1,0:T(1,128)S(1)}', space=vmem, size = 0x200, scoped, tag = 'scoped memory for fno2d_forward.3']
  %s0 = inlined_call_operand.vmem [shape: f32[32,512], index: 0, kind: input, shape index: {}]
  %s1 = inlined_call_operand.vmem [shape: f32[256,32], index: 1, kind: input, shape index: {}]
  %s2 = inlined_call_operand.vmem [shape: f32[256,1], index: 2, kind: input, shape index: {}]
  %s3 = inlined_call_operand.vmem [shape: f32[128,256], index: 3, kind: input, shape index: {}]
  %s4 = inlined_call_operand.vmem [shape: f32[128,1], index: 4, kind: input, shape index: {}]
  %s5 = inlined_call_operand.vmem [shape: f32[128,128], index: 5, kind: input, shape index: {}]
  %s6 = inlined_call_operand.vmem [shape: f32[128,1], index: 6, kind: input, shape index: {}]
  %s7 = inlined_call_operand.vmem [shape: f32[1,128], index: 7, kind: input, shape index: {}]
  %s8 = inlined_call_operand.<no memory space> [shape: f32[1,1], index: 8, kind: input, shape index: {}]
  %s9 = inlined_call_operand.vmem [shape: f32[1,512], index: 9, kind: output, shape index: {}]
  %s10 = sld [smem:[#allocation0]]
  $region92: #{fno2d_forward.3} parent=0
    _
  %s12 = ssub.s32 1, %s10
  %s13 = scalar_select 0, %s12, %s10
  %v14 = vstv %s8
  %15 = vst [vmem:[#allocation2] sm:$0x1] %v14
  $region1: #{fno2d_forward.3} parent=0
    #allocation3 [shape = 'u8[65536]{0}', space=vmem, size = 0x10000, scoped, tag = 'input window, operand 0']
    loop: start=0, step=1, limit=4
    $region2: #{fno2d_forward.3} parent=1 // loop_pre_header
      _
    $region3: #{fno2d_forward.3} parent=1 // loop_header
      %s17 = sphi 0, %s21
      %p18 = scmp.ge.s32.totalorder %s17, 4
      %s27 = sphi 0, %s29
      %s30 = sphi 0, %s27
      %s31 = sphi 0, %s30
      %s47 = sphi 0, %s31
      %s51 = sphi 0, %s51
      %s53 = sphi 0, %s51
      %s54 = sphi 0, %s53
      %s68 = sphi 0, %s54
      %s72 = sphi 0, %s72
      %s74 = sphi 0, %s72
      %s75 = sphi 0, %s74
      %s89 = sphi 0, %s75
      %s93 = sphi 0, %s93
      %s95 = sphi 0, %s93
      %s96 = sphi 0, %s95
      %s110 = sphi 0, %s96
      %s114 = sphi 0, %s114
      %s116 = sphi 0, %s114
      %s117 = sphi 0, %s116
      %s131 = sphi 0, %s117
      %s135 = sphi 0, %s135
      %s137 = sphi 0, %s135
      %s138 = sphi 0, %s137
      %s152 = sphi 0, %s138
      %s156 = sphi 0, %s156
      %s158 = sphi 0, %s156
      %s159 = sphi 0, %s158
      %s173 = sphi 0, %s159
      %s177 = sphi 0, %s177
      %s179 = sphi 0, %s177
      %s180 = sphi 0, %s179
      %s194 = sphi 0, %s180
      %s198 = sphi 0, %s198
      %s200 = sphi 0, %s198
      %s201 = sphi 0, %s200
      %s215 = sphi 0, %s201
      %s221 = sphi 0, %s223
      %s224 = sphi 0, %s221
      %s225 = sphi 0, %s224
      %s241 = sphi 0, %s225
    $region4: #{fno2d_forward.3} parent=1 // loop_header_branch
      %20 = sbr.rel (%p18) target = $region8
    $region5: #{fno2d_forward.3} parent=1 // loop_body
      %s22 = ssub.s32 %s17, 1
      %s23 = ssub.s32 %s17, 2
      %s24 = sadd.s32 %s17, 1
      %s25 = ssub.s32 %s17, %s24
      %p26 = scmp.eq.s32.totalorder %s25, 0
      %s28 = sadd.s32 %s27, 1
      %s29 = scalar_select %p26, %s27, %s28
      %p32 = pneg %p26
      %p33 = scmp.eq.s32.totalorder %s17, 1
      %p34 = por %p32, %p33
      %p35 = scmp.ne.s32.totalorder %s27, %s30
      %p36 = scmp.eq.s32.totalorder %s17, 0
      %p37 = por %p35, %p36
      %p38 = scmp.ne.s32.totalorder %s27, %s30
      %p39 = scmp.eq.s32.totalorder %s22, 1
      %p40 = por %p38, %p39
      %p41 = scmp.ne.s32.totalorder %s30, %s31
      %p42 = scmp.eq.s32.totalorder %s22, 0
      %p43 = por %p41, %p42
      %p44 = scmp.ne.s32.totalorder %s30, %s31
      %p45 = scmp.eq.s32.totalorder %s23, 1
      %p46 = por %p44, %p45
      %p48 = scmp.ne.s32.totalorder %s31, %s47
      %p49 = scmp.eq.s32.totalorder %s23, 0
      %p50 = por %p48, %p49
      %s52 = sadd.s32 %s51, 1
      %p55 = scmp.eq.s32.totalorder %s17, 1
      %p56 = scmp.ne.s32.totalorder %s51, %s53
      %p57 = scmp.eq.s32.totalorder %s17, 0
      %p58 = por %p56, %p57
      %p59 = scmp.ne.s32.totalorder %s51, %s53
      %p60 = scmp.eq.s32.totalorder %s22, 1
      %p61 = por %p59, %p60
      %p62 = scmp.ne.s32.totalorder %s53, %s54
      %p63 = scmp.eq.s32.totalorder %s22, 0
      %p64 = por %p62, %p63
      %p65 = scmp.ne.s32.totalorder %s53, %s54
      %p66 = scmp.eq.s32.totalorder %s23, 1
      %p67 = por %p65, %p66
      %p69 = scmp.ne.s32.totalorder %s54, %s68
      %p70 = scmp.eq.s32.totalorder %s23, 0
      %p71 = por %p69, %p70
      %s73 = sadd.s32 %s72, 1
      %p76 = scmp.eq.s32.totalorder %s17, 1
      %p77 = scmp.ne.s32.totalorder %s72, %s74
      %p78 = scmp.eq.s32.totalorder %s17, 0
      %p79 = por %p77, %p78
      %p80 = scmp.ne.s32.totalorder %s72, %s74
      %p81 = scmp.eq.s32.totalorder %s22, 1
      %p82 = por %p80, %p81
      %p83 = scmp.ne.s32.totalorder %s74, %s75
      %p84 = scmp.eq.s32.totalorder %s22, 0
      %p85 = por %p83, %p84
      %p86 = scmp.ne.s32.totalorder %s74, %s75
      %p87 = scmp.eq.s32.totalorder %s23, 1
      %p88 = por %p86, %p87
      %p90 = scmp.ne.s32.totalorder %s75, %s89
      %p91 = scmp.eq.s32.totalorder %s23, 0
      %p92 = por %p90, %p91
      %s94 = sadd.s32 %s93, 1
      %p97 = scmp.eq.s32.totalorder %s17, 1
      %p98 = scmp.ne.s32.totalorder %s93, %s95
      %p99 = scmp.eq.s32.totalorder %s17, 0
      %p100 = por %p98, %p99
      %p101 = scmp.ne.s32.totalorder %s93, %s95
      %p102 = scmp.eq.s32.totalorder %s22, 1
      %p103 = por %p101, %p102
      %p104 = scmp.ne.s32.totalorder %s95, %s96
      %p105 = scmp.eq.s32.totalorder %s22, 0
      %p106 = por %p104, %p105
      %p107 = scmp.ne.s32.totalorder %s95, %s96
      %p108 = scmp.eq.s32.totalorder %s23, 1
      %p109 = por %p107, %p108
      %p111 = scmp.ne.s32.totalorder %s96, %s110
      %p112 = scmp.eq.s32.totalorder %s23, 0
      %p113 = por %p111, %p112
      %s115 = sadd.s32 %s114, 1
      %p118 = scmp.eq.s32.totalorder %s17, 1
      %p119 = scmp.ne.s32.totalorder %s114, %s116
      %p120 = scmp.eq.s32.totalorder %s17, 0
      %p121 = por %p119, %p120
      %p122 = scmp.ne.s32.totalorder %s114, %s116
      %p123 = scmp.eq.s32.totalorder %s22, 1
      %p124 = por %p122, %p123
      %p125 = scmp.ne.s32.totalorder %s116, %s117
      %p126 = scmp.eq.s32.totalorder %s22, 0
      %p127 = por %p125, %p126
      %p128 = scmp.ne.s32.totalorder %s116, %s117
      %p129 = scmp.eq.s32.totalorder %s23, 1
      %p130 = por %p128, %p129
      %p132 = scmp.ne.s32.totalorder %s117, %s131
      %p133 = scmp.eq.s32.totalorder %s23, 0
      %p134 = por %p132, %p133
      %s136 = sadd.s32 %s135, 1
      %p139 = scmp.eq.s32.totalorder %s17, 1
      %p140 = scmp.ne.s32.totalorder %s135, %s137
      %p141 = scmp.eq.s32.totalorder %s17, 0
      %p142 = por %p140, %p141
      %p143 = scmp.ne.s32.totalorder %s135, %s137
      %p144 = scmp.eq.s32.totalorder %s22, 1
      %p145 = por %p143, %p144
      %p146 = scmp.ne.s32.totalorder %s137, %s138
      %p147 = scmp.eq.s32.totalorder %s22, 0
      %p148 = por %p146, %p147
      %p149 = scmp.ne.s32.totalorder %s137, %s138
      %p150 = scmp.eq.s32.totalorder %s23, 1
      %p151 = por %p149, %p150
      %p153 = scmp.ne.s32.totalorder %s138, %s152
      %p154 = scmp.eq.s32.totalorder %s23, 0
      %p155 = por %p153, %p154
      %s157 = sadd.s32 %s156, 1
      %p160 = scmp.eq.s32.totalorder %s17, 1
      %p161 = scmp.ne.s32.totalorder %s156, %s158
      %p162 = scmp.eq.s32.totalorder %s17, 0
      %p163 = por %p161, %p162
      %p164 = scmp.ne.s32.totalorder %s156, %s158
      %p165 = scmp.eq.s32.totalorder %s22, 1
      %p166 = por %p164, %p165
      %p167 = scmp.ne.s32.totalorder %s158, %s159
      %p168 = scmp.eq.s32.totalorder %s22, 0
      %p169 = por %p167, %p168
      %p170 = scmp.ne.s32.totalorder %s158, %s159
      %p171 = scmp.eq.s32.totalorder %s23, 1
      %p172 = por %p170, %p171
      %p174 = scmp.ne.s32.totalorder %s159, %s173
      %p175 = scmp.eq.s32.totalorder %s23, 0
      %p176 = por %p174, %p175
      %s178 = sadd.s32 %s177, 1
      %p181 = scmp.eq.s32.totalorder %s17, 1
      %p182 = scmp.ne.s32.totalorder %s177, %s179
      %p183 = scmp.eq.s32.totalorder %s17, 0
      %p184 = por %p182, %p183
      %p185 = scmp.ne.s32.totalorder %s177, %s179
      %p186 = scmp.eq.s32.totalorder %s22, 1
      %p187 = por %p185, %p186
      %p188 = scmp.ne.s32.totalorder %s179, %s180
      %p189 = scmp.eq.s32.totalorder %s22, 0
      %p190 = por %p188, %p189
      %p191 = scmp.ne.s32.totalorder %s179, %s180
      %p192 = scmp.eq.s32.totalorder %s23, 1
      %p193 = por %p191, %p192
      %p195 = scmp.ne.s32.totalorder %s180, %s194
      %p196 = scmp.eq.s32.totalorder %s23, 0
      %p197 = por %p195, %p196
      %s199 = sadd.s32 %s198, 1
      %p202 = scmp.eq.s32.totalorder %s17, 1
      %p203 = scmp.ne.s32.totalorder %s198, %s200
      %p204 = scmp.eq.s32.totalorder %s17, 0
      %p205 = por %p203, %p204
      %p206 = scmp.ne.s32.totalorder %s198, %s200
      %p207 = scmp.eq.s32.totalorder %s22, 1
      %p208 = por %p206, %p207
      %p209 = scmp.ne.s32.totalorder %s200, %s201
      %p210 = scmp.eq.s32.totalorder %s22, 0
      %p211 = por %p209, %p210
      %p212 = scmp.ne.s32.totalorder %s200, %s201
      %p213 = scmp.eq.s32.totalorder %s23, 1
      %p214 = por %p212, %p213
      %p216 = scmp.ne.s32.totalorder %s201, %s215
      %p217 = scmp.eq.s32.totalorder %s23, 0
      %p218 = por %p216, %p217
      %s219 = ssub.s32 %s17, %s24
      %p220 = scmp.eq.s32.totalorder %s219, 0
      %s222 = sadd.s32 %s221, 1
      %s223 = scalar_select %p220, %s221, %s222
      %p226 = pneg %p220
      %p227 = scmp.eq.s32.totalorder %s17, 1
      %p228 = por %p226, %p227
      %p229 = scmp.ne.s32.totalorder %s221, %s224
      %p230 = scmp.eq.s32.totalorder %s17, 0
      %p231 = por %p229, %p230
      %p232 = scmp.ne.s32.totalorder %s221, %s224
      %p233 = scmp.eq.s32.totalorder %s22, 1
      %p234 = por %p232, %p233
      %p235 = scmp.ne.s32.totalorder %s224, %s225
      %p236 = scmp.eq.s32.totalorder %s22, 0
      %p237 = por %p235, %p236
      %p238 = scmp.ne.s32.totalorder %s224, %s225
      %p239 = scmp.eq.s32.totalorder %s23, 1
      %p240 = por %p238, %p239
      %p242 = scmp.ne.s32.totalorder %s225, %s241
      %p243 = scmp.eq.s32.totalorder %s23, 0
      %p244 = por %p242, %p243
      %p245 = scmp.le.s32.totalorder 1, %s17
      %p246 = scmp.lt.s32.totalorder %s17, 3
      %p247 = pnand %p245, %p246
      %p248 = pneg %p247
      // Predicated region
      $region9: #{fno2d_forward.3} parent=5 // pred_check
        _
      $region10: #{fno2d_forward.3} parent=5 // pred_check_branch
        %250 = sbr.rel (%p247) target = $region12
      $region11: #{fno2d_forward.3} parent=5 // pred_region
        %s251 = ssub.s32 %s17, 1
        // Predicated region
        $region13: #{fno2d_forward.3} parent=11 // pred_check
          %p252 = pneg %p64
        $region14: #{fno2d_forward.3} parent=11 // pred_check_branch
          %254 = sbr.rel (%p252) target = $region16
        $region15: #{fno2d_forward.3} parent=11 // pred_region
          _
        $region16: #{fno2d_forward.3} parent=11 // pred_fallthru
          _
        // Predicated region
        $region17: #{fno2d_forward.3} parent=11 // pred_check
          %p255 = pneg %p85
        $region18: #{fno2d_forward.3} parent=11 // pred_check_branch
          %257 = sbr.rel (%p255) target = $region20
        $region19: #{fno2d_forward.3} parent=11 // pred_region
          _
        $region20: #{fno2d_forward.3} parent=11 // pred_fallthru
          _
        // Predicated region
        $region21: #{fno2d_forward.3} parent=11 // pred_check
          %p258 = pneg %p106
        $region22: #{fno2d_forward.3} parent=11 // pred_check_branch
          %260 = sbr.rel (%p258) target = $region24
        $region23: #{fno2d_forward.3} parent=11 // pred_region
          _
        $region24: #{fno2d_forward.3} parent=11 // pred_fallthru
          _
        // Predicated region
        $region25: #{fno2d_forward.3} parent=11 // pred_check
          %p261 = pneg %p127
        $region26: #{fno2d_forward.3} parent=11 // pred_check_branch
          %263 = sbr.rel (%p261) target = $region28
        $region27: #{fno2d_forward.3} parent=11 // pred_region
          _
        $region28: #{fno2d_forward.3} parent=11 // pred_fallthru
          _
        // Predicated region
        $region29: #{fno2d_forward.3} parent=11 // pred_check
          %p264 = pneg %p148
        $region30: #{fno2d_forward.3} parent=11 // pred_check_branch
          %266 = sbr.rel (%p264) target = $region32
        $region31: #{fno2d_forward.3} parent=11 // pred_region
          _
        $region32: #{fno2d_forward.3} parent=11 // pred_fallthru
          _
        // Predicated region
        $region33: #{fno2d_forward.3} parent=11 // pred_check
          %p267 = pneg %p169
        $region34: #{fno2d_forward.3} parent=11 // pred_check_branch
          %269 = sbr.rel (%p267) target = $region36
        $region35: #{fno2d_forward.3} parent=11 // pred_region
          _
        $region36: #{fno2d_forward.3} parent=11 // pred_fallthru
          _
        // Predicated region
        $region37: #{fno2d_forward.3} parent=11 // pred_check
          %p270 = pneg %p190
        $region38: #{fno2d_forward.3} parent=11 // pred_check_branch
          %272 = sbr.rel (%p270) target = $region40
        $region39: #{fno2d_forward.3} parent=11 // pred_region
          _
        $region40: #{fno2d_forward.3} parent=11 // pred_fallthru
          _
        // Predicated region
        $region41: #{fno2d_forward.3} parent=11 // pred_check
          %p273 = pneg %p211
        $region42: #{fno2d_forward.3} parent=11 // pred_check_branch
          %275 = sbr.rel (%p273) target = $region44
        $region43: #{fno2d_forward.3} parent=11 // pred_region
          _
        $region44: #{fno2d_forward.3} parent=11 // pred_fallthru
          _
      $region12: #{fno2d_forward.3} parent=5 // pred_fallthru
        _
      %p276 = scmp.lt.s32.totalorder %s17, 2
      // Predicated region
      $region45: #{fno2d_forward.3} parent=5 // pred_check
        %p277 = pneg %p276
      $region46: #{fno2d_forward.3} parent=5 // pred_check_branch
        %279 = sbr.rel (%p277) target = $region48
      $region47: #{fno2d_forward.3} parent=5 // pred_region
        // Predicated region
        $region49: #{fno2d_forward.3} parent=47 // pred_check
          %p280 = pneg %p37
        $region50: #{fno2d_forward.3} parent=47 // pred_check_branch
          %282 = sbr.rel (%p280) target = $region52
        $region51: #{fno2d_forward.3} parent=47 // pred_region
          %s283 = sand.u32 %s27, 1
          %s284 = sand.u32 %s27, 1
          %s285 = smul.addr %s284, 64
          %s286 = scalar_lea.vmem [#allocation3], %s285
          %s287 = smul.u32 2, %s17
          %s288 = smul.addr %s287, 8
          %s289 = scalar_lea.vmem %s0, %s288
          // Predicated region
          $region53: #{fno2d_forward.3} parent=51 // pred_check
            _
          $region54: #{fno2d_forward.3} parent=51 // pred_check_branch
            %291 = sbr.rel (0) target = $region56
          $region55: #{fno2d_forward.3} parent=51 // pred_region
            // Predicated region
            $region57: #{fno2d_forward.3} parent=55 // pred_check
              _
            $region58: #{fno2d_forward.3} parent=55 // pred_check_branch
              %293 = sbr.rel (0) target = $region60
            $region59: #{fno2d_forward.3} parent=55 // pred_region
              loop: start=0, step=1, limit=1
              $region61: #{fno2d_forward.3} parent=59 // loop_pre_header
                _
              $region62: #{fno2d_forward.3} parent=59 // loop_header
                %s295 = sphi 0, %s299
                %p296 = scmp.ge.s32.totalorder %s295, 1
                %s300 = sphi %s289, %s289
                %s301 = sphi %s286, %s286
              $region63: #{fno2d_forward.3} parent=59 // loop_header_branch
                %298 = sbr.rel (%p296) target = $region67
              $region64: #{fno2d_forward.3} parent=59 // loop_body
                %v302 = vld [vmem:[%s300] sm:$0xff]
                %303 = vst [vmem:[%s301] sm:$0xff] %v302
                %v304 = vld [vmem:[%s300 + $0x8] sm:$0xff]
                %305 = vst [vmem:[%s301 + $0x8] sm:$0xff] %v304
                %v306 = vld [vmem:[%s300 + $0x20] sm:$0xff]
                %307 = vst [vmem:[%s301 + $0x10] sm:$0xff] %v306
                %v308 = vld [vmem:[%s300 + $0x28] sm:$0xff]
                %309 = vst [vmem:[%s301 + $0x18] sm:$0xff] %v308
                %v310 = vld [vmem:[%s300 + $0x40] sm:$0xff]
                %311 = vst [vmem:[%s301 + $0x20] sm:$0xff] %v310
                %v312 = vld [vmem:[%s300 + $0x48] sm:$0xff]
                %313 = vst [vmem:[%s301 + $0x28] sm:$0xff] %v312
                %v314 = vld [vmem:[%s300 + $0x60] sm:$0xff]
                %315 = vst [vmem:[%s301 + $0x30] sm:$0xff] %v314
                %v316 = vld [vmem:[%s300 + $0x68] sm:$0xff]
                %317 = vst [vmem:[%s301 + $0x38] sm:$0xff] %v316
              $region65: #{fno2d_forward.3} parent=59 // loop_footer
                %s299 = sadd.s32 1, %s295
              $region66: #{fno2d_forward.3} parent=59 // loop_footer_branch
                %294 = sbr.rel target = $region62
              $region67: #{fno2d_forward.3} parent=59 // loop_exit
                _
            $region60: #{fno2d_forward.3} parent=55 // pred_fallthru
              _
            // Predicated region
            $region68: #{fno2d_forward.3} parent=55 // pred_check
              _
            $region69: #{fno2d_forward.3} parent=55 // pred_check_branch
              %319 = sbr.rel target = $region71
            $region70: #{fno2d_forward.3} parent=55 // pred_region
              _
            $region71: #{fno2d_forward.3} parent=55 // pred_fallthru
              _
          $region56: #{fno2d_forward.3} parent=51 // pred_fallthru
            _
          %320 = vnop
        $region52: #{fno2d_forward.3} parent=47 // pred_fallthru
          _
      $region48: #{fno2d_forward.3} parent=5 // pred_fallthru
        _
      %p321 = scmp.le.s32.totalorder 1, %s17
      %p322 = scmp.lt.s32.totalorder %s17, 3
      %p323 = pnand %p321, %p322
      %p324 = pneg %p323
      // Predicated region
      $region72: #{fno2d_forward.3} parent=5 // pred_check
        _
      $region73: #{fno2d_forward.3} parent=5 // pred_check_branch
        %326 = sbr.rel (%p323) target = $region75
      $region74: #{fno2d_forward.3} parent=5 // pred_region
        %s327 = ssub.s32 %s17, 1
        %s328 = sand.u32 %s30, 1
        %s329 = sand.u32 %s30, 1
        %s330 = smul.addr %s329, 64
        %s331 = scalar_lea.vmem [#allocation3], %s330
        // Predicated region
        $region76: #{fno2d_forward.3} parent=74 // pred_check
          %p332 = pneg %p43
        $region77: #{fno2d_forward.3} parent=74 // pred_check_branch
          %334 = sbr.rel (%p332) target = $region79
        $region78: #{fno2d_forward.3} parent=74 // pred_region
          _
        $region79: #{fno2d_forward.3} parent=74 // pred_fallthru
          _
        %s335 = sand.u32 %s30, 1
        %s336 = sand.u32 %s30, 1
        %s337 = smul.addr %s336, 64
        %s338 = scalar_lea.vmem [#allocation3], %s337
        %p339 = pneg %p43
        %p340 = pneg %p40
        %p341 = pneg %p64
        %p342 = pneg %p61
        %p343 = pneg %p85
        %p344 = pneg %p82
        %p345 = pneg %p106
        %p346 = pneg %p103
        %p347 = pneg %p127
        %p348 = pneg %p124
        %p349 = pneg %p148
        %p350 = pneg %p145
        %p351 = pneg %p169
        %p352 = pneg %p166
        %p353 = pneg %p190
        %p354 = pneg %p187
        %p355 = pneg %p211
        %p356 = pneg %p208
        %p357 = pneg %p237
        %p358 = pneg %p234
        %s359 = smul.u32 2, %s22
        %p360 = scmp.lt.s32.totalorder %s359, 3
        %s361 = scalar_select %p360, %s359, 3
        %s362 = scalar_lea.vmem %s9, %s361
        %s363 = smul.u32 2, %s22
        %s364 = smul.u32 2, %s22
        %p365 = scmp.lt.s32.totalorder %s364, 3
        %s366 = scalar_select %p365, %s364, 3
        %s367 = scalar_lea.vmem %s9, %s366
        %s368 = smul.u32 2, %s22
        %v369 = vld [vmem:[%s1] sm:$0xff]
        %v370 = vld [vmem:[%s1 + $0x8] sm:$0xff]
        %v371 = vld [vmem:[%s1 + $0x10] sm:$0xff]
        %v372 = vld [vmem:[%s1 + $0x18] sm:$0xff]
        %v373 = vld [vmem:[%s1 + $0x20] sm:$0xff]
        %v374 = vld [vmem:[%s1 + $0x28] sm:$0xff]
        %v375 = vld [vmem:[%s1 + $0x30] sm:$0xff]
        %v376 = vld [vmem:[%s1 + $0x38] sm:$0xff]
        %v377 = vld [vmem:[%s1 + $0x40] sm:$0xff]
        %v378 = vld [vmem:[%s1 + $0x48] sm:$0xff]
        %v379 = vld [vmem:[%s1 + $0x50] sm:$0xff]
        %v380 = vld [vmem:[%s1 + $0x58] sm:$0xff]
        %v381 = vld [vmem:[%s1 + $0x60] sm:$0xff]
        %v382 = vld [vmem:[%s1 + $0x68] sm:$0xff]
        %v383 = vld [vmem:[%s1 + $0x70] sm:$0xff]
        %v384 = vld [vmem:[%s1 + $0x78] sm:$0xff]
        %v385 = vld [vmem:[%s1 + $0x80] sm:$0xff]
        %v386 = vld [vmem:[%s1 + $0x88] sm:$0xff]
        %v387 = vld [vmem:[%s1 + $0x90] sm:$0xff]
        %v388 = vld [vmem:[%s1 + $0x98] sm:$0xff]
        %v389 = vld [vmem:[%s1 + $0xa0] sm:$0xff]
        %v390 = vld [vmem:[%s1 + $0xa8] sm:$0xff]
        %v391 = vld [vmem:[%s1 + $0xb0] sm:$0xff]
        %v392 = vld [vmem:[%s1 + $0xb8] sm:$0xff]
        %v393 = vld [vmem:[%s1 + $0xc0] sm:$0xff]
        %v394 = vld [vmem:[%s1 + $0xc8] sm:$0xff]
        %v395 = vld [vmem:[%s1 + $0xd0] sm:$0xff]
        %v396 = vld [vmem:[%s1 + $0xd8] sm:$0xff]
        %v397 = vld [vmem:[%s1 + $0xe0] sm:$0xff]
        %v398 = vld [vmem:[%s1 + $0xe8] sm:$0xff]
        %v399 = vld [vmem:[%s1 + $0xf0] sm:$0xff]
        %v400 = vld [vmem:[%s1 + $0xf8] sm:$0xff]
        %v401 = vld [vmem:[%s331] sm:$0xff]
        %v402 = vld [vmem:[%s331 + $0x8] sm:$0xff]
        %v403 = vld [vmem:[%s331 + $0x10] sm:$0xff]
        %v404 = vld [vmem:[%s331 + $0x18] sm:$0xff]
        %v405 = vld [vmem:[%s331 + $0x20] sm:$0xff]
        %v406 = vld [vmem:[%s331 + $0x28] sm:$0xff]
        %v407 = vld [vmem:[%s331 + $0x30] sm:$0xff]
        %v408 = vld [vmem:[%s331 + $0x38] sm:$0xff]
        %v409 = vld [vmem:[%s2] sm:$0xff]
        %v410 = vld [vmem:[%s2 + $0x8] sm:$0xff]
        %v411 = vld [vmem:[%s2 + $0x10] sm:$0xff]
        %v412 = vld [vmem:[%s2 + $0x18] sm:$0xff]
        %v413 = vld [vmem:[%s2 + $0x20] sm:$0xff]
        %v414 = vld [vmem:[%s2 + $0x28] sm:$0xff]
        %v415 = vld [vmem:[%s2 + $0x30] sm:$0xff]
        %v416 = vld [vmem:[%s2 + $0x38] sm:$0xff]
        %v417 = vld [vmem:[%s2 + $0x40] sm:$0xff]
        %v418 = vld [vmem:[%s2 + $0x48] sm:$0xff]
        %v419 = vld [vmem:[%s2 + $0x50] sm:$0xff]
        %v420 = vld [vmem:[%s2 + $0x58] sm:$0xff]
        %v421 = vld [vmem:[%s2 + $0x60] sm:$0xff]
        %v422 = vld [vmem:[%s2 + $0x68] sm:$0xff]
        %v423 = vld [vmem:[%s2 + $0x70] sm:$0xff]
        %v424 = vld [vmem:[%s2 + $0x78] sm:$0xff]
        %v425 = vld [vmem:[%s2 + $0x80] sm:$0xff]
        %v426 = vld [vmem:[%s2 + $0x88] sm:$0xff]
        %v427 = vld [vmem:[%s2 + $0x90] sm:$0xff]
        %v428 = vld [vmem:[%s2 + $0x98] sm:$0xff]
        %v429 = vld [vmem:[%s2 + $0xa0] sm:$0xff]
        %v430 = vld [vmem:[%s2 + $0xa8] sm:$0xff]
        %v431 = vld [vmem:[%s2 + $0xb0] sm:$0xff]
        %v432 = vld [vmem:[%s2 + $0xb8] sm:$0xff]
        %v433 = vld [vmem:[%s2 + $0xc0] sm:$0xff]
        %v434 = vld [vmem:[%s2 + $0xc8] sm:$0xff]
        %v435 = vld [vmem:[%s2 + $0xd0] sm:$0xff]
        %v436 = vld [vmem:[%s2 + $0xd8] sm:$0xff]
        %v437 = vld [vmem:[%s2 + $0xe0] sm:$0xff]
        %v438 = vld [vmem:[%s2 + $0xe8] sm:$0xff]
        %v439 = vld [vmem:[%s2 + $0xf0] sm:$0xff]
        %v440 = vld [vmem:[%s2 + $0xf8] sm:$0xff]
        %442 = vset.pattern.permute.xlu0 0
        %443 = vperm.xlu0 %442, %v409
        %v444 = vpop.permute.xlu0 %443
        %447 = vset.pattern.permute.xlu0 0
        %448 = vperm.xlu0 %447, %v410
        %v449 = vpop.permute.xlu0 %448
        %452 = vset.pattern.permute.xlu0 0
        %453 = vperm.xlu0 %452, %v411
        %v454 = vpop.permute.xlu0 %453
        %457 = vset.pattern.permute.xlu0 0
        %458 = vperm.xlu0 %457, %v412
        %v459 = vpop.permute.xlu0 %458
        %462 = vset.pattern.permute.xlu0 0
        %463 = vperm.xlu0 %462, %v413
        %v464 = vpop.permute.xlu0 %463
        %467 = vset.pattern.permute.xlu0 0
        %468 = vperm.xlu0 %467, %v414
        %v469 = vpop.permute.xlu0 %468
        %472 = vset.pattern.permute.xlu0 0
        %473 = vperm.xlu0 %472, %v415
        %v474 = vpop.permute.xlu0 %473
        %477 = vset.pattern.permute.xlu0 0
        %478 = vperm.xlu0 %477, %v416
        %v479 = vpop.permute.xlu0 %478
        %482 = vset.pattern.permute.xlu0 0
        %483 = vperm.xlu0 %482, %v417
        %v484 = vpop.permute.xlu0 %483
        %487 = vset.pattern.permute.xlu0 0
        %488 = vperm.xlu0 %487, %v418
        %v489 = vpop.permute.xlu0 %488
        %492 = vset.pattern.permute.xlu0 0
        %493 = vperm.xlu0 %492, %v419
        %v494 = vpop.permute.xlu0 %493
        %497 = vset.pattern.permute.xlu0 0
        %498 = vperm.xlu0 %497, %v420
        %v499 = vpop.permute.xlu0 %498
        %502 = vset.pattern.permute.xlu0 0
        %503 = vperm.xlu0 %502, %v421
        %v504 = vpop.permute.xlu0 %503
        %507 = vset.pattern.permute.xlu0 0
        %508 = vperm.xlu0 %507, %v422
        %v509 = vpop.permute.xlu0 %508
        %512 = vset.pattern.permute.xlu0 0
        %513 = vperm.xlu0 %512, %v423
        %v514 = vpop.permute.xlu0 %513
        %517 = vset.pattern.permute.xlu0 0
        %518 = vperm.xlu0 %517, %v424
        %v519 = vpop.permute.xlu0 %518
        %522 = vset.pattern.permute.xlu0 0
        %523 = vperm.xlu0 %522, %v425
        %v524 = vpop.permute.xlu0 %523
        %527 = vset.pattern.permute.xlu0 0
        %528 = vperm.xlu0 %527, %v426
        %v529 = vpop.permute.xlu0 %528
        %532 = vset.pattern.permute.xlu0 0
        %533 = vperm.xlu0 %532, %v427
        %v534 = vpop.permute.xlu0 %533
        %537 = vset.pattern.permute.xlu0 0
        %538 = vperm.xlu0 %537, %v428
        %v539 = vpop.permute.xlu0 %538
        %542 = vset.pattern.permute.xlu0 0
        %543 = vperm.xlu0 %542, %v429
        %v544 = vpop.permute.xlu0 %543
        %547 = vset.pattern.permute.xlu0 0
        %548 = vperm.xlu0 %547, %v430
        %v549 = vpop.permute.xlu0 %548
        %552 = vset.pattern.permute.xlu0 0
        %553 = vperm.xlu0 %552, %v431
        %v554 = vpop.permute.xlu0 %553
        %557 = vset.pattern.permute.xlu0 0
        %558 = vperm.xlu0 %557, %v432
        %v559 = vpop.permute.xlu0 %558
        %562 = vset.pattern.permute.xlu0 0
        %563 = vperm.xlu0 %562, %v433
        %v564 = vpop.permute.xlu0 %563
        %567 = vset.pattern.permute.xlu0 0
        %568 = vperm.xlu0 %567, %v434
        %v569 = vpop.permute.xlu0 %568
        %572 = vset.pattern.permute.xlu0 0
        %573 = vperm.xlu0 %572, %v435
        %v574 = vpop.permute.xlu0 %573
        %577 = vset.pattern.permute.xlu0 0
        %578 = vperm.xlu0 %577, %v436
        %v579 = vpop.permute.xlu0 %578
        %582 = vset.pattern.permute.xlu0 0
        %583 = vperm.xlu0 %582, %v437
        %v584 = vpop.permute.xlu0 %583
        %587 = vset.pattern.permute.xlu0 0
        %588 = vperm.xlu0 %587, %v438
        %v589 = vpop.permute.xlu0 %588
        %592 = vset.pattern.permute.xlu0 0
        %593 = vperm.xlu0 %592, %v439
        %v594 = vpop.permute.xlu0 %593
        %597 = vset.pattern.permute.xlu0 0
        %598 = vperm.xlu0 %597, %v440
        %v599 = vpop.permute.xlu0 %598
        %vm601 = vcmask 261120
        %v603 = vsel %vm601, %v369, 0
        %v606 = vsel %vm601, %v370, 0
        %v609 = vsel %vm601, %v371, 0
        %v612 = vsel %vm601, %v372, 0
        %v615 = vsel %vm601, %v373, 0
        %v618 = vsel %vm601, %v374, 0
        %v621 = vsel %vm601, %v375, 0
        %v624 = vsel %vm601, %v376, 0
        %v627 = vsel %vm601, %v377, 0
        %v630 = vsel %vm601, %v378, 0
        %v633 = vsel %vm601, %v379, 0
        %v636 = vsel %vm601, %v380, 0
        %v639 = vsel %vm601, %v381, 0
        %v642 = vsel %vm601, %v382, 0
        %v645 = vsel %vm601, %v383, 0
        %v648 = vsel %vm601, %v384, 0
        %v651 = vsel %vm601, %v385, 0
        %v654 = vsel %vm601, %v386, 0
        %v657 = vsel %vm601, %v387, 0
        %v660 = vsel %vm601, %v388, 0
        %v663 = vsel %vm601, %v389, 0
        %v666 = vsel %vm601, %v390, 0
        %v669 = vsel %vm601, %v391, 0
        %v672 = vsel %vm601, %v392, 0
        %v675 = vsel %vm601, %v393, 0
        %v678 = vsel %vm601, %v394, 0
        %v681 = vsel %vm601, %v395, 0
        %v684 = vsel %vm601, %v396, 0
        %v687 = vsel %vm601, %v397, 0
        %v690 = vsel %vm601, %v398, 0
        %v693 = vsel %vm601, %v399, 0
        %v696 = vsel %vm601, %v400, 0
        %698 = vmatprep.subr.mxu0 %v402
        %699 = vmatpush1.msra.mxu0 %v401
        %700 = vmatprep.subr.mxu0 %v404
        %701 = vmatpush1.msra.mxu0 %v403
        %702 = vmatprep.subr.mxu0 %v406
        %703 = vmatpush1.msra.mxu0 %v405
        %704 = vmatprep.subr.mxu0 %v408
        %705 = vmatpush1.msra.mxu0 %v407
        %706 = vmatprep.subr.mxu0 0.0
        %707 = vmatpush1.msra.mxu0 0.0
        %708 = vmatprep.subr.mxu0 0.0
        %709 = vmatpush1.msra.mxu0 0.0
        %710 = vmatprep.subr.mxu0 0.0
        %711 = vmatpush1.msra.mxu0 0.0
        %712 = vmatprep.subr.mxu0 0.0
        %713 = vmatpush1.msra.mxu0 0.0
        %714 = vmatprep.subr.mxu0 0.0
        %715 = vmatpush1.msra.mxu0 0.0
        %716 = vmatprep.subr.mxu0 0.0
        %717 = vmatpush1.msra.mxu0 0.0
        %718 = vmatprep.subr.mxu0 0.0
        %719 = vmatpush1.msra.mxu0 0.0
        %720 = vmatprep.subr.mxu0 0.0
        %721 = vmatpush1.msra.mxu0 0.0
        %722 = vmatprep.subr.mxu0 0.0
        %723 = vmatpush1.msra.mxu0 0.0
        %724 = vmatprep.subr.mxu0 0.0
        %725 = vmatpush1.msra.mxu0 0.0
        %726 = vmatprep.subr.mxu0 0.0
        %727 = vmatpush1.msra.mxu0 0.0
        %728 = vmatprep.subr.mxu0 0.0
        %729 = vmatpush1.msra.mxu0 0.0
        %730 = vmatprep.subr.mxu0 0.0
        %731 = vmatpush1.msra.mxu0 0.0
        %732 = vmatprep.subr.mxu0 0.0
        %733 = vmatpush1.msra.mxu0 0.0
        %734 = vmatprep.subr.mxu0 0.0
        %735 = vmatpush1.msra.mxu0 0.0
        %736 = vmatprep.subr.mxu0 0.0
        %737 = vmatpush1.msra.mxu0 0.0
        %738 = vmatprep.subr.mxu0 0.0
        %739 = vmatpush1.msra.mxu0 0.0
        %740 = vmatprep.subr.mxu0 0.0
        %741 = vmatpush1.msra.mxu0 0.0
        %742 = vmatprep.subr.mxu0 0.0
        %743 = vmatpush1.msra.mxu0 0.0
        %744 = vmatprep.subr.mxu0 0.0
        %745 = vmatpush1.msra.mxu0 0.0
        %746 = vmatprep.subr.mxu0 0.0
        %747 = vmatpush1.msra.mxu0 0.0
        %748 = vmatprep.subr.mxu0 0.0
        %749 = vmatpush1.msra.mxu0 0.0
        %750 = vmatprep.subr.mxu0 0.0
        %751 = vmatpush1.msra.mxu0 0.0
        %752 = vmatprep.subr.mxu0 0.0
        %753 = vmatpush1.msra.mxu0 0.0
        %754 = vmatprep.subr.mxu0 0.0
        %755 = vmatpush1.msra.mxu0 0.0
        %756 = vmatprep.subr.mxu0 0.0
        %757 = vmatpush1.msra.mxu0 0.0
        %758 = vmatprep.subr.mxu0 0.0
        %759 = vmatpush1.msra.mxu0 0.0
        %760 = vmatprep.subr.mxu0 0.0
        %761 = vmatpush1.msra.mxu0 0.0
        %762 = vmatprep.mubr.f32.mxu0 0.0
        %763 = vmatmul.mubr.f32.gmra.mrb[0].mxu0 %v603
        %v764 = vpop.f32.mrb[0].mxu0
        %v765 = vadd.f32 %v444, %v764
        %v766 = vpop.f32.mrb[0].mxu0
        %v767 = vadd.f32 %v444, %v766
        %768 = vmatprep.mubr.f32.mxu0 0.0
        %769 = vmatmul.mubr.f32.gmra.mrb[0].mxu0 %v606
        %v770 = vpop.f32.mrb[0].mxu0
        %v771 = vadd.f32 %v449, %v770
        %v772 = vpop.f32.mrb[0].mxu0
        %v773 = vadd.f32 %v449, %v772
        %774 = vmatprep.mubr.f32.mxu0 0.0
        %775 = vmatmul.mubr.f32.gmra.mrb[0].mxu0 %v609
        %v776 = vpop.f32.mrb[0].mxu0
        %v777 = vadd.f32 %v454, %v776
        %v778 = vpop.f32.mrb[0].mxu0
        %v779 = vadd.f32 %v454, %v778
        %780 = vmatprep.mubr.f32.mxu0 0.0
        %781 = vmatmul.mubr.f32.gmra.mrb[0].mxu0 %v612
        %v782 = vpop.f32.mrb[0].mxu0
        %v783 = vadd.f32 %v459, %v782
        %v784 = vpop.f32.mrb[0].mxu0
        %v785 = vadd.f32 %v459, %v784
        %786 = vmatprep.mubr.f32.mxu0 0.0
        %787 = vmatmul.mubr.f32.gmra.mrb[0].mxu0 %v615
        %v788 = vpop.f32.mrb[0].mxu0
        %v789 = vadd.f32 %v464, %v788
        %v790 = vpop.f32.mrb[0].mxu0
        %v791 = vadd.f32 %v464, %v790
        %792 = vmatprep.mubr.f32.mxu0 0.0
        %793 = vmatmul.mubr.f32.gmra.mrb[0].mxu0 %v618
        %v794 = vpop.f32.mrb[0].mxu0
        %v795 = vadd.f32 %v469, %v794
        %v796 = vpop.f32.mrb[0].mxu0
        %v797 = vadd.f32 %v469, %v796
        %798 = vmatprep.mubr.f32.mxu0 0.0
        %799 = vmatmul.mubr.f32.gmra.mrb[0].mxu0 %v621
        %v800 = vpop.f32.mrb[0].mxu0
        %v801 = vadd.f32 %v474, %v800
        %v802 = vpop.f32.mrb[0].mxu0
        %v803 = vadd.f32 %v474, %v802
        %804 = vmatprep.mubr.f32.mxu0 0.0
        %805 = vmatmul.mubr.f32.gmra.mrb[0].mxu0 %v624
        %v806 = vpop.f32.mrb[0].mxu0
        %v807 = vadd.f32 %v479, %v806
        %v808 = vpop.f32.mrb[0].mxu0
        %v809 = vadd.f32 %v479, %v808
        %810 = vmatprep.mubr.f32.mxu0 0.0
        %811 = vmatmul.mubr.f32.gmra.mrb[0].mxu0 %v627
        %v812 = vpop.f32.mrb[0].mxu0
        %v813 = vadd.f32 %v484, %v812
        %v814 = vpop.f32.mrb[0].mxu0
        %v815 = vadd.f32 %v484, %v814
        %816 = vmatprep.mubr.f32.mxu0 0.0
        %817 = vmatmul.mubr.f32.gmra.mrb[0].mxu0 %v630
        %v818 = vpop.f32.mrb[0].mxu0
        %v819 = vadd.f32 %v489, %v818
        %v820 = vpop.f32.mrb[0].mxu0
        %v821 = vadd.f32 %v489, %v820
        %822 = vmatprep.mubr.f32.mxu0 0.0
        %823 = vmatmul.mubr.f32.gmra.mrb[0].mxu0 %v633
        %v824 = vpop.f32.mrb[0].mxu0
        %v825 = vadd.f32 %v494, %v824
        %v826 = vpop.f32.mrb[0].mxu0
        %v827 = vadd.f32 %v494, %v826
        %828 = vmatprep.mubr.f32.mxu0 0.0
        %829 = vmatmul.mubr.f32.gmra.mrb[0].mxu0 %v636
        %v830 = vpop.f32.mrb[0].mxu0
        %v831 = vadd.f32 %v499, %v830
        %v832 = vpop.f32.mrb[0].mxu0
        %v833 = vadd.f32 %v499, %v832
        %834 = vmatprep.mubr.f32.mxu0 0.0
        %835 = vmatmul.mubr.f32.gmra.mrb[0].mxu0 %v639
        %v836 = vpop.f32.mrb[0].mxu0
        %v837 = vadd.f32 %v504, %v836
        %v838 = vpop.f32.mrb[0].mxu0
        %v839 = vadd.f32 %v504, %v838
        %840 = vmatprep.mubr.f32.mxu0 0.0
        %841 = vmatmul.mubr.f32.gmra.mrb[0].mxu0 %v642
        %v842 = vpop.f32.mrb[0].mxu0
        %v843 = vadd.f32 %v509, %v842
        %v844 = vpop.f32.mrb[0].mxu0
        %v845 = vadd.f32 %v509, %v844
        %846 = vmatprep.mubr.f32.mxu0 0.0
        %847 = vmatmul.mubr.f32.gmra.mrb[0].mxu0 %v645
        %v848 = vpop.f32.mrb[0].mxu0
        %v849 = vadd.f32 %v514, %v848
        %v850 = vpop.f32.mrb[0].mxu0
        %v851 = vadd.f32 %v514, %v850
        %852 = vmatprep.mubr.f32.mxu0 0.0
        %853 = vmatmul.mubr.f32.gmra.mrb[0].mxu0 %v648
        %v854 = vpop.f32.mrb[0].mxu0
        %v855 = vadd.f32 %v519, %v854
        %v856 = vpop.f32.mrb[0].mxu0
        %v857 = vadd.f32 %v519, %v856
        %858 = vmatprep.mubr.f32.mxu0 0.0
        %859 = vmatmul.mubr.f32.gmra.mrb[0].mxu0 %v651
        %v860 = vpop.f32.mrb[0].mxu0
        %v861 = vadd.f32 %v524, %v860
        %v862 = vpop.f32.mrb[0].mxu0
        %v863 = vadd.f32 %v524, %v862
        %864 = vmatprep.mubr.f32.mxu0 0.0
        %865 = vmatmul.mubr.f32.gmra.mrb[0].mxu0 %v654
        %v866 = vpop.f32.mrb[0].mxu0
        %v867 = vadd.f32 %v529, %v866
        %v868 = vpop.f32.mrb[0].mxu0
        %v869 = vadd.f32 %v529, %v868
        %870 = vmatprep.mubr.f32.mxu0 0.0
        %871 = vmatmul.mubr.f32.gmra.mrb[0].mxu0 %v657
        %v872 = vpop.f32.mrb[0].mxu0
        %v873 = vadd.f32 %v534, %v872
        %v874 = vpop.f32.mrb[0].mxu0
        %v875 = vadd.f32 %v534, %v874
        %876 = vmatprep.mubr.f32.mxu0 0.0
        %877 = vmatmul.mubr.f32.gmra.mrb[0].mxu0 %v660
        %v878 = vpop.f32.mrb[0].mxu0
        %v879 = vadd.f32 %v539, %v878
        %v880 = vpop.f32.mrb[0].mxu0
        %v881 = vadd.f32 %v539, %v880
        %882 = vmatprep.mubr.f32.mxu0 0.0
        %883 = vmatmul.mubr.f32.gmra.mrb[0].mxu0 %v663
        %v884 = vpop.f32.mrb[0].mxu0
        %v885 = vadd.f32 %v544, %v884
        %v886 = vpop.f32.mrb[0].mxu0
        %v887 = vadd.f32 %v544, %v886
        %888 = vmatprep.mubr.f32.mxu0 0.0
        %889 = vmatmul.mubr.f32.gmra.mrb[0].mxu0 %v666
        %v890 = vpop.f32.mrb[0].mxu0
        %v891 = vadd.f32 %v549, %v890
        %v892 = vpop.f32.mrb[0].mxu0
        %v893 = vadd.f32 %v549, %v892
        %894 = vmatprep.mubr.f32.mxu0 0.0
        %895 = vmatmul.mubr.f32.gmra.mrb[0].mxu0 %v669
        %v896 = vpop.f32.mrb[0].mxu0
        %v897 = vadd.f32 %v554, %v896
        %v898 = vpop.f32.mrb[0].mxu0
        %v899 = vadd.f32 %v554, %v898
        %900 = vmatprep.mubr.f32.mxu0 0.0
        %901 = vmatmul.mubr.f32.gmra.mrb[0].mxu0 %v672
        %v902 = vpop.f32.mrb[0].mxu0
        %v903 = vadd.f32 %v559, %v902
        %v904 = vpop.f32.mrb[0].mxu0
        %v905 = vadd.f32 %v559, %v904
        %906 = vmatprep.mubr.f32.mxu0 0.0
        %907 = vmatmul.mubr.f32.gmra.mrb[0].mxu0 %v675
        %v908 = vpop.f32.mrb[0].mxu0
        %v909 = vadd.f32 %v564, %v908
        %v910 = vpop.f32.mrb[0].mxu0
        %v911 = vadd.f32 %v564, %v910
        %912 = vmatprep.mubr.f32.mxu0 0.0
        %913 = vmatmul.mubr.f32.gmra.mrb[0].mxu0 %v678
        %v914 = vpop.f32.mrb[0].mxu0
        %v915 = vadd.f32 %v569, %v914
        %v916 = vpop.f32.mrb[0].mxu0
        %v917 = vadd.f32 %v569, %v916
        %918 = vmatprep.mubr.f32.mxu0 0.0
        %919 = vmatmul.mubr.f32.gmra.mrb[0].mxu0 %v681
        %v920 = vpop.f32.mrb[0].mxu0
        %v921 = vadd.f32 %v574, %v920
        %v922 = vpop.f32.mrb[0].mxu0
        %v923 = vadd.f32 %v574, %v922
        %924 = vmatprep.mubr.f32.mxu0 0.0
        %925 = vmatmul.mubr.f32.gmra.mrb[0].mxu0 %v684
        %v926 = vpop.f32.mrb[0].mxu0
        %v927 = vadd.f32 %v579, %v926
        %v928 = vpop.f32.mrb[0].mxu0
        %v929 = vadd.f32 %v579, %v928
        %930 = vmatprep.mubr.f32.mxu0 0.0
        %931 = vmatmul.mubr.f32.gmra.mrb[0].mxu0 %v687
        %v932 = vpop.f32.mrb[0].mxu0
        %v933 = vadd.f32 %v584, %v932
        %v934 = vpop.f32.mrb[0].mxu0
        %v935 = vadd.f32 %v584, %v934
        %936 = vmatprep.mubr.f32.mxu0 0.0
        %937 = vmatmul.mubr.f32.gmra.mrb[0].mxu0 %v690
        %v938 = vpop.f32.mrb[0].mxu0
        %v939 = vadd.f32 %v589, %v938
        %v940 = vpop.f32.mrb[0].mxu0
        %v941 = vadd.f32 %v589, %v940
        %942 = vmatprep.mubr.f32.mxu0 0.0
        %943 = vmatmul.mubr.f32.gmra.mrb[0].mxu0 %v693
        %v944 = vpop.f32.mrb[0].mxu0
        %v945 = vadd.f32 %v594, %v944
        %v946 = vpop.f32.mrb[0].mxu0
        %v947 = vadd.f32 %v594, %v946
        %948 = vmatprep.mubr.f32.mxu0 0.0
        %949 = vmatmul.mubr.f32.gmra.mrb[0].mxu0 %v696
        %v950 = vpop.f32.mrb[0].mxu0
        %v951 = vadd.f32 %v599, %v950
        %v952 = vpop.f32.mrb[0].mxu0
        %v953 = vadd.f32 %v599, %v952
        %954 = vdwg.mxu0
        %v955 = vmul.f32 %v765, 0.70710677
        %v956 = vmul.f32 %v767, 0.70710677
        %v957 = vmul.f32 %v771, 0.70710677
        %v958 = vmul.f32 %v773, 0.70710677
        %v959 = vmul.f32 %v777, 0.70710677
        %v960 = vmul.f32 %v779, 0.70710677
        %v961 = vmul.f32 %v783, 0.70710677
        %v962 = vmul.f32 %v785, 0.70710677
        %v963 = vmul.f32 %v789, 0.70710677
        %v964 = vmul.f32 %v791, 0.70710677
        %v965 = vmul.f32 %v795, 0.70710677
        %v966 = vmul.f32 %v797, 0.70710677
        %v967 = vmul.f32 %v801, 0.70710677
        %v968 = vmul.f32 %v803, 0.70710677
        %v969 = vmul.f32 %v807, 0.70710677
        %v970 = vmul.f32 %v809, 0.70710677
        %v971 = vmul.f32 %v813, 0.70710677
        %v972 = vmul.f32 %v815, 0.70710677
        %v973 = vmul.f32 %v819, 0.70710677
        %v974 = vmul.f32 %v821, 0.70710677
        %v975 = vmul.f32 %v825, 0.70710677
        %v976 = vmul.f32 %v827, 0.70710677
        %v977 = vmul.f32 %v831, 0.70710677
        %v978 = vmul.f32 %v833, 0.70710677
        %v979 = vmul.f32 %v837, 0.70710677
        %v980 = vmul.f32 %v839, 0.70710677
        %v981 = vmul.f32 %v843, 0.70710677
        %v982 = vmul.f32 %v845, 0.70710677
        %v983 = vmul.f32 %v849, 0.70710677
        %v984 = vmul.f32 %v851, 0.70710677
        %v985 = vmul.f32 %v855, 0.70710677
        %v986 = vmul.f32 %v857, 0.70710677
        %v987 = vmul.f32 %v861, 0.70710677
        %v988 = vmul.f32 %v863, 0.70710677
        %v989 = vmul.f32 %v867, 0.70710677
        %v990 = vmul.f32 %v869, 0.70710677
        %v991 = vmul.f32 %v873, 0.70710677
        %v992 = vmul.f32 %v875, 0.70710677
        %v993 = vmul.f32 %v879, 0.70710677
        %v994 = vmul.f32 %v881, 0.70710677
        %v995 = vmul.f32 %v885, 0.70710677
        %v996 = vmul.f32 %v887, 0.70710677
        %v997 = vmul.f32 %v891, 0.70710677
        %v998 = vmul.f32 %v893, 0.70710677
        %v999 = vmul.f32 %v897, 0.70710677
        %v1000 = vmul.f32 %v899, 0.70710677
        %v1001 = vmul.f32 %v903, 0.70710677
        %v1002 = vmul.f32 %v905, 0.70710677
        %v1003 = vmul.f32 %v909, 0.70710677
        %v1004 = vmul.f32 %v911, 0.70710677
        %v1005 = vmul.f32 %v915, 0.70710677
        %v1006 = vmul.f32 %v917, 0.70710677
        %v1007 = vmul.f32 %v921, 0.70710677
        %v1008 = vmul.f32 %v923, 0.70710677
        %v1009 = vmul.f32 %v927, 0.70710677
        %v1010 = vmul.f32 %v929, 0.70710677
        %v1011 = vmul.f32 %v933, 0.70710677
        %v1012 = vmul.f32 %v935, 0.70710677
        %v1013 = vmul.f32 %v939, 0.70710677
        %v1014 = vmul.f32 %v941, 0.70710677
        %v1015 = vmul.f32 %v945, 0.70710677
        %v1016 = vmul.f32 %v947, 0.70710677
        %v1017 = vmul.f32 %v951, 0.70710677
        %v1018 = vmul.f32 %v953, 0.70710677
        %v1019 = vand.u32 2147483647, %v955
        %v1020 = vand.u32 2147483647, %v956
        %v1021 = vand.u32 2147483647, %v957
        %v1022 = vand.u32 2147483647, %v958
        %v1023 = vand.u32 2147483647, %v959
        %v1024 = vand.u32 2147483647, %v960
        %v1025 = vand.u32 2147483647, %v961
        %v1026 = vand.u32 2147483647, %v962
        %v1027 = vand.u32 2147483647, %v963
        %v1028 = vand.u32 2147483647, %v964
        %v1029 = vand.u32 2147483647, %v965
        %v1030 = vand.u32 2147483647, %v966
        %v1031 = vand.u32 2147483647, %v967
        %v1032 = vand.u32 2147483647, %v968
        %v1033 = vand.u32 2147483647, %v969
        %v1034 = vand.u32 2147483647, %v970
        %v1035 = vand.u32 2147483647, %v971
        %v1036 = vand.u32 2147483647, %v972
        %v1037 = vand.u32 2147483647, %v973
        %v1038 = vand.u32 2147483647, %v974
        %v1039 = vand.u32 2147483647, %v975
        %v1040 = vand.u32 2147483647, %v976
        %v1041 = vand.u32 2147483647, %v977
        %v1042 = vand.u32 2147483647, %v978
        %v1043 = vand.u32 2147483647, %v979
        %v1044 = vand.u32 2147483647, %v980
        %v1045 = vand.u32 2147483647, %v981
        %v1046 = vand.u32 2147483647, %v982
        %v1047 = vand.u32 2147483647, %v983
        %v1048 = vand.u32 2147483647, %v984
        %v1049 = vand.u32 2147483647, %v985
        %v1050 = vand.u32 2147483647, %v986
        %v1051 = vand.u32 2147483647, %v987
        %v1052 = vand.u32 2147483647, %v988
        %v1053 = vand.u32 2147483647, %v989
        %v1054 = vand.u32 2147483647, %v990
        %v1055 = vand.u32 2147483647, %v991
        %v1056 = vand.u32 2147483647, %v992
        %v1057 = vand.u32 2147483647, %v993
        %v1058 = vand.u32 2147483647, %v994
        %v1059 = vand.u32 2147483647, %v995
        %v1060 = vand.u32 2147483647, %v996
        %v1061 = vand.u32 2147483647, %v997
        %v1062 = vand.u32 2147483647, %v998
        %v1063 = vand.u32 2147483647, %v999
        %v1064 = vand.u32 2147483647, %v1000
        %v1065 = vand.u32 2147483647, %v1001
        %v1066 = vand.u32 2147483647, %v1002
        %v1067 = vand.u32 2147483647, %v1003
        %v1068 = vand.u32 2147483647, %v1004
        %v1069 = vand.u32 2147483647, %v1005
        %v1070 = vand.u32 2147483647, %v1006
        %v1071 = vand.u32 2147483647, %v1007
        %v1072 = vand.u32 2147483647, %v1008
        %v1073 = vand.u32 2147483647, %v1009
        %v1074 = vand.u32 2147483647, %v1010
        %v1075 = vand.u32 2147483647, %v1011
        %v1076 = vand.u32 2147483647, %v1012
        %v1077 = vand.u32 2147483647, %v1013
        %v1078 = vand.u32 2147483647, %v1014
        %v1079 = vand.u32 2147483647, %v1015
        %v1080 = vand.u32 2147483647, %v1016
        %v1081 = vand.u32 2147483647, %v1017
        %v1082 = vand.u32 2147483647, %v1018
        %v1083 = vmul.f32 %v1019, 0.3275911
        %v1084 = vmul.f32 %v1020, 0.3275911
        %v1085 = vmul.f32 %v1021, 0.3275911
        %v1086 = vmul.f32 %v1022, 0.3275911
        %v1087 = vmul.f32 %v1023, 0.3275911
        %v1088 = vmul.f32 %v1024, 0.3275911
        %v1089 = vmul.f32 %v1025, 0.3275911
        %v1090 = vmul.f32 %v1026, 0.3275911
        %v1091 = vmul.f32 %v1027, 0.3275911
        %v1092 = vmul.f32 %v1028, 0.3275911
        %v1093 = vmul.f32 %v1029, 0.3275911
        %v1094 = vmul.f32 %v1030, 0.3275911
        %v1095 = vmul.f32 %v1031, 0.3275911
        %v1096 = vmul.f32 %v1032, 0.3275911
        %v1097 = vmul.f32 %v1033, 0.3275911
        %v1098 = vmul.f32 %v1034, 0.3275911
        %v1099 = vmul.f32 %v1035, 0.3275911
        %v1100 = vmul.f32 %v1036, 0.3275911
        %v1101 = vmul.f32 %v1037, 0.3275911
        %v1102 = vmul.f32 %v1038, 0.3275911
        %v1103 = vmul.f32 %v1039, 0.3275911
        %v1104 = vmul.f32 %v1040, 0.3275911
        %v1105 = vmul.f32 %v1041, 0.3275911
        %v1106 = vmul.f32 %v1042, 0.3275911
        %v1107 = vmul.f32 %v1043, 0.3275911
        %v1108 = vmul.f32 %v1044, 0.3275911
        %v1109 = vmul.f32 %v1045, 0.3275911
        %v1110 = vmul.f32 %v1046, 0.3275911
        %v1111 = vmul.f32 %v1047, 0.3275911
        %v1112 = vmul.f32 %v1048, 0.3275911
        %v1113 = vmul.f32 %v1049, 0.3275911
        %v1114 = vmul.f32 %v1050, 0.3275911
        %v1115 = vmul.f32 %v1051, 0.3275911
        %v1116 = vmul.f32 %v1052, 0.3275911
        %v1117 = vmul.f32 %v1053, 0.3275911
        %v1118 = vmul.f32 %v1054, 0.3275911
        %v1119 = vmul.f32 %v1055, 0.3275911
        %v1120 = vmul.f32 %v1056, 0.3275911
        %v1121 = vmul.f32 %v1057, 0.3275911
        %v1122 = vmul.f32 %v1058, 0.3275911
        %v1123 = vmul.f32 %v1059, 0.3275911
        %v1124 = vmul.f32 %v1060, 0.3275911
        %v1125 = vmul.f32 %v1061, 0.3275911
        %v1126 = vmul.f32 %v1062, 0.3275911
        %v1127 = vmul.f32 %v1063, 0.3275911
        %v1128 = vmul.f32 %v1064, 0.3275911
        %v1129 = vmul.f32 %v1065, 0.3275911
        %v1130 = vmul.f32 %v1066, 0.3275911
        %v1131 = vmul.f32 %v1067, 0.3275911
        %v1132 = vmul.f32 %v1068, 0.3275911
        %v1133 = vmul.f32 %v1069, 0.3275911
        %v1134 = vmul.f32 %v1070, 0.3275911
        %v1135 = vmul.f32 %v1071, 0.3275911
        %v1136 = vmul.f32 %v1072, 0.3275911
        %v1137 = vmul.f32 %v1073, 0.3275911
        %v1138 = vmul.f32 %v1074, 0.3275911
        %v1139 = vmul.f32 %v1075, 0.3275911
        %v1140 = vmul.f32 %v1076, 0.3275911
        %v1141 = vmul.f32 %v1077, 0.3275911
        %v1142 = vmul.f32 %v1078, 0.3275911
        %v1143 = vmul.f32 %v1079, 0.3275911
        %v1144 = vmul.f32 %v1080, 0.3275911
        %v1145 = vmul.f32 %v1081, 0.3275911
        %v1146 = vmul.f32 %v1082, 0.3275911
        %v1147 = vadd.f32 %v1083, 1.0
        %v1148 = vadd.f32 %v1084, 1.0
        %v1149 = vadd.f32 %v1085, 1.0
        %v1150 = vadd.f32 %v1086, 1.0
        %v1151 = vadd.f32 %v1087, 1.0
        %v1152 = vadd.f32 %v1088, 1.0
        %v1153 = vadd.f32 %v1089, 1.0
        %v1154 = vadd.f32 %v1090, 1.0
        %v1155 = vadd.f32 %v1091, 1.0
        %v1156 = vadd.f32 %v1092, 1.0
        %v1157 = vadd.f32 %v1093, 1.0
        %v1158 = vadd.f32 %v1094, 1.0
        %v1159 = vadd.f32 %v1095, 1.0
        %v1160 = vadd.f32 %v1096, 1.0
        %v1161 = vadd.f32 %v1097, 1.0
        %v1162 = vadd.f32 %v1098, 1.0
        %v1163 = vadd.f32 %v1099, 1.0
        %v1164 = vadd.f32 %v1100, 1.0
        %v1165 = vadd.f32 %v1101, 1.0
        %v1166 = vadd.f32 %v1102, 1.0
        %v1167 = vadd.f32 %v1103, 1.0
        %v1168 = vadd.f32 %v1104, 1.0
        %v1169 = vadd.f32 %v1105, 1.0
        %v1170 = vadd.f32 %v1106, 1.0
        %v1171 = vadd.f32 %v1107, 1.0
        %v1172 = vadd.f32 %v1108, 1.0
        %v1173 = vadd.f32 %v1109, 1.0
        %v1174 = vadd.f32 %v1110, 1.0
        %v1175 = vadd.f32 %v1111, 1.0
        %v1176 = vadd.f32 %v1112, 1.0
        %v1177 = vadd.f32 %v1113, 1.0
        %v1178 = vadd.f32 %v1114, 1.0
        %v1179 = vadd.f32 %v1115, 1.0
        %v1180 = vadd.f32 %v1116, 1.0
        %v1181 = vadd.f32 %v1117, 1.0
        %v1182 = vadd.f32 %v1118, 1.0
        %v1183 = vadd.f32 %v1119, 1.0
        %v1184 = vadd.f32 %v1120, 1.0
        %v1185 = vadd.f32 %v1121, 1.0
        %v1186 = vadd.f32 %v1122, 1.0
        %v1187 = vadd.f32 %v1123, 1.0
        %v1188 = vadd.f32 %v1124, 1.0
        %v1189 = vadd.f32 %v1125, 1.0
        %v1190 = vadd.f32 %v1126, 1.0
        %v1191 = vadd.f32 %v1127, 1.0
        %v1192 = vadd.f32 %v1128, 1.0
        %v1193 = vadd.f32 %v1129, 1.0
        %v1194 = vadd.f32 %v1130, 1.0
        %v1195 = vadd.f32 %v1131, 1.0
        %v1196 = vadd.f32 %v1132, 1.0
        %v1197 = vadd.f32 %v1133, 1.0
        %v1198 = vadd.f32 %v1134, 1.0
        %v1199 = vadd.f32 %v1135, 1.0
        %v1200 = vadd.f32 %v1136, 1.0
        %v1201 = vadd.f32 %v1137, 1.0
        %v1202 = vadd.f32 %v1138, 1.0
        %v1203 = vadd.f32 %v1139, 1.0
        %v1204 = vadd.f32 %v1140, 1.0
        %v1205 = vadd.f32 %v1141, 1.0
        %v1206 = vadd.f32 %v1142, 1.0
        %v1207 = vadd.f32 %v1143, 1.0
        %v1208 = vadd.f32 %v1144, 1.0
        %v1209 = vadd.f32 %v1145, 1.0
        %v1210 = vadd.f32 %v1146, 1.0
        %v1211 = vrcp.pop %v1147
        %v1212 = vmul.f32 1.0, %v1211
        %v1213 = vrcp.pop %v1148
        %v1214 = vmul.f32 1.0, %v1213
        %v1215 = vrcp.pop %v1149
        %v1216 = vmul.f32 1.0, %v1215
        %v1217 = vrcp.pop %v1150
        %v1218 = vmul.f32 1.0, %v1217
        %v1219 = vrcp.pop %v1151
        %v1220 = vmul.f32 1.0, %v1219
        %v1221 = vrcp.pop %v1152
        %v1222 = vmul.f32 1.0, %v1221
        %v1223 = vrcp.pop %v1153
        %v1224 = vmul.f32 1.0, %v1223
        %v1225 = vrcp.pop %v1154
        %v1226 = vmul.f32 1.0, %v1225
        %v1227 = vrcp.pop %v1155
        %v1228 = vmul.f32 1.0, %v1227
        %v1229 = vrcp.pop %v1156
        %v1230 = vmul.f32 1.0, %v1229
        %v1231 = vrcp.pop %v1157
        %v1232 = vmul.f32 1.0, %v1231
        %v1233 = vrcp.pop %v1158
        %v1234 = vmul.f32 1.0, %v1233
        %v1235 = vrcp.pop %v1159
        %v1236 = vmul.f32 1.0, %v1235
        %v1237 = vrcp.pop %v1160
        %v1238 = vmul.f32 1.0, %v1237
        %v1239 = vrcp.pop %v1161
        %v1240 = vmul.f32 1.0, %v1239
        %v1241 = vrcp.pop %v1162
        %v1242 = vmul.f32 1.0, %v1241
        %v1243 = vrcp.pop %v1163
        %v1244 = vmul.f32 1.0, %v1243
        %v1245 = vrcp.pop %v1164
        %v1246 = vmul.f32 1.0, %v1245
        %v1247 = vrcp.pop %v1165
        %v1248 = vmul.f32 1.0, %v1247
        %v1249 = vrcp.pop %v1166
        %v1250 = vmul.f32 1.0, %v1249
        %v1251 = vrcp.pop %v1167
        %v1252 = vmul.f32 1.0, %v1251
        %v1253 = vrcp.pop %v1168
        %v1254 = vmul.f32 1.0, %v1253
        %v1255 = vrcp.pop %v1169
        %v1256 = vmul.f32 1.0, %v1255
        %v1257 = vrcp.pop %v1170
        %v1258 = vmul.f32 1.0, %v1257
        %v1259 = vrcp.pop %v1171
        %v1260 = vmul.f32 1.0, %v1259
        %v1261 = vrcp.pop %v1172
        %v1262 = vmul.f32 1.0, %v1261
        %v1263 = vrcp.pop %v1173
        %v1264 = vmul.f32 1.0, %v1263
        %v1265 = vrcp.pop %v1174
        %v1266 = vmul.f32 1.0, %v1265
        %v1267 = vrcp.pop %v1175
        %v1268 = vmul.f32 1.0, %v1267
        %v1269 = vrcp.pop %v1176
        %v1270 = vmul.f32 1.0, %v1269
        %v1271 = vrcp.pop %v1177
        %v1272 = vmul.f32 1.0, %v1271
        %v1273 = vrcp.pop %v1178
        %v1274 = vmul.f32 1.0, %v1273
        %v1275 = vrcp.pop %v1179
        %v1276 = vmul.f32 1.0, %v1275
        %v1277 = vrcp.pop %v1180
        %v1278 = vmul.f32 1.0, %v1277
        %v1279 = vrcp.pop %v1181
        %v1280 = vmul.f32 1.0, %v1279
        %v1281 = vrcp.pop %v1182
        %v1282 = vmul.f32 1.0, %v1281
        %v1283 = vrcp.pop %v1183
        %v1284 = vmul.f32 1.0, %v1283
        %v1285 = vrcp.pop %v1184
        %v1286 = vmul.f32 1.0, %v1285
        %v1287 = vrcp.pop %v1185
        %v1288 = vmul.f32 1.0, %v1287
        %v1289 = vrcp.pop %v1186
        %v1290 = vmul.f32 1.0, %v1289
        %v1291 = vrcp.pop %v1187
        %v1292 = vmul.f32 1.0, %v1291
        %v1293 = vrcp.pop %v1188
        %v1294 = vmul.f32 1.0, %v1293
        %v1295 = vrcp.pop %v1189
        %v1296 = vmul.f32 1.0, %v1295
        %v1297 = vrcp.pop %v1190
        %v1298 = vmul.f32 1.0, %v1297
        %v1299 = vrcp.pop %v1191
        %v1300 = vmul.f32 1.0, %v1299
        %v1301 = vrcp.pop %v1192
        %v1302 = vmul.f32 1.0, %v1301
        %v1303 = vrcp.pop %v1193
        %v1304 = vmul.f32 1.0, %v1303
        %v1305 = vrcp.pop %v1194
        %v1306 = vmul.f32 1.0, %v1305
        %v1307 = vrcp.pop %v1195
        %v1308 = vmul.f32 1.0, %v1307
        %v1309 = vrcp.pop %v1196
        %v1310 = vmul.f32 1.0, %v1309
        %v1311 = vrcp.pop %v1197
        %v1312 = vmul.f32 1.0, %v1311
        %v1313 = vrcp.pop %v1198
        %v1314 = vmul.f32 1.0, %v1313
        %v1315 = vrcp.pop %v1199
        %v1316 = vmul.f32 1.0, %v1315
        %v1317 = vrcp.pop %v1200
        %v1318 = vmul.f32 1.0, %v1317
        %v1319 = vrcp.pop %v1201
        %v1320 = vmul.f32 1.0, %v1319
        %v1321 = vrcp.pop %v1202
        %v1322 = vmul.f32 1.0, %v1321
        %v1323 = vrcp.pop %v1203
        %v1324 = vmul.f32 1.0, %v1323
        %v1325 = vrcp.pop %v1204
        %v1326 = vmul.f32 1.0, %v1325
        %v1327 = vrcp.pop %v1205
        %v1328 = vmul.f32 1.0, %v1327
        %v1329 = vrcp.pop %v1206
        %v1330 = vmul.f32 1.0, %v1329
        %v1331 = vrcp.pop %v1207
        %v1332 = vmul.f32 1.0, %v1331
        %v1333 = vrcp.pop %v1208
        %v1334 = vmul.f32 1.0, %v1333
        %v1335 = vrcp.pop %v1209
        %v1336 = vmul.f32 1.0, %v1335
        %v1337 = vrcp.pop %v1210
        %v1338 = vmul.f32 1.0, %v1337
        %v1339 = vmul.f32 %v1212, 1.0614054
        %v1340 = vmul.f32 %v1214, 1.0614054
        %v1341 = vmul.f32 %v1216, 1.0614054
        %v1342 = vmul.f32 %v1218, 1.0614054
        %v1343 = vmul.f32 %v1220, 1.0614054
        %v1344 = vmul.f32 %v1222, 1.0614054
        %v1345 = vmul.f32 %v1224, 1.0614054
        %v1346 = vmul.f32 %v1226, 1.0614054
        %v1347 = vmul.f32 %v1228, 1.0614054
        %v1348 = vmul.f32 %v1230, 1.0614054
        %v1349 = vmul.f32 %v1232, 1.0614054
        %v1350 = vmul.f32 %v1234, 1.0614054
        %v1351 = vmul.f32 %v1236, 1.0614054
        %v1352 = vmul.f32 %v1238, 1.0614054
        %v1353 = vmul.f32 %v1240, 1.0614054
        %v1354 = vmul.f32 %v1242, 1.0614054
        %v1355 = vmul.f32 %v1244, 1.0614054
        %v1356 = vmul.f32 %v1246, 1.0614054
        %v1357 = vmul.f32 %v1248, 1.0614054
        %v1358 = vmul.f32 %v1250, 1.0614054
        %v1359 = vmul.f32 %v1252, 1.0614054
        %v1360 = vmul.f32 %v1254, 1.0614054
        %v1361 = vmul.f32 %v1256, 1.0614054
        %v1362 = vmul.f32 %v1258, 1.0614054
        %v1363 = vmul.f32 %v1260, 1.0614054
        %v1364 = vmul.f32 %v1262, 1.0614054
        %v1365 = vmul.f32 %v1264, 1.0614054
        %v1366 = vmul.f32 %v1266, 1.0614054
        %v1367 = vmul.f32 %v1268, 1.0614054
        %v1368 = vmul.f32 %v1270, 1.0614054
        %v1369 = vmul.f32 %v1272, 1.0614054
        %v1370 = vmul.f32 %v1274, 1.0614054
        %v1371 = vmul.f32 %v1276, 1.0614054
        %v1372 = vmul.f32 %v1278, 1.0614054
        %v1373 = vmul.f32 %v1280, 1.0614054
        %v1374 = vmul.f32 %v1282, 1.0614054
        %v1375 = vmul.f32 %v1284, 1.0614054
        %v1376 = vmul.f32 %v1286, 1.0614054
        %v1377 = vmul.f32 %v1288, 1.0614054
        %v1378 = vmul.f32 %v1290, 1.0614054
        %v1379 = vmul.f32 %v1292, 1.0614054
        %v1380 = vmul.f32 %v1294, 1.0614054
        %v1381 = vmul.f32 %v1296, 1.0614054
        %v1382 = vmul.f32 %v1298, 1.0614054
        %v1383 = vmul.f32 %v1300, 1.0614054
        %v1384 = vmul.f32 %v1302, 1.0614054
        %v1385 = vmul.f32 %v1304, 1.0614054
        %v1386 = vmul.f32 %v1306, 1.0614054
        %v1387 = vmul.f32 %v1308, 1.0614054
        %v1388 = vmul.f32 %v1310, 1.0614054
        %v1389 = vmul.f32 %v1312, 1.0614054
        %v1390 = vmul.f32 %v1314, 1.0614054
        %v1391 = vmul.f32 %v1316, 1.0614054
        %v1392 = vmul.f32 %v1318, 1.0614054
        %v1393 = vmul.f32 %v1320, 1.0614054
        %v1394 = vmul.f32 %v1322, 1.0614054
        %v1395 = vmul.f32 %v1324, 1.0614054
        %v1396 = vmul.f32 %v1326, 1.0614054
        %v1397 = vmul.f32 %v1328, 1.0614054
        %v1398 = vmul.f32 %v1330, 1.0614054
        %v1399 = vmul.f32 %v1332, 1.0614054
        %v1400 = vmul.f32 %v1334, 1.0614054
        %v1401 = vmul.f32 %v1336, 1.0614054
        %v1402 = vmul.f32 %v1338, 1.0614054
        %v1403 = vadd.f32 %v1339, -1.4531521
        %v1404 = vadd.f32 %v1340, -1.4531521
        %v1405 = vadd.f32 %v1341, -1.4531521
        %v1406 = vadd.f32 %v1342, -1.4531521
        %v1407 = vadd.f32 %v1343, -1.4531521
        %v1408 = vadd.f32 %v1344, -1.4531521
        %v1409 = vadd.f32 %v1345, -1.4531521
        %v1410 = vadd.f32 %v1346, -1.4531521
        %v1411 = vadd.f32 %v1347, -1.4531521
        %v1412 = vadd.f32 %v1348, -1.4531521
        %v1413 = vadd.f32 %v1349, -1.4531521
        %v1414 = vadd.f32 %v1350, -1.4531521
        %v1415 = vadd.f32 %v1351, -1.4531521
        %v1416 = vadd.f32 %v1352, -1.4531521
        %v1417 = vadd.f32 %v1353, -1.4531521
        %v1418 = vadd.f32 %v1354, -1.4531521
        %v1419 = vadd.f32 %v1355, -1.4531521
        %v1420 = vadd.f32 %v1356, -1.4531521
        %v1421 = vadd.f32 %v1357, -1.4531521
        %v1422 = vadd.f32 %v1358, -1.4531521
        %v1423 = vadd.f32 %v1359, -1.4531521
        %v1424 = vadd.f32 %v1360, -1.4531521
        %v1425 = vadd.f32 %v1361, -1.4531521
        %v1426 = vadd.f32 %v1362, -1.4531521
        %v1427 = vadd.f32 %v1363, -1.4531521
        %v1428 = vadd.f32 %v1364, -1.4531521
        %v1429 = vadd.f32 %v1365, -1.4531521
        %v1430 = vadd.f32 %v1366, -1.4531521
        %v1431 = vadd.f32 %v1367, -1.4531521
        %v1432 = vadd.f32 %v1368, -1.4531521
        %v1433 = vadd.f32 %v1369, -1.4531521
        %v1434 = vadd.f32 %v1370, -1.4531521
        %v1435 = vadd.f32 %v1371, -1.4531521
        %v1436 = vadd.f32 %v1372, -1.4531521
        %v1437 = vadd.f32 %v1373, -1.4531521
        %v1438 = vadd.f32 %v1374, -1.4531521
        %v1439 = vadd.f32 %v1375, -1.4531521
        %v1440 = vadd.f32 %v1376, -1.4531521
        %v1441 = vadd.f32 %v1377, -1.4531521
        %v1442 = vadd.f32 %v1378, -1.4531521
        %v1443 = vadd.f32 %v1379, -1.4531521
        %v1444 = vadd.f32 %v1380, -1.4531521
        %v1445 = vadd.f32 %v1381, -1.4531521
        %v1446 = vadd.f32 %v1382, -1.4531521
        %v1447 = vadd.f32 %v1383, -1.4531521
        %v1448 = vadd.f32 %v1384, -1.4531521
        %v1449 = vadd.f32 %v1385, -1.4531521
        %v1450 = vadd.f32 %v1386, -1.4531521
        %v1451 = vadd.f32 %v1387, -1.4531521
        %v1452 = vadd.f32 %v1388, -1.4531521
        %v1453 = vadd.f32 %v1389, -1.4531521
        %v1454 = vadd.f32 %v1390, -1.4531521
        %v1455 = vadd.f32 %v1391, -1.4531521
        %v1456 = vadd.f32 %v1392, -1.4531521
        %v1457 = vadd.f32 %v1393, -1.4531521
        %v1458 = vadd.f32 %v1394, -1.4531521
        %v1459 = vadd.f32 %v1395, -1.4531521
        %v1460 = vadd.f32 %v1396, -1.4531521
        %v1461 = vadd.f32 %v1397, -1.4531521
        %v1462 = vadd.f32 %v1398, -1.4531521
        %v1463 = vadd.f32 %v1399, -1.4531521
        %v1464 = vadd.f32 %v1400, -1.4531521
        %v1465 = vadd.f32 %v1401, -1.4531521
        %v1466 = vadd.f32 %v1402, -1.4531521
        %v1467 = vmul.f32 %v1403, %v1212
        %v1468 = vmul.f32 %v1404, %v1214
        %v1469 = vmul.f32 %v1405, %v1216
        %v1470 = vmul.f32 %v1406, %v1218
        %v1471 = vmul.f32 %v1407, %v1220
        %v1472 = vmul.f32 %v1408, %v1222
        %v1473 = vmul.f32 %v1409, %v1224
        %v1474 = vmul.f32 %v1410, %v1226
        %v1475 = vmul.f32 %v1411, %v1228
        %v1476 = vmul.f32 %v1412, %v1230
        %v1477 = vmul.f32 %v1413, %v1232
        %v1478 = vmul.f32 %v1414, %v1234
        %v1479 = vmul.f32 %v1415, %v1236
        %v1480 = vmul.f32 %v1416, %v1238
        %v1481 = vmul.f32 %v1417, %v1240
        %v1482 = vmul.f32 %v1418, %v1242
        %v1483 = vmul.f32 %v1419, %v1244
        %v1484 = vmul.f32 %v1420, %v1246
        %v1485 = vmul.f32 %v1421, %v1248
        %v1486 = vmul.f32 %v1422, %v1250
        %v1487 = vmul.f32 %v1423, %v1252
        %v1488 = vmul.f32 %v1424, %v1254
        %v1489 = vmul.f32 %v1425, %v1256
        %v1490 = vmul.f32 %v1426, %v1258
        %v1491 = vmul.f32 %v1427, %v1260
        %v1492 = vmul.f32 %v1428, %v1262
        %v1493 = vmul.f32 %v1429, %v1264
        %v1494 = vmul.f32 %v1430, %v1266
        %v1495 = vmul.f32 %v1431, %v1268
        %v1496 = vmul.f32 %v1432, %v1270
        %v1497 = vmul.f32 %v1433, %v1272
        %v1498 = vmul.f32 %v1434, %v1274
        %v1499 = vmul.f32 %v1435, %v1276
        %v1500 = vmul.f32 %v1436, %v1278
        %v1501 = vmul.f32 %v1437, %v1280
        %v1502 = vmul.f32 %v1438, %v1282
        %v1503 = vmul.f32 %v1439, %v1284
        %v1504 = vmul.f32 %v1440, %v1286
        %v1505 = vmul.f32 %v1441, %v1288
        %v1506 = vmul.f32 %v1442, %v1290
        %v1507 = vmul.f32 %v1443, %v1292
        %v1508 = vmul.f32 %v1444, %v1294
        %v1509 = vmul.f32 %v1445, %v1296
        %v1510 = vmul.f32 %v1446, %v1298
        %v1511 = vmul.f32 %v1447, %v1300
        %v1512 = vmul.f32 %v1448, %v1302
        %v1513 = vmul.f32 %v1449, %v1304
        %v1514 = vmul.f32 %v1450, %v1306
        %v1515 = vmul.f32 %v1451, %v1308
        %v1516 = vmul.f32 %v1452, %v1310
        %v1517 = vmul.f32 %v1453, %v1312
        %v1518 = vmul.f32 %v1454, %v1314
        %v1519 = vmul.f32 %v1455, %v1316
        %v1520 = vmul.f32 %v1456, %v1318
        %v1521 = vmul.f32 %v1457, %v1320
        %v1522 = vmul.f32 %v1458, %v1322
        %v1523 = vmul.f32 %v1459, %v1324
        %v1524 = vmul.f32 %v1460, %v1326
        %v1525 = vmul.f32 %v1461, %v1328
        %v1526 = vmul.f32 %v1462, %v1330
        %v1527 = vmul.f32 %v1463, %v1332
        %v1528 = vmul.f32 %v1464, %v1334
        %v1529 = vmul.f32 %v1465, %v1336
        %v1530 = vmul.f32 %v1466, %v1338
        %v1531 = vadd.f32 %v1467, 1.4214138
        %v1532 = vadd.f32 %v1468, 1.4214138
        %v1533 = vadd.f32 %v1469, 1.4214138
        %v1534 = vadd.f32 %v1470, 1.4214138
        %v1535 = vadd.f32 %v1471, 1.4214138
        %v1536 = vadd.f32 %v1472, 1.4214138
        %v1537 = vadd.f32 %v1473, 1.4214138
        %v1538 = vadd.f32 %v1474, 1.4214138
        %v1539 = vadd.f32 %v1475, 1.4214138
        %v1540 = vadd.f32 %v1476, 1.4214138
        %v1541 = vadd.f32 %v1477, 1.4214138
        %v1542 = vadd.f32 %v1478, 1.4214138
        %v1543 = vadd.f32 %v1479, 1.4214138
        %v1544 = vadd.f32 %v1480, 1.4214138
        %v1545 = vadd.f32 %v1481, 1.4214138
        %v1546 = vadd.f32 %v1482, 1.4214138
        %v1547 = vadd.f32 %v1483, 1.4214138
        %v1548 = vadd.f32 %v1484, 1.4214138
        %v1549 = vadd.f32 %v1485, 1.4214138
        %v1550 = vadd.f32 %v1486, 1.4214138
        %v1551 = vadd.f32 %v1487, 1.4214138
        %v1552 = vadd.f32 %v1488, 1.4214138
        %v1553 = vadd.f32 %v1489, 1.4214138
        %v1554 = vadd.f32 %v1490, 1.4214138
        %v1555 = vadd.f32 %v1491, 1.4214138
        %v1556 = vadd.f32 %v1492, 1.4214138
        %v1557 = vadd.f32 %v1493, 1.4214138
        %v1558 = vadd.f32 %v1494, 1.4214138
        %v1559 = vadd.f32 %v1495, 1.4214138
        %v1560 = vadd.f32 %v1496, 1.4214138
        %v1561 = vadd.f32 %v1497, 1.4214138
        %v1562 = vadd.f32 %v1498, 1.4214138
        %v1563 = vadd.f32 %v1499, 1.4214138
        %v1564 = vadd.f32 %v1500, 1.4214138
        %v1565 = vadd.f32 %v1501, 1.4214138
        %v1566 = vadd.f32 %v1502, 1.4214138
        %v1567 = vadd.f32 %v1503, 1.4214138
        %v1568 = vadd.f32 %v1504, 1.4214138
        %v1569 = vadd.f32 %v1505, 1.4214138
        %v1570 = vadd.f32 %v1506, 1.4214138
        %v1571 = vadd.f32 %v1507, 1.4214138
        %v1572 = vadd.f32 %v1508, 1.4214138
        %v1573 = vadd.f32 %v1509, 1.4214138
        %v1574 = vadd.f32 %v1510, 1.4214138
        %v1575 = vadd.f32 %v1511, 1.4214138
        %v1576 = vadd.f32 %v1512, 1.4214138
        %v1577 = vadd.f32 %v1513, 1.4214138
        %v1578 = vadd.f32 %v1514, 1.4214138
        %v1579 = vadd.f32 %v1515, 1.4214138
        %v1580 = vadd.f32 %v1516, 1.4214138
        %v1581 = vadd.f32 %v1517, 1.4214138
        %v1582 = vadd.f32 %v1518, 1.4214138
        %v1583 = vadd.f32 %v1519, 1.4214138
        %v1584 = vadd.f32 %v1520, 1.4214138
        %v1585 = vadd.f32 %v1521, 1.4214138
        %v1586 = vadd.f32 %v1522, 1.4214138
        %v1587 = vadd.f32 %v1523, 1.4214138
        %v1588 = vadd.f32 %v1524, 1.4214138
        %v1589 = vadd.f32 %v1525, 1.4214138
        %v1590 = vadd.f32 %v1526, 1.4214138
        %v1591 = vadd.f32 %v1527, 1.4214138
        %v1592 = vadd.f32 %v1528, 1.4214138
        %v1593 = vadd.f32 %v1529, 1.4214138
        %v1594 = vadd.f32 %v1530, 1.4214138
        %v1595 = vmul.f32 %v1531, %v1212
        %v1596 = vmul.f32 %v1532, %v1214
        %v1597 = vmul.f32 %v1533, %v1216
        %v1598 = vmul.f32 %v1534, %v1218
        %v1599 = vmul.f32 %v1535, %v1220
        %v1600 = vmul.f32 %v1536, %v1222
        %v1601 = vmul.f32 %v1537, %v1224
        %v1602 = vmul.f32 %v1538, %v1226
        %v1603 = vmul.f32 %v1539, %v1228
        %v1604 = vmul.f32 %v1540, %v1230
        %v1605 = vmul.f32 %v1541, %v1232
        %v1606 = vmul.f32 %v1542, %v1234
        %v1607 = vmul.f32 %v1543, %v1236
        %v1608 = vmul.f32 %v1544, %v1238
        %v1609 = vmul.f32 %v1545, %v1240
        %v1610 = vmul.f32 %v1546, %v1242
        %v1611 = vmul.f32 %v1547, %v1244
        %v1612 = vmul.f32 %v1548, %v1246
        %v1613 = vmul.f32 %v1549, %v1248
        %v1614 = vmul.f32 %v1550, %v1250
        %v1615 = vmul.f32 %v1551, %v1252
        %v1616 = vmul.f32 %v1552, %v1254
        %v1617 = vmul.f32 %v1553, %v1256
        %v1618 = vmul.f32 %v1554, %v1258
        %v1619 = vmul.f32 %v1555, %v1260
        %v1620 = vmul.f32 %v1556, %v1262
        %v1621 = vmul.f32 %v1557, %v1264
        %v1622 = vmul.f32 %v1558, %v1266
        %v1623 = vmul.f32 %v1559, %v1268
        %v1624 = vmul.f32 %v1560, %v1270
        %v1625 = vmul.f32 %v1561, %v1272
        %v1626 = vmul.f32 %v1562, %v1274
        %v1627 = vmul.f32 %v1563, %v1276
        %v1628 = vmul.f32 %v1564, %v1278
        %v1629 = vmul.f32 %v1565, %v1280
        %v1630 = vmul.f32 %v1566, %v1282
        %v1631 = vmul.f32 %v1567, %v1284
        %v1632 = vmul.f32 %v1568, %v1286
        %v1633 = vmul.f32 %v1569, %v1288
        %v1634 = vmul.f32 %v1570, %v1290
        %v1635 = vmul.f32 %v1571, %v1292
        %v1636 = vmul.f32 %v1572, %v1294
        %v1637 = vmul.f32 %v1573, %v1296
        %v1638 = vmul.f32 %v1574, %v1298
        %v1639 = vmul.f32 %v1575, %v1300
        %v1640 = vmul.f32 %v1576, %v1302
        %v1641 = vmul.f32 %v1577, %v1304
        %v1642 = vmul.f32 %v1578, %v1306
        %v1643 = vmul.f32 %v1579, %v1308
        %v1644 = vmul.f32 %v1580, %v1310
        %v1645 = vmul.f32 %v1581, %v1312
        %v1646 = vmul.f32 %v1582, %v1314
        %v1647 = vmul.f32 %v1583, %v1316
        %v1648 = vmul.f32 %v1584, %v1318
        %v1649 = vmul.f32 %v1585, %v1320
        %v1650 = vmul.f32 %v1586, %v1322
        %v1651 = vmul.f32 %v1587, %v1324
        %v1652 = vmul.f32 %v1588, %v1326
        %v1653 = vmul.f32 %v1589, %v1328
        %v1654 = vmul.f32 %v1590, %v1330
        %v1655 = vmul.f32 %v1591, %v1332
        %v1656 = vmul.f32 %v1592, %v1334
        %v1657 = vmul.f32 %v1593, %v1336
        %v1658 = vmul.f32 %v1594, %v1338
        %v1659 = vadd.f32 %v1595, -0.28449672
        %v1660 = vadd.f32 %v1596, -0.28449672
        %v1661 = vadd.f32 %v1597, -0.28449672
        %v1662 = vadd.f32 %v1598, -0.28449672
        %v1663 = vadd.f32 %v1599, -0.28449672
        %v1664 = vadd.f32 %v1600, -0.28449672
        %v1665 = vadd.f32 %v1601, -0.28449672
        %v1666 = vadd.f32 %v1602, -0.28449672
        %v1667 = vadd.f32 %v1603, -0.28449672
        %v1668 = vadd.f32 %v1604, -0.28449672
        %v1669 = vadd.f32 %v1605, -0.28449672
        %v1670 = vadd.f32 %v1606, -0.28449672
        %v1671 = vadd.f32 %v1607, -0.28449672
        %v1672 = vadd.f32 %v1608, -0.28449672
        %v1673 = vadd.f32 %v1609, -0.28449672
        %v1674 = vadd.f32 %v1610, -0.28449672
        %v1675 = vadd.f32 %v1611, -0.28449672
        %v1676 = vadd.f32 %v1612, -0.28449672
        %v1677 = vadd.f32 %v1613, -0.28449672
        %v1678 = vadd.f32 %v1614, -0.28449672
        %v1679 = vadd.f32 %v1615, -0.28449672
        %v1680 = vadd.f32 %v1616, -0.28449672
        %v1681 = vadd.f32 %v1617, -0.28449672
        %v1682 = vadd.f32 %v1618, -0.28449672
        %v1683 = vadd.f32 %v1619, -0.28449672
        %v1684 = vadd.f32 %v1620, -0.28449672
        %v1685 = vadd.f32 %v1621, -0.28449672
        %v1686 = vadd.f32 %v1622, -0.28449672
        %v1687 = vadd.f32 %v1623, -0.28449672
        %v1688 = vadd.f32 %v1624, -0.28449672
        %v1689 = vadd.f32 %v1625, -0.28449672
        %v1690 = vadd.f32 %v1626, -0.28449672
        %v1691 = vadd.f32 %v1627, -0.28449672
        %v1692 = vadd.f32 %v1628, -0.28449672
        %v1693 = vadd.f32 %v1629, -0.28449672
        %v1694 = vadd.f32 %v1630, -0.28449672
        %v1695 = vadd.f32 %v1631, -0.28449672
        %v1696 = vadd.f32 %v1632, -0.28449672
        %v1697 = vadd.f32 %v1633, -0.28449672
        %v1698 = vadd.f32 %v1634, -0.28449672
        %v1699 = vadd.f32 %v1635, -0.28449672
        %v1700 = vadd.f32 %v1636, -0.28449672
        %v1701 = vadd.f32 %v1637, -0.28449672
        %v1702 = vadd.f32 %v1638, -0.28449672
        %v1703 = vadd.f32 %v1639, -0.28449672
        %v1704 = vadd.f32 %v1640, -0.28449672
        %v1705 = vadd.f32 %v1641, -0.28449672
        %v1706 = vadd.f32 %v1642, -0.28449672
        %v1707 = vadd.f32 %v1643, -0.28449672
        %v1708 = vadd.f32 %v1644, -0.28449672
        %v1709 = vadd.f32 %v1645, -0.28449672
        %v1710 = vadd.f32 %v1646, -0.28449672
        %v1711 = vadd.f32 %v1647, -0.28449672
        %v1712 = vadd.f32 %v1648, -0.28449672
        %v1713 = vadd.f32 %v1649, -0.28449672
        %v1714 = vadd.f32 %v1650, -0.28449672
        %v1715 = vadd.f32 %v1651, -0.28449672
        %v1716 = vadd.f32 %v1652, -0.28449672
        %v1717 = vadd.f32 %v1653, -0.28449672
        %v1718 = vadd.f32 %v1654, -0.28449672
        %v1719 = vadd.f32 %v1655, -0.28449672
        %v1720 = vadd.f32 %v1656, -0.28449672
        %v1721 = vadd.f32 %v1657, -0.28449672
        %v1722 = vadd.f32 %v1658, -0.28449672
        %v1723 = vmul.f32 %v1659, %v1212
        %v1724 = vmul.f32 %v1660, %v1214
        %v1725 = vmul.f32 %v1661, %v1216
        %v1726 = vmul.f32 %v1662, %v1218
        %v1727 = vmul.f32 %v1663, %v1220
        %v1728 = vmul.f32 %v1664, %v1222
        %v1729 = vmul.f32 %v1665, %v1224
        %v1730 = vmul.f32 %v1666, %v1226
        %v1731 = vmul.f32 %v1667, %v1228
        %v1732 = vmul.f32 %v1668, %v1230
        %v1733 = vmul.f32 %v1669, %v1232
        %v1734 = vmul.f32 %v1670, %v1234
        %v1735 = vmul.f32 %v1671, %v1236
        %v1736 = vmul.f32 %v1672, %v1238
        %v1737 = vmul.f32 %v1673, %v1240
        %v1738 = vmul.f32 %v1674, %v1242
        %v1739 = vmul.f32 %v1675, %v1244
        %v1740 = vmul.f32 %v1676, %v1246
        %v1741 = vmul.f32 %v1677, %v1248
        %v1742 = vmul.f32 %v1678, %v1250
        %v1743 = vmul.f32 %v1679, %v1252
        %v1744 = vmul.f32 %v1680, %v1254
        %v1745 = vmul.f32 %v1681, %v1256
        %v1746 = vmul.f32 %v1682, %v1258
        %v1747 = vmul.f32 %v1683, %v1260
        %v1748 = vmul.f32 %v1684, %v1262
        %v1749 = vmul.f32 %v1685, %v1264
        %v1750 = vmul.f32 %v1686, %v1266
        %v1751 = vmul.f32 %v1687, %v1268
        %v1752 = vmul.f32 %v1688, %v1270
        %v1753 = vmul.f32 %v1689, %v1272
        %v1754 = vmul.f32 %v1690, %v1274
        %v1755 = vmul.f32 %v1691, %v1276
        %v1756 = vmul.f32 %v1692, %v1278
        %v1757 = vmul.f32 %v1693, %v1280
        %v1758 = vmul.f32 %v1694, %v1282
        %v1759 = vmul.f32 %v1695, %v1284
        %v1760 = vmul.f32 %v1696, %v1286
        %v1761 = vmul.f32 %v1697, %v1288
        %v1762 = vmul.f32 %v1698, %v1290
        %v1763 = vmul.f32 %v1699, %v1292
        %v1764 = vmul.f32 %v1700, %v1294
        %v1765 = vmul.f32 %v1701, %v1296
        %v1766 = vmul.f32 %v1702, %v1298
        %v1767 = vmul.f32 %v1703, %v1300
        %v1768 = vmul.f32 %v1704, %v1302
        %v1769 = vmul.f32 %v1705, %v1304
        %v1770 = vmul.f32 %v1706, %v1306
        %v1771 = vmul.f32 %v1707, %v1308
        %v1772 = vmul.f32 %v1708, %v1310
        %v1773 = vmul.f32 %v1709, %v1312
        %v1774 = vmul.f32 %v1710, %v1314
        %v1775 = vmul.f32 %v1711, %v1316
        %v1776 = vmul.f32 %v1712, %v1318
        %v1777 = vmul.f32 %v1713, %v1320
        %v1778 = vmul.f32 %v1714, %v1322
        %v1779 = vmul.f32 %v1715, %v1324
        %v1780 = vmul.f32 %v1716, %v1326
        %v1781 = vmul.f32 %v1717, %v1328
        %v1782 = vmul.f32 %v1718, %v1330
        %v1783 = vmul.f32 %v1719, %v1332
        %v1784 = vmul.f32 %v1720, %v1334
        %v1785 = vmul.f32 %v1721, %v1336
        %v1786 = vmul.f32 %v1722, %v1338
        %v1787 = vadd.f32 %v1723, 0.2548296
        %v1788 = vadd.f32 %v1724, 0.2548296
        %v1789 = vadd.f32 %v1725, 0.2548296
        %v1790 = vadd.f32 %v1726, 0.2548296
        %v1791 = vadd.f32 %v1727, 0.2548296
        %v1792 = vadd.f32 %v1728, 0.2548296
        %v1793 = vadd.f32 %v1729, 0.2548296
        %v1794 = vadd.f32 %v1730, 0.2548296
        %v1795 = vadd.f32 %v1731, 0.2548296
        %v1796 = vadd.f32 %v1732, 0.2548296
        %v1797 = vadd.f32 %v1733, 0.2548296
        %v1798 = vadd.f32 %v1734, 0.2548296
        %v1799 = vadd.f32 %v1735, 0.2548296
        %v1800 = vadd.f32 %v1736, 0.2548296
        %v1801 = vadd.f32 %v1737, 0.2548296
        %v1802 = vadd.f32 %v1738, 0.2548296
        %v1803 = vadd.f32 %v1739, 0.2548296
        %v1804 = vadd.f32 %v1740, 0.2548296
        %v1805 = vadd.f32 %v1741, 0.2548296
        %v1806 = vadd.f32 %v1742, 0.2548296
        %v1807 = vadd.f32 %v1743, 0.2548296
        %v1808 = vadd.f32 %v1744, 0.2548296
        %v1809 = vadd.f32 %v1745, 0.2548296
        %v1810 = vadd.f32 %v1746, 0.2548296
        %v1811 = vadd.f32 %v1747, 0.2548296
        %v1812 = vadd.f32 %v1748, 0.2548296
        %v1813 = vadd.f32 %v1749, 0.2548296
        %v1814 = vadd.f32 %v1750, 0.2548296
        %v1815 = vadd.f32 %v1751, 0.2548296
        %v1816 = vadd.f32 %v1752, 0.2548296
        %v1817 = vadd.f32 %v1753, 0.2548296
        %v1818 = vadd.f32 %v1754, 0.2548296
        %v1819 = vadd.f32 %v1755, 0.2548296
        %v1820 = vadd.f32 %v1756, 0.2548296
        %v1821 = vadd.f32 %v1757, 0.2548296
        %v1822 = vadd.f32 %v1758, 0.2548296
        %v1823 = vadd.f32 %v1759, 0.2548296
        %v1824 = vadd.f32 %v1760, 0.2548296
        %v1825 = vadd.f32 %v1761, 0.2548296
        %v1826 = vadd.f32 %v1762, 0.2548296
        %v1827 = vadd.f32 %v1763, 0.2548296
        %v1828 = vadd.f32 %v1764, 0.2548296
        %v1829 = vadd.f32 %v1765, 0.2548296
        %v1830 = vadd.f32 %v1766, 0.2548296
        %v1831 = vadd.f32 %v1767, 0.2548296
        %v1832 = vadd.f32 %v1768, 0.2548296
        %v1833 = vadd.f32 %v1769, 0.2548296
        %v1834 = vadd.f32 %v1770, 0.2548296
        %v1835 = vadd.f32 %v1771, 0.2548296
        %v1836 = vadd.f32 %v1772, 0.2548296
        %v1837 = vadd.f32 %v1773, 0.2548296
        %v1838 = vadd.f32 %v1774, 0.2548296
        %v1839 = vadd.f32 %v1775, 0.2548296
        %v1840 = vadd.f32 %v1776, 0.2548296
        %v1841 = vadd.f32 %v1777, 0.2548296
        %v1842 = vadd.f32 %v1778, 0.2548296
        %v1843 = vadd.f32 %v1779, 0.2548296
        %v1844 = vadd.f32 %v1780, 0.2548296
        %v1845 = vadd.f32 %v1781, 0.2548296
        %v1846 = vadd.f32 %v1782, 0.2548296
        %v1847 = vadd.f32 %v1783, 0.2548296
        %v1848 = vadd.f32 %v1784, 0.2548296
        %v1849 = vadd.f32 %v1785, 0.2548296
        %v1850 = vadd.f32 %v1786, 0.2548296
        %v1851 = vmul.f32 %v1787, %v1212
        %v1852 = vmul.f32 %v1788, %v1214
        %v1853 = vmul.f32 %v1789, %v1216
        %v1854 = vmul.f32 %v1790, %v1218
        %v1855 = vmul.f32 %v1791, %v1220
        %v1856 = vmul.f32 %v1792, %v1222
        %v1857 = vmul.f32 %v1793, %v1224
        %v1858 = vmul.f32 %v1794, %v1226
        %v1859 = vmul.f32 %v1795, %v1228
        %v1860 = vmul.f32 %v1796, %v1230
        %v1861 = vmul.f32 %v1797, %v1232
        %v1862 = vmul.f32 %v1798, %v1234
        %v1863 = vmul.f32 %v1799, %v1236
        %v1864 = vmul.f32 %v1800, %v1238
        %v1865 = vmul.f32 %v1801, %v1240
        %v1866 = vmul.f32 %v1802, %v1242
        %v1867 = vmul.f32 %v1803, %v1244
        %v1868 = vmul.f32 %v1804, %v1246
        %v1869 = vmul.f32 %v1805, %v1248
        %v1870 = vmul.f32 %v1806, %v1250
        %v1871 = vmul.f32 %v1807, %v1252
        %v1872 = vmul.f32 %v1808, %v1254
        %v1873 = vmul.f32 %v1809, %v1256
        %v1874 = vmul.f32 %v1810, %v1258
        %v1875 = vmul.f32 %v1811, %v1260
        %v1876 = vmul.f32 %v1812, %v1262
        %v1877 = vmul.f32 %v1813, %v1264
        %v1878 = vmul.f32 %v1814, %v1266
        %v1879 = vmul.f32 %v1815, %v1268
        %v1880 = vmul.f32 %v1816, %v1270
        %v1881 = vmul.f32 %v1817, %v1272
        %v1882 = vmul.f32 %v1818, %v1274
        %v1883 = vmul.f32 %v1819, %v1276
        %v1884 = vmul.f32 %v1820, %v1278
        %v1885 = vmul.f32 %v1821, %v1280
        %v1886 = vmul.f32 %v1822, %v1282
        %v1887 = vmul.f32 %v1823, %v1284
        %v1888 = vmul.f32 %v1824, %v1286
        %v1889 = vmul.f32 %v1825, %v1288
        %v1890 = vmul.f32 %v1826, %v1290
        %v1891 = vmul.f32 %v1827, %v1292
        %v1892 = vmul.f32 %v1828, %v1294
        %v1893 = vmul.f32 %v1829, %v1296
        %v1894 = vmul.f32 %v1830, %v1298
        %v1895 = vmul.f32 %v1831, %v1300
        %v1896 = vmul.f32 %v1832, %v1302
        %v1897 = vmul.f32 %v1833, %v1304
        %v1898 = vmul.f32 %v1834, %v1306
        %v1899 = vmul.f32 %v1835, %v1308
        %v1900 = vmul.f32 %v1836, %v1310
        %v1901 = vmul.f32 %v1837, %v1312
        %v1902 = vmul.f32 %v1838, %v1314
        %v1903 = vmul.f32 %v1839, %v1316
        %v1904 = vmul.f32 %v1840, %v1318
        %v1905 = vmul.f32 %v1841, %v1320
        %v1906 = vmul.f32 %v1842, %v1322
        %v1907 = vmul.f32 %v1843, %v1324
        %v1908 = vmul.f32 %v1844, %v1326
        %v1909 = vmul.f32 %v1845, %v1328
        %v1910 = vmul.f32 %v1846, %v1330
        %v1911 = vmul.f32 %v1847, %v1332
        %v1912 = vmul.f32 %v1848, %v1334
        %v1913 = vmul.f32 %v1849, %v1336
        %v1914 = vmul.f32 %v1850, %v1338
        %v1915 = vsub.f32 0.0, %v1019
        %v1916 = vsub.f32 0.0, %v1020
        %v1917 = vsub.f32 0.0, %v1021
        %v1918 = vsub.f32 0.0, %v1022
        %v1919 = vsub.f32 0.0, %v1023
        %v1920 = vsub.f32 0.0, %v1024
        %v1921 = vsub.f32 0.0, %v1025
        %v1922 = vsub.f32 0.0, %v1026
        %v1923 = vsub.f32 0.0, %v1027
        %v1924 = vsub.f32 0.0, %v1028
        %v1925 = vsub.f32 0.0, %v1029
        %v1926 = vsub.f32 0.0, %v1030
        %v1927 = vsub.f32 0.0, %v1031
        %v1928 = vsub.f32 0.0, %v1032
        %v1929 = vsub.f32 0.0, %v1033
        %v1930 = vsub.f32 0.0, %v1034
        %v1931 = vsub.f32 0.0, %v1035
        %v1932 = vsub.f32 0.0, %v1036
        %v1933 = vsub.f32 0.0, %v1037
        %v1934 = vsub.f32 0.0, %v1038
        %v1935 = vsub.f32 0.0, %v1039
        %v1936 = vsub.f32 0.0, %v1040
        %v1937 = vsub.f32 0.0, %v1041
        %v1938 = vsub.f32 0.0, %v1042
        %v1939 = vsub.f32 0.0, %v1043
        %v1940 = vsub.f32 0.0, %v1044
        %v1941 = vsub.f32 0.0, %v1045
        %v1942 = vsub.f32 0.0, %v1046
        %v1943 = vsub.f32 0.0, %v1047
        %v1944 = vsub.f32 0.0, %v1048
        %v1945 = vsub.f32 0.0, %v1049
        %v1946 = vsub.f32 0.0, %v1050
        %v1947 = vsub.f32 0.0, %v1051
        %v1948 = vsub.f32 0.0, %v1052
        %v1949 = vsub.f32 0.0, %v1053
        %v1950 = vsub.f32 0.0, %v1054
        %v1951 = vsub.f32 0.0, %v1055
        %v1952 = vsub.f32 0.0, %v1056
        %v1953 = vsub.f32 0.0, %v1057
        %v1954 = vsub.f32 0.0, %v1058
        %v1955 = vsub.f32 0.0, %v1059
        %v1956 = vsub.f32 0.0, %v1060
        %v1957 = vsub.f32 0.0, %v1061
        %v1958 = vsub.f32 0.0, %v1062
        %v1959 = vsub.f32 0.0, %v1063
        %v1960 = vsub.f32 0.0, %v1064
        %v1961 = vsub.f32 0.0, %v1065
        %v1962 = vsub.f32 0.0, %v1066
        %v1963 = vsub.f32 0.0, %v1067
        %v1964 = vsub.f32 0.0, %v1068
        %v1965 = vsub.f32 0.0, %v1069
        %v1966 = vsub.f32 0.0, %v1070
        %v1967 = vsub.f32 0.0, %v1071
        %v1968 = vsub.f32 0.0, %v1072
        %v1969 = vsub.f32 0.0, %v1073
        %v1970 = vsub.f32 0.0, %v1074
        %v1971 = vsub.f32 0.0, %v1075
        %v1972 = vsub.f32 0.0, %v1076
        %v1973 = vsub.f32 0.0, %v1077
        %v1974 = vsub.f32 0.0, %v1078
        %v1975 = vsub.f32 0.0, %v1079
        %v1976 = vsub.f32 0.0, %v1080
        %v1977 = vsub.f32 0.0, %v1081
        %v1978 = vsub.f32 0.0, %v1082
        %v1979 = vmul.f32 %v1915, %v1019
        %v1980 = vmul.f32 %v1916, %v1020
        %v1981 = vmul.f32 %v1917, %v1021
        %v1982 = vmul.f32 %v1918, %v1022
        %v1983 = vmul.f32 %v1919, %v1023
        %v1984 = vmul.f32 %v1920, %v1024
        %v1985 = vmul.f32 %v1921, %v1025
        %v1986 = vmul.f32 %v1922, %v1026
        %v1987 = vmul.f32 %v1923, %v1027
        %v1988 = vmul.f32 %v1924, %v1028
        %v1989 = vmul.f32 %v1925, %v1029
        %v1990 = vmul.f32 %v1926, %v1030
        %v1991 = vmul.f32 %v1927, %v1031
        %v1992 = vmul.f32 %v1928, %v1032
        %v1993 = vmul.f32 %v1929, %v1033
        %v1994 = vmul.f32 %v1930, %v1034
        %v1995 = vmul.f32 %v1931, %v1035
        %v1996 = vmul.f32 %v1932, %v1036
        %v1997 = vmul.f32 %v1933, %v1037
        %v1998 = vmul.f32 %v1934, %v1038
        %v1999 = vmul.f32 %v1935, %v1039
        %v2000 = vmul.f32 %v1936, %v1040
        %v2001 = vmul.f32 %v1937, %v1041
        %v2002 = vmul.f32 %v1938, %v1042
        %v2003 = vmul.f32 %v1939, %v1043
        %v2004 = vmul.f32 %v1940, %v1044
        %v2005 = vmul.f32 %v1941, %v1045
        %v2006 = vmul.f32 %v1942, %v1046
        %v2007 = vmul.f32 %v1943, %v1047
        %v2008 = vmul.f32 %v1944, %v1048
        %v2009 = vmul.f32 %v1945, %v1049
        %v2010 = vmul.f32 %v1946, %v1050
        %v2011 = vmul.f32 %v1947, %v1051
        %v2012 = vmul.f32 %v1948, %v1052
        %v2013 = vmul.f32 %v1949, %v1053
        %v2014 = vmul.f32 %v1950, %v1054
        %v2015 = vmul.f32 %v1951, %v1055
        %v2016 = vmul.f32 %v1952, %v1056
        %v2017 = vmul.f32 %v1953, %v1057
        %v2018 = vmul.f32 %v1954, %v1058
        %v2019 = vmul.f32 %v1955, %v1059
        %v2020 = vmul.f32 %v1956, %v1060
        %v2021 = vmul.f32 %v1957, %v1061
        %v2022 = vmul.f32 %v1958, %v1062
        %v2023 = vmul.f32 %v1959, %v1063
        %v2024 = vmul.f32 %v1960, %v1064
        %v2025 = vmul.f32 %v1961, %v1065
        %v2026 = vmul.f32 %v1962, %v1066
        %v2027 = vmul.f32 %v1963, %v1067
        %v2028 = vmul.f32 %v1964, %v1068
        %v2029 = vmul.f32 %v1965, %v1069
        %v2030 = vmul.f32 %v1966, %v1070
        %v2031 = vmul.f32 %v1967, %v1071
        %v2032 = vmul.f32 %v1968, %v1072
        %v2033 = vmul.f32 %v1969, %v1073
        %v2034 = vmul.f32 %v1970, %v1074
        %v2035 = vmul.f32 %v1971, %v1075
        %v2036 = vmul.f32 %v1972, %v1076
        %v2037 = vmul.f32 %v1973, %v1077
        %v2038 = vmul.f32 %v1974, %v1078
        %v2039 = vmul.f32 %v1975, %v1079
        %v2040 = vmul.f32 %v1976, %v1080
        %v2041 = vmul.f32 %v1977, %v1081
        %v2042 = vmul.f32 %v1978, %v1082
        %v2043 = vmul.f32 %v1979, 1.442695
        %v2044 = vpow.pop %v2043
        %v2045 = vmul.f32 %v1980, 1.442695
        %v2046 = vpow.pop %v2045
        %v2047 = vmul.f32 %v1981, 1.442695
        %v2048 = vpow.pop %v2047
        %v2049 = vmul.f32 %v1982, 1.442695
        %v2050 = vpow.pop %v2049
        %v2051 = vmul.f32 %v1983, 1.442695
        %v2052 = vpow.pop %v2051
        %v2053 = vmul.f32 %v1984, 1.442695
        %v2054 = vpow.pop %v2053
        %v2055 = vmul.f32 %v1985, 1.442695
        %v2056 = vpow.pop %v2055
        %v2057 = vmul.f32 %v1986, 1.442695
        %v2058 = vpow.pop %v2057
        %v2059 = vmul.f32 %v1987, 1.442695
        %v2060 = vpow.pop %v2059
        %v2061 = vmul.f32 %v1988, 1.442695
        %v2062 = vpow.pop %v2061
        %v2063 = vmul.f32 %v1989, 1.442695
        %v2064 = vpow.pop %v2063
        %v2065 = vmul.f32 %v1990, 1.442695
        %v2066 = vpow.pop %v2065
        %v2067 = vmul.f32 %v1991, 1.442695
        %v2068 = vpow.pop %v2067
        %v2069 = vmul.f32 %v1992, 1.442695
        %v2070 = vpow.pop %v2069
        %v2071 = vmul.f32 %v1993, 1.442695
        %v2072 = vpow.pop %v2071
        %v2073 = vmul.f32 %v1994, 1.442695
        %v2074 = vpow.pop %v2073
        %v2075 = vmul.f32 %v1995, 1.442695
        %v2076 = vpow.pop %v2075
        %v2077 = vmul.f32 %v1996, 1.442695
        %v2078 = vpow.pop %v2077
        %v2079 = vmul.f32 %v1997, 1.442695
        %v2080 = vpow.pop %v2079
        %v2081 = vmul.f32 %v1998, 1.442695
        %v2082 = vpow.pop %v2081
        %v2083 = vmul.f32 %v1999, 1.442695
        %v2084 = vpow.pop %v2083
        %v2085 = vmul.f32 %v2000, 1.442695
        %v2086 = vpow.pop %v2085
        %v2087 = vmul.f32 %v2001, 1.442695
        %v2088 = vpow.pop %v2087
        %v2089 = vmul.f32 %v2002, 1.442695
        %v2090 = vpow.pop %v2089
        %v2091 = vmul.f32 %v2003, 1.442695
        %v2092 = vpow.pop %v2091
        %v2093 = vmul.f32 %v2004, 1.442695
        %v2094 = vpow.pop %v2093
        %v2095 = vmul.f32 %v2005, 1.442695
        %v2096 = vpow.pop %v2095
        %v2097 = vmul.f32 %v2006, 1.442695
        %v2098 = vpow.pop %v2097
        %v2099 = vmul.f32 %v2007, 1.442695
        %v2100 = vpow.pop %v2099
        %v2101 = vmul.f32 %v2008, 1.442695
        %v2102 = vpow.pop %v2101
        %v2103 = vmul.f32 %v2009, 1.442695
        %v2104 = vpow.pop %v2103
        %v2105 = vmul.f32 %v2010, 1.442695
        %v2106 = vpow.pop %v2105
        %v2107 = vmul.f32 %v2011, 1.442695
        %v2108 = vpow.pop %v2107
        %v2109 = vmul.f32 %v2012, 1.442695
        %v2110 = vpow.pop %v2109
        %v2111 = vmul.f32 %v2013, 1.442695
        %v2112 = vpow.pop %v2111
        %v2113 = vmul.f32 %v2014, 1.442695
        %v2114 = vpow.pop %v2113
        %v2115 = vmul.f32 %v2015, 1.442695
        %v2116 = vpow.pop %v2115
        %v2117 = vmul.f32 %v2016, 1.442695
        %v2118 = vpow.pop %v2117
        %v2119 = vmul.f32 %v2017, 1.442695
        %v2120 = vpow.pop %v2119
        %v2121 = vmul.f32 %v2018, 1.442695
        %v2122 = vpow.pop %v2121
        %v2123 = vmul.f32 %v2019, 1.442695
        %v2124 = vpow.pop %v2123
        %v2125 = vmul.f32 %v2020, 1.442695
        %v2126 = vpow.pop %v2125
        %v2127 = vmul.f32 %v2021, 1.442695
        %v2128 = vpow.pop %v2127
        %v2129 = vmul.f32 %v2022, 1.442695
        %v2130 = vpow.pop %v2129
        %v2131 = vmul.f32 %v2023, 1.442695
        %v2132 = vpow.pop %v2131
        %v2133 = vmul.f32 %v2024, 1.442695
        %v2134 = vpow.pop %v2133
        %v2135 = vmul.f32 %v2025, 1.442695
        %v2136 = vpow.pop %v2135
        %v2137 = vmul.f32 %v2026, 1.442695
        %v2138 = vpow.pop %v2137
        %v2139 = vmul.f32 %v2027, 1.442695
        %v2140 = vpow.pop %v2139
        %v2141 = vmul.f32 %v2028, 1.442695
        %v2142 = vpow.pop %v2141
        %v2143 = vmul.f32 %v2029, 1.442695
        %v2144 = vpow.pop %v2143
        %v2145 = vmul.f32 %v2030, 1.442695
        %v2146 = vpow.pop %v2145
        %v2147 = vmul.f32 %v2031, 1.442695
        %v2148 = vpow.pop %v2147
        %v2149 = vmul.f32 %v2032, 1.442695
        %v2150 = vpow.pop %v2149
        %v2151 = vmul.f32 %v2033, 1.442695
        %v2152 = vpow.pop %v2151
        %v2153 = vmul.f32 %v2034, 1.442695
        %v2154 = vpow.pop %v2153
        %v2155 = vmul.f32 %v2035, 1.442695
        %v2156 = vpow.pop %v2155
        %v2157 = vmul.f32 %v2036, 1.442695
        %v2158 = vpow.pop %v2157
        %v2159 = vmul.f32 %v2037, 1.442695
        %v2160 = vpow.pop %v2159
        %v2161 = vmul.f32 %v2038, 1.442695
        %v2162 = vpow.pop %v2161
        %v2163 = vmul.f32 %v2039, 1.442695
        %v2164 = vpow.pop %v2163
        %v2165 = vmul.f32 %v2040, 1.442695
        %v2166 = vpow.pop %v2165
        %v2167 = vmul.f32 %v2041, 1.442695
        %v2168 = vpow.pop %v2167
        %v2169 = vmul.f32 %v2042, 1.442695
        %v2170 = vpow.pop %v2169
        %v2171 = vmul.f32 %v1851, %v2044
        %v2172 = vmul.f32 %v1852, %v2046
        %v2173 = vmul.f32 %v1853, %v2048
        %v2174 = vmul.f32 %v1854, %v2050
        %v2175 = vmul.f32 %v1855, %v2052
        %v2176 = vmul.f32 %v1856, %v2054
        %v2177 = vmul.f32 %v1857, %v2056
        %v2178 = vmul.f32 %v1858, %v2058
        %v2179 = vmul.f32 %v1859, %v2060
        %v2180 = vmul.f32 %v1860, %v2062
        %v2181 = vmul.f32 %v1861, %v2064
        %v2182 = vmul.f32 %v1862, %v2066
        %v2183 = vmul.f32 %v1863, %v2068
        %v2184 = vmul.f32 %v1864, %v2070
        %v2185 = vmul.f32 %v1865, %v2072
        %v2186 = vmul.f32 %v1866, %v2074
        %v2187 = vmul.f32 %v1867, %v2076
        %v2188 = vmul.f32 %v1868, %v2078
        %v2189 = vmul.f32 %v1869, %v2080
        %v2190 = vmul.f32 %v1870, %v2082
        %v2191 = vmul.f32 %v1871, %v2084
        %v2192 = vmul.f32 %v1872, %v2086
        %v2193 = vmul.f32 %v1873, %v2088
        %v2194 = vmul.f32 %v1874, %v2090
        %v2195 = vmul.f32 %v1875, %v2092
        %v2196 = vmul.f32 %v1876, %v2094
        %v2197 = vmul.f32 %v1877, %v2096
        %v2198 = vmul.f32 %v1878, %v2098
        %v2199 = vmul.f32 %v1879, %v2100
        %v2200 = vmul.f32 %v1880, %v2102
        %v2201 = vmul.f32 %v1881, %v2104
        %v2202 = vmul.f32 %v1882, %v2106
        %v2203 = vmul.f32 %v1883, %v2108
        %v2204 = vmul.f32 %v1884, %v2110
        %v2205 = vmul.f32 %v1885, %v2112
        %v2206 = vmul.f32 %v1886, %v2114
        %v2207 = vmul.f32 %v1887, %v2116
        %v2208 = vmul.f32 %v1888, %v2118
        %v2209 = vmul.f32 %v1889, %v2120
        %v2210 = vmul.f32 %v1890, %v2122
        %v2211 = vmul.f32 %v1891, %v2124
        %v2212 = vmul.f32 %v1892, %v2126
        %v2213 = vmul.f32 %v1893, %v2128
        %v2214 = vmul.f32 %v1894, %v2130
        %v2215 = vmul.f32 %v1895, %v2132
        %v2216 = vmul.f32 %v1896, %v2134
        %v2217 = vmul.f32 %v1897, %v2136
        %v2218 = vmul.f32 %v1898, %v2138
        %v2219 = vmul.f32 %v1899, %v2140
        %v2220 = vmul.f32 %v1900, %v2142
        %v2221 = vmul.f32 %v1901, %v2144
        %v2222 = vmul.f32 %v1902, %v2146
        %v2223 = vmul.f32 %v1903, %v2148
        %v2224 = vmul.f32 %v1904, %v2150
        %v2225 = vmul.f32 %v1905, %v2152
        %v2226 = vmul.f32 %v1906, %v2154
        %v2227 = vmul.f32 %v1907, %v2156
        %v2228 = vmul.f32 %v1908, %v2158
        %v2229 = vmul.f32 %v1909, %v2160
        %v2230 = vmul.f32 %v1910, %v2162
        %v2231 = vmul.f32 %v1911, %v2164
        %v2232 = vmul.f32 %v1912, %v2166
        %v2233 = vmul.f32 %v1913, %v2168
        %v2234 = vmul.f32 %v1914, %v2170
        %v2235 = vsub.f32 1.0, %v2171
        %v2236 = vsub.f32 1.0, %v2172
        %v2237 = vsub.f32 1.0, %v2173
        %v2238 = vsub.f32 1.0, %v2174
        %v2239 = vsub.f32 1.0, %v2175
        %v2240 = vsub.f32 1.0, %v2176
        %v2241 = vsub.f32 1.0, %v2177
        %v2242 = vsub.f32 1.0, %v2178
        %v2243 = vsub.f32 1.0, %v2179
        %v2244 = vsub.f32 1.0, %v2180
        %v2245 = vsub.f32 1.0, %v2181
        %v2246 = vsub.f32 1.0, %v2182
        %v2247 = vsub.f32 1.0, %v2183
        %v2248 = vsub.f32 1.0, %v2184
        %v2249 = vsub.f32 1.0, %v2185
        %v2250 = vsub.f32 1.0, %v2186
        %v2251 = vsub.f32 1.0, %v2187
        %v2252 = vsub.f32 1.0, %v2188
        %v2253 = vsub.f32 1.0, %v2189
        %v2254 = vsub.f32 1.0, %v2190
        %v2255 = vsub.f32 1.0, %v2191
        %v2256 = vsub.f32 1.0, %v2192
        %v2257 = vsub.f32 1.0, %v2193
        %v2258 = vsub.f32 1.0, %v2194
        %v2259 = vsub.f32 1.0, %v2195
        %v2260 = vsub.f32 1.0, %v2196
        %v2261 = vsub.f32 1.0, %v2197
        %v2262 = vsub.f32 1.0, %v2198
        %v2263 = vsub.f32 1.0, %v2199
        %v2264 = vsub.f32 1.0, %v2200
        %v2265 = vsub.f32 1.0, %v2201
        %v2266 = vsub.f32 1.0, %v2202
        %v2267 = vsub.f32 1.0, %v2203
        %v2268 = vsub.f32 1.0, %v2204
        %v2269 = vsub.f32 1.0, %v2205
        %v2270 = vsub.f32 1.0, %v2206
        %v2271 = vsub.f32 1.0, %v2207
        %v2272 = vsub.f32 1.0, %v2208
        %v2273 = vsub.f32 1.0, %v2209
        %v2274 = vsub.f32 1.0, %v2210
        %v2275 = vsub.f32 1.0, %v2211
        %v2276 = vsub.f32 1.0, %v2212
        %v2277 = vsub.f32 1.0, %v2213
        %v2278 = vsub.f32 1.0, %v2214
        %v2279 = vsub.f32 1.0, %v2215
        %v2280 = vsub.f32 1.0, %v2216
        %v2281 = vsub.f32 1.0, %v2217
        %v2282 = vsub.f32 1.0, %v2218
        %v2283 = vsub.f32 1.0, %v2219
        %v2284 = vsub.f32 1.0, %v2220
        %v2285 = vsub.f32 1.0, %v2221
        %v2286 = vsub.f32 1.0, %v2222
        %v2287 = vsub.f32 1.0, %v2223
        %v2288 = vsub.f32 1.0, %v2224
        %v2289 = vsub.f32 1.0, %v2225
        %v2290 = vsub.f32 1.0, %v2226
        %v2291 = vsub.f32 1.0, %v2227
        %v2292 = vsub.f32 1.0, %v2228
        %v2293 = vsub.f32 1.0, %v2229
        %v2294 = vsub.f32 1.0, %v2230
        %v2295 = vsub.f32 1.0, %v2231
        %v2296 = vsub.f32 1.0, %v2232
        %v2297 = vsub.f32 1.0, %v2233
        %v2298 = vsub.f32 1.0, %v2234
        %vm2299 = vcmp.lt.f32.partialorder %v955, 0.0
        %vm2300 = vcmp.lt.f32.partialorder %v956, 0.0
        %vm2301 = vcmp.lt.f32.partialorder %v957, 0.0
        %vm2302 = vcmp.lt.f32.partialorder %v958, 0.0
        %vm2303 = vcmp.lt.f32.partialorder %v959, 0.0
        %vm2304 = vcmp.lt.f32.partialorder %v960, 0.0
        %vm2305 = vcmp.lt.f32.partialorder %v961, 0.0
        %vm2306 = vcmp.lt.f32.partialorder %v962, 0.0
        %vm2307 = vcmp.lt.f32.partialorder %v963, 0.0
        %vm2308 = vcmp.lt.f32.partialorder %v964, 0.0
        %vm2309 = vcmp.lt.f32.partialorder %v965, 0.0
        %vm2310 = vcmp.lt.f32.partialorder %v966, 0.0
        %vm2311 = vcmp.lt.f32.partialorder %v967, 0.0
        %vm2312 = vcmp.lt.f32.partialorder %v968, 0.0
        %vm2313 = vcmp.lt.f32.partialorder %v969, 0.0
        %vm2314 = vcmp.lt.f32.partialorder %v970, 0.0
        %vm2315 = vcmp.lt.f32.partialorder %v971, 0.0
        %vm2316 = vcmp.lt.f32.partialorder %v972, 0.0
        %vm2317 = vcmp.lt.f32.partialorder %v973, 0.0
        %vm2318 = vcmp.lt.f32.partialorder %v974, 0.0
        %vm2319 = vcmp.lt.f32.partialorder %v975, 0.0
        %vm2320 = vcmp.lt.f32.partialorder %v976, 0.0
        %vm2321 = vcmp.lt.f32.partialorder %v977, 0.0
        %vm2322 = vcmp.lt.f32.partialorder %v978, 0.0
        %vm2323 = vcmp.lt.f32.partialorder %v979, 0.0
        %vm2324 = vcmp.lt.f32.partialorder %v980, 0.0
        %vm2325 = vcmp.lt.f32.partialorder %v981, 0.0
        %vm2326 = vcmp.lt.f32.partialorder %v982, 0.0
        %vm2327 = vcmp.lt.f32.partialorder %v983, 0.0
        %vm2328 = vcmp.lt.f32.partialorder %v984, 0.0
        %vm2329 = vcmp.lt.f32.partialorder %v985, 0.0
        %vm2330 = vcmp.lt.f32.partialorder %v986, 0.0
        %vm2331 = vcmp.lt.f32.partialorder %v987, 0.0
        %vm2332 = vcmp.lt.f32.partialorder %v988, 0.0
        %vm2333 = vcmp.lt.f32.partialorder %v989, 0.0
        %vm2334 = vcmp.lt.f32.partialorder %v990, 0.0
        %vm2335 = vcmp.lt.f32.partialorder %v991, 0.0
        %vm2336 = vcmp.lt.f32.partialorder %v992, 0.0
        %vm2337 = vcmp.lt.f32.partialorder %v993, 0.0
        %vm2338 = vcmp.lt.f32.partialorder %v994, 0.0
        %vm2339 = vcmp.lt.f32.partialorder %v995, 0.0
        %vm2340 = vcmp.lt.f32.partialorder %v996, 0.0
        %vm2341 = vcmp.lt.f32.partialorder %v997, 0.0
        %vm2342 = vcmp.lt.f32.partialorder %v998, 0.0
        %vm2343 = vcmp.lt.f32.partialorder %v999, 0.0
        %vm2344 = vcmp.lt.f32.partialorder %v1000, 0.0
        %vm2345 = vcmp.lt.f32.partialorder %v1001, 0.0
        %vm2346 = vcmp.lt.f32.partialorder %v1002, 0.0
        %vm2347 = vcmp.lt.f32.partialorder %v1003, 0.0
        %vm2348 = vcmp.lt.f32.partialorder %v1004, 0.0
        %vm2349 = vcmp.lt.f32.partialorder %v1005, 0.0
        %vm2350 = vcmp.lt.f32.partialorder %v1006, 0.0
        %vm2351 = vcmp.lt.f32.partialorder %v1007, 0.0
        %vm2352 = vcmp.lt.f32.partialorder %v1008, 0.0
        %vm2353 = vcmp.lt.f32.partialorder %v1009, 0.0
        %vm2354 = vcmp.lt.f32.partialorder %v1010, 0.0
        %vm2355 = vcmp.lt.f32.partialorder %v1011, 0.0
        %vm2356 = vcmp.lt.f32.partialorder %v1012, 0.0
        %vm2357 = vcmp.lt.f32.partialorder %v1013, 0.0
        %vm2358 = vcmp.lt.f32.partialorder %v1014, 0.0
        %vm2359 = vcmp.lt.f32.partialorder %v1015, 0.0
        %vm2360 = vcmp.lt.f32.partialorder %v1016, 0.0
        %vm2361 = vcmp.lt.f32.partialorder %v1017, 0.0
        %vm2362 = vcmp.lt.f32.partialorder %v1018, 0.0
        %v2363 = vsub.f32 0.0, %v2235
        %v2364 = vsub.f32 0.0, %v2236
        %v2365 = vsub.f32 0.0, %v2237
        %v2366 = vsub.f32 0.0, %v2238
        %v2367 = vsub.f32 0.0, %v2239
        %v2368 = vsub.f32 0.0, %v2240
        %v2369 = vsub.f32 0.0, %v2241
        %v2370 = vsub.f32 0.0, %v2242
        %v2371 = vsub.f32 0.0, %v2243
        %v2372 = vsub.f32 0.0, %v2244
        %v2373 = vsub.f32 0.0, %v2245
        %v2374 = vsub.f32 0.0, %v2246
        %v2375 = vsub.f32 0.0, %v2247
        %v2376 = vsub.f32 0.0, %v2248
        %v2377 = vsub.f32 0.0, %v2249
        %v2378 = vsub.f32 0.0, %v2250
        %v2379 = vsub.f32 0.0, %v2251
        %v2380 = vsub.f32 0.0, %v2252
        %v2381 = vsub.f32 0.0, %v2253
        %v2382 = vsub.f32 0.0, %v2254
        %v2383 = vsub.f32 0.0, %v2255
        %v2384 = vsub.f32 0.0, %v2256
        %v2385 = vsub.f32 0.0, %v2257
        %v2386 = vsub.f32 0.0, %v2258
        %v2387 = vsub.f32 0.0, %v2259
        %v2388 = vsub.f32 0.0, %v2260
        %v2389 = vsub.f32 0.0, %v2261
        %v2390 = vsub.f32 0.0, %v2262
        %v2391 = vsub.f32 0.0, %v2263
        %v2392 = vsub.f32 0.0, %v2264
        %v2393 = vsub.f32 0.0, %v2265
        %v2394 = vsub.f32 0.0, %v2266
        %v2395 = vsub.f32 0.0, %v2267
        %v2396 = vsub.f32 0.0, %v2268
        %v2397 = vsub.f32 0.0, %v2269
        %v2398 = vsub.f32 0.0, %v2270
        %v2399 = vsub.f32 0.0, %v2271
        %v2400 = vsub.f32 0.0, %v2272
        %v2401 = vsub.f32 0.0, %v2273
        %v2402 = vsub.f32 0.0, %v2274
        %v2403 = vsub.f32 0.0, %v2275
        %v2404 = vsub.f32 0.0, %v2276
        %v2405 = vsub.f32 0.0, %v2277
        %v2406 = vsub.f32 0.0, %v2278
        %v2407 = vsub.f32 0.0, %v2279
        %v2408 = vsub.f32 0.0, %v2280
        %v2409 = vsub.f32 0.0, %v2281
        %v2410 = vsub.f32 0.0, %v2282
        %v2411 = vsub.f32 0.0, %v2283
        %v2412 = vsub.f32 0.0, %v2284
        %v2413 = vsub.f32 0.0, %v2285
        %v2414 = vsub.f32 0.0, %v2286
        %v2415 = vsub.f32 0.0, %v2287
        %v2416 = vsub.f32 0.0, %v2288
        %v2417 = vsub.f32 0.0, %v2289
        %v2418 = vsub.f32 0.0, %v2290
        %v2419 = vsub.f32 0.0, %v2291
        %v2420 = vsub.f32 0.0, %v2292
        %v2421 = vsub.f32 0.0, %v2293
        %v2422 = vsub.f32 0.0, %v2294
        %v2423 = vsub.f32 0.0, %v2295
        %v2424 = vsub.f32 0.0, %v2296
        %v2425 = vsub.f32 0.0, %v2297
        %v2426 = vsub.f32 0.0, %v2298
        %v2427 = vsel %vm2299, %v2363, %v2235
        %v2428 = vsel %vm2300, %v2364, %v2236
        %v2429 = vsel %vm2301, %v2365, %v2237
        %v2430 = vsel %vm2302, %v2366, %v2238
        %v2431 = vsel %vm2303, %v2367, %v2239
        %v2432 = vsel %vm2304, %v2368, %v2240
        %v2433 = vsel %vm2305, %v2369, %v2241
        %v2434 = vsel %vm2306, %v2370, %v2242
        %v2435 = vsel %vm2307, %v2371, %v2243
        %v2436 = vsel %vm2308, %v2372, %v2244
        %v2437 = vsel %vm2309, %v2373, %v2245
        %v2438 = vsel %vm2310, %v2374, %v2246
        %v2439 = vsel %vm2311, %v2375, %v2247
        %v2440 = vsel %vm2312, %v2376, %v2248
        %v2441 = vsel %vm2313, %v2377, %v2249
        %v2442 = vsel %vm2314, %v2378, %v2250
        %v2443 = vsel %vm2315, %v2379, %v2251
        %v2444 = vsel %vm2316, %v2380, %v2252
        %v2445 = vsel %vm2317, %v2381, %v2253
        %v2446 = vsel %vm2318, %v2382, %v2254
        %v2447 = vsel %vm2319, %v2383, %v2255
        %v2448 = vsel %vm2320, %v2384, %v2256
        %v2449 = vsel %vm2321, %v2385, %v2257
        %v2450 = vsel %vm2322, %v2386, %v2258
        %v2451 = vsel %vm2323, %v2387, %v2259
        %v2452 = vsel %vm2324, %v2388, %v2260
        %v2453 = vsel %vm2325, %v2389, %v2261
        %v2454 = vsel %vm2326, %v2390, %v2262
        %v2455 = vsel %vm2327, %v2391, %v2263
        %v2456 = vsel %vm2328, %v2392, %v2264
        %v2457 = vsel %vm2329, %v2393, %v2265
        %v2458 = vsel %vm2330, %v2394, %v2266
        %v2459 = vsel %vm2331, %v2395, %v2267
        %v2460 = vsel %vm2332, %v2396, %v2268
        %v2461 = vsel %vm2333, %v2397, %v2269
        %v2462 = vsel %vm2334, %v2398, %v2270
        %v2463 = vsel %vm2335, %v2399, %v2271
        %v2464 = vsel %vm2336, %v2400, %v2272
        %v2465 = vsel %vm2337, %v2401, %v2273
        %v2466 = vsel %vm2338, %v2402, %v2274
        %v2467 = vsel %vm2339, %v2403, %v2275
        %v2468 = vsel %vm2340, %v2404, %v2276
        %v2469 = vsel %vm2341, %v2405, %v2277
        %v2470 = vsel %vm2342, %v2406, %v2278
        %v2471 = vsel %vm2343, %v2407, %v2279
        %v2472 = vsel %vm2344, %v2408, %v2280
        %v2473 = vsel %vm2345, %v2409, %v2281
        %v2474 = vsel %vm2346, %v2410, %v2282
        %v2475 = vsel %vm2347, %v2411, %v2283
        %v2476 = vsel %vm2348, %v2412, %v2284
        %v2477 = vsel %vm2349, %v2413, %v2285
        %v2478 = vsel %vm2350, %v2414, %v2286
        %v2479 = vsel %vm2351, %v2415, %v2287
        %v2480 = vsel %vm2352, %v2416, %v2288
        %v2481 = vsel %vm2353, %v2417, %v2289
        %v2482 = vsel %vm2354, %v2418, %v2290
        %v2483 = vsel %vm2355, %v2419, %v2291
        %v2484 = vsel %vm2356, %v2420, %v2292
        %v2485 = vsel %vm2357, %v2421, %v2293
        %v2486 = vsel %vm2358, %v2422, %v2294
        %v2487 = vsel %vm2359, %v2423, %v2295
        %v2488 = vsel %vm2360, %v2424, %v2296
        %v2489 = vsel %vm2361, %v2425, %v2297
        %v2490 = vsel %vm2362, %v2426, %v2298
        %v2491 = vmul.f32 %v765, 0.5
        %v2492 = vmul.f32 %v767, 0.5
        %v2493 = vmul.f32 %v771, 0.5
        %v2494 = vmul.f32 %v773, 0.5
        %v2495 = vmul.f32 %v777, 0.5
        %v2496 = vmul.f32 %v779, 0.5
        %v2497 = vmul.f32 %v783, 0.5
        %v2498 = vmul.f32 %v785, 0.5
        %v2499 = vmul.f32 %v789, 0.5
        %v2500 = vmul.f32 %v791, 0.5
        %v2501 = vmul.f32 %v795, 0.5
        %v2502 = vmul.f32 %v797, 0.5
        %v2503 = vmul.f32 %v801, 0.5
        %v2504 = vmul.f32 %v803, 0.5
        %v2505 = vmul.f32 %v807, 0.5
        %v2506 = vmul.f32 %v809, 0.5
        %v2507 = vmul.f32 %v813, 0.5
        %v2508 = vmul.f32 %v815, 0.5
        %v2509 = vmul.f32 %v819, 0.5
        %v2510 = vmul.f32 %v821, 0.5
        %v2511 = vmul.f32 %v825, 0.5
        %v2512 = vmul.f32 %v827, 0.5
        %v2513 = vmul.f32 %v831, 0.5
        %v2514 = vmul.f32 %v833, 0.5
        %v2515 = vmul.f32 %v837, 0.5
        %v2516 = vmul.f32 %v839, 0.5
        %v2517 = vmul.f32 %v843, 0.5
        %v2518 = vmul.f32 %v845, 0.5
        %v2519 = vmul.f32 %v849, 0.5
        %v2520 = vmul.f32 %v851, 0.5
        %v2521 = vmul.f32 %v855, 0.5
        %v2522 = vmul.f32 %v857, 0.5
        %v2523 = vmul.f32 %v861, 0.5
        %v2524 = vmul.f32 %v863, 0.5
        %v2525 = vmul.f32 %v867, 0.5
        %v2526 = vmul.f32 %v869, 0.5
        %v2527 = vmul.f32 %v873, 0.5
        %v2528 = vmul.f32 %v875, 0.5
        %v2529 = vmul.f32 %v879, 0.5
        %v2530 = vmul.f32 %v881, 0.5
        %v2531 = vmul.f32 %v885, 0.5
        %v2532 = vmul.f32 %v887, 0.5
        %v2533 = vmul.f32 %v891, 0.5
        %v2534 = vmul.f32 %v893, 0.5
        %v2535 = vmul.f32 %v897, 0.5
        %v2536 = vmul.f32 %v899, 0.5
        %v2537 = vmul.f32 %v903, 0.5
        %v2538 = vmul.f32 %v905, 0.5
        %v2539 = vmul.f32 %v909, 0.5
        %v2540 = vmul.f32 %v911, 0.5
        %v2541 = vmul.f32 %v915, 0.5
        %v2542 = vmul.f32 %v917, 0.5
        %v2543 = vmul.f32 %v921, 0.5
        %v2544 = vmul.f32 %v923, 0.5
        %v2545 = vmul.f32 %v927, 0.5
        %v2546 = vmul.f32 %v929, 0.5
        %v2547 = vmul.f32 %v933, 0.5
        %v2548 = vmul.f32 %v935, 0.5
        %v2549 = vmul.f32 %v939, 0.5
        %v2550 = vmul.f32 %v941, 0.5
        %v2551 = vmul.f32 %v945, 0.5
        %v2552 = vmul.f32 %v947, 0.5
        %v2553 = vmul.f32 %v951, 0.5
        %v2554 = vmul.f32 %v953, 0.5
        %v2555 = vadd.f32 %v2427, 1.0
        %v2556 = vadd.f32 %v2428, 1.0
        %v2557 = vadd.f32 %v2429, 1.0
        %v2558 = vadd.f32 %v2430, 1.0
        %v2559 = vadd.f32 %v2431, 1.0
        %v2560 = vadd.f32 %v2432, 1.0
        %v2561 = vadd.f32 %v2433, 1.0
        %v2562 = vadd.f32 %v2434, 1.0
        %v2563 = vadd.f32 %v2435, 1.0
        %v2564 = vadd.f32 %v2436, 1.0
        %v2565 = vadd.f32 %v2437, 1.0
        %v2566 = vadd.f32 %v2438, 1.0
        %v2567 = vadd.f32 %v2439, 1.0
        %v2568 = vadd.f32 %v2440, 1.0
        %v2569 = vadd.f32 %v2441, 1.0
        %v2570 = vadd.f32 %v2442, 1.0
        %v2571 = vadd.f32 %v2443, 1.0
        %v2572 = vadd.f32 %v2444, 1.0
        %v2573 = vadd.f32 %v2445, 1.0
        %v2574 = vadd.f32 %v2446, 1.0
        %v2575 = vadd.f32 %v2447, 1.0
        %v2576 = vadd.f32 %v2448, 1.0
        %v2577 = vadd.f32 %v2449, 1.0
        %v2578 = vadd.f32 %v2450, 1.0
        %v2579 = vadd.f32 %v2451, 1.0
        %v2580 = vadd.f32 %v2452, 1.0
        %v2581 = vadd.f32 %v2453, 1.0
        %v2582 = vadd.f32 %v2454, 1.0
        %v2583 = vadd.f32 %v2455, 1.0
        %v2584 = vadd.f32 %v2456, 1.0
        %v2585 = vadd.f32 %v2457, 1.0
        %v2586 = vadd.f32 %v2458, 1.0
        %v2587 = vadd.f32 %v2459, 1.0
        %v2588 = vadd.f32 %v2460, 1.0
        %v2589 = vadd.f32 %v2461, 1.0
        %v2590 = vadd.f32 %v2462, 1.0
        %v2591 = vadd.f32 %v2463, 1.0
        %v2592 = vadd.f32 %v2464, 1.0
        %v2593 = vadd.f32 %v2465, 1.0
        %v2594 = vadd.f32 %v2466, 1.0
        %v2595 = vadd.f32 %v2467, 1.0
        %v2596 = vadd.f32 %v2468, 1.0
        %v2597 = vadd.f32 %v2469, 1.0
        %v2598 = vadd.f32 %v2470, 1.0
        %v2599 = vadd.f32 %v2471, 1.0
        %v2600 = vadd.f32 %v2472, 1.0
        %v2601 = vadd.f32 %v2473, 1.0
        %v2602 = vadd.f32 %v2474, 1.0
        %v2603 = vadd.f32 %v2475, 1.0
        %v2604 = vadd.f32 %v2476, 1.0
        %v2605 = vadd.f32 %v2477, 1.0
        %v2606 = vadd.f32 %v2478, 1.0
        %v2607 = vadd.f32 %v2479, 1.0
        %v2608 = vadd.f32 %v2480, 1.0
        %v2609 = vadd.f32 %v2481, 1.0
        %v2610 = vadd.f32 %v2482, 1.0
        %v2611 = vadd.f32 %v2483, 1.0
        %v2612 = vadd.f32 %v2484, 1.0
        %v2613 = vadd.f32 %v2485, 1.0
        %v2614 = vadd.f32 %v2486, 1.0
        %v2615 = vadd.f32 %v2487, 1.0
        %v2616 = vadd.f32 %v2488, 1.0
        %v2617 = vadd.f32 %v2489, 1.0
        %v2618 = vadd.f32 %v2490, 1.0
        %v2619 = vmul.f32 %v2491, %v2555
        %v2620 = vmul.f32 %v2492, %v2556
        %v2621 = vmul.f32 %v2493, %v2557
        %v2622 = vmul.f32 %v2494, %v2558
        %v2623 = vmul.f32 %v2495, %v2559
        %v2624 = vmul.f32 %v2496, %v2560
        %v2625 = vmul.f32 %v2497, %v2561
        %v2626 = vmul.f32 %v2498, %v2562
        %v2627 = vmul.f32 %v2499, %v2563
        %v2628 = vmul.f32 %v2500, %v2564
        %v2629 = vmul.f32 %v2501, %v2565
        %v2630 = vmul.f32 %v2502, %v2566
        %v2631 = vmul.f32 %v2503, %v2567
        %v2632 = vmul.f32 %v2504, %v2568
        %v2633 = vmul.f32 %v2505, %v2569
        %v2634 = vmul.f32 %v2506, %v2570
        %v2635 = vmul.f32 %v2507, %v2571
        %v2636 = vmul.f32 %v2508, %v2572
        %v2637 = vmul.f32 %v2509, %v2573
        %v2638 = vmul.f32 %v2510, %v2574
        %v2639 = vmul.f32 %v2511, %v2575
        %v2640 = vmul.f32 %v2512, %v2576
        %v2641 = vmul.f32 %v2513, %v2577
        %v2642 = vmul.f32 %v2514, %v2578
        %v2643 = vmul.f32 %v2515, %v2579
        %v2644 = vmul.f32 %v2516, %v2580
        %v2645 = vmul.f32 %v2517, %v2581
        %v2646 = vmul.f32 %v2518, %v2582
        %v2647 = vmul.f32 %v2519, %v2583
        %v2648 = vmul.f32 %v2520, %v2584
        %v2649 = vmul.f32 %v2521, %v2585
        %v2650 = vmul.f32 %v2522, %v2586
        %v2651 = vmul.f32 %v2523, %v2587
        %v2652 = vmul.f32 %v2524, %v2588
        %v2653 = vmul.f32 %v2525, %v2589
        %v2654 = vmul.f32 %v2526, %v2590
        %v2655 = vmul.f32 %v2527, %v2591
        %v2656 = vmul.f32 %v2528, %v2592
        %v2657 = vmul.f32 %v2529, %v2593
        %v2658 = vmul.f32 %v2530, %v2594
        %v2659 = vmul.f32 %v2531, %v2595
        %v2660 = vmul.f32 %v2532, %v2596
        %v2661 = vmul.f32 %v2533, %v2597
        %v2662 = vmul.f32 %v2534, %v2598
        %v2663 = vmul.f32 %v2535, %v2599
        %v2664 = vmul.f32 %v2536, %v2600
        %v2665 = vmul.f32 %v2537, %v2601
        %v2666 = vmul.f32 %v2538, %v2602
        %v2667 = vmul.f32 %v2539, %v2603
        %v2668 = vmul.f32 %v2540, %v2604
        %v2669 = vmul.f32 %v2541, %v2605
        %v2670 = vmul.f32 %v2542, %v2606
        %v2671 = vmul.f32 %v2543, %v2607
        %v2672 = vmul.f32 %v2544, %v2608
        %v2673 = vmul.f32 %v2545, %v2609
        %v2674 = vmul.f32 %v2546, %v2610
        %v2675 = vmul.f32 %v2547, %v2611
        %v2676 = vmul.f32 %v2548, %v2612
        %v2677 = vmul.f32 %v2549, %v2613
        %v2678 = vmul.f32 %v2550, %v2614
        %v2679 = vmul.f32 %v2551, %v2615
        %v2680 = vmul.f32 %v2552, %v2616
        %v2681 = vmul.f32 %v2553, %v2617
        %v2682 = vmul.f32 %v2554, %v2618
        %v2683 = vld [vmem:[%s3] sm:$0xff]
        %v2684 = vld [vmem:[%s3 + $0x8] sm:$0xff]
        %v2685 = vld [vmem:[%s3 + $0x10] sm:$0xff]
        %v2686 = vld [vmem:[%s3 + $0x18] sm:$0xff]
        %v2687 = vld [vmem:[%s3 + $0x20] sm:$0xff]
        %v2688 = vld [vmem:[%s3 + $0x28] sm:$0xff]
        %v2689 = vld [vmem:[%s3 + $0x30] sm:$0xff]
        %v2690 = vld [vmem:[%s3 + $0x38] sm:$0xff]
        %v2691 = vld [vmem:[%s3 + $0x40] sm:$0xff]
        %v2692 = vld [vmem:[%s3 + $0x48] sm:$0xff]
        %v2693 = vld [vmem:[%s3 + $0x50] sm:$0xff]
        %v2694 = vld [vmem:[%s3 + $0x58] sm:$0xff]
        %v2695 = vld [vmem:[%s3 + $0x60] sm:$0xff]
        %v2696 = vld [vmem:[%s3 + $0x68] sm:$0xff]
        %v2697 = vld [vmem:[%s3 + $0x70] sm:$0xff]
        %v2698 = vld [vmem:[%s3 + $0x78] sm:$0xff]
        %v2699 = vld [vmem:[%s3 + $0x80] sm:$0xff]
        %v2700 = vld [vmem:[%s3 + $0x88] sm:$0xff]
        %v2701 = vld [vmem:[%s3 + $0x90] sm:$0xff]
        %v2702 = vld [vmem:[%s3 + $0x98] sm:$0xff]
        %v2703 = vld [vmem:[%s3 + $0xa0] sm:$0xff]
        %v2704 = vld [vmem:[%s3 + $0xa8] sm:$0xff]
        %v2705 = vld [vmem:[%s3 + $0xb0] sm:$0xff]
        %v2706 = vld [vmem:[%s3 + $0xb8] sm:$0xff]
        %v2707 = vld [vmem:[%s3 + $0xc0] sm:$0xff]
        %v2708 = vld [vmem:[%s3 + $0xc8] sm:$0xff]
        %v2709 = vld [vmem:[%s3 + $0xd0] sm:$0xff]
        %v2710 = vld [vmem:[%s3 + $0xd8] sm:$0xff]
        %v2711 = vld [vmem:[%s3 + $0xe0] sm:$0xff]
        %v2712 = vld [vmem:[%s3 + $0xe8] sm:$0xff]
        %v2713 = vld [vmem:[%s3 + $0xf0] sm:$0xff]
        %v2714 = vld [vmem:[%s3 + $0xf8] sm:$0xff]
        %v2715 = vld [vmem:[%s4] sm:$0xff]
        %v2716 = vld [vmem:[%s4 + $0x8] sm:$0xff]
        %v2717 = vld [vmem:[%s4 + $0x10] sm:$0xff]
        %v2718 = vld [vmem:[%s4 + $0x18] sm:$0xff]
        %v2719 = vld [vmem:[%s4 + $0x20] sm:$0xff]
        %v2720 = vld [vmem:[%s4 + $0x28] sm:$0xff]
        %v2721 = vld [vmem:[%s4 + $0x30] sm:$0xff]
        %v2722 = vld [vmem:[%s4 + $0x38] sm:$0xff]
        %v2723 = vld [vmem:[%s4 + $0x40] sm:$0xff]
        %v2724 = vld [vmem:[%s4 + $0x48] sm:$0xff]
        %v2725 = vld [vmem:[%s4 + $0x50] sm:$0xff]
        %v2726 = vld [vmem:[%s4 + $0x58] sm:$0xff]
        %v2727 = vld [vmem:[%s4 + $0x60] sm:$0xff]
        %v2728 = vld [vmem:[%s4 + $0x68] sm:$0xff]
        %v2729 = vld [vmem:[%s4 + $0x70] sm:$0xff]
        %v2730 = vld [vmem:[%s4 + $0x78] sm:$0xff]
        %2732 = vset.pattern.permute.xlu0 0
        %2733 = vperm.xlu0 %2732, %v2715
        %v2734 = vpop.permute.xlu0 %2733
        %2737 = vset.pattern.permute.xlu0 0
        %2738 = vperm.xlu0 %2737, %v2716
        %v2739 = vpop.permute.xlu0 %2738
        %2742 = vset.pattern.permute.xlu0 0
        %2743 = vperm.xlu0 %2742, %v2717
        %v2744 = vpop.permute.xlu0 %2743
        %2747 = vset.pattern.permute.xlu0 0
        %2748 = vperm.xlu0 %2747, %v2718
        %v2749 = vpop.permute.xlu0 %2748
        %2752 = vset.pattern.permute.xlu0 0
        %2753 = vperm.xlu0 %2752, %v2719
        %v2754 = vpop.permute.xlu0 %2753
        %2757 = vset.pattern.permute.xlu0 0
        %2758 = vperm.xlu0 %2757, %v2720
        %v2759 = vpop.permute.xlu0 %2758
        %2762 = vset.pattern.permute.xlu0 0
        %2763 = vperm.xlu0 %2762, %v2721
        %v2764 = vpop.permute.xlu0 %2763
        %2767 = vset.pattern.permute.xlu0 0
        %2768 = vperm.xlu0 %2767, %v2722
        %v2769 = vpop.permute.xlu0 %2768
        %2772 = vset.pattern.permute.xlu0 0
        %2773 = vperm.xlu0 %2772, %v2723
        %v2774 = vpop.permute.xlu0 %2773
        %2777 = vset.pattern.permute.xlu0 0
        %2778 = vperm.xlu0 %2777, %v2724
        %v2779 = vpop.permute.xlu0 %2778
        %2782 = vset.pattern.permute.xlu0 0
        %2783 = vperm.xlu0 %2782, %v2725
        %v2784 = vpop.permute.xlu0 %2783
        %2787 = vset.pattern.permute.xlu0 0
        %2788 = vperm.xlu0 %2787, %v2726
        %v2789 = vpop.permute.xlu0 %2788
        %2792 = vset.pattern.permute.xlu0 0
        %2793 = vperm.xlu0 %2792, %v2727
        %v2794 = vpop.permute.xlu0 %2793
        %2797 = vset.pattern.permute.xlu0 0
        %2798 = vperm.xlu0 %2797, %v2728
        %v2799 = vpop.permute.xlu0 %2798
        %2802 = vset.pattern.permute.xlu0 0
        %2803 = vperm.xlu0 %2802, %v2729
        %v2804 = vpop.permute.xlu0 %2803
        %2807 = vset.pattern.permute.xlu0 0
        %2808 = vperm.xlu0 %2807, %v2730
        %v2809 = vpop.permute.xlu0 %2808
        %2811 = vmatprep.subr.mxu0 %v2620
        %2812 = vmatpush1.msra.mxu0 %v2619
        %2813 = vmatprep.subr.mxu0 %v2622
        %2814 = vmatpush1.msra.mxu0 %v2621
        %2815 = vmatprep.subr.mxu0 %v2624
        %2816 = vmatpush1.msra.mxu0 %v2623
        %2817 = vmatprep.subr.mxu0 %v2626
        %2818 = vmatpush1.msra.mxu0 %v2625
        %2819 = vmatprep.subr.mxu0 %v2628
        %2820 = vmatpush1.msra.mxu0 %v2627
        %2821 = vmatprep.subr.mxu0 %v2630
        %2822 = vmatpush1.msra.mxu0 %v2629
        %2823 = vmatprep.subr.mxu0 %v2632
        %2824 = vmatpush1.msra.mxu0 %v2631
        %2825 = vmatprep.subr.mxu0 %v2634
        %2826 = vmatpush1.msra.mxu0 %v2633
        %2827 = vmatprep.subr.mxu0 %v2636
        %2828 = vmatpush1.msra.mxu0 %v2635
        %2829 = vmatprep.subr.mxu0 %v2638
        %2830 = vmatpush1.msra.mxu0 %v2637
        %2831 = vmatprep.subr.mxu0 %v2640
        %2832 = vmatpush1.msra.mxu0 %v2639
        %2833 = vmatprep.subr.mxu0 %v2642
        %2834 = vmatpush1.msra.mxu0 %v2641
        %2835 = vmatprep.subr.mxu0 %v2644
        %2836 = vmatpush1.msra.mxu0 %v2643
        %2837 = vmatprep.subr.mxu0 %v2646
        %2838 = vmatpush1.msra.mxu0 %v2645
        %2839 = vmatprep.subr.mxu0 %v2648
        %2840 = vmatpush1.msra.mxu0 %v2647
        %2841 = vmatprep.subr.mxu0 %v2650
        %2842 = vmatpush1.msra.mxu0 %v2649
        %2843 = vmatprep.subr.mxu0 %v2652
        %2844 = vmatpush1.msra.mxu0 %v2651
        %2845 = vmatprep.subr.mxu0 %v2654
        %2846 = vmatpush1.msra.mxu0 %v2653
        %2847 = vmatprep.subr.mxu0 %v2656
        %2848 = vmatpush1.msra.mxu0 %v2655
        %2849 = vmatprep.subr.mxu0 %v2658
        %2850 = vmatpush1.msra.mxu0 %v2657
        %2851 = vmatprep.subr.mxu0 %v2660
        %2852 = vmatpush1.msra.mxu0 %v2659
        %2853 = vmatprep.subr.mxu0 %v2662
        %2854 = vmatpush1.msra.mxu0 %v2661
        %2855 = vmatprep.subr.mxu0 %v2664
        %2856 = vmatpush1.msra.mxu0 %v2663
        %2857 = vmatprep.subr.mxu0 %v2666
        %2858 = vmatpush1.msra.mxu0 %v2665
        %2859 = vmatprep.subr.mxu0 %v2668
        %2860 = vmatpush1.msra.mxu0 %v2667
        %2861 = vmatprep.subr.mxu0 %v2670
        %2862 = vmatpush1.msra.mxu0 %v2669
        %2863 = vmatprep.subr.mxu0 %v2672
        %2864 = vmatpush1.msra.mxu0 %v2671
        %2865 = vmatprep.subr.mxu0 %v2674
        %2866 = vmatpush1.msra.mxu0 %v2673
        %2867 = vmatprep.subr.mxu0 %v2676
        %2868 = vmatpush1.msra.mxu0 %v2675
        %2869 = vmatprep.subr.mxu0 %v2678
        %2870 = vmatpush1.msra.mxu0 %v2677
        %2871 = vmatprep.subr.mxu0 %v2680
        %2872 = vmatpush1.msra.mxu0 %v2679
        %2873 = vmatprep.subr.mxu0 %v2682
        %2874 = vmatpush1.msra.mxu0 %v2681
        %2875 = vmatprep.mubr.f32.mxu0 %v2684
        %2876 = vmatmul.mubr.f32.gmra.mrb[0].mxu0 %v2683
        %v2877 = vpop.f32.mrb[0].mxu0
        %v2878 = vadd.f32 %v2734, %v2877
        %v2879 = vpop.f32.mrb[0].mxu0
        %v2880 = vadd.f32 %v2734, %v2879
        %2881 = vmatprep.mubr.f32.mxu0 %v2686
        %2882 = vmatmul.mubr.f32.gmra.mrb[0].mxu0 %v2685
        %v2883 = vpop.f32.mrb[0].mxu0
        %v2884 = vadd.f32 %v2739, %v2883
        %v2885 = vpop.f32.mrb[0].mxu0
        %v2886 = vadd.f32 %v2739, %v2885
        %2887 = vmatprep.mubr.f32.mxu0 %v2688
        %2888 = vmatmul.mubr.f32.gmra.mrb[0].mxu0 %v2687
        %v2889 = vpop.f32.mrb[0].mxu0
        %v2890 = vadd.f32 %v2744, %v2889
        %v2891 = vpop.f32.mrb[0].mxu0
        %v2892 = vadd.f32 %v2744, %v2891
        %2893 = vmatprep.mubr.f32.mxu0 %v2690
        %2894 = vmatmul.mubr.f32.gmra.mrb[0].mxu0 %v2689
        %v2895 = vpop.f32.mrb[0].mxu0
        %v2896 = vadd.f32 %v2749, %v2895
        %v2897 = vpop.f32.mrb[0].mxu0
        %v2898 = vadd.f32 %v2749, %v2897
        %2899 = vmatprep.mubr.f32.mxu0 %v2692
        %2900 = vmatmul.mubr.f32.gmra.mrb[0].mxu0 %v2691
        %v2901 = vpop.f32.mrb[0].mxu0
        %v2902 = vadd.f32 %v2754, %v2901
        %v2903 = vpop.f32.mrb[0].mxu0
        %v2904 = vadd.f32 %v2754, %v2903
        %2905 = vmatprep.mubr.f32.mxu0 %v2694
        %2906 = vmatmul.mubr.f32.gmra.mrb[0].mxu0 %v2693
        %v2907 = vpop.f32.mrb[0].mxu0
        %v2908 = vadd.f32 %v2759, %v2907
        %v2909 = vpop.f32.mrb[0].mxu0
        %v2910 = vadd.f32 %v2759, %v2909
        %2911 = vmatprep.mubr.f32.mxu0 %v2696
        %2912 = vmatmul.mubr.f32.gmra.mrb[0].mxu0 %v2695
        %v2913 = vpop.f32.mrb[0].mxu0
        %v2914 = vadd.f32 %v2764, %v2913
        %v2915 = vpop.f32.mrb[0].mxu0
        %v2916 = vadd.f32 %v2764, %v2915
        %2917 = vmatprep.mubr.f32.mxu0 %v2698
        %2918 = vmatmul.mubr.f32.gmra.mrb[0].mxu0 %v2697
        %v2919 = vpop.f32.mrb[0].mxu0
        %v2920 = vadd.f32 %v2769, %v2919
        %v2921 = vpop.f32.mrb[0].mxu0
        %v2922 = vadd.f32 %v2769, %v2921
        %2923 = vmatprep.mubr.f32.mxu0 %v2700
        %2924 = vmatmul.mubr.f32.gmra.mrb[0].mxu0 %v2699
        %v2925 = vpop.f32.mrb[0].mxu0
        %v2926 = vadd.f32 %v2774, %v2925
        %v2927 = vpop.f32.mrb[0].mxu0
        %v2928 = vadd.f32 %v2774, %v2927
        %2929 = vmatprep.mubr.f32.mxu0 %v2702
        %2930 = vmatmul.mubr.f32.gmra.mrb[0].mxu0 %v2701
        %v2931 = vpop.f32.mrb[0].mxu0
        %v2932 = vadd.f32 %v2779, %v2931
        %v2933 = vpop.f32.mrb[0].mxu0
        %v2934 = vadd.f32 %v2779, %v2933
        %2935 = vmatprep.mubr.f32.mxu0 %v2704
        %2936 = vmatmul.mubr.f32.gmra.mrb[0].mxu0 %v2703
        %v2937 = vpop.f32.mrb[0].mxu0
        %v2938 = vadd.f32 %v2784, %v2937
        %v2939 = vpop.f32.mrb[0].mxu0
        %v2940 = vadd.f32 %v2784, %v2939
        %2941 = vmatprep.mubr.f32.mxu0 %v2706
        %2942 = vmatmul.mubr.f32.gmra.mrb[0].mxu0 %v2705
        %v2943 = vpop.f32.mrb[0].mxu0
        %v2944 = vadd.f32 %v2789, %v2943
        %v2945 = vpop.f32.mrb[0].mxu0
        %v2946 = vadd.f32 %v2789, %v2945
        %2947 = vmatprep.mubr.f32.mxu0 %v2708
        %2948 = vmatmul.mubr.f32.gmra.mrb[0].mxu0 %v2707
        %v2949 = vpop.f32.mrb[0].mxu0
        %v2950 = vadd.f32 %v2794, %v2949
        %v2951 = vpop.f32.mrb[0].mxu0
        %v2952 = vadd.f32 %v2794, %v2951
        %2953 = vmatprep.mubr.f32.mxu0 %v2710
        %2954 = vmatmul.mubr.f32.gmra.mrb[0].mxu0 %v2709
        %v2955 = vpop.f32.mrb[0].mxu0
        %v2956 = vadd.f32 %v2799, %v2955
        %v2957 = vpop.f32.mrb[0].mxu0
        %v2958 = vadd.f32 %v2799, %v2957
        %2959 = vmatprep.mubr.f32.mxu0 %v2712
        %2960 = vmatmul.mubr.f32.gmra.mrb[0].mxu0 %v2711
        %v2961 = vpop.f32.mrb[0].mxu0
        %v2962 = vadd.f32 %v2804, %v2961
        %v2963 = vpop.f32.mrb[0].mxu0
        %v2964 = vadd.f32 %v2804, %v2963
        %2965 = vmatprep.mubr.f32.mxu0 %v2714
        %2966 = vmatmul.mubr.f32.gmra.mrb[0].mxu0 %v2713
        %v2967 = vpop.f32.mrb[0].mxu0
        %v2968 = vadd.f32 %v2809, %v2967
        %v2969 = vpop.f32.mrb[0].mxu0
        %v2970 = vadd.f32 %v2809, %v2969
        %2971 = vdwg.mxu0
        %v2972 = vmul.f32 %v2878, 0.70710677
        %v2973 = vmul.f32 %v2880, 0.70710677
        %v2974 = vmul.f32 %v2884, 0.70710677
        %v2975 = vmul.f32 %v2886, 0.70710677
        %v2976 = vmul.f32 %v2890, 0.70710677
        %v2977 = vmul.f32 %v2892, 0.70710677
        %v2978 = vmul.f32 %v2896, 0.70710677
        %v2979 = vmul.f32 %v2898, 0.70710677
        %v2980 = vmul.f32 %v2902, 0.70710677
        %v2981 = vmul.f32 %v2904, 0.70710677
        %v2982 = vmul.f32 %v2908, 0.70710677
        %v2983 = vmul.f32 %v2910, 0.70710677
        %v2984 = vmul.f32 %v2914, 0.70710677
        %v2985 = vmul.f32 %v2916, 0.70710677
        %v2986 = vmul.f32 %v2920, 0.70710677
        %v2987 = vmul.f32 %v2922, 0.70710677
        %v2988 = vmul.f32 %v2926, 0.70710677
        %v2989 = vmul.f32 %v2928, 0.70710677
        %v2990 = vmul.f32 %v2932, 0.70710677
        %v2991 = vmul.f32 %v2934, 0.70710677
        %v2992 = vmul.f32 %v2938, 0.70710677
        %v2993 = vmul.f32 %v2940, 0.70710677
        %v2994 = vmul.f32 %v2944, 0.70710677
        %v2995 = vmul.f32 %v2946, 0.70710677
        %v2996 = vmul.f32 %v2950, 0.70710677
        %v2997 = vmul.f32 %v2952, 0.70710677
        %v2998 = vmul.f32 %v2956, 0.70710677
        %v2999 = vmul.f32 %v2958, 0.70710677
        %v3000 = vmul.f32 %v2962, 0.70710677
        %v3001 = vmul.f32 %v2964, 0.70710677
        %v3002 = vmul.f32 %v2968, 0.70710677
        %v3003 = vmul.f32 %v2970, 0.70710677
        %v3004 = vand.u32 2147483647, %v2972
        %v3005 = vand.u32 2147483647, %v2973
        %v3006 = vand.u32 2147483647, %v2974
        %v3007 = vand.u32 2147483647, %v2975
        %v3008 = vand.u32 2147483647, %v2976
        %v3009 = vand.u32 2147483647, %v2977
        %v3010 = vand.u32 2147483647, %v2978
        %v3011 = vand.u32 2147483647, %v2979
        %v3012 = vand.u32 2147483647, %v2980
        %v3013 = vand.u32 2147483647, %v2981
        %v3014 = vand.u32 2147483647, %v2982
        %v3015 = vand.u32 2147483647, %v2983
        %v3016 = vand.u32 2147483647, %v2984
        %v3017 = vand.u32 2147483647, %v2985
        %v3018 = vand.u32 2147483647, %v2986
        %v3019 = vand.u32 2147483647, %v2987
        %v3020 = vand.u32 2147483647, %v2988
        %v3021 = vand.u32 2147483647, %v2989
        %v3022 = vand.u32 2147483647, %v2990
        %v3023 = vand.u32 2147483647, %v2991
        %v3024 = vand.u32 2147483647, %v2992
        %v3025 = vand.u32 2147483647, %v2993
        %v3026 = vand.u32 2147483647, %v2994
        %v3027 = vand.u32 2147483647, %v2995
        %v3028 = vand.u32 2147483647, %v2996
        %v3029 = vand.u32 2147483647, %v2997
        %v3030 = vand.u32 2147483647, %v2998
        %v3031 = vand.u32 2147483647, %v2999
        %v3032 = vand.u32 2147483647, %v3000
        %v3033 = vand.u32 2147483647, %v3001
        %v3034 = vand.u32 2147483647, %v3002
        %v3035 = vand.u32 2147483647, %v3003
        %v3036 = vmul.f32 %v3004, 0.3275911
        %v3037 = vmul.f32 %v3005, 0.3275911
        %v3038 = vmul.f32 %v3006, 0.3275911
        %v3039 = vmul.f32 %v3007, 0.3275911
        %v3040 = vmul.f32 %v3008, 0.3275911
        %v3041 = vmul.f32 %v3009, 0.3275911
        %v3042 = vmul.f32 %v3010, 0.3275911
        %v3043 = vmul.f32 %v3011, 0.3275911
        %v3044 = vmul.f32 %v3012, 0.3275911
        %v3045 = vmul.f32 %v3013, 0.3275911
        %v3046 = vmul.f32 %v3014, 0.3275911
        %v3047 = vmul.f32 %v3015, 0.3275911
        %v3048 = vmul.f32 %v3016, 0.3275911
        %v3049 = vmul.f32 %v3017, 0.3275911
        %v3050 = vmul.f32 %v3018, 0.3275911
        %v3051 = vmul.f32 %v3019, 0.3275911
        %v3052 = vmul.f32 %v3020, 0.3275911
        %v3053 = vmul.f32 %v3021, 0.3275911
        %v3054 = vmul.f32 %v3022, 0.3275911
        %v3055 = vmul.f32 %v3023, 0.3275911
        %v3056 = vmul.f32 %v3024, 0.3275911
        %v3057 = vmul.f32 %v3025, 0.3275911
        %v3058 = vmul.f32 %v3026, 0.3275911
        %v3059 = vmul.f32 %v3027, 0.3275911
        %v3060 = vmul.f32 %v3028, 0.3275911
        %v3061 = vmul.f32 %v3029, 0.3275911
        %v3062 = vmul.f32 %v3030, 0.3275911
        %v3063 = vmul.f32 %v3031, 0.3275911
        %v3064 = vmul.f32 %v3032, 0.3275911
        %v3065 = vmul.f32 %v3033, 0.3275911
        %v3066 = vmul.f32 %v3034, 0.3275911
        %v3067 = vmul.f32 %v3035, 0.3275911
        %v3068 = vadd.f32 %v3036, 1.0
        %v3069 = vadd.f32 %v3037, 1.0
        %v3070 = vadd.f32 %v3038, 1.0
        %v3071 = vadd.f32 %v3039, 1.0
        %v3072 = vadd.f32 %v3040, 1.0
        %v3073 = vadd.f32 %v3041, 1.0
        %v3074 = vadd.f32 %v3042, 1.0
        %v3075 = vadd.f32 %v3043, 1.0
        %v3076 = vadd.f32 %v3044, 1.0
        %v3077 = vadd.f32 %v3045, 1.0
        %v3078 = vadd.f32 %v3046, 1.0
        %v3079 = vadd.f32 %v3047, 1.0
        %v3080 = vadd.f32 %v3048, 1.0
        %v3081 = vadd.f32 %v3049, 1.0
        %v3082 = vadd.f32 %v3050, 1.0
        %v3083 = vadd.f32 %v3051, 1.0
        %v3084 = vadd.f32 %v3052, 1.0
        %v3085 = vadd.f32 %v3053, 1.0
        %v3086 = vadd.f32 %v3054, 1.0
        %v3087 = vadd.f32 %v3055, 1.0
        %v3088 = vadd.f32 %v3056, 1.0
        %v3089 = vadd.f32 %v3057, 1.0
        %v3090 = vadd.f32 %v3058, 1.0
        %v3091 = vadd.f32 %v3059, 1.0
        %v3092 = vadd.f32 %v3060, 1.0
        %v3093 = vadd.f32 %v3061, 1.0
        %v3094 = vadd.f32 %v3062, 1.0
        %v3095 = vadd.f32 %v3063, 1.0
        %v3096 = vadd.f32 %v3064, 1.0
        %v3097 = vadd.f32 %v3065, 1.0
        %v3098 = vadd.f32 %v3066, 1.0
        %v3099 = vadd.f32 %v3067, 1.0
        %v3100 = vrcp.pop %v3068
        %v3101 = vmul.f32 1.0, %v3100
        %v3102 = vrcp.pop %v3069
        %v3103 = vmul.f32 1.0, %v3102
        %v3104 = vrcp.pop %v3070
        %v3105 = vmul.f32 1.0, %v3104
        %v3106 = vrcp.pop %v3071
        %v3107 = vmul.f32 1.0, %v3106
        %v3108 = vrcp.pop %v3072
        %v3109 = vmul.f32 1.0, %v3108
        %v3110 = vrcp.pop %v3073
        %v3111 = vmul.f32 1.0, %v3110
        %v3112 = vrcp.pop %v3074
        %v3113 = vmul.f32 1.0, %v3112
        %v3114 = vrcp.pop %v3075
        %v3115 = vmul.f32 1.0, %v3114
        %v3116 = vrcp.pop %v3076
        %v3117 = vmul.f32 1.0, %v3116
        %v3118 = vrcp.pop %v3077
        %v3119 = vmul.f32 1.0, %v3118
        %v3120 = vrcp.pop %v3078
        %v3121 = vmul.f32 1.0, %v3120
        %v3122 = vrcp.pop %v3079
        %v3123 = vmul.f32 1.0, %v3122
        %v3124 = vrcp.pop %v3080
        %v3125 = vmul.f32 1.0, %v3124
        %v3126 = vrcp.pop %v3081
        %v3127 = vmul.f32 1.0, %v3126
        %v3128 = vrcp.pop %v3082
        %v3129 = vmul.f32 1.0, %v3128
        %v3130 = vrcp.pop %v3083
        %v3131 = vmul.f32 1.0, %v3130
        %v3132 = vrcp.pop %v3084
        %v3133 = vmul.f32 1.0, %v3132
        %v3134 = vrcp.pop %v3085
        %v3135 = vmul.f32 1.0, %v3134
        %v3136 = vrcp.pop %v3086
        %v3137 = vmul.f32 1.0, %v3136
        %v3138 = vrcp.pop %v3087
        %v3139 = vmul.f32 1.0, %v3138
        %v3140 = vrcp.pop %v3088
        %v3141 = vmul.f32 1.0, %v3140
        %v3142 = vrcp.pop %v3089
        %v3143 = vmul.f32 1.0, %v3142
        %v3144 = vrcp.pop %v3090
        %v3145 = vmul.f32 1.0, %v3144
        %v3146 = vrcp.pop %v3091
        %v3147 = vmul.f32 1.0, %v3146
        %v3148 = vrcp.pop %v3092
        %v3149 = vmul.f32 1.0, %v3148
        %v3150 = vrcp.pop %v3093
        %v3151 = vmul.f32 1.0, %v3150
        %v3152 = vrcp.pop %v3094
        %v3153 = vmul.f32 1.0, %v3152
        %v3154 = vrcp.pop %v3095
        %v3155 = vmul.f32 1.0, %v3154
        %v3156 = vrcp.pop %v3096
        %v3157 = vmul.f32 1.0, %v3156
        %v3158 = vrcp.pop %v3097
        %v3159 = vmul.f32 1.0, %v3158
        %v3160 = vrcp.pop %v3098
        %v3161 = vmul.f32 1.0, %v3160
        %v3162 = vrcp.pop %v3099
        %v3163 = vmul.f32 1.0, %v3162
        %v3164 = vmul.f32 %v3101, 1.0614054
        %v3165 = vmul.f32 %v3103, 1.0614054
        %v3166 = vmul.f32 %v3105, 1.0614054
        %v3167 = vmul.f32 %v3107, 1.0614054
        %v3168 = vmul.f32 %v3109, 1.0614054
        %v3169 = vmul.f32 %v3111, 1.0614054
        %v3170 = vmul.f32 %v3113, 1.0614054
        %v3171 = vmul.f32 %v3115, 1.0614054
        %v3172 = vmul.f32 %v3117, 1.0614054
        %v3173 = vmul.f32 %v3119, 1.0614054
        %v3174 = vmul.f32 %v3121, 1.0614054
        %v3175 = vmul.f32 %v3123, 1.0614054
        %v3176 = vmul.f32 %v3125, 1.0614054
        %v3177 = vmul.f32 %v3127, 1.0614054
        %v3178 = vmul.f32 %v3129, 1.0614054
        %v3179 = vmul.f32 %v3131, 1.0614054
        %v3180 = vmul.f32 %v3133, 1.0614054
        %v3181 = vmul.f32 %v3135, 1.0614054
        %v3182 = vmul.f32 %v3137, 1.0614054
        %v3183 = vmul.f32 %v3139, 1.0614054
        %v3184 = vmul.f32 %v3141, 1.0614054
        %v3185 = vmul.f32 %v3143, 1.0614054
        %v3186 = vmul.f32 %v3145, 1.0614054
        %v3187 = vmul.f32 %v3147, 1.0614054
        %v3188 = vmul.f32 %v3149, 1.0614054
        %v3189 = vmul.f32 %v3151, 1.0614054
        %v3190 = vmul.f32 %v3153, 1.0614054
        %v3191 = vmul.f32 %v3155, 1.0614054
        %v3192 = vmul.f32 %v3157, 1.0614054
        %v3193 = vmul.f32 %v3159, 1.0614054
        %v3194 = vmul.f32 %v3161, 1.0614054
        %v3195 = vmul.f32 %v3163, 1.0614054
        %v3196 = vadd.f32 %v3164, -1.4531521
        %v3197 = vadd.f32 %v3165, -1.4531521
        %v3198 = vadd.f32 %v3166, -1.4531521
        %v3199 = vadd.f32 %v3167, -1.4531521
        %v3200 = vadd.f32 %v3168, -1.4531521
        %v3201 = vadd.f32 %v3169, -1.4531521
        %v3202 = vadd.f32 %v3170, -1.4531521
        %v3203 = vadd.f32 %v3171, -1.4531521
        %v3204 = vadd.f32 %v3172, -1.4531521
        %v3205 = vadd.f32 %v3173, -1.4531521
        %v3206 = vadd.f32 %v3174, -1.4531521
        %v3207 = vadd.f32 %v3175, -1.4531521
        %v3208 = vadd.f32 %v3176, -1.4531521
        %v3209 = vadd.f32 %v3177, -1.4531521
        %v3210 = vadd.f32 %v3178, -1.4531521
        %v3211 = vadd.f32 %v3179, -1.4531521
        %v3212 = vadd.f32 %v3180, -1.4531521
        %v3213 = vadd.f32 %v3181, -1.4531521
        %v3214 = vadd.f32 %v3182, -1.4531521
        %v3215 = vadd.f32 %v3183, -1.4531521
        %v3216 = vadd.f32 %v3184, -1.4531521
        %v3217 = vadd.f32 %v3185, -1.4531521
        %v3218 = vadd.f32 %v3186, -1.4531521
        %v3219 = vadd.f32 %v3187, -1.4531521
        %v3220 = vadd.f32 %v3188, -1.4531521
        %v3221 = vadd.f32 %v3189, -1.4531521
        %v3222 = vadd.f32 %v3190, -1.4531521
        %v3223 = vadd.f32 %v3191, -1.4531521
        %v3224 = vadd.f32 %v3192, -1.4531521
        %v3225 = vadd.f32 %v3193, -1.4531521
        %v3226 = vadd.f32 %v3194, -1.4531521
        %v3227 = vadd.f32 %v3195, -1.4531521
        %v3228 = vmul.f32 %v3196, %v3101
        %v3229 = vmul.f32 %v3197, %v3103
        %v3230 = vmul.f32 %v3198, %v3105
        %v3231 = vmul.f32 %v3199, %v3107
        %v3232 = vmul.f32 %v3200, %v3109
        %v3233 = vmul.f32 %v3201, %v3111
        %v3234 = vmul.f32 %v3202, %v3113
        %v3235 = vmul.f32 %v3203, %v3115
        %v3236 = vmul.f32 %v3204, %v3117
        %v3237 = vmul.f32 %v3205, %v3119
        %v3238 = vmul.f32 %v3206, %v3121
        %v3239 = vmul.f32 %v3207, %v3123
        %v3240 = vmul.f32 %v3208, %v3125
        %v3241 = vmul.f32 %v3209, %v3127
        %v3242 = vmul.f32 %v3210, %v3129
        %v3243 = vmul.f32 %v3211, %v3131
        %v3244 = vmul.f32 %v3212, %v3133
        %v3245 = vmul.f32 %v3213, %v3135
        %v3246 = vmul.f32 %v3214, %v3137
        %v3247 = vmul.f32 %v3215, %v3139
        %v3248 = vmul.f32 %v3216, %v3141
        %v3249 = vmul.f32 %v3217, %v3143
        %v3250 = vmul.f32 %v3218, %v3145
        %v3251 = vmul.f32 %v3219, %v3147
        %v3252 = vmul.f32 %v3220, %v3149
        %v3253 = vmul.f32 %v3221, %v3151
        %v3254 = vmul.f32 %v3222, %v3153
        %v3255 = vmul.f32 %v3223, %v3155
        %v3256 = vmul.f32 %v3224, %v3157
        %v3257 = vmul.f32 %v3225, %v3159
        %v3258 = vmul.f32 %v3226, %v3161
        %v3259 = vmul.f32 %v3227, %v3163
        %v3260 = vadd.f32 %v3228, 1.4214138
        %v3261 = vadd.f32 %v3229, 1.4214138
        %v3262 = vadd.f32 %v3230, 1.4214138
        %v3263 = vadd.f32 %v3231, 1.4214138
        %v3264 = vadd.f32 %v3232, 1.4214138
        %v3265 = vadd.f32 %v3233, 1.4214138
        %v3266 = vadd.f32 %v3234, 1.4214138
        %v3267 = vadd.f32 %v3235, 1.4214138
        %v3268 = vadd.f32 %v3236, 1.4214138
        %v3269 = vadd.f32 %v3237, 1.4214138
        %v3270 = vadd.f32 %v3238, 1.4214138
        %v3271 = vadd.f32 %v3239, 1.4214138
        %v3272 = vadd.f32 %v3240, 1.4214138
        %v3273 = vadd.f32 %v3241, 1.4214138
        %v3274 = vadd.f32 %v3242, 1.4214138
        %v3275 = vadd.f32 %v3243, 1.4214138
        %v3276 = vadd.f32 %v3244, 1.4214138
        %v3277 = vadd.f32 %v3245, 1.4214138
        %v3278 = vadd.f32 %v3246, 1.4214138
        %v3279 = vadd.f32 %v3247, 1.4214138
        %v3280 = vadd.f32 %v3248, 1.4214138
        %v3281 = vadd.f32 %v3249, 1.4214138
        %v3282 = vadd.f32 %v3250, 1.4214138
        %v3283 = vadd.f32 %v3251, 1.4214138
        %v3284 = vadd.f32 %v3252, 1.4214138
        %v3285 = vadd.f32 %v3253, 1.4214138
        %v3286 = vadd.f32 %v3254, 1.4214138
        %v3287 = vadd.f32 %v3255, 1.4214138
        %v3288 = vadd.f32 %v3256, 1.4214138
        %v3289 = vadd.f32 %v3257, 1.4214138
        %v3290 = vadd.f32 %v3258, 1.4214138
        %v3291 = vadd.f32 %v3259, 1.4214138
        %v3292 = vmul.f32 %v3260, %v3101
        %v3293 = vmul.f32 %v3261, %v3103
        %v3294 = vmul.f32 %v3262, %v3105
        %v3295 = vmul.f32 %v3263, %v3107
        %v3296 = vmul.f32 %v3264, %v3109
        %v3297 = vmul.f32 %v3265, %v3111
        %v3298 = vmul.f32 %v3266, %v3113
        %v3299 = vmul.f32 %v3267, %v3115
        %v3300 = vmul.f32 %v3268, %v3117
        %v3301 = vmul.f32 %v3269, %v3119
        %v3302 = vmul.f32 %v3270, %v3121
        %v3303 = vmul.f32 %v3271, %v3123
        %v3304 = vmul.f32 %v3272, %v3125
        %v3305 = vmul.f32 %v3273, %v3127
        %v3306 = vmul.f32 %v3274, %v3129
        %v3307 = vmul.f32 %v3275, %v3131
        %v3308 = vmul.f32 %v3276, %v3133
        %v3309 = vmul.f32 %v3277, %v3135
        %v3310 = vmul.f32 %v3278, %v3137
        %v3311 = vmul.f32 %v3279, %v3139
        %v3312 = vmul.f32 %v3280, %v3141
        %v3313 = vmul.f32 %v3281, %v3143
        %v3314 = vmul.f32 %v3282, %v3145
        %v3315 = vmul.f32 %v3283, %v3147
        %v3316 = vmul.f32 %v3284, %v3149
        %v3317 = vmul.f32 %v3285, %v3151
        %v3318 = vmul.f32 %v3286, %v3153
        %v3319 = vmul.f32 %v3287, %v3155
        %v3320 = vmul.f32 %v3288, %v3157
        %v3321 = vmul.f32 %v3289, %v3159
        %v3322 = vmul.f32 %v3290, %v3161
        %v3323 = vmul.f32 %v3291, %v3163
        %v3324 = vadd.f32 %v3292, -0.28449672
        %v3325 = vadd.f32 %v3293, -0.28449672
        %v3326 = vadd.f32 %v3294, -0.28449672
        %v3327 = vadd.f32 %v3295, -0.28449672
        %v3328 = vadd.f32 %v3296, -0.28449672
        %v3329 = vadd.f32 %v3297, -0.28449672
        %v3330 = vadd.f32 %v3298, -0.28449672
        %v3331 = vadd.f32 %v3299, -0.28449672
        %v3332 = vadd.f32 %v3300, -0.28449672
        %v3333 = vadd.f32 %v3301, -0.28449672
        %v3334 = vadd.f32 %v3302, -0.28449672
        %v3335 = vadd.f32 %v3303, -0.28449672
        %v3336 = vadd.f32 %v3304, -0.28449672
        %v3337 = vadd.f32 %v3305, -0.28449672
        %v3338 = vadd.f32 %v3306, -0.28449672
        %v3339 = vadd.f32 %v3307, -0.28449672
        %v3340 = vadd.f32 %v3308, -0.28449672
        %v3341 = vadd.f32 %v3309, -0.28449672
        %v3342 = vadd.f32 %v3310, -0.28449672
        %v3343 = vadd.f32 %v3311, -0.28449672
        %v3344 = vadd.f32 %v3312, -0.28449672
        %v3345 = vadd.f32 %v3313, -0.28449672
        %v3346 = vadd.f32 %v3314, -0.28449672
        %v3347 = vadd.f32 %v3315, -0.28449672
        %v3348 = vadd.f32 %v3316, -0.28449672
        %v3349 = vadd.f32 %v3317, -0.28449672
        %v3350 = vadd.f32 %v3318, -0.28449672
        %v3351 = vadd.f32 %v3319, -0.28449672
        %v3352 = vadd.f32 %v3320, -0.28449672
        %v3353 = vadd.f32 %v3321, -0.28449672
        %v3354 = vadd.f32 %v3322, -0.28449672
        %v3355 = vadd.f32 %v3323, -0.28449672
        %v3356 = vmul.f32 %v3324, %v3101
        %v3357 = vmul.f32 %v3325, %v3103
        %v3358 = vmul.f32 %v3326, %v3105
        %v3359 = vmul.f32 %v3327, %v3107
        %v3360 = vmul.f32 %v3328, %v3109
        %v3361 = vmul.f32 %v3329, %v3111
        %v3362 = vmul.f32 %v3330, %v3113
        %v3363 = vmul.f32 %v3331, %v3115
        %v3364 = vmul.f32 %v3332, %v3117
        %v3365 = vmul.f32 %v3333, %v3119
        %v3366 = vmul.f32 %v3334, %v3121
        %v3367 = vmul.f32 %v3335, %v3123
        %v3368 = vmul.f32 %v3336, %v3125
        %v3369 = vmul.f32 %v3337, %v3127
        %v3370 = vmul.f32 %v3338, %v3129
        %v3371 = vmul.f32 %v3339, %v3131
        %v3372 = vmul.f32 %v3340, %v3133
        %v3373 = vmul.f32 %v3341, %v3135
        %v3374 = vmul.f32 %v3342, %v3137
        %v3375 = vmul.f32 %v3343, %v3139
        %v3376 = vmul.f32 %v3344, %v3141
        %v3377 = vmul.f32 %v3345, %v3143
        %v3378 = vmul.f32 %v3346, %v3145
        %v3379 = vmul.f32 %v3347, %v3147
        %v3380 = vmul.f32 %v3348, %v3149
        %v3381 = vmul.f32 %v3349, %v3151
        %v3382 = vmul.f32 %v3350, %v3153
        %v3383 = vmul.f32 %v3351, %v3155
        %v3384 = vmul.f32 %v3352, %v3157
        %v3385 = vmul.f32 %v3353, %v3159
        %v3386 = vmul.f32 %v3354, %v3161
        %v3387 = vmul.f32 %v3355, %v3163
        %v3388 = vadd.f32 %v3356, 0.2548296
        %v3389 = vadd.f32 %v3357, 0.2548296
        %v3390 = vadd.f32 %v3358, 0.2548296
        %v3391 = vadd.f32 %v3359, 0.2548296
        %v3392 = vadd.f32 %v3360, 0.2548296
        %v3393 = vadd.f32 %v3361, 0.2548296
        %v3394 = vadd.f32 %v3362, 0.2548296
        %v3395 = vadd.f32 %v3363, 0.2548296
        %v3396 = vadd.f32 %v3364, 0.2548296
        %v3397 = vadd.f32 %v3365, 0.2548296
        %v3398 = vadd.f32 %v3366, 0.2548296
        %v3399 = vadd.f32 %v3367, 0.2548296
        %v3400 = vadd.f32 %v3368, 0.2548296
        %v3401 = vadd.f32 %v3369, 0.2548296
        %v3402 = vadd.f32 %v3370, 0.2548296
        %v3403 = vadd.f32 %v3371, 0.2548296
        %v3404 = vadd.f32 %v3372, 0.2548296
        %v3405 = vadd.f32 %v3373, 0.2548296
        %v3406 = vadd.f32 %v3374, 0.2548296
        %v3407 = vadd.f32 %v3375, 0.2548296
        %v3408 = vadd.f32 %v3376, 0.2548296
        %v3409 = vadd.f32 %v3377, 0.2548296
        %v3410 = vadd.f32 %v3378, 0.2548296
        %v3411 = vadd.f32 %v3379, 0.2548296
        %v3412 = vadd.f32 %v3380, 0.2548296
        %v3413 = vadd.f32 %v3381, 0.2548296
        %v3414 = vadd.f32 %v3382, 0.2548296
        %v3415 = vadd.f32 %v3383, 0.2548296
        %v3416 = vadd.f32 %v3384, 0.2548296
        %v3417 = vadd.f32 %v3385, 0.2548296
        %v3418 = vadd.f32 %v3386, 0.2548296
        %v3419 = vadd.f32 %v3387, 0.2548296
        %v3420 = vmul.f32 %v3388, %v3101
        %v3421 = vmul.f32 %v3389, %v3103
        %v3422 = vmul.f32 %v3390, %v3105
        %v3423 = vmul.f32 %v3391, %v3107
        %v3424 = vmul.f32 %v3392, %v3109
        %v3425 = vmul.f32 %v3393, %v3111
        %v3426 = vmul.f32 %v3394, %v3113
        %v3427 = vmul.f32 %v3395, %v3115
        %v3428 = vmul.f32 %v3396, %v3117
        %v3429 = vmul.f32 %v3397, %v3119
        %v3430 = vmul.f32 %v3398, %v3121
        %v3431 = vmul.f32 %v3399, %v3123
        %v3432 = vmul.f32 %v3400, %v3125
        %v3433 = vmul.f32 %v3401, %v3127
        %v3434 = vmul.f32 %v3402, %v3129
        %v3435 = vmul.f32 %v3403, %v3131
        %v3436 = vmul.f32 %v3404, %v3133
        %v3437 = vmul.f32 %v3405, %v3135
        %v3438 = vmul.f32 %v3406, %v3137
        %v3439 = vmul.f32 %v3407, %v3139
        %v3440 = vmul.f32 %v3408, %v3141
        %v3441 = vmul.f32 %v3409, %v3143
        %v3442 = vmul.f32 %v3410, %v3145
        %v3443 = vmul.f32 %v3411, %v3147
        %v3444 = vmul.f32 %v3412, %v3149
        %v3445 = vmul.f32 %v3413, %v3151
        %v3446 = vmul.f32 %v3414, %v3153
        %v3447 = vmul.f32 %v3415, %v3155
        %v3448 = vmul.f32 %v3416, %v3157
        %v3449 = vmul.f32 %v3417, %v3159
        %v3450 = vmul.f32 %v3418, %v3161
        %v3451 = vmul.f32 %v3419, %v3163
        %v3452 = vsub.f32 0.0, %v3004
        %v3453 = vsub.f32 0.0, %v3005
        %v3454 = vsub.f32 0.0, %v3006
        %v3455 = vsub.f32 0.0, %v3007
        %v3456 = vsub.f32 0.0, %v3008
        %v3457 = vsub.f32 0.0, %v3009
        %v3458 = vsub.f32 0.0, %v3010
        %v3459 = vsub.f32 0.0, %v3011
        %v3460 = vsub.f32 0.0, %v3012
        %v3461 = vsub.f32 0.0, %v3013
        %v3462 = vsub.f32 0.0, %v3014
        %v3463 = vsub.f32 0.0, %v3015
        %v3464 = vsub.f32 0.0, %v3016
        %v3465 = vsub.f32 0.0, %v3017
        %v3466 = vsub.f32 0.0, %v3018
        %v3467 = vsub.f32 0.0, %v3019
        %v3468 = vsub.f32 0.0, %v3020
        %v3469 = vsub.f32 0.0, %v3021
        %v3470 = vsub.f32 0.0, %v3022
        %v3471 = vsub.f32 0.0, %v3023
        %v3472 = vsub.f32 0.0, %v3024
        %v3473 = vsub.f32 0.0, %v3025
        %v3474 = vsub.f32 0.0, %v3026
        %v3475 = vsub.f32 0.0, %v3027
        %v3476 = vsub.f32 0.0, %v3028
        %v3477 = vsub.f32 0.0, %v3029
        %v3478 = vsub.f32 0.0, %v3030
        %v3479 = vsub.f32 0.0, %v3031
        %v3480 = vsub.f32 0.0, %v3032
        %v3481 = vsub.f32 0.0, %v3033
        %v3482 = vsub.f32 0.0, %v3034
        %v3483 = vsub.f32 0.0, %v3035
        %v3484 = vmul.f32 %v3452, %v3004
        %v3485 = vmul.f32 %v3453, %v3005
        %v3486 = vmul.f32 %v3454, %v3006
        %v3487 = vmul.f32 %v3455, %v3007
        %v3488 = vmul.f32 %v3456, %v3008
        %v3489 = vmul.f32 %v3457, %v3009
        %v3490 = vmul.f32 %v3458, %v3010
        %v3491 = vmul.f32 %v3459, %v3011
        %v3492 = vmul.f32 %v3460, %v3012
        %v3493 = vmul.f32 %v3461, %v3013
        %v3494 = vmul.f32 %v3462, %v3014
        %v3495 = vmul.f32 %v3463, %v3015
        %v3496 = vmul.f32 %v3464, %v3016
        %v3497 = vmul.f32 %v3465, %v3017
        %v3498 = vmul.f32 %v3466, %v3018
        %v3499 = vmul.f32 %v3467, %v3019
        %v3500 = vmul.f32 %v3468, %v3020
        %v3501 = vmul.f32 %v3469, %v3021
        %v3502 = vmul.f32 %v3470, %v3022
        %v3503 = vmul.f32 %v3471, %v3023
        %v3504 = vmul.f32 %v3472, %v3024
        %v3505 = vmul.f32 %v3473, %v3025
        %v3506 = vmul.f32 %v3474, %v3026
        %v3507 = vmul.f32 %v3475, %v3027
        %v3508 = vmul.f32 %v3476, %v3028
        %v3509 = vmul.f32 %v3477, %v3029
        %v3510 = vmul.f32 %v3478, %v3030
        %v3511 = vmul.f32 %v3479, %v3031
        %v3512 = vmul.f32 %v3480, %v3032
        %v3513 = vmul.f32 %v3481, %v3033
        %v3514 = vmul.f32 %v3482, %v3034
        %v3515 = vmul.f32 %v3483, %v3035
        %v3516 = vmul.f32 %v3484, 1.442695
        %v3517 = vpow.pop %v3516
        %v3518 = vmul.f32 %v3485, 1.442695
        %v3519 = vpow.pop %v3518
        %v3520 = vmul.f32 %v3486, 1.442695
        %v3521 = vpow.pop %v3520
        %v3522 = vmul.f32 %v3487, 1.442695
        %v3523 = vpow.pop %v3522
        %v3524 = vmul.f32 %v3488, 1.442695
        %v3525 = vpow.pop %v3524
        %v3526 = vmul.f32 %v3489, 1.442695
        %v3527 = vpow.pop %v3526
        %v3528 = vmul.f32 %v3490, 1.442695
        %v3529 = vpow.pop %v3528
        %v3530 = vmul.f32 %v3491, 1.442695
        %v3531 = vpow.pop %v3530
        %v3532 = vmul.f32 %v3492, 1.442695
        %v3533 = vpow.pop %v3532
        %v3534 = vmul.f32 %v3493, 1.442695
        %v3535 = vpow.pop %v3534
        %v3536 = vmul.f32 %v3494, 1.442695
        %v3537 = vpow.pop %v3536
        %v3538 = vmul.f32 %v3495, 1.442695
        %v3539 = vpow.pop %v3538
        %v3540 = vmul.f32 %v3496, 1.442695
        %v3541 = vpow.pop %v3540
        %v3542 = vmul.f32 %v3497, 1.442695
        %v3543 = vpow.pop %v3542
        %v3544 = vmul.f32 %v3498, 1.442695
        %v3545 = vpow.pop %v3544
        %v3546 = vmul.f32 %v3499, 1.442695
        %v3547 = vpow.pop %v3546
        %v3548 = vmul.f32 %v3500, 1.442695
        %v3549 = vpow.pop %v3548
        %v3550 = vmul.f32 %v3501, 1.442695
        %v3551 = vpow.pop %v3550
        %v3552 = vmul.f32 %v3502, 1.442695
        %v3553 = vpow.pop %v3552
        %v3554 = vmul.f32 %v3503, 1.442695
        %v3555 = vpow.pop %v3554
        %v3556 = vmul.f32 %v3504, 1.442695
        %v3557 = vpow.pop %v3556
        %v3558 = vmul.f32 %v3505, 1.442695
        %v3559 = vpow.pop %v3558
        %v3560 = vmul.f32 %v3506, 1.442695
        %v3561 = vpow.pop %v3560
        %v3562 = vmul.f32 %v3507, 1.442695
        %v3563 = vpow.pop %v3562
        %v3564 = vmul.f32 %v3508, 1.442695
        %v3565 = vpow.pop %v3564
        %v3566 = vmul.f32 %v3509, 1.442695
        %v3567 = vpow.pop %v3566
        %v3568 = vmul.f32 %v3510, 1.442695
        %v3569 = vpow.pop %v3568
        %v3570 = vmul.f32 %v3511, 1.442695
        %v3571 = vpow.pop %v3570
        %v3572 = vmul.f32 %v3512, 1.442695
        %v3573 = vpow.pop %v3572
        %v3574 = vmul.f32 %v3513, 1.442695
        %v3575 = vpow.pop %v3574
        %v3576 = vmul.f32 %v3514, 1.442695
        %v3577 = vpow.pop %v3576
        %v3578 = vmul.f32 %v3515, 1.442695
        %v3579 = vpow.pop %v3578
        %v3580 = vmul.f32 %v3420, %v3517
        %v3581 = vmul.f32 %v3421, %v3519
        %v3582 = vmul.f32 %v3422, %v3521
        %v3583 = vmul.f32 %v3423, %v3523
        %v3584 = vmul.f32 %v3424, %v3525
        %v3585 = vmul.f32 %v3425, %v3527
        %v3586 = vmul.f32 %v3426, %v3529
        %v3587 = vmul.f32 %v3427, %v3531
        %v3588 = vmul.f32 %v3428, %v3533
        %v3589 = vmul.f32 %v3429, %v3535
        %v3590 = vmul.f32 %v3430, %v3537
        %v3591 = vmul.f32 %v3431, %v3539
        %v3592 = vmul.f32 %v3432, %v3541
        %v3593 = vmul.f32 %v3433, %v3543
        %v3594 = vmul.f32 %v3434, %v3545
        %v3595 = vmul.f32 %v3435, %v3547
        %v3596 = vmul.f32 %v3436, %v3549
        %v3597 = vmul.f32 %v3437, %v3551
        %v3598 = vmul.f32 %v3438, %v3553
        %v3599 = vmul.f32 %v3439, %v3555
        %v3600 = vmul.f32 %v3440, %v3557
        %v3601 = vmul.f32 %v3441, %v3559
        %v3602 = vmul.f32 %v3442, %v3561
        %v3603 = vmul.f32 %v3443, %v3563
        %v3604 = vmul.f32 %v3444, %v3565
        %v3605 = vmul.f32 %v3445, %v3567
        %v3606 = vmul.f32 %v3446, %v3569
        %v3607 = vmul.f32 %v3447, %v3571
        %v3608 = vmul.f32 %v3448, %v3573
        %v3609 = vmul.f32 %v3449, %v3575
        %v3610 = vmul.f32 %v3450, %v3577
        %v3611 = vmul.f32 %v3451, %v3579
        %v3612 = vsub.f32 1.0, %v3580
        %v3613 = vsub.f32 1.0, %v3581
        %v3614 = vsub.f32 1.0, %v3582
        %v3615 = vsub.f32 1.0, %v3583
        %v3616 = vsub.f32 1.0, %v3584
        %v3617 = vsub.f32 1.0, %v3585
        %v3618 = vsub.f32 1.0, %v3586
        %v3619 = vsub.f32 1.0, %v3587
        %v3620 = vsub.f32 1.0, %v3588
        %v3621 = vsub.f32 1.0, %v3589
        %v3622 = vsub.f32 1.0, %v3590
        %v3623 = vsub.f32 1.0, %v3591
        %v3624 = vsub.f32 1.0, %v3592
        %v3625 = vsub.f32 1.0, %v3593
        %v3626 = vsub.f32 1.0, %v3594
        %v3627 = vsub.f32 1.0, %v3595
        %v3628 = vsub.f32 1.0, %v3596
        %v3629 = vsub.f32 1.0, %v3597
        %v3630 = vsub.f32 1.0, %v3598
        %v3631 = vsub.f32 1.0, %v3599
        %v3632 = vsub.f32 1.0, %v3600
        %v3633 = vsub.f32 1.0, %v3601
        %v3634 = vsub.f32 1.0, %v3602
        %v3635 = vsub.f32 1.0, %v3603
        %v3636 = vsub.f32 1.0, %v3604
        %v3637 = vsub.f32 1.0, %v3605
        %v3638 = vsub.f32 1.0, %v3606
        %v3639 = vsub.f32 1.0, %v3607
        %v3640 = vsub.f32 1.0, %v3608
        %v3641 = vsub.f32 1.0, %v3609
        %v3642 = vsub.f32 1.0, %v3610
        %v3643 = vsub.f32 1.0, %v3611
        %vm3644 = vcmp.lt.f32.partialorder %v2972, 0.0
        %vm3645 = vcmp.lt.f32.partialorder %v2973, 0.0
        %vm3646 = vcmp.lt.f32.partialorder %v2974, 0.0
        %vm3647 = vcmp.lt.f32.partialorder %v2975, 0.0
        %vm3648 = vcmp.lt.f32.partialorder %v2976, 0.0
        %vm3649 = vcmp.lt.f32.partialorder %v2977, 0.0
        %vm3650 = vcmp.lt.f32.partialorder %v2978, 0.0
        %vm3651 = vcmp.lt.f32.partialorder %v2979, 0.0
        %vm3652 = vcmp.lt.f32.partialorder %v2980, 0.0
        %vm3653 = vcmp.lt.f32.partialorder %v2981, 0.0
        %vm3654 = vcmp.lt.f32.partialorder %v2982, 0.0
        %vm3655 = vcmp.lt.f32.partialorder %v2983, 0.0
        %vm3656 = vcmp.lt.f32.partialorder %v2984, 0.0
        %vm3657 = vcmp.lt.f32.partialorder %v2985, 0.0
        %vm3658 = vcmp.lt.f32.partialorder %v2986, 0.0
        %vm3659 = vcmp.lt.f32.partialorder %v2987, 0.0
        %vm3660 = vcmp.lt.f32.partialorder %v2988, 0.0
        %vm3661 = vcmp.lt.f32.partialorder %v2989, 0.0
        %vm3662 = vcmp.lt.f32.partialorder %v2990, 0.0
        %vm3663 = vcmp.lt.f32.partialorder %v2991, 0.0
        %vm3664 = vcmp.lt.f32.partialorder %v2992, 0.0
        %vm3665 = vcmp.lt.f32.partialorder %v2993, 0.0
        %vm3666 = vcmp.lt.f32.partialorder %v2994, 0.0
        %vm3667 = vcmp.lt.f32.partialorder %v2995, 0.0
        %vm3668 = vcmp.lt.f32.partialorder %v2996, 0.0
        %vm3669 = vcmp.lt.f32.partialorder %v2997, 0.0
        %vm3670 = vcmp.lt.f32.partialorder %v2998, 0.0
        %vm3671 = vcmp.lt.f32.partialorder %v2999, 0.0
        %vm3672 = vcmp.lt.f32.partialorder %v3000, 0.0
        %vm3673 = vcmp.lt.f32.partialorder %v3001, 0.0
        %vm3674 = vcmp.lt.f32.partialorder %v3002, 0.0
        %vm3675 = vcmp.lt.f32.partialorder %v3003, 0.0
        %v3676 = vsub.f32 0.0, %v3612
        %v3677 = vsub.f32 0.0, %v3613
        %v3678 = vsub.f32 0.0, %v3614
        %v3679 = vsub.f32 0.0, %v3615
        %v3680 = vsub.f32 0.0, %v3616
        %v3681 = vsub.f32 0.0, %v3617
        %v3682 = vsub.f32 0.0, %v3618
        %v3683 = vsub.f32 0.0, %v3619
        %v3684 = vsub.f32 0.0, %v3620
        %v3685 = vsub.f32 0.0, %v3621
        %v3686 = vsub.f32 0.0, %v3622
        %v3687 = vsub.f32 0.0, %v3623
        %v3688 = vsub.f32 0.0, %v3624
        %v3689 = vsub.f32 0.0, %v3625
        %v3690 = vsub.f32 0.0, %v3626
        %v3691 = vsub.f32 0.0, %v3627
        %v3692 = vsub.f32 0.0, %v3628
        %v3693 = vsub.f32 0.0, %v3629
        %v3694 = vsub.f32 0.0, %v3630
        %v3695 = vsub.f32 0.0, %v3631
        %v3696 = vsub.f32 0.0, %v3632
        %v3697 = vsub.f32 0.0, %v3633
        %v3698 = vsub.f32 0.0, %v3634
        %v3699 = vsub.f32 0.0, %v3635
        %v3700 = vsub.f32 0.0, %v3636
        %v3701 = vsub.f32 0.0, %v3637
        %v3702 = vsub.f32 0.0, %v3638
        %v3703 = vsub.f32 0.0, %v3639
        %v3704 = vsub.f32 0.0, %v3640
        %v3705 = vsub.f32 0.0, %v3641
        %v3706 = vsub.f32 0.0, %v3642
        %v3707 = vsub.f32 0.0, %v3643
        %v3708 = vsel %vm3644, %v3676, %v3612
        %v3709 = vsel %vm3645, %v3677, %v3613
        %v3710 = vsel %vm3646, %v3678, %v3614
        %v3711 = vsel %vm3647, %v3679, %v3615
        %v3712 = vsel %vm3648, %v3680, %v3616
        %v3713 = vsel %vm3649, %v3681, %v3617
        %v3714 = vsel %vm3650, %v3682, %v3618
        %v3715 = vsel %vm3651, %v3683, %v3619
        %v3716 = vsel %vm3652, %v3684, %v3620
        %v3717 = vsel %vm3653, %v3685, %v3621
        %v3718 = vsel %vm3654, %v3686, %v3622
        %v3719 = vsel %vm3655, %v3687, %v3623
        %v3720 = vsel %vm3656, %v3688, %v3624
        %v3721 = vsel %vm3657, %v3689, %v3625
        %v3722 = vsel %vm3658, %v3690, %v3626
        %v3723 = vsel %vm3659, %v3691, %v3627
        %v3724 = vsel %vm3660, %v3692, %v3628
        %v3725 = vsel %vm3661, %v3693, %v3629
        %v3726 = vsel %vm3662, %v3694, %v3630
        %v3727 = vsel %vm3663, %v3695, %v3631
        %v3728 = vsel %vm3664, %v3696, %v3632
        %v3729 = vsel %vm3665, %v3697, %v3633
        %v3730 = vsel %vm3666, %v3698, %v3634
        %v3731 = vsel %vm3667, %v3699, %v3635
        %v3732 = vsel %vm3668, %v3700, %v3636
        %v3733 = vsel %vm3669, %v3701, %v3637
        %v3734 = vsel %vm3670, %v3702, %v3638
        %v3735 = vsel %vm3671, %v3703, %v3639
        %v3736 = vsel %vm3672, %v3704, %v3640
        %v3737 = vsel %vm3673, %v3705, %v3641
        %v3738 = vsel %vm3674, %v3706, %v3642
        %v3739 = vsel %vm3675, %v3707, %v3643
        %v3740 = vmul.f32 %v2878, 0.5
        %v3741 = vmul.f32 %v2880, 0.5
        %v3742 = vmul.f32 %v2884, 0.5
        %v3743 = vmul.f32 %v2886, 0.5
        %v3744 = vmul.f32 %v2890, 0.5
        %v3745 = vmul.f32 %v2892, 0.5
        %v3746 = vmul.f32 %v2896, 0.5
        %v3747 = vmul.f32 %v2898, 0.5
        %v3748 = vmul.f32 %v2902, 0.5
        %v3749 = vmul.f32 %v2904, 0.5
        %v3750 = vmul.f32 %v2908, 0.5
        %v3751 = vmul.f32 %v2910, 0.5
        %v3752 = vmul.f32 %v2914, 0.5
        %v3753 = vmul.f32 %v2916, 0.5
        %v3754 = vmul.f32 %v2920, 0.5
        %v3755 = vmul.f32 %v2922, 0.5
        %v3756 = vmul.f32 %v2926, 0.5
        %v3757 = vmul.f32 %v2928, 0.5
        %v3758 = vmul.f32 %v2932, 0.5
        %v3759 = vmul.f32 %v2934, 0.5
        %v3760 = vmul.f32 %v2938, 0.5
        %v3761 = vmul.f32 %v2940, 0.5
        %v3762 = vmul.f32 %v2944, 0.5
        %v3763 = vmul.f32 %v2946, 0.5
        %v3764 = vmul.f32 %v2950, 0.5
        %v3765 = vmul.f32 %v2952, 0.5
        %v3766 = vmul.f32 %v2956, 0.5
        %v3767 = vmul.f32 %v2958, 0.5
        %v3768 = vmul.f32 %v2962, 0.5
        %v3769 = vmul.f32 %v2964, 0.5
        %v3770 = vmul.f32 %v2968, 0.5
        %v3771 = vmul.f32 %v2970, 0.5
        %v3772 = vadd.f32 %v3708, 1.0
        %v3773 = vadd.f32 %v3709, 1.0
        %v3774 = vadd.f32 %v3710, 1.0
        %v3775 = vadd.f32 %v3711, 1.0
        %v3776 = vadd.f32 %v3712, 1.0
        %v3777 = vadd.f32 %v3713, 1.0
        %v3778 = vadd.f32 %v3714, 1.0
        %v3779 = vadd.f32 %v3715, 1.0
        %v3780 = vadd.f32 %v3716, 1.0
        %v3781 = vadd.f32 %v3717, 1.0
        %v3782 = vadd.f32 %v3718, 1.0
        %v3783 = vadd.f32 %v3719, 1.0
        %v3784 = vadd.f32 %v3720, 1.0
        %v3785 = vadd.f32 %v3721, 1.0
        %v3786 = vadd.f32 %v3722, 1.0
        %v3787 = vadd.f32 %v3723, 1.0
        %v3788 = vadd.f32 %v3724, 1.0
        %v3789 = vadd.f32 %v3725, 1.0
        %v3790 = vadd.f32 %v3726, 1.0
        %v3791 = vadd.f32 %v3727, 1.0
        %v3792 = vadd.f32 %v3728, 1.0
        %v3793 = vadd.f32 %v3729, 1.0
        %v3794 = vadd.f32 %v3730, 1.0
        %v3795 = vadd.f32 %v3731, 1.0
        %v3796 = vadd.f32 %v3732, 1.0
        %v3797 = vadd.f32 %v3733, 1.0
        %v3798 = vadd.f32 %v3734, 1.0
        %v3799 = vadd.f32 %v3735, 1.0
        %v3800 = vadd.f32 %v3736, 1.0
        %v3801 = vadd.f32 %v3737, 1.0
        %v3802 = vadd.f32 %v3738, 1.0
        %v3803 = vadd.f32 %v3739, 1.0
        %v3804 = vmul.f32 %v3740, %v3772
        %v3805 = vmul.f32 %v3741, %v3773
        %v3806 = vmul.f32 %v3742, %v3774
        %v3807 = vmul.f32 %v3743, %v3775
        %v3808 = vmul.f32 %v3744, %v3776
        %v3809 = vmul.f32 %v3745, %v3777
        %v3810 = vmul.f32 %v3746, %v3778
        %v3811 = vmul.f32 %v3747, %v3779
        %v3812 = vmul.f32 %v3748, %v3780
        %v3813 = vmul.f32 %v3749, %v3781
        %v3814 = vmul.f32 %v3750, %v3782
        %v3815 = vmul.f32 %v3751, %v3783
        %v3816 = vmul.f32 %v3752, %v3784
        %v3817 = vmul.f32 %v3753, %v3785
        %v3818 = vmul.f32 %v3754, %v3786
        %v3819 = vmul.f32 %v3755, %v3787
        %v3820 = vmul.f32 %v3756, %v3788
        %v3821 = vmul.f32 %v3757, %v3789
        %v3822 = vmul.f32 %v3758, %v3790
        %v3823 = vmul.f32 %v3759, %v3791
        %v3824 = vmul.f32 %v3760, %v3792
        %v3825 = vmul.f32 %v3761, %v3793
        %v3826 = vmul.f32 %v3762, %v3794
        %v3827 = vmul.f32 %v3763, %v3795
        %v3828 = vmul.f32 %v3764, %v3796
        %v3829 = vmul.f32 %v3765, %v3797
        %v3830 = vmul.f32 %v3766, %v3798
        %v3831 = vmul.f32 %v3767, %v3799
        %v3832 = vmul.f32 %v3768, %v3800
        %v3833 = vmul.f32 %v3769, %v3801
        %v3834 = vmul.f32 %v3770, %v3802
        %v3835 = vmul.f32 %v3771, %v3803
        %v3836 = vld [vmem:[%s5] sm:$0xff]
        %v3837 = vld [vmem:[%s5 + $0x8] sm:$0xff]
        %v3838 = vld [vmem:[%s5 + $0x10] sm:$0xff]
        %v3839 = vld [vmem:[%s5 + $0x18] sm:$0xff]
        %v3840 = vld [vmem:[%s5 + $0x20] sm:$0xff]
        %v3841 = vld [vmem:[%s5 + $0x28] sm:$0xff]
        %v3842 = vld [vmem:[%s5 + $0x30] sm:$0xff]
        %v3843 = vld [vmem:[%s5 + $0x38] sm:$0xff]
        %v3844 = vld [vmem:[%s5 + $0x40] sm:$0xff]
        %v3845 = vld [vmem:[%s5 + $0x48] sm:$0xff]
        %v3846 = vld [vmem:[%s5 + $0x50] sm:$0xff]
        %v3847 = vld [vmem:[%s5 + $0x58] sm:$0xff]
        %v3848 = vld [vmem:[%s5 + $0x60] sm:$0xff]
        %v3849 = vld [vmem:[%s5 + $0x68] sm:$0xff]
        %v3850 = vld [vmem:[%s5 + $0x70] sm:$0xff]
        %v3851 = vld [vmem:[%s5 + $0x78] sm:$0xff]
        %v3852 = vld [vmem:[%s6] sm:$0xff]
        %v3853 = vld [vmem:[%s6 + $0x8] sm:$0xff]
        %v3854 = vld [vmem:[%s6 + $0x10] sm:$0xff]
        %v3855 = vld [vmem:[%s6 + $0x18] sm:$0xff]
        %v3856 = vld [vmem:[%s6 + $0x20] sm:$0xff]
        %v3857 = vld [vmem:[%s6 + $0x28] sm:$0xff]
        %v3858 = vld [vmem:[%s6 + $0x30] sm:$0xff]
        %v3859 = vld [vmem:[%s6 + $0x38] sm:$0xff]
        %v3860 = vld [vmem:[%s6 + $0x40] sm:$0xff]
        %v3861 = vld [vmem:[%s6 + $0x48] sm:$0xff]
        %v3862 = vld [vmem:[%s6 + $0x50] sm:$0xff]
        %v3863 = vld [vmem:[%s6 + $0x58] sm:$0xff]
        %v3864 = vld [vmem:[%s6 + $0x60] sm:$0xff]
        %v3865 = vld [vmem:[%s6 + $0x68] sm:$0xff]
        %v3866 = vld [vmem:[%s6 + $0x70] sm:$0xff]
        %v3867 = vld [vmem:[%s6 + $0x78] sm:$0xff]
        %3869 = vset.pattern.permute.xlu0 0
        %3870 = vperm.xlu0 %3869, %v3852
        %v3871 = vpop.permute.xlu0 %3870
        %3874 = vset.pattern.permute.xlu0 0
        %3875 = vperm.xlu0 %3874, %v3853
        %v3876 = vpop.permute.xlu0 %3875
        %3879 = vset.pattern.permute.xlu0 0
        %3880 = vperm.xlu0 %3879, %v3854
        %v3881 = vpop.permute.xlu0 %3880
        %3884 = vset.pattern.permute.xlu0 0
        %3885 = vperm.xlu0 %3884, %v3855
        %v3886 = vpop.permute.xlu0 %3885
        %3889 = vset.pattern.permute.xlu0 0
        %3890 = vperm.xlu0 %3889, %v3856
        %v3891 = vpop.permute.xlu0 %3890
        %3894 = vset.pattern.permute.xlu0 0
        %3895 = vperm.xlu0 %3894, %v3857
        %v3896 = vpop.permute.xlu0 %3895
        %3899 = vset.pattern.permute.xlu0 0
        %3900 = vperm.xlu0 %3899, %v3858
        %v3901 = vpop.permute.xlu0 %3900
        %3904 = vset.pattern.permute.xlu0 0
        %3905 = vperm.xlu0 %3904, %v3859
        %v3906 = vpop.permute.xlu0 %3905
        %3909 = vset.pattern.permute.xlu0 0
        %3910 = vperm.xlu0 %3909, %v3860
        %v3911 = vpop.permute.xlu0 %3910
        %3914 = vset.pattern.permute.xlu0 0
        %3915 = vperm.xlu0 %3914, %v3861
        %v3916 = vpop.permute.xlu0 %3915
        %3919 = vset.pattern.permute.xlu0 0
        %3920 = vperm.xlu0 %3919, %v3862
        %v3921 = vpop.permute.xlu0 %3920
        %3924 = vset.pattern.permute.xlu0 0
        %3925 = vperm.xlu0 %3924, %v3863
        %v3926 = vpop.permute.xlu0 %3925
        %3929 = vset.pattern.permute.xlu0 0
        %3930 = vperm.xlu0 %3929, %v3864
        %v3931 = vpop.permute.xlu0 %3930
        %3934 = vset.pattern.permute.xlu0 0
        %3935 = vperm.xlu0 %3934, %v3865
        %v3936 = vpop.permute.xlu0 %3935
        %3939 = vset.pattern.permute.xlu0 0
        %3940 = vperm.xlu0 %3939, %v3866
        %v3941 = vpop.permute.xlu0 %3940
        %3944 = vset.pattern.permute.xlu0 0
        %3945 = vperm.xlu0 %3944, %v3867
        %v3946 = vpop.permute.xlu0 %3945
        %3948 = vmatprep.subr.mxu0 %v3805
        %3949 = vmatpush1.msra.mxu0 %v3804
        %3950 = vmatprep.subr.mxu0 %v3807
        %3951 = vmatpush1.msra.mxu0 %v3806
        %3952 = vmatprep.subr.mxu0 %v3809
        %3953 = vmatpush1.msra.mxu0 %v3808
        %3954 = vmatprep.subr.mxu0 %v3811
        %3955 = vmatpush1.msra.mxu0 %v3810
        %3956 = vmatprep.subr.mxu0 %v3813
        %3957 = vmatpush1.msra.mxu0 %v3812
        %3958 = vmatprep.subr.mxu0 %v3815
        %3959 = vmatpush1.msra.mxu0 %v3814
        %3960 = vmatprep.subr.mxu0 %v3817
        %3961 = vmatpush1.msra.mxu0 %v3816
        %3962 = vmatprep.subr.mxu0 %v3819
        %3963 = vmatpush1.msra.mxu0 %v3818
        %3964 = vmatprep.subr.mxu0 %v3821
        %3965 = vmatpush1.msra.mxu0 %v3820
        %3966 = vmatprep.subr.mxu0 %v3823
        %3967 = vmatpush1.msra.mxu0 %v3822
        %3968 = vmatprep.subr.mxu0 %v3825
        %3969 = vmatpush1.msra.mxu0 %v3824
        %3970 = vmatprep.subr.mxu0 %v3827
        %3971 = vmatpush1.msra.mxu0 %v3826
        %3972 = vmatprep.subr.mxu0 %v3829
        %3973 = vmatpush1.msra.mxu0 %v3828
        %3974 = vmatprep.subr.mxu0 %v3831
        %3975 = vmatpush1.msra.mxu0 %v3830
        %3976 = vmatprep.subr.mxu0 %v3833
        %3977 = vmatpush1.msra.mxu0 %v3832
        %3978 = vmatprep.subr.mxu0 %v3835
        %3979 = vmatpush1.msra.mxu0 %v3834
        %3980 = vmatprep.subr.mxu0 0.0
        %3981 = vmatpush1.msra.mxu0 0.0
        %3982 = vmatprep.subr.mxu0 0.0
        %3983 = vmatpush1.msra.mxu0 0.0
        %3984 = vmatprep.subr.mxu0 0.0
        %3985 = vmatpush1.msra.mxu0 0.0
        %3986 = vmatprep.subr.mxu0 0.0
        %3987 = vmatpush1.msra.mxu0 0.0
        %3988 = vmatprep.subr.mxu0 0.0
        %3989 = vmatpush1.msra.mxu0 0.0
        %3990 = vmatprep.subr.mxu0 0.0
        %3991 = vmatpush1.msra.mxu0 0.0
        %3992 = vmatprep.subr.mxu0 0.0
        %3993 = vmatpush1.msra.mxu0 0.0
        %3994 = vmatprep.subr.mxu0 0.0
        %3995 = vmatpush1.msra.mxu0 0.0
        %3996 = vmatprep.subr.mxu0 0.0
        %3997 = vmatpush1.msra.mxu0 0.0
        %3998 = vmatprep.subr.mxu0 0.0
        %3999 = vmatpush1.msra.mxu0 0.0
        %4000 = vmatprep.subr.mxu0 0.0
        %4001 = vmatpush1.msra.mxu0 0.0
        %4002 = vmatprep.subr.mxu0 0.0
        %4003 = vmatpush1.msra.mxu0 0.0
        %4004 = vmatprep.subr.mxu0 0.0
        %4005 = vmatpush1.msra.mxu0 0.0
        %4006 = vmatprep.subr.mxu0 0.0
        %4007 = vmatpush1.msra.mxu0 0.0
        %4008 = vmatprep.subr.mxu0 0.0
        %4009 = vmatpush1.msra.mxu0 0.0
        %4010 = vmatprep.subr.mxu0 0.0
        %4011 = vmatpush1.msra.mxu0 0.0
        %4012 = vmatprep.mubr.f32.mxu0 0.0
        %4013 = vmatmul.mubr.f32.gmra.mrb[0].mxu0 %v3836
        %v4014 = vpop.f32.mrb[0].mxu0
        %v4015 = vadd.f32 %v3871, %v4014
        %v4016 = vpop.f32.mrb[0].mxu0
        %v4017 = vadd.f32 %v3871, %v4016
        %4018 = vmatprep.mubr.f32.mxu0 0.0
        %4019 = vmatmul.mubr.f32.gmra.mrb[0].mxu0 %v3837
        %v4020 = vpop.f32.mrb[0].mxu0
        %v4021 = vadd.f32 %v3876, %v4020
        %v4022 = vpop.f32.mrb[0].mxu0
        %v4023 = vadd.f32 %v3876, %v4022
        %4024 = vmatprep.mubr.f32.mxu0 0.0
        %4025 = vmatmul.mubr.f32.gmra.mrb[0].mxu0 %v3838
        %v4026 = vpop.f32.mrb[0].mxu0
        %v4027 = vadd.f32 %v3881, %v4026
        %v4028 = vpop.f32.mrb[0].mxu0
        %v4029 = vadd.f32 %v3881, %v4028
        %4030 = vmatprep.mubr.f32.mxu0 0.0
        %4031 = vmatmul.mubr.f32.gmra.mrb[0].mxu0 %v3839
        %v4032 = vpop.f32.mrb[0].mxu0
        %v4033 = vadd.f32 %v3886, %v4032
        %v4034 = vpop.f32.mrb[0].mxu0
        %v4035 = vadd.f32 %v3886, %v4034
        %4036 = vmatprep.mubr.f32.mxu0 0.0
        %4037 = vmatmul.mubr.f32.gmra.mrb[0].mxu0 %v3840
        %v4038 = vpop.f32.mrb[0].mxu0
        %v4039 = vadd.f32 %v3891, %v4038
        %v4040 = vpop.f32.mrb[0].mxu0
        %v4041 = vadd.f32 %v3891, %v4040
        %4042 = vmatprep.mubr.f32.mxu0 0.0
        %4043 = vmatmul.mubr.f32.gmra.mrb[0].mxu0 %v3841
        %v4044 = vpop.f32.mrb[0].mxu0
        %v4045 = vadd.f32 %v3896, %v4044
        %v4046 = vpop.f32.mrb[0].mxu0
        %v4047 = vadd.f32 %v3896, %v4046
        %4048 = vmatprep.mubr.f32.mxu0 0.0
        %4049 = vmatmul.mubr.f32.gmra.mrb[0].mxu0 %v3842
        %v4050 = vpop.f32.mrb[0].mxu0
        %v4051 = vadd.f32 %v3901, %v4050
        %v4052 = vpop.f32.mrb[0].mxu0
        %v4053 = vadd.f32 %v3901, %v4052
        %4054 = vmatprep.mubr.f32.mxu0 0.0
        %4055 = vmatmul.mubr.f32.gmra.mrb[0].mxu0 %v3843
        %v4056 = vpop.f32.mrb[0].mxu0
        %v4057 = vadd.f32 %v3906, %v4056
        %v4058 = vpop.f32.mrb[0].mxu0
        %v4059 = vadd.f32 %v3906, %v4058
        %4060 = vmatprep.mubr.f32.mxu0 0.0
        %4061 = vmatmul.mubr.f32.gmra.mrb[0].mxu0 %v3844
        %v4062 = vpop.f32.mrb[0].mxu0
        %v4063 = vadd.f32 %v3911, %v4062
        %v4064 = vpop.f32.mrb[0].mxu0
        %v4065 = vadd.f32 %v3911, %v4064
        %4066 = vmatprep.mubr.f32.mxu0 0.0
        %4067 = vmatmul.mubr.f32.gmra.mrb[0].mxu0 %v3845
        %v4068 = vpop.f32.mrb[0].mxu0
        %v4069 = vadd.f32 %v3916, %v4068
        %v4070 = vpop.f32.mrb[0].mxu0
        %v4071 = vadd.f32 %v3916, %v4070
        %4072 = vmatprep.mubr.f32.mxu0 0.0
        %4073 = vmatmul.mubr.f32.gmra.mrb[0].mxu0 %v3846
        %v4074 = vpop.f32.mrb[0].mxu0
        %v4075 = vadd.f32 %v3921, %v4074
        %v4076 = vpop.f32.mrb[0].mxu0
        %v4077 = vadd.f32 %v3921, %v4076
        %4078 = vmatprep.mubr.f32.mxu0 0.0
        %4079 = vmatmul.mubr.f32.gmra.mrb[0].mxu0 %v3847
        %v4080 = vpop.f32.mrb[0].mxu0
        %v4081 = vadd.f32 %v3926, %v4080
        %v4082 = vpop.f32.mrb[0].mxu0
        %v4083 = vadd.f32 %v3926, %v4082
        %4084 = vmatprep.mubr.f32.mxu0 0.0
        %4085 = vmatmul.mubr.f32.gmra.mrb[0].mxu0 %v3848
        %v4086 = vpop.f32.mrb[0].mxu0
        %v4087 = vadd.f32 %v3931, %v4086
        %v4088 = vpop.f32.mrb[0].mxu0
        %v4089 = vadd.f32 %v3931, %v4088
        %4090 = vmatprep.mubr.f32.mxu0 0.0
        %4091 = vmatmul.mubr.f32.gmra.mrb[0].mxu0 %v3849
        %v4092 = vpop.f32.mrb[0].mxu0
        %v4093 = vadd.f32 %v3936, %v4092
        %v4094 = vpop.f32.mrb[0].mxu0
        %v4095 = vadd.f32 %v3936, %v4094
        %4096 = vmatprep.mubr.f32.mxu0 0.0
        %4097 = vmatmul.mubr.f32.gmra.mrb[0].mxu0 %v3850
        %v4098 = vpop.f32.mrb[0].mxu0
        %v4099 = vadd.f32 %v3941, %v4098
        %v4100 = vpop.f32.mrb[0].mxu0
        %v4101 = vadd.f32 %v3941, %v4100
        %4102 = vmatprep.mubr.f32.mxu0 0.0
        %4103 = vmatmul.mubr.f32.gmra.mrb[0].mxu0 %v3851
        %v4104 = vpop.f32.mrb[0].mxu0
        %v4105 = vadd.f32 %v3946, %v4104
        %v4106 = vpop.f32.mrb[0].mxu0
        %v4107 = vadd.f32 %v3946, %v4106
        %4108 = vdwg.mxu0
        %v4109 = vld [vmem:[%s7] sm:$0x1]
        %v4110 = vld [vmem:[#allocation2] sm:$0x1]
        %4112 = vset.pattern.permute.xlu0 0
        %4113 = vperm.xlu0 %4112, %v4110
        %v4114 = vpop.permute.xlu0 %4113
        %v4116 = vlaneseq
        %v4117 = vshrl.u32 %v4116, 7
        %v4118 = vsub.s32 0, %v4117
        %v4119 = vrot.slane %v4114, %v4118
        %4120 = vmatprep.subr.mxu0 %v4017
        %4121 = vmatpush1.msra.mxu0 %v4015
        %4122 = vmatprep.subr.mxu0 %v4023
        %4123 = vmatpush1.msra.mxu0 %v4021
        %4124 = vmatprep.subr.mxu0 %v4029
        %4125 = vmatpush1.msra.mxu0 %v4027
        %4126 = vmatprep.subr.mxu0 %v4035
        %4127 = vmatpush1.msra.mxu0 %v4033
        %4128 = vmatprep.subr.mxu0 %v4041
        %4129 = vmatpush1.msra.mxu0 %v4039
        %4130 = vmatprep.subr.mxu0 %v4047
        %4131 = vmatpush1.msra.mxu0 %v4045
        %4132 = vmatprep.subr.mxu0 %v4053
        %4133 = vmatpush1.msra.mxu0 %v4051
        %4134 = vmatprep.subr.mxu0 %v4059
        %4135 = vmatpush1.msra.mxu0 %v4057
        %4136 = vmatprep.subr.mxu0 %v4065
        %4137 = vmatpush1.msra.mxu0 %v4063
        %4138 = vmatprep.subr.mxu0 %v4071
        %4139 = vmatpush1.msra.mxu0 %v4069
        %4140 = vmatprep.subr.mxu0 %v4077
        %4141 = vmatpush1.msra.mxu0 %v4075
        %4142 = vmatprep.subr.mxu0 %v4083
        %4143 = vmatpush1.msra.mxu0 %v4081
        %4144 = vmatprep.subr.mxu0 %v4089
        %4145 = vmatpush1.msra.mxu0 %v4087
        %4146 = vmatprep.subr.mxu0 %v4095
        %4147 = vmatpush1.msra.mxu0 %v4093
        %4148 = vmatprep.subr.mxu0 %v4101
        %4149 = vmatpush1.msra.mxu0 %v4099
        %4150 = vmatprep.subr.mxu0 %v4107
        %4151 = vmatpush1.msra.mxu0 %v4105
        %4152 = vmatprep.subr.mxu0 0.0
        %4153 = vmatpush1.msra.mxu0 0.0
        %4154 = vmatprep.subr.mxu0 0.0
        %4155 = vmatpush1.msra.mxu0 0.0
        %4156 = vmatprep.subr.mxu0 0.0
        %4157 = vmatpush1.msra.mxu0 0.0
        %4158 = vmatprep.subr.mxu0 0.0
        %4159 = vmatpush1.msra.mxu0 0.0
        %4160 = vmatprep.subr.mxu0 0.0
        %4161 = vmatpush1.msra.mxu0 0.0
        %4162 = vmatprep.subr.mxu0 0.0
        %4163 = vmatpush1.msra.mxu0 0.0
        %4164 = vmatprep.subr.mxu0 0.0
        %4165 = vmatpush1.msra.mxu0 0.0
        %4166 = vmatprep.subr.mxu0 0.0
        %4167 = vmatpush1.msra.mxu0 0.0
        %4168 = vmatprep.subr.mxu0 0.0
        %4169 = vmatpush1.msra.mxu0 0.0
        %4170 = vmatprep.subr.mxu0 0.0
        %4171 = vmatpush1.msra.mxu0 0.0
        %4172 = vmatprep.subr.mxu0 0.0
        %4173 = vmatpush1.msra.mxu0 0.0
        %4174 = vmatprep.subr.mxu0 0.0
        %4175 = vmatpush1.msra.mxu0 0.0
        %4176 = vmatprep.subr.mxu0 0.0
        %4177 = vmatpush1.msra.mxu0 0.0
        %4178 = vmatprep.subr.mxu0 0.0
        %4179 = vmatpush1.msra.mxu0 0.0
        %4180 = vmatprep.subr.mxu0 0.0
        %4181 = vmatpush1.msra.mxu0 0.0
        %4182 = vmatprep.subr.mxu0 0.0
        %4183 = vmatpush1.msra.mxu0 0.0
        %4184 = vmatprep.mubr.f32.mxu0 0.0
        %4185 = vmatmul.mubr.f32.gmra.mrb[0].mxu0 %v4109
        %v4186 = vpop.f32.mrb[0].mxu0
        %v4187 = vadd.f32 %v4119, %v4186
        %v4188 = vpop.f32.mrb[0].mxu0
        %v4189 = vadd.f32 %v4119, %v4188
        %4190 = vdwg.mxu0
        %v4193 = vcombine.low %v4187, %v4189
        %v4195 = vunpack.c.l.s4 1966171168
        %v4196 = vunpack.c.0.s8 %v4195
        %v4197 = vlaneseq
        %v4198 = vshrl.u32 %v4197, 7
        %v4199 = vsub.s32 %v4196, %v4198
        %v4200 = vrot.slane %v4193, %v4199
        %v4202 = vunpack.c.l.s4 1966171168
        %v4203 = vunpack.c.0.s8 %v4202
        %v4204 = vlaneseq
        %v4205 = vshrl.u32 %v4204, 7
        %v4206 = vsub.s32 %v4203, %v4205
        %v4207 = vrot.slane %v4200, %v4206
        %v4209 = vlaneseq
        %vm4210 = vcmp.ge.s32.totalorder %v4209, 0
        %vm4211 = vcmp.lt.s32.totalorder %v4209, 256
        %vm4212 = vmand %vm4210, %vm4211
        %4213 = vst.msk [vmem:[%s367] sm:$0x3] %vm4212, %v4207
        %s4214 = smul.u32 2, %s22
        %p4215 = scmp.lt.s32.totalorder %s4214, 3
        %s4216 = scalar_select %p4215, %s4214, 3
        %s4217 = scalar_lea.vmem %s9, %s4216
        // Predicated region
        $region80: #{fno2d_forward.3} parent=74 // pred_check
          %p4218 = pneg %p234
        $region81: #{fno2d_forward.3} parent=74 // pred_check_branch
          %4220 = sbr.rel (%p4218) target = $region83
        $region82: #{fno2d_forward.3} parent=74 // pred_region
          %s4221 = smul.u32 2, %s22
        $region83: #{fno2d_forward.3} parent=74 // pred_fallthru
          _
      $region75: #{fno2d_forward.3} parent=5 // pred_fallthru
        _
      %p4222 = scmp.le.s32.totalorder 2, %s17
      // Predicated region
      $region84: #{fno2d_forward.3} parent=5 // pred_check
        %p4223 = pneg %p4222
      $region85: #{fno2d_forward.3} parent=5 // pred_check_branch
        %4225 = sbr.rel (%p4223) target = $region87
      $region86: #{fno2d_forward.3} parent=5 // pred_region
        %s4226 = ssub.s32 %s17, 2
        // Predicated region
        $region88: #{fno2d_forward.3} parent=86 // pred_check
          %p4227 = pneg %p240
        $region89: #{fno2d_forward.3} parent=86 // pred_check_branch
          %4229 = sbr.rel (%p4227) target = $region91
        $region90: #{fno2d_forward.3} parent=86 // pred_region
          %s4230 = smul.u32 2, %s23
          %p4231 = scmp.lt.s32.totalorder %s4230, 3
          %s4232 = scalar_select %p4231, %s4230, 3
          %s4233 = scalar_lea.vmem %s9, %s4232
        $region91: #{fno2d_forward.3} parent=86 // pred_fallthru
          _
      $region87: #{fno2d_forward.3} parent=5 // pred_fallthru
        _
    $region6: #{fno2d_forward.3} parent=1 // loop_footer
      %s21 = sadd.s32 1, %s17
    $region7: #{fno2d_forward.3} parent=1 // loop_footer_branch
      %16 = sbr.rel target = $region3
    $region8: #{fno2d_forward.3} parent=1 // loop_exit
      _

// kernel: fno2d_forward.2
$region0: #{fno2d_forward.2}
  #allocation0 [shape = 'u32[]', space=smem, size = 0x4, offset = 0x4, fixed_abs, tag = 'smem constant byte address 0x4 - core index']
  #allocation1 [shape = 'u32[144,128]{1,0:T(1,128)}', space=vmem, size = 0x12000, scoped, tag = 'internal scratch']
  #allocation2 [shape = 'f32[32,72]{1,0:T(8,128)}', space=vmem, size = 0x4000, scoped, tag = 'scratch operand']
  #allocation3 [shape = 'f32[32,72]{1,0:T(8,128)}', space=vmem, size = 0x4000, scoped, tag = 'scratch operand']
  %s0 = inlined_call_operand.vmem [shape: f32[4,512], index: 0, kind: input, shape index: {}]
  %s1 = inlined_call_operand.vmem [shape: f32[5,512], index: 1, kind: input, shape index: {}]
  %s2 = inlined_call_operand.vmem [shape: f32[32,4], index: 2, kind: input, shape index: {}]
  %s3 = inlined_call_operand.vmem [shape: f32[32,1], index: 3, kind: input, shape index: {}]
  %s4 = inlined_call_operand.vmem [shape: f32[256,72], index: 4, kind: input, shape index: {}]
  %s5 = inlined_call_operand.vmem [shape: f32[256,72], index: 5, kind: input, shape index: {}]
  %s6 = inlined_call_operand.hbm [shape: f32[72,256], index: 6, kind: input, shape index: {}]
  %s7 = inlined_call_operand.hbm [shape: f32[72,256], index: 7, kind: input, shape index: {}]
  %s8 = inlined_call_operand.hbm [shape: f32[6,32,32,72], index: 8, kind: input, shape index: {}]
  %s9 = inlined_call_operand.hbm [shape: f32[6,32,32,72], index: 9, kind: input, shape index: {}]
  %s10 = inlined_call_operand.hbm [shape: f32[6,32,32], index: 10, kind: input, shape index: {}]
  %s11 = inlined_call_operand.vmem [shape: f32[6,32,5], index: 11, kind: input, shape index: {}]
  %s12 = inlined_call_operand.vmem [shape: f32[6,32,1], index: 12, kind: input, shape index: {}]
  %s13 = inlined_call_operand.vmem [shape: f32[32,512], index: 13, kind: output, shape index: {}]
  %s14 = sld [smem:[#allocation0]]
  $region128: #{fno2d_forward.2} parent=0
    _
  %s16 = ssub.s32 1, %s14
  %s17 = scalar_select 0, %s16, %s14
  $region1: #{fno2d_forward.2} parent=0
    #allocation4 [shape = 'u8[73728]{0}', space=vmem, size = 0x12000, scoped, tag = 'input window, operand 6, single buffered']
    #allocation5 [shape = 's32[2]{0}', space=sflag, size = 0x8, scoped, tag = 'scoped memory for fno2d_forward.2']
    #allocation6 [shape = 'u8[73728]{0}', space=vmem, size = 0x12000, scoped, tag = 'input window, operand 7, single buffered']
    #allocation7 [shape = 's32[1]{0}', space=sflag, size = 0x4, scoped, tag = 'scoped memory for fno2d_forward.2']
    #allocation8 [shape = 'u8[1048576]{0}', space=vmem, size = 0x100000, scoped, tag = 'input window, operand 8']
    #allocation9 [shape = 'u8[1048576]{0}', space=vmem, size = 0x100000, scoped, tag = 'input window, operand 9']
    #allocation10 [shape = 'u8[32768]{0}', space=vmem, size = 0x8000, scoped, tag = 'input window, operand 10']
    #allocation11 [shape = 'u8[65536]{0}', space=vmem, size = 0x10000, scoped, tag = 'output window, operand 0']
    %18 = vsyncpa [#allocation5], 0
    %19 = vsyncpa [#allocation7], 0
    loop: start=0, step=1, limit=14
    $region2: #{fno2d_forward.2} parent=1 // loop_pre_header
      _
    $region3: #{fno2d_forward.2} parent=1 // loop_header
      %s21 = sphi 0, %s25
      %p22 = scmp.ge.s32.totalorder %s21, 14
      %s28 = sphi 0, %s40
      %s29 = sphi 0, %s36
      %s30 = sphi 0, %s28
      %s31 = sphi 0, %s29
      %s32 = sphi 0, %s30
      %s33 = sphi 0, %s31
      %s43 = sphi 0, %s45
      %s46 = sphi 0, %s43
      %s47 = sphi 0, %s46
      %s63 = sphi 0, %s47
      %s69 = sphi 0, %s71
      %s72 = sphi 0, %s69
      %s73 = sphi 0, %s72
      %s89 = sphi 0, %s73
      %s93 = sphi 0, %s93
      %s95 = sphi 0, %s93
      %s96 = sphi 0, %s95
      %s110 = sphi 0, %s96
      %s114 = sphi 0, %s114
      %s116 = sphi 0, %s114
      %s117 = sphi 0, %s116
      %s131 = sphi 0, %s117
      %s135 = sphi 0, %s135
      %s137 = sphi 0, %s135
      %s138 = sphi 0, %s137
      %s152 = sphi 0, %s138
      %s156 = sphi 0, %s156
      %s158 = sphi 0, %s156
      %s159 = sphi 0, %s158
      %s173 = sphi 0, %s159
      %s177 = sphi 0, %s177
      %s179 = sphi 0, %s177
      %s180 = sphi 0, %s179
      %s194 = sphi 0, %s180
      %s198 = sphi 0, %s198
      %s200 = sphi 0, %s198
      %s201 = sphi 0, %s200
      %s215 = sphi 0, %s201
      %s221 = sphi 0, %s223
      %s224 = sphi 0, %s221
      %s225 = sphi 0, %s224
      %s241 = sphi 0, %s225
      %s247 = sphi 0, %s249
      %s250 = sphi 0, %s247
      %s251 = sphi 0, %s250
      %s267 = sphi 0, %s251
      %s273 = sphi 0, %s275
      %s276 = sphi 0, %s273
      %s277 = sphi 0, %s276
      %s293 = sphi 0, %s277
      %s299 = sphi 0, %s301
      %s302 = sphi 0, %s299
      %s303 = sphi 0, %s302
      %s319 = sphi 0, %s303
      %s325 = sphi 0, %s327
      %s328 = sphi 0, %s325
      %s329 = sphi 0, %s328
      %s345 = sphi 0, %s329
      %s351 = sphi 0, %s353
      %s354 = sphi 0, %s351
      %s355 = sphi 0, %s354
      %s371 = sphi 0, %s355
    $region4: #{fno2d_forward.2} parent=1 // loop_header_branch
      %24 = sbr.rel (%p22) target = $region8
    $region5: #{fno2d_forward.2} parent=1 // loop_body
      %s26 = ssub.s32 %s21, 1
      %s27 = ssub.s32 %s21, 2
      %s34 = sadd.s32 1, %s29
      %p35 = scmp.ge.s32.totalorder %s34, 6
      %s36 = scalar_select %p35, 0, %s34
      %s37 = sadd.s32 1, %s28
      %s38 = scalar_select %p35, %s37, %s28
      %p39 = scmp.ge.s32.totalorder %s38, 2
      %s40 = scalar_select %p39, 0, %s38
      %s41 = ssub.s32 %s28, %s40
      %p42 = scmp.eq.s32.totalorder %s41, 0
      %s44 = sadd.s32 %s43, 1
      %s45 = scalar_select %p42, %s43, %s44
      %p48 = pneg %p42
      %p49 = scmp.eq.s32.totalorder %s21, 11
      %p50 = por %p48, %p49
      %p51 = scmp.ne.s32.totalorder %s43, %s46
      %p52 = scmp.eq.s32.totalorder %s21, 0
      %p53 = por %p51, %p52
      %p54 = scmp.ne.s32.totalorder %s43, %s46
      %p55 = scmp.eq.s32.totalorder %s26, 11
      %p56 = por %p54, %p55
      %p57 = scmp.ne.s32.totalorder %s46, %s47
      %p58 = scmp.eq.s32.totalorder %s26, 0
      %p59 = por %p57, %p58
      %p60 = scmp.ne.s32.totalorder %s46, %s47
      %p61 = scmp.eq.s32.totalorder %s27, 11
      %p62 = por %p60, %p61
      %p64 = scmp.ne.s32.totalorder %s47, %s63
      %p65 = scmp.eq.s32.totalorder %s27, 0
      %p66 = por %p64, %p65
      %s67 = ssub.s32 %s28, %s40
      %p68 = scmp.eq.s32.totalorder %s67, 0
      %s70 = sadd.s32 %s69, 1
      %s71 = scalar_select %p68, %s69, %s70
      %p74 = pneg %p68
      %p75 = scmp.eq.s32.totalorder %s21, 11
      %p76 = por %p74, %p75
      %p77 = scmp.ne.s32.totalorder %s69, %s72
      %p78 = scmp.eq.s32.totalorder %s21, 0
      %p79 = por %p77, %p78
      %p80 = scmp.ne.s32.totalorder %s69, %s72
      %p81 = scmp.eq.s32.totalorder %s26, 11
      %p82 = por %p80, %p81
      %p83 = scmp.ne.s32.totalorder %s72, %s73
      %p84 = scmp.eq.s32.totalorder %s26, 0
      %p85 = por %p83, %p84
      %p86 = scmp.ne.s32.totalorder %s72, %s73
      %p87 = scmp.eq.s32.totalorder %s27, 11
      %p88 = por %p86, %p87
      %p90 = scmp.ne.s32.totalorder %s73, %s89
      %p91 = scmp.eq.s32.totalorder %s27, 0
      %p92 = por %p90, %p91
      %s94 = sadd.s32 %s93, 1
      %p97 = scmp.eq.s32.totalorder %s21, 11
      %p98 = scmp.ne.s32.totalorder %s93, %s95
      %p99 = scmp.eq.s32.totalorder %s21, 0
      %p100 = por %p98, %p99
      %p101 = scmp.ne.s32.totalorder %s93, %s95
      %p102 = scmp.eq.s32.totalorder %s26, 11
      %p103 = por %p101, %p102
      %p104 = scmp.ne.s32.totalorder %s95, %s96
      %p105 = scmp.eq.s32.totalorder %s26, 0
      %p106 = por %p104, %p105
      %p107 = scmp.ne.s32.totalorder %s95, %s96
      %p108 = scmp.eq.s32.totalorder %s27, 11
      %p109 = por %p107, %p108
      %p111 = scmp.ne.s32.totalorder %s96, %s110
      %p112 = scmp.eq.s32.totalorder %s27, 0
      %p113 = por %p111, %p112
      %s115 = sadd.s32 %s114, 1
      %p118 = scmp.eq.s32.totalorder %s21, 11
      %p119 = scmp.ne.s32.totalorder %s114, %s116
      %p120 = scmp.eq.s32.totalorder %s21, 0
      %p121 = por %p119, %p120
      %p122 = scmp.ne.s32.totalorder %s114, %s116
      %p123 = scmp.eq.s32.totalorder %s26, 11
      %p124 = por %p122, %p123
      %p125 = scmp.ne.s32.totalorder %s116, %s117
      %p126 = scmp.eq.s32.totalorder %s26, 0
      %p127 = por %p125, %p126
      %p128 = scmp.ne.s32.totalorder %s116, %s117
      %p129 = scmp.eq.s32.totalorder %s27, 11
      %p130 = por %p128, %p129
      %p132 = scmp.ne.s32.totalorder %s117, %s131
      %p133 = scmp.eq.s32.totalorder %s27, 0
      %p134 = por %p132, %p133
      %s136 = sadd.s32 %s135, 1
      %p139 = scmp.eq.s32.totalorder %s21, 11
      %p140 = scmp.ne.s32.totalorder %s135, %s137
      %p141 = scmp.eq.s32.totalorder %s21, 0
      %p142 = por %p140, %p141
      %p143 = scmp.ne.s32.totalorder %s135, %s137
      %p144 = scmp.eq.s32.totalorder %s26, 11
      %p145 = por %p143, %p144
      %p146 = scmp.ne.s32.totalorder %s137, %s138
      %p147 = scmp.eq.s32.totalorder %s26, 0
      %p148 = por %p146, %p147
      %p149 = scmp.ne.s32.totalorder %s137, %s138
      %p150 = scmp.eq.s32.totalorder %s27, 11
      %p151 = por %p149, %p150
      %p153 = scmp.ne.s32.totalorder %s138, %s152
      %p154 = scmp.eq.s32.totalorder %s27, 0
      %p155 = por %p153, %p154
      %s157 = sadd.s32 %s156, 1
      %p160 = scmp.eq.s32.totalorder %s21, 11
      %p161 = scmp.ne.s32.totalorder %s156, %s158
      %p162 = scmp.eq.s32.totalorder %s21, 0
      %p163 = por %p161, %p162
      %p164 = scmp.ne.s32.totalorder %s156, %s158
      %p165 = scmp.eq.s32.totalorder %s26, 11
      %p166 = por %p164, %p165
      %p167 = scmp.ne.s32.totalorder %s158, %s159
      %p168 = scmp.eq.s32.totalorder %s26, 0
      %p169 = por %p167, %p168
      %p170 = scmp.ne.s32.totalorder %s158, %s159
      %p171 = scmp.eq.s32.totalorder %s27, 11
      %p172 = por %p170, %p171
      %p174 = scmp.ne.s32.totalorder %s159, %s173
      %p175 = scmp.eq.s32.totalorder %s27, 0
      %p176 = por %p174, %p175
      %s178 = sadd.s32 %s177, 1
      %p181 = scmp.eq.s32.totalorder %s21, 11
      %p182 = scmp.ne.s32.totalorder %s177, %s179
      %p183 = scmp.eq.s32.totalorder %s21, 0
      %p184 = por %p182, %p183
      %p185 = scmp.ne.s32.totalorder %s177, %s179
      %p186 = scmp.eq.s32.totalorder %s26, 11
      %p187 = por %p185, %p186
      %p188 = scmp.ne.s32.totalorder %s179, %s180
      %p189 = scmp.eq.s32.totalorder %s26, 0
      %p190 = por %p188, %p189
      %p191 = scmp.ne.s32.totalorder %s179, %s180
      %p192 = scmp.eq.s32.totalorder %s27, 11
      %p193 = por %p191, %p192
      %p195 = scmp.ne.s32.totalorder %s180, %s194
      %p196 = scmp.eq.s32.totalorder %s27, 0
      %p197 = por %p195, %p196
      %s199 = sadd.s32 %s198, 1
      %p202 = scmp.eq.s32.totalorder %s21, 11
      %p203 = scmp.ne.s32.totalorder %s198, %s200
      %p204 = scmp.eq.s32.totalorder %s21, 0
      %p205 = por %p203, %p204
      %p206 = scmp.ne.s32.totalorder %s198, %s200
      %p207 = scmp.eq.s32.totalorder %s26, 11
      %p208 = por %p206, %p207
      %p209 = scmp.ne.s32.totalorder %s200, %s201
      %p210 = scmp.eq.s32.totalorder %s26, 0
      %p211 = por %p209, %p210
      %p212 = scmp.ne.s32.totalorder %s200, %s201
      %p213 = scmp.eq.s32.totalorder %s27, 11
      %p214 = por %p212, %p213
      %p216 = scmp.ne.s32.totalorder %s201, %s215
      %p217 = scmp.eq.s32.totalorder %s27, 0
      %p218 = por %p216, %p217
      %s219 = ssub.s32 %s29, %s36
      %p220 = scmp.eq.s32.totalorder %s219, 0
      %s222 = sadd.s32 %s221, 1
      %s223 = scalar_select %p220, %s221, %s222
      %p226 = pneg %p220
      %p227 = scmp.eq.s32.totalorder %s21, 11
      %p228 = por %p226, %p227
      %p229 = scmp.ne.s32.totalorder %s221, %s224
      %p230 = scmp.eq.s32.totalorder %s21, 0
      %p231 = por %p229, %p230
      %p232 = scmp.ne.s32.totalorder %s221, %s224
      %p233 = scmp.eq.s32.totalorder %s26, 11
      %p234 = por %p232, %p233
      %p235 = scmp.ne.s32.totalorder %s224, %s225
      %p236 = scmp.eq.s32.totalorder %s26, 0
      %p237 = por %p235, %p236
      %p238 = scmp.ne.s32.totalorder %s224, %s225
      %p239 = scmp.eq.s32.totalorder %s27, 11
      %p240 = por %p238, %p239
      %p242 = scmp.ne.s32.totalorder %s225, %s241
      %p243 = scmp.eq.s32.totalorder %s27, 0
      %p244 = por %p242, %p243
      %s245 = ssub.s32 %s29, %s36
      %p246 = scmp.eq.s32.totalorder %s245, 0
      %s248 = sadd.s32 %s247, 1
      %s249 = scalar_select %p246, %s247, %s248
      %p252 = pneg %p246
      %p253 = scmp.eq.s32.totalorder %s21, 11
      %p254 = por %p252, %p253
      %p255 = scmp.ne.s32.totalorder %s247, %s250
      %p256 = scmp.eq.s32.totalorder %s21, 0
      %p257 = por %p255, %p256
      %p258 = scmp.ne.s32.totalorder %s247, %s250
      %p259 = scmp.eq.s32.totalorder %s26, 11
      %p260 = por %p258, %p259
      %p261 = scmp.ne.s32.totalorder %s250, %s251
      %p262 = scmp.eq.s32.totalorder %s26, 0
      %p263 = por %p261, %p262
      %p264 = scmp.ne.s32.totalorder %s250, %s251
      %p265 = scmp.eq.s32.totalorder %s27, 11
      %p266 = por %p264, %p265
      %p268 = scmp.ne.s32.totalorder %s251, %s267
      %p269 = scmp.eq.s32.totalorder %s27, 0
      %p270 = por %p268, %p269
      %s271 = ssub.s32 %s29, %s36
      %p272 = scmp.eq.s32.totalorder %s271, 0
      %s274 = sadd.s32 %s273, 1
      %s275 = scalar_select %p272, %s273, %s274
      %p278 = pneg %p272
      %p279 = scmp.eq.s32.totalorder %s21, 11
      %p280 = por %p278, %p279
      %p281 = scmp.ne.s32.totalorder %s273, %s276
      %p282 = scmp.eq.s32.totalorder %s21, 0
      %p283 = por %p281, %p282
      %p284 = scmp.ne.s32.totalorder %s273, %s276
      %p285 = scmp.eq.s32.totalorder %s26, 11
      %p286 = por %p284, %p285
      %p287 = scmp.ne.s32.totalorder %s276, %s277
      %p288 = scmp.eq.s32.totalorder %s26, 0
      %p289 = por %p287, %p288
      %p290 = scmp.ne.s32.totalorder %s276, %s277
      %p291 = scmp.eq.s32.totalorder %s27, 11
      %p292 = por %p290, %p291
      %p294 = scmp.ne.s32.totalorder %s277, %s293
      %p295 = scmp.eq.s32.totalorder %s27, 0
      %p296 = por %p294, %p295
      %s297 = ssub.s32 %s29, %s36
      %p298 = scmp.eq.s32.totalorder %s297, 0
      %s300 = sadd.s32 %s299, 1
      %s301 = scalar_select %p298, %s299, %s300
      %p304 = pneg %p298
      %p305 = scmp.eq.s32.totalorder %s21, 11
      %p306 = por %p304, %p305
      %p307 = scmp.ne.s32.totalorder %s299, %s302
      %p308 = scmp.eq.s32.totalorder %s21, 0
      %p309 = por %p307, %p308
      %p310 = scmp.ne.s32.totalorder %s299, %s302
      %p311 = scmp.eq.s32.totalorder %s26, 11
      %p312 = por %p310, %p311
      %p313 = scmp.ne.s32.totalorder %s302, %s303
      %p314 = scmp.eq.s32.totalorder %s26, 0
      %p315 = por %p313, %p314
      %p316 = scmp.ne.s32.totalorder %s302, %s303
      %p317 = scmp.eq.s32.totalorder %s27, 11
      %p318 = por %p316, %p317
      %p320 = scmp.ne.s32.totalorder %s303, %s319
      %p321 = scmp.eq.s32.totalorder %s27, 0
      %p322 = por %p320, %p321
      %s323 = ssub.s32 %s29, %s36
      %p324 = scmp.eq.s32.totalorder %s323, 0
      %s326 = sadd.s32 %s325, 1
      %s327 = scalar_select %p324, %s325, %s326
      %p330 = pneg %p324
      %p331 = scmp.eq.s32.totalorder %s21, 11
      %p332 = por %p330, %p331
      %p333 = scmp.ne.s32.totalorder %s325, %s328
      %p334 = scmp.eq.s32.totalorder %s21, 0
      %p335 = por %p333, %p334
      %p336 = scmp.ne.s32.totalorder %s325, %s328
      %p337 = scmp.eq.s32.totalorder %s26, 11
      %p338 = por %p336, %p337
      %p339 = scmp.ne.s32.totalorder %s328, %s329
      %p340 = scmp.eq.s32.totalorder %s26, 0
      %p341 = por %p339, %p340
      %p342 = scmp.ne.s32.totalorder %s328, %s329
      %p343 = scmp.eq.s32.totalorder %s27, 11
      %p344 = por %p342, %p343
      %p346 = scmp.ne.s32.totalorder %s329, %s345
      %p347 = scmp.eq.s32.totalorder %s27, 0
      %p348 = por %p346, %p347
      %s349 = ssub.s32 %s28, %s40
      %p350 = scmp.eq.s32.totalorder %s349, 0
      %s352 = sadd.s32 %s351, 1
      %s353 = scalar_select %p350, %s351, %s352
      %p356 = pneg %p350
      %p357 = scmp.eq.s32.totalorder %s21, 11
      %p358 = por %p356, %p357
      %p359 = scmp.ne.s32.totalorder %s351, %s354
      %p360 = scmp.eq.s32.totalorder %s21, 0
      %p361 = por %p359, %p360
      %p362 = scmp.ne.s32.totalorder %s351, %s354
      %p363 = scmp.eq.s32.totalorder %s26, 11
      %p364 = por %p362, %p363
      %p365 = scmp.ne.s32.totalorder %s354, %s355
      %p366 = scmp.eq.s32.totalorder %s26, 0
      %p367 = por %p365, %p366
      %p368 = scmp.ne.s32.totalorder %s354, %s355
      %p369 = scmp.eq.s32.totalorder %s27, 11
      %p370 = por %p368, %p369
      %p372 = scmp.ne.s32.totalorder %s355, %s371
      %p373 = scmp.eq.s32.totalorder %s27, 0
      %p374 = por %p372, %p373
      %p375 = scmp.le.s32.totalorder 1, %s21
      %p376 = scmp.lt.s32.totalorder %s21, 13
      %p377 = pnand %p375, %p376
      %p378 = pneg %p377
      // Predicated region
      $region9: #{fno2d_forward.2} parent=5 // pred_check
        _
      $region10: #{fno2d_forward.2} parent=5 // pred_check_branch
        %380 = sbr.rel (%p377) target = $region12
      $region11: #{fno2d_forward.2} parent=5 // pred_region
        %s381 = ssub.s32 %s21, 1
        // Predicated region
        $region13: #{fno2d_forward.2} parent=11 // pred_check
          %p382 = pneg %p106
        $region14: #{fno2d_forward.2} parent=11 // pred_check_branch
          %384 = sbr.rel (%p382) target = $region16
        $region15: #{fno2d_forward.2} parent=11 // pred_region
          _
        $region16: #{fno2d_forward.2} parent=11 // pred_fallthru
          _
        // Predicated region
        $region17: #{fno2d_forward.2} parent=11 // pred_check
          %p385 = pneg %p127
        $region18: #{fno2d_forward.2} parent=11 // pred_check_branch
          %387 = sbr.rel (%p385) target = $region20
        $region19: #{fno2d_forward.2} parent=11 // pred_region
          _
        $region20: #{fno2d_forward.2} parent=11 // pred_fallthru
          _
        // Predicated region
        $region21: #{fno2d_forward.2} parent=11 // pred_check
          %p388 = pneg %p148
        $region22: #{fno2d_forward.2} parent=11 // pred_check_branch
          %390 = sbr.rel (%p388) target = $region24
        $region23: #{fno2d_forward.2} parent=11 // pred_region
          _
        $region24: #{fno2d_forward.2} parent=11 // pred_fallthru
          _
        // Predicated region
        $region25: #{fno2d_forward.2} parent=11 // pred_check
          %p391 = pneg %p169
        $region26: #{fno2d_forward.2} parent=11 // pred_check_branch
          %393 = sbr.rel (%p391) target = $region28
        $region27: #{fno2d_forward.2} parent=11 // pred_region
          _
        $region28: #{fno2d_forward.2} parent=11 // pred_fallthru
          _
        // Predicated region
        $region29: #{fno2d_forward.2} parent=11 // pred_check
          %p394 = pneg %p190
        $region30: #{fno2d_forward.2} parent=11 // pred_check_branch
          %396 = sbr.rel (%p394) target = $region32
        $region31: #{fno2d_forward.2} parent=11 // pred_region
          %s398 = ssub.s32 2304, 2304
          %399 = vsyncadd [#allocation5], %s398
          %s400 = sshll.u32 [#allocation4], 4
          %s401 = int_to_ptr.vmem [resolvable:$true] %s400
          %406 = dma.hbm_to_vmem [thread:$0]  %s6, 2304, %s401, [#allocation5], 256, 256, 16
        $region32: #{fno2d_forward.2} parent=11 // pred_fallthru
          _
        // Predicated region
        $region33: #{fno2d_forward.2} parent=11 // pred_check
          %p407 = pneg %p211
        $region34: #{fno2d_forward.2} parent=11 // pred_check_branch
          %409 = sbr.rel (%p407) target = $region36
        $region35: #{fno2d_forward.2} parent=11 // pred_region
          %s411 = ssub.s32 2304, 2304
          %412 = vsyncadd [#allocation7], %s411
          %s413 = sshll.u32 [#allocation6], 4
          %s414 = int_to_ptr.vmem [resolvable:$true] %s413
          %419 = dma.hbm_to_vmem [thread:$0]  %s7, 2304, %s414, [#allocation7], 256, 256, 16
        $region36: #{fno2d_forward.2} parent=11 // pred_fallthru
          _
      $region12: #{fno2d_forward.2} parent=5 // pred_fallthru
        _
      %p420 = scmp.lt.s32.totalorder %s21, 12
      // Predicated region
      $region37: #{fno2d_forward.2} parent=5 // pred_check
        %p421 = pneg %p420
      $region38: #{fno2d_forward.2} parent=5 // pred_check_branch
        %423 = sbr.rel (%p421) target = $region40
      $region39: #{fno2d_forward.2} parent=5 // pred_region
        // Predicated region
        $region41: #{fno2d_forward.2} parent=39 // pred_check
          %p424 = pneg %p53
        $region42: #{fno2d_forward.2} parent=39 // pred_check_branch
          %426 = sbr.rel (%p424) target = $region44
        $region43: #{fno2d_forward.2} parent=39 // pred_region
          %s427 = smul.u32 2, %s28
          %p428 = scmp.lt.s32.totalorder %s427, 3
          %s429 = scalar_select %p428, %s427, 3
          %s430 = smul.addr %s429, 4
          %s431 = scalar_lea.vmem %s0, %s430
          %s432 = smul.u32 2, %s28
        $region44: #{fno2d_forward.2} parent=39 // pred_fallthru
          _
        // Predicated region
        $region45: #{fno2d_forward.2} parent=39 // pred_check
          %p433 = pneg %p79
        $region46: #{fno2d_forward.2} parent=39 // pred_check_branch
          %435 = sbr.rel (%p433) target = $region48
        $region47: #{fno2d_forward.2} parent=39 // pred_region
          %s436 = smul.u32 2, %s28
          %p437 = scmp.lt.s32.totalorder %s436, 3
          %s438 = scalar_select %p437, %s436, 3
          %s439 = smul.addr %s438, 8
          %s440 = scalar_lea.vmem %s1, %s439
          %s441 = smul.u32 2, %s28
        $region48: #{fno2d_forward.2} parent=39 // pred_fallthru
          _
        // Predicated region
        $region49: #{fno2d_forward.2} parent=39 // pred_check
          %p442 = pneg %p231
        $region50: #{fno2d_forward.2} parent=39 // pred_check_branch
          %444 = sbr.rel (%p442) target = $region52
        $region51: #{fno2d_forward.2} parent=39 // pred_region
          %s445 = sand.u32 %s21, 1
          %s446 = scalar_lea.sflag [#allocation5], %s445
          %s447 = sand.u32 %s221, 1
          %s448 = smul.addr %s447, 1024
          %s449 = scalar_lea.vmem [#allocation8], %s448
          %s451 = ssub.s32 16384, 16384
          %452 = vsyncadd %s446, %s451
          %s453 = smul.addr %s29, 128
          %s454 = smul.addr %s453, 128
          %s455 = scalar_lea.hbm %s8, %s454
          %s456 = sshll.u32 %s449, 4
          %s457 = int_to_ptr.vmem [resolvable:$true] %s456
          %462 = dma.hbm_to_vmem [thread:$0]  %s455, 16384, %s457, %s446, 128, 128, 8
        $region52: #{fno2d_forward.2} parent=39 // pred_fallthru
          _
        // Predicated region
        $region53: #{fno2d_forward.2} parent=39 // pred_check
          %p463 = pneg %p257
        $region54: #{fno2d_forward.2} parent=39 // pred_check_branch
          %465 = sbr.rel (%p463) target = $region56
        $region55: #{fno2d_forward.2} parent=39 // pred_region
          %s466 = sand.u32 %s21, 1
          %s467 = scalar_lea.sflag [#allocation5], %s466
          %s468 = sand.u32 %s247, 1
          %s469 = smul.addr %s468, 1024
          %s470 = scalar_lea.vmem [#allocation9], %s469
          %s472 = ssub.s32 16384, 16384
          %473 = vsyncadd %s467, %s472
          %s474 = smul.addr %s29, 128
          %s475 = smul.addr %s474, 128
          %s476 = scalar_lea.hbm %s9, %s475
          %s477 = sshll.u32 %s470, 4
          %s478 = int_to_ptr.vmem [resolvable:$true] %s477
          %483 = dma.hbm_to_vmem [thread:$0]  %s476, 16384, %s478, %s467, 128, 128, 8
        $region56: #{fno2d_forward.2} parent=39 // pred_fallthru
          _
        // Predicated region
        $region57: #{fno2d_forward.2} parent=39 // pred_check
          %p484 = pneg %p283
        $region58: #{fno2d_forward.2} parent=39 // pred_check_branch
          %486 = sbr.rel (%p484) target = $region60
        $region59: #{fno2d_forward.2} parent=39 // pred_region
          %s487 = sand.u32 %s21, 1
          %s488 = scalar_lea.sflag [#allocation5], %s487
          %s489 = sand.u32 %s273, 1
          %s490 = smul.addr %s489, 32
          %s491 = scalar_lea.vmem [#allocation10], %s490
          %s493 = ssub.s32 512, 512
          %494 = vsyncadd %s488, %s493
          %s495 = smul.addr %s29, 4
          %s496 = smul.addr %s495, 128
          %s497 = scalar_lea.hbm %s10, %s496
          %s498 = sshll.u32 %s491, 4
          %s499 = int_to_ptr.vmem [resolvable:$true] %s498
          %504 = dma.hbm_to_vmem [thread:$0]  %s497, 512, %s499, %s488, 128, 128, 8
        $region60: #{fno2d_forward.2} parent=39 // pred_fallthru
          _
        // Predicated region
        $region61: #{fno2d_forward.2} parent=39 // pred_check
          %p505 = pneg %p309
        $region62: #{fno2d_forward.2} parent=39 // pred_check_branch
          %507 = sbr.rel (%p505) target = $region64
        $region63: #{fno2d_forward.2} parent=39 // pred_region
          %p508 = scmp.lt.s32.totalorder %s29, 5
          %s509 = scalar_select %p508, %s29, 5
          %s510 = smul.addr %s509, 4
          %s511 = smul.addr %s510, 8
          %s512 = scalar_lea.vmem %s11, %s511
        $region64: #{fno2d_forward.2} parent=39 // pred_fallthru
          _
        // Predicated region
        $region65: #{fno2d_forward.2} parent=39 // pred_check
          %p513 = pneg %p335
        $region66: #{fno2d_forward.2} parent=39 // pred_check_branch
          %515 = sbr.rel (%p513) target = $region68
        $region67: #{fno2d_forward.2} parent=39 // pred_region
          %p516 = scmp.lt.s32.totalorder %s29, 5
          %s517 = scalar_select %p516, %s29, 5
          %s518 = smul.addr %s517, 4
          %s519 = smul.addr %s518, 8
          %s520 = scalar_lea.vmem %s12, %s519
        $region68: #{fno2d_forward.2} parent=39 // pred_fallthru
          _
      $region40: #{fno2d_forward.2} parent=5 // pred_fallthru
        _
      %p521 = scmp.le.s32.totalorder 1, %s21
      %p522 = scmp.lt.s32.totalorder %s21, 13
      %p523 = pnand %p521, %p522
      %p524 = pneg %p523
      // Predicated region
      $region69: #{fno2d_forward.2} parent=5 // pred_check
        _
      $region70: #{fno2d_forward.2} parent=5 // pred_check_branch
        %526 = sbr.rel (%p523) target = $region72
      $region71: #{fno2d_forward.2} parent=5 // pred_region
        %s527 = ssub.s32 %s21, 1
        // Predicated region
        $region73: #{fno2d_forward.2} parent=71 // pred_check
          %p528 = pneg %p190
        $region74: #{fno2d_forward.2} parent=71 // pred_check_branch
          %530 = sbr.rel (%p528) target = $region76
        $region75: #{fno2d_forward.2} parent=71 // pred_region
          %531 = dma.done [#allocation5], 2304
        $region76: #{fno2d_forward.2} parent=71 // pred_fallthru
          _
        // Predicated region
        $region77: #{fno2d_forward.2} parent=71 // pred_check
          %p532 = pneg %p211
        $region78: #{fno2d_forward.2} parent=71 // pred_check_branch
          %534 = sbr.rel (%p532) target = $region80
        $region79: #{fno2d_forward.2} parent=71 // pred_region
          %535 = dma.done [#allocation7], 2304
        $region80: #{fno2d_forward.2} parent=71 // pred_fallthru
          _
        %s536 = sand.u32 %s26, 1
        %s537 = scalar_lea.sflag [#allocation5], %s536
        %s538 = sand.u32 %s224, 1
        %s539 = smul.addr %s538, 1024
        %s540 = scalar_lea.vmem [#allocation8], %s539
        // Predicated region
        $region81: #{fno2d_forward.2} parent=71 // pred_check
          %p541 = pneg %p237
        $region82: #{fno2d_forward.2} parent=71 // pred_check_branch
          %543 = sbr.rel (%p541) target = $region84
        $region83: #{fno2d_forward.2} parent=71 // pred_region
          %544 = dma.done %s537, 16384
        $region84: #{fno2d_forward.2} parent=71 // pred_fallthru
          _
        %s545 = sand.u32 %s26, 1
        %s546 = scalar_lea.sflag [#allocation5], %s545
        %s547 = sand.u32 %s250, 1
        %s548 = smul.addr %s547, 1024
        %s549 = scalar_lea.vmem [#allocation9], %s548
        // Predicated region
        $region85: #{fno2d_forward.2} parent=71 // pred_check
          %p550 = pneg %p263
        $region86: #{fno2d_forward.2} parent=71 // pred_check_branch
          %552 = sbr.rel (%p550) target = $region88
        $region87: #{fno2d_forward.2} parent=71 // pred_region
          %553 = dma.done %s546, 16384
        $region88: #{fno2d_forward.2} parent=71 // pred_fallthru
          _
        %s554 = sand.u32 %s26, 1
        %s555 = scalar_lea.sflag [#allocation5], %s554
        %s556 = sand.u32 %s276, 1
        %s557 = smul.addr %s556, 32
        %s558 = scalar_lea.vmem [#allocation10], %s557
        // Predicated region
        $region89: #{fno2d_forward.2} parent=71 // pred_check
          %p559 = pneg %p289
        $region90: #{fno2d_forward.2} parent=71 // pred_check_branch
          %561 = sbr.rel (%p559) target = $region92
        $region91: #{fno2d_forward.2} parent=71 // pred_region
          %562 = dma.done %s555, 512
        $region92: #{fno2d_forward.2} parent=71 // pred_fallthru
          _
        %s563 = smul.u32 2, %s30
        %p564 = scmp.lt.s32.totalorder %s563, 3
        %s565 = scalar_select %p564, %s563, 3
        %s566 = smul.addr %s565, 4
        %s567 = scalar_lea.vmem %s0, %s566
        %p568 = pneg %p59
        %p569 = pneg %p56
        %s570 = smul.u32 2, %s30
        %p571 = scmp.lt.s32.totalorder %s570, 3
        %s572 = scalar_select %p571, %s570, 3
        %s573 = smul.addr %s572, 8
        %s574 = scalar_lea.vmem %s1, %s573
        %p575 = pneg %p85
        %p576 = pneg %p82
        %p577 = pneg %p106
        %p578 = pneg %p103
        %p579 = pneg %p127
        %p580 = pneg %p124
        %p581 = pneg %p148
        %p582 = pneg %p145
        %p583 = pneg %p169
        %p584 = pneg %p166
        %p585 = pneg %p190
        %p586 = pneg %p187
        %p587 = pneg %p211
        %p588 = pneg %p208
        %s589 = sand.u32 %s26, 1
        %s590 = scalar_lea.sflag [#allocation5], %s589
        %s591 = sand.u32 %s224, 1
        %s592 = smul.addr %s591, 1024
        %s593 = scalar_lea.vmem [#allocation8], %s592
        %p594 = pneg %p237
        %p595 = pneg %p234
        %s596 = sand.u32 %s26, 1
        %s597 = scalar_lea.sflag [#allocation5], %s596
        %s598 = sand.u32 %s250, 1
        %s599 = smul.addr %s598, 1024
        %s600 = scalar_lea.vmem [#allocation9], %s599
        %p601 = pneg %p263
        %p602 = pneg %p260
        %s603 = sand.u32 %s26, 1
        %s604 = scalar_lea.sflag [#allocation5], %s603
        %s605 = sand.u32 %s276, 1
        %s606 = smul.addr %s605, 32
        %s607 = scalar_lea.vmem [#allocation10], %s606
        %p608 = pneg %p289
        %p609 = pneg %p286
        %p610 = scmp.lt.s32.totalorder %s31, 5
        %s611 = scalar_select %p610, %s31, 5
        %s612 = smul.addr %s611, 4
        %s613 = smul.addr %s612, 8
        %s614 = scalar_lea.vmem %s11, %s613
        %p615 = pneg %p315
        %p616 = pneg %p312
        %p617 = scmp.lt.s32.totalorder %s31, 5
        %s618 = scalar_select %p617, %s31, 5
        %s619 = smul.addr %s618, 4
        %s620 = smul.addr %s619, 8
        %s621 = scalar_lea.vmem %s12, %s620
        %p622 = pneg %p341
        %p623 = pneg %p338
        %p624 = pneg %p367
        %p625 = pneg %p364
        %s626 = sand.u32 %s354, 1
        %s627 = sand.u32 %s354, 1
        %s628 = smul.addr %s627, 64
        %s629 = scalar_lea.vmem [#allocation11], %s628
        %s630 = smul.u32 2, %s30
        %p631 = scmp.lt.s32.totalorder %s630, 3
        %s632 = scalar_select %p631, %s630, 3
        %s633 = smul.addr %s632, 4
        %s634 = scalar_lea.vmem %s0, %s633
        %s635 = smul.u32 2, %s30
        %s636 = smul.u32 2, %s30
        %p637 = scmp.lt.s32.totalorder %s636, 3
        %s638 = scalar_select %p637, %s636, 3
        %s639 = smul.addr %s638, 8
        %s640 = scalar_lea.vmem %s1, %s639
        %s641 = smul.u32 2, %s30
        %p642 = scmp.lt.s32.totalorder %s31, 5
        %s643 = scalar_select %p642, %s31, 5
        %s644 = smul.addr %s643, 4
        %s645 = smul.addr %s644, 8
        %s646 = scalar_lea.vmem %s11, %s645
        %p647 = scmp.lt.s32.totalorder %s31, 5
        %s648 = scalar_select %p647, %s31, 5
        %s649 = smul.addr %s648, 4
        %s650 = smul.addr %s649, 8
        %s651 = scalar_lea.vmem %s12, %s650
        %s652 = smul.u32 2, %s30
        %p653 = scmp.eq.s32.totalorder %s31, 0
        // Predicated region
        $region93: #{fno2d_forward.2} parent=71 // pred_check
          %p654 = pneg %p653
        $region94: #{fno2d_forward.2} parent=71 // pred_check_branch
          %656 = sbr.rel (%p654) target = $region96
        $region95: #{fno2d_forward.2} parent=71 // pred_region
          %v657 = vld [vmem:[%s2] sm:$0xff]
          %v658 = vld [vmem:[%s2 + $0x8] sm:$0xff]
          %v659 = vld [vmem:[%s2 + $0x10] sm:$0xff]
          %v660 = vld [vmem:[%s2 + $0x18] sm:$0xff]
          %v661 = vld [vmem:[%s634] sm:$0xff]
          %v662 = vld [vmem:[%s3] sm:$0xff]
          %v663 = vld [vmem:[%s3 + $0x8] sm:$0xff]
          %v664 = vld [vmem:[%s3 + $0x10] sm:$0xff]
          %v665 = vld [vmem:[%s3 + $0x18] sm:$0xff]
          %667 = vset.pattern.permute.xlu0 0
          %668 = vperm.xlu0 %667, %v662
          %v669 = vpop.permute.xlu0 %668
          %672 = vset.pattern.permute.xlu0 0
          %673 = vperm.xlu0 %672, %v663
          %v674 = vpop.permute.xlu0 %673
          %677 = vset.pattern.permute.xlu0 0
          %678 = vperm.xlu0 %677, %v664
          %v679 = vpop.permute.xlu0 %678
          %682 = vset.pattern.permute.xlu0 0
          %683 = vperm.xlu0 %682, %v665
          %v684 = vpop.permute.xlu0 %683
          %v687 = vcombine.high %v661, %v661
          %vm688 = vcmask 31744
          %v690 = vsel %vm688, %v657, 0
          %v693 = vsel %vm688, %v658, 0
          %v696 = vsel %vm688, %v659, 0
          %v699 = vsel %vm688, %v660, 0
          %vm701 = vcmask 1043456
          %v702 = vsel %vm701, %v661, 0
          %v704 = vsel %vm701, %v687, 0
          %706 = vmatprep.subr.mxu0 %v704
          %707 = vmatpush1.msra.mxu0 %v702
          %708 = vmatprep.subr.mxu0 0.0
          %709 = vmatpush1.msra.mxu0 0.0
          %710 = vmatprep.subr.mxu0 0.0
          %711 = vmatpush1.msra.mxu0 0.0
          %712 = vmatprep.subr.mxu0 0.0
          %713 = vmatpush1.msra.mxu0 0.0
          %714 = vmatprep.subr.mxu0 0.0
          %715 = vmatpush1.msra.mxu0 0.0
          %716 = vmatprep.subr.mxu0 0.0
          %717 = vmatpush1.msra.mxu0 0.0
          %718 = vmatprep.subr.mxu0 0.0
          %719 = vmatpush1.msra.mxu0 0.0
          %720 = vmatprep.subr.mxu0 0.0
          %721 = vmatpush1.msra.mxu0 0.0
          %722 = vmatprep.subr.mxu0 0.0
          %723 = vmatpush1.msra.mxu0 0.0
          %724 = vmatprep.subr.mxu0 0.0
          %725 = vmatpush1.msra.mxu0 0.0
          %726 = vmatprep.subr.mxu0 0.0
          %727 = vmatpush1.msra.mxu0 0.0
          %728 = vmatprep.subr.mxu0 0.0
          %729 = vmatpush1.msra.mxu0 0.0
          %730 = vmatprep.subr.mxu0 0.0
          %731 = vmatpush1.msra.mxu0 0.0
          %732 = vmatprep.subr.mxu0 0.0
          %733 = vmatpush1.msra.mxu0 0.0
          %734 = vmatprep.subr.mxu0 0.0
          %735 = vmatpush1.msra.mxu0 0.0
          %736 = vmatprep.subr.mxu0 0.0
          %737 = vmatpush1.msra.mxu0 0.0
          %738 = vmatprep.subr.mxu0 0.0
          %739 = vmatpush1.msra.mxu0 0.0
          %740 = vmatprep.subr.mxu0 0.0
          %741 = vmatpush1.msra.mxu0 0.0
          %742 = vmatprep.subr.mxu0 0.0
          %743 = vmatpush1.msra.mxu0 0.0
          %744 = vmatprep.subr.mxu0 0.0
          %745 = vmatpush1.msra.mxu0 0.0
          %746 = vmatprep.subr.mxu0 0.0
          %747 = vmatpush1.msra.mxu0 0.0
          %748 = vmatprep.subr.mxu0 0.0
          %749 = vmatpush1.msra.mxu0 0.0
          %750 = vmatprep.subr.mxu0 0.0
          %751 = vmatpush1.msra.mxu0 0.0
          %752 = vmatprep.subr.mxu0 0.0
          %753 = vmatpush1.msra.mxu0 0.0
          %754 = vmatprep.subr.mxu0 0.0
          %755 = vmatpush1.msra.mxu0 0.0
          %756 = vmatprep.subr.mxu0 0.0
          %757 = vmatpush1.msra.mxu0 0.0
          %758 = vmatprep.subr.mxu0 0.0
          %759 = vmatpush1.msra.mxu0 0.0
          %760 = vmatprep.subr.mxu0 0.0
          %761 = vmatpush1.msra.mxu0 0.0
          %762 = vmatprep.subr.mxu0 0.0
          %763 = vmatpush1.msra.mxu0 0.0
          %764 = vmatprep.subr.mxu0 0.0
          %765 = vmatpush1.msra.mxu0 0.0
          %766 = vmatprep.subr.mxu0 0.0
          %767 = vmatpush1.msra.mxu0 0.0
          %768 = vmatprep.subr.mxu0 0.0
          %769 = vmatpush1.msra.mxu0 0.0
          %770 = vmatprep.mubr.f32.mxu0 0.0
          %771 = vmatmul.mubr.f32.gmra.mrb[0].mxu0 %v690
          %v772 = vpop.f32.mrb[0].mxu0
          %v773 = vadd.f32 %v669, %v772
          %v774 = vpop.f32.mrb[0].mxu0
          %v775 = vadd.f32 %v669, %v774
          %776 = vmatprep.mubr.f32.mxu0 0.0
          %777 = vmatmul.mubr.f32.gmra.mrb[0].mxu0 %v693
          %v778 = vpop.f32.mrb[0].mxu0
          %v779 = vadd.f32 %v674, %v778
          %v780 = vpop.f32.mrb[0].mxu0
          %v781 = vadd.f32 %v674, %v780
          %782 = vmatprep.mubr.f32.mxu0 0.0
          %783 = vmatmul.mubr.f32.gmra.mrb[0].mxu0 %v696
          %v784 = vpop.f32.mrb[0].mxu0
          %v785 = vadd.f32 %v679, %v784
          %v786 = vpop.f32.mrb[0].mxu0
          %v787 = vadd.f32 %v679, %v786
          %788 = vmatprep.mubr.f32.mxu0 0.0
          %789 = vmatmul.mubr.f32.gmra.mrb[0].mxu0 %v699
          %v790 = vpop.f32.mrb[0].mxu0
          %v791 = vadd.f32 %v684, %v790
          %v792 = vpop.f32.mrb[0].mxu0
          %v793 = vadd.f32 %v684, %v792
          %794 = vdwg.mxu0
          %795 = vst [vmem:[%s629] sm:$0xff] %v773
          %796 = vst [vmem:[%s629 + $0x8] sm:$0xff] %v775
          %797 = vst [vmem:[%s629 + $0x10] sm:$0xff] %v779
          %798 = vst [vmem:[%s629 + $0x18] sm:$0xff] %v781
          %799 = vst [vmem:[%s629 + $0x20] sm:$0xff] %v785
          %800 = vst [vmem:[%s629 + $0x28] sm:$0xff] %v787
          %801 = vst [vmem:[%s629 + $0x30] sm:$0xff] %v791
          %802 = vst [vmem:[%s629 + $0x38] sm:$0xff] %v793
        $region96: #{fno2d_forward.2} parent=71 // pred_fallthru
          _
        %v803 = vld [vmem:[%s629] sm:$0xff]
        %v804 = vld [vmem:[%s629 + $0x8] sm:$0xff]
        %v805 = vld [vmem:[%s629 + $0x10] sm:$0xff]
        %v806 = vld [vmem:[%s629 + $0x18] sm:$0xff]
        %v807 = vld [vmem:[%s629 + $0x20] sm:$0xff]
        %v808 = vld [vmem:[%s629 + $0x28] sm:$0xff]
        %v809 = vld [vmem:[%s629 + $0x30] sm:$0xff]
        %v810 = vld [vmem:[%s629 + $0x38] sm:$0xff]
        %v811 = vld [vmem:[%s4] sm:$0xff]
        %v812 = vld [vmem:[%s4 + $0x8] sm:$0xff]
        %v813 = vld [vmem:[%s4 + $0x10] sm:$0xff]
        %v814 = vld [vmem:[%s4 + $0x18] sm:$0xff]
        %v815 = vld [vmem:[%s4 + $0x20] sm:$0xff]
        %v816 = vld [vmem:[%s4 + $0x28] sm:$0xff]
        %v817 = vld [vmem:[%s4 + $0x30] sm:$0xff]
        %v818 = vld [vmem:[%s4 + $0x38] sm:$0xff]
        %v819 = vld [vmem:[%s4 + $0x40] sm:$0xff]
        %v820 = vld [vmem:[%s4 + $0x48] sm:$0xff]
        %v821 = vld [vmem:[%s4 + $0x50] sm:$0xff]
        %v822 = vld [vmem:[%s4 + $0x58] sm:$0xff]
        %v823 = vld [vmem:[%s4 + $0x60] sm:$0xff]
        %v824 = vld [vmem:[%s4 + $0x68] sm:$0xff]
        %v825 = vld [vmem:[%s4 + $0x70] sm:$0xff]
        %v826 = vld [vmem:[%s4 + $0x78] sm:$0xff]
        %v827 = vld [vmem:[%s4 + $0x80] sm:$0xff]
        %v828 = vld [vmem:[%s4 + $0x88] sm:$0xff]
        %v829 = vld [vmem:[%s4 + $0x90] sm:$0xff]
        %v830 = vld [vmem:[%s4 + $0x98] sm:$0xff]
        %v831 = vld [vmem:[%s4 + $0xa0] sm:$0xff]
        %v832 = vld [vmem:[%s4 + $0xa8] sm:$0xff]
        %v833 = vld [vmem:[%s4 + $0xb0] sm:$0xff]
        %v834 = vld [vmem:[%s4 + $0xb8] sm:$0xff]
        %v835 = vld [vmem:[%s4 + $0xc0] sm:$0xff]
        %v836 = vld [vmem:[%s4 + $0xc8] sm:$0xff]
        %v837 = vld [vmem:[%s4 + $0xd0] sm:$0xff]
        %v838 = vld [vmem:[%s4 + $0xd8] sm:$0xff]
        %v839 = vld [vmem:[%s4 + $0xe0] sm:$0xff]
        %v840 = vld [vmem:[%s4 + $0xe8] sm:$0xff]
        %v841 = vld [vmem:[%s4 + $0xf0] sm:$0xff]
        %v842 = vld [vmem:[%s4 + $0xf8] sm:$0xff]
        %843 = vmatprep.subr.mxu0 0.0
        %844 = vmatpush1.msra.mxu0 %v811
        %845 = vmatprep.subr.mxu0 0.0
        %846 = vmatpush1.msra.mxu0 %v812
        %847 = vmatprep.subr.mxu0 0.0
        %848 = vmatpush1.msra.mxu0 %v813
        %849 = vmatprep.subr.mxu0 0.0
        %850 = vmatpush1.msra.mxu0 %v814
        %851 = vmatprep.subr.mxu0 0.0
        %852 = vmatpush1.msra.mxu0 %v815
        %853 = vmatprep.subr.mxu0 0.0
        %854 = vmatpush1.msra.mxu0 %v816
        %855 = vmatprep.subr.mxu0 0.0
        %856 = vmatpush1.msra.mxu0 %v817
        %857 = vmatprep.subr.mxu0 0.0
        %858 = vmatpush1.msra.mxu0 %v818
        %859 = vmatprep.subr.mxu0 0.0
        %860 = vmatpush1.msra.mxu0 %v819
        %861 = vmatprep.subr.mxu0 0.0
        %862 = vmatpush1.msra.mxu0 %v820
        %863 = vmatprep.subr.mxu0 0.0
        %864 = vmatpush1.msra.mxu0 %v821
        %865 = vmatprep.subr.mxu0 0.0
        %866 = vmatpush1.msra.mxu0 %v822
        %867 = vmatprep.subr.mxu0 0.0
        %868 = vmatpush1.msra.mxu0 %v823
        %869 = vmatprep.subr.mxu0 0.0
        %870 = vmatpush1.msra.mxu0 %v824
        %871 = vmatprep.subr.mxu0 0.0
        %872 = vmatpush1.msra.mxu0 %v825
        %873 = vmatprep.subr.mxu0 0.0
        %874 = vmatpush1.msra.mxu0 %v826
        %875 = vmatprep.subr.mxu0 0.0
        %876 = vmatpush1.msra.mxu0 %v827
        %877 = vmatprep.subr.mxu0 0.0
        %878 = vmatpush1.msra.mxu0 %v828
        %879 = vmatprep.subr.mxu0 0.0
        %880 = vmatpush1.msra.mxu0 %v829
        %881 = vmatprep.subr.mxu0 0.0
        %882 = vmatpush1.msra.mxu0 %v830
        %883 = vmatprep.subr.mxu0 0.0
        %884 = vmatpush1.msra.mxu0 %v831
        %885 = vmatprep.subr.mxu0 0.0
        %886 = vmatpush1.msra.mxu0 %v832
        %887 = vmatprep.subr.mxu0 0.0
        %888 = vmatpush1.msra.mxu0 %v833
        %889 = vmatprep.subr.mxu0 0.0
        %890 = vmatpush1.msra.mxu0 %v834
        %891 = vmatprep.subr.mxu0 0.0
        %892 = vmatpush1.msra.mxu0 %v835
        %893 = vmatprep.subr.mxu0 0.0
        %894 = vmatpush1.msra.mxu0 %v836
        %895 = vmatprep.subr.mxu0 0.0
        %896 = vmatpush1.msra.mxu0 %v837
        %897 = vmatprep.subr.mxu0 0.0
        %898 = vmatpush1.msra.mxu0 %v838
        %899 = vmatprep.subr.mxu0 0.0
        %900 = vmatpush1.msra.mxu0 %v839
        %901 = vmatprep.subr.mxu0 0.0
        %902 = vmatpush1.msra.mxu0 %v840
        %903 = vmatprep.subr.mxu0 0.0
        %904 = vmatpush1.msra.mxu0 %v841
        %905 = vmatprep.subr.mxu0 0.0
        %906 = vmatpush1.msra.mxu0 %v842
        %907 = vmatprep.mubr.f32.mxu0 %v804
        %908 = vmatmul.mubr.f32.gmra.mrb[0].mxu0 %v803
        %v909 = vpop.f32.mrb[0].mxu0
        %v910 = vadd.f32 0.0, %v909
        %v911 = vpop.f32.mrb[0].mxu0
        %912 = vmatprep.mubr.f32.mxu0 %v806
        %913 = vmatmul.mubr.f32.gmra.mrb[0].mxu0 %v805
        %v914 = vpop.f32.mrb[0].mxu0
        %v915 = vadd.f32 0.0, %v914
        %v916 = vpop.f32.mrb[0].mxu0
        %917 = vmatprep.mubr.f32.mxu0 %v808
        %918 = vmatmul.mubr.f32.gmra.mrb[0].mxu0 %v807
        %v919 = vpop.f32.mrb[0].mxu0
        %v920 = vadd.f32 0.0, %v919
        %v921 = vpop.f32.mrb[0].mxu0
        %922 = vmatprep.mubr.f32.mxu0 %v810
        %923 = vmatmul.mubr.f32.gmra.mrb[0].mxu0 %v809
        %v924 = vpop.f32.mrb[0].mxu0
        %v925 = vadd.f32 0.0, %v924
        %v926 = vpop.f32.mrb[0].mxu0
        %927 = vdwg.mxu0
        %vm928 = vcmask 588800
        %929 = vst.msk [vmem:[#allocation2] sm:$0xff] %vm928, %v910
        %930 = vst.msk [vmem:[#allocation2 + $0x8] sm:$0xff] %vm928, %v915
        %931 = vst.msk [vmem:[#allocation2 + $0x10] sm:$0xff] %vm928, %v920
        %932 = vst.msk [vmem:[#allocation2 + $0x18] sm:$0xff] %vm928, %v925
        %v933 = vld [vmem:[%s5] sm:$0xff]
        %v934 = vld [vmem:[%s5 + $0x8] sm:$0xff]
        %v935 = vld [vmem:[%s5 + $0x10] sm:$0xff]
        %v936 = vld [vmem:[%s5 + $0x18] sm:$0xff]
        %v937 = vld [vmem:[%s5 + $0x20] sm:$0xff]
        %v938 = vld [vmem:[%s5 + $0x28] sm:$0xff]
        %v939 = vld [vmem:[%s5 + $0x30] sm:$0xff]
        %v940 = vld [vmem:[%s5 + $0x38] sm:$0xff]
        %v941 = vld [vmem:[%s5 + $0x40] sm:$0xff]
        %v942 = vld [vmem:[%s5 + $0x48] sm:$0xff]
        %v943 = vld [vmem:[%s5 + $0x50] sm:$0xff]
        %v944 = vld [vmem:[%s5 + $0x58] sm:$0xff]
        %v945 = vld [vmem:[%s5 + $0x60] sm:$0xff]
        %v946 = vld [vmem:[%s5 + $0x68] sm:$0xff]
        %v947 = vld [vmem:[%s5 + $0x70] sm:$0xff]
        %v948 = vld [vmem:[%s5 + $0x78] sm:$0xff]
        %v949 = vld [vmem:[%s5 + $0x80] sm:$0xff]
        %v950 = vld [vmem:[%s5 + $0x88] sm:$0xff]
        %v951 = vld [vmem:[%s5 + $0x90] sm:$0xff]
        %v952 = vld [vmem:[%s5 + $0x98] sm:$0xff]
        %v953 = vld [vmem:[%s5 + $0xa0] sm:$0xff]
        %v954 = vld [vmem:[%s5 + $0xa8] sm:$0xff]
        %v955 = vld [vmem:[%s5 + $0xb0] sm:$0xff]
        %v956 = vld [vmem:[%s5 + $0xb8] sm:$0xff]
        %v957 = vld [vmem:[%s5 + $0xc0] sm:$0xff]
        %v958 = vld [vmem:[%s5 + $0xc8] sm:$0xff]
        %v959 = vld [vmem:[%s5 + $0xd0] sm:$0xff]
        %v960 = vld [vmem:[%s5 + $0xd8] sm:$0xff]
        %v961 = vld [vmem:[%s5 + $0xe0] sm:$0xff]
        %v962 = vld [vmem:[%s5 + $0xe8] sm:$0xff]
        %v963 = vld [vmem:[%s5 + $0xf0] sm:$0xff]
        %v964 = vld [vmem:[%s5 + $0xf8] sm:$0xff]
        %965 = vmatprep.subr.mxu0 0.0
        %966 = vmatpush1.msra.mxu0 %v933
        %967 = vmatprep.subr.mxu0 0.0
        %968 = vmatpush1.msra.mxu0 %v934
        %969 = vmatprep.subr.mxu0 0.0
        %970 = vmatpush1.msra.mxu0 %v935
        %971 = vmatprep.subr.mxu0 0.0
        %972 = vmatpush1.msra.mxu0 %v936
        %973 = vmatprep.subr.mxu0 0.0
        %974 = vmatpush1.msra.mxu0 %v937
        %975 = vmatprep.subr.mxu0 0.0
        %976 = vmatpush1.msra.mxu0 %v938
        %977 = vmatprep.subr.mxu0 0.0
        %978 = vmatpush1.msra.mxu0 %v939
        %979 = vmatprep.subr.mxu0 0.0
        %980 = vmatpush1.msra.mxu0 %v940
        %981 = vmatprep.subr.mxu0 0.0
        %982 = vmatpush1.msra.mxu0 %v941
        %983 = vmatprep.subr.mxu0 0.0
        %984 = vmatpush1.msra.mxu0 %v942
        %985 = vmatprep.subr.mxu0 0.0
        %986 = vmatpush1.msra.mxu0 %v943
        %987 = vmatprep.subr.mxu0 0.0
        %988 = vmatpush1.msra.mxu0 %v944
        %989 = vmatprep.subr.mxu0 0.0
        %990 = vmatpush1.msra.mxu0 %v945
        %991 = vmatprep.subr.mxu0 0.0
        %992 = vmatpush1.msra.mxu0 %v946
        %993 = vmatprep.subr.mxu0 0.0
        %994 = vmatpush1.msra.mxu0 %v947
        %995 = vmatprep.subr.mxu0 0.0
        %996 = vmatpush1.msra.mxu0 %v948
        %997 = vmatprep.subr.mxu0 0.0
        %998 = vmatpush1.msra.mxu0 %v949
        %999 = vmatprep.subr.mxu0 0.0
        %1000 = vmatpush1.msra.mxu0 %v950
        %1001 = vmatprep.subr.mxu0 0.0
        %1002 = vmatpush1.msra.mxu0 %v951
        %1003 = vmatprep.subr.mxu0 0.0
        %1004 = vmatpush1.msra.mxu0 %v952
        %1005 = vmatprep.subr.mxu0 0.0
        %1006 = vmatpush1.msra.mxu0 %v953
        %1007 = vmatprep.subr.mxu0 0.0
        %1008 = vmatpush1.msra.mxu0 %v954
        %1009 = vmatprep.subr.mxu0 0.0
        %1010 = vmatpush1.msra.mxu0 %v955
        %1011 = vmatprep.subr.mxu0 0.0
        %1012 = vmatpush1.msra.mxu0 %v956
        %1013 = vmatprep.subr.mxu0 0.0
        %1014 = vmatpush1.msra.mxu0 %v957
        %1015 = vmatprep.subr.mxu0 0.0
        %1016 = vmatpush1.msra.mxu0 %v958
        %1017 = vmatprep.subr.mxu0 0.0
        %1018 = vmatpush1.msra.mxu0 %v959
        %1019 = vmatprep.subr.mxu0 0.0
        %1020 = vmatpush1.msra.mxu0 %v960
        %1021 = vmatprep.subr.mxu0 0.0
        %1022 = vmatpush1.msra.mxu0 %v961
        %1023 = vmatprep.subr.mxu0 0.0
        %1024 = vmatpush1.msra.mxu0 %v962
        %1025 = vmatprep.subr.mxu0 0.0
        %1026 = vmatpush1.msra.mxu0 %v963
        %1027 = vmatprep.subr.mxu0 0.0
        %1028 = vmatpush1.msra.mxu0 %v964
        %1029 = vmatprep.mubr.f32.mxu0 %v804
        %1030 = vmatmul.mubr.f32.gmra.mrb[0].mxu0 %v803
        %v1031 = vpop.f32.mrb[0].mxu0
        %v1032 = vadd.f32 0.0, %v1031
        %v1033 = vpop.f32.mrb[0].mxu0
        %1034 = vmatprep.mubr.f32.mxu0 %v806
        %1035 = vmatmul.mubr.f32.gmra.mrb[0].mxu0 %v805
        %v1036 = vpop.f32.mrb[0].mxu0
        %v1037 = vadd.f32 0.0, %v1036
        %v1038 = vpop.f32.mrb[0].mxu0
        %1039 = vmatprep.mubr.f32.mxu0 %v808
        %1040 = vmatmul.mubr.f32.gmra.mrb[0].mxu0 %v807
        %v1041 = vpop.f32.mrb[0].mxu0
        %v1042 = vadd.f32 0.0, %v1041
        %v1043 = vpop.f32.mrb[0].mxu0
        %1044 = vmatprep.mubr.f32.mxu0 %v810
        %1045 = vmatmul.mubr.f32.gmra.mrb[0].mxu0 %v809
        %v1046 = vpop.f32.mrb[0].mxu0
        %v1047 = vadd.f32 0.0, %v1046
        %v1048 = vpop.f32.mrb[0].mxu0
        %1049 = vdwg.mxu0
        %1050 = vst.msk [vmem:[#allocation3] sm:$0xff] %vm928, %v1032
        %1051 = vst.msk [vmem:[#allocation3 + $0x8] sm:$0xff] %vm928, %v1037
        %1052 = vst.msk [vmem:[#allocation3 + $0x10] sm:$0xff] %vm928, %v1042
        %1053 = vst.msk [vmem:[#allocation3 + $0x18] sm:$0xff] %vm928, %v1047
        %v1054 = vld [vmem:[#allocation2] sm:$0x1]
        %v1055 = vld [vmem:[#allocation3] sm:$0x1]
        %v1056 = vld [vmem:[%s540] sm:$0xff]
        %v1057 = vld [vmem:[%s540 + $0x8] sm:$0xff]
        %v1058 = vld [vmem:[%s540 + $0x10] sm:$0xff]
        %v1059 = vld [vmem:[%s540 + $0x18] sm:$0xff]
        %v1060 = vld [vmem:[%s549] sm:$0xff]
        %v1061 = vld [vmem:[%s549 + $0x8] sm:$0xff]
        %v1062 = vld [vmem:[%s549 + $0x10] sm:$0xff]
        %v1063 = vld [vmem:[%s549 + $0x18] sm:$0xff]
        %v1064 = vlaneseq
        %v1065 = vshrl.u32 %v1064, 7
        %v1066 = vsub.s32 0, %v1065
        %v1067 = vrot.slane %v1054, %v1066
        %v1068 = vmul.f32 %v1056, %v1067
        %v1069 = vmul.f32 %v1057, %v1067
        %v1070 = vmul.f32 %v1058, %v1067
        %v1071 = vmul.f32 %v1059, %v1067
        %v1072 = vadd.f32 %v1068, 0.0
        %v1073 = vadd.f32 %v1069, 0.0
        %v1074 = vadd.f32 %v1070, 0.0
        %v1075 = vadd.f32 %v1071, 0.0
        %v1076 = vlaneseq
        %v1077 = vshrl.u32 %v1076, 7
        %v1078 = vsub.s32 0, %v1077
        %v1079 = vrot.slane %v1055, %v1078
        %v1080 = vmul.f32 %v1060, %v1079
        %v1081 = vmul.f32 %v1061, %v1079
        %v1082 = vmul.f32 %v1062, %v1079
        %v1083 = vmul.f32 %v1063, %v1079
        %v1084 = vsub.f32 %v1072, %v1080
        %v1085 = vsub.f32 %v1073, %v1081
        %v1086 = vsub.f32 %v1074, %v1082
        %v1087 = vsub.f32 %v1075, %v1083
        %v1088 = vmul.f32 %v1056, %v1079
        %v1089 = vmul.f32 %v1057, %v1079
        %v1090 = vmul.f32 %v1058, %v1079
        %v1091 = vmul.f32 %v1059, %v1079
        %v1092 = vadd.f32 %v1088, 0.0
        %v1093 = vadd.f32 %v1089, 0.0
        %v1094 = vadd.f32 %v1090, 0.0
        %v1095 = vadd.f32 %v1091, 0.0
        %v1096 = vmul.f32 %v1060, %v1067
        %v1097 = vmul.f32 %v1061, %v1067
        %v1098 = vmul.f32 %v1062, %v1067
        %v1099 = vmul.f32 %v1063, %v1067
        %v1100 = vadd.f32 %v1092, %v1096
        %v1101 = vadd.f32 %v1093, %v1097
        %v1102 = vadd.f32 %v1094, %v1098
        %v1103 = vadd.f32 %v1095, %v1099
        %v1104 = vld [vmem:[#allocation2 + $0x1] sm:$0x1]
        %v1105 = vld [vmem:[#allocation3 + $0x1] sm:$0x1]
        %s1106 = scalar_lea.vmem %s540, 32 [#allocation8]
        %v1107 = vld [vmem:[%s1106] sm:$0xff]
        %v1108 = vld [vmem:[%s1106 + $0x8] sm:$0xff]
        %v1109 = vld [vmem:[%s1106 + $0x10] sm:$0xff]
        %v1110 = vld [vmem:[%s1106 + $0x18] sm:$0xff]
        %s1111 = scalar_lea.vmem %s549, 32 [#allocation9]
        %v1112 = vld [vmem:[%s1111] sm:$0xff]
        %v1113 = vld [vmem:[%s1111 + $0x8] sm:$0xff]
        %v1114 = vld [vmem:[%s1111 + $0x10] sm:$0xff]
        %v1115 = vld [vmem:[%s1111 + $0x18] sm:$0xff]
        %v1116 = vlaneseq
        %v1117 = vshrl.u32 %v1116, 7
        %v1118 = vsub.s32 0, %v1117
        %v1119 = vrot.slane %v1104, %v1118
        %v1120 = vmul.f32 %v1107, %v1119
        %v1121 = vmul.f32 %v1108, %v1119
        %v1122 = vmul.f32 %v1109, %v1119
        %v1123 = vmul.f32 %v1110, %v1119
        %v1124 = vadd.f32 %v1084, %v1120
        %v1125 = vadd.f32 %v1085, %v1121
        %v1126 = vadd.f32 %v1086, %v1122
        %v1127 = vadd.f32 %v1087, %v1123
        %v1128 = vlaneseq
        %v1129 = vshrl.u32 %v1128, 7
        %v1130 = vsub.s32 0, %v1129
        %v1131 = vrot.slane %v1105, %v1130
        %v1132 = vmul.f32 %v1112, %v1131
        %v1133 = vmul.f32 %v1113, %v1131
        %v1134 = vmul.f32 %v1114, %v1131
        %v1135 = vmul.f32 %v1115, %v1131
        %v1136 = vsub.f32 %v1124, %v1132
        %v1137 = vsub.f32 %v1125, %v1133
        %v1138 = vsub.f32 %v1126, %v1134
        %v1139 = vsub.f32 %v1127, %v1135
        %v1140 = vmul.f32 %v1107, %v1131
        %v1141 = vmul.f32 %v1108, %v1131
        %v1142 = vmul.f32 %v1109, %v1131
        %v1143 = vmul.f32 %v1110, %v1131
        %v1144 = vadd.f32 %v1100, %v1140
        %v1145 = vadd.f32 %v1101, %v1141
        %v1146 = vadd.f32 %v1102, %v1142
        %v1147 = vadd.f32 %v1103, %v1143
        %v1148 = vmul.f32 %v1112, %v1119
        %v1149 = vmul.f32 %v1113, %v1119
        %v1150 = vmul.f32 %v1114, %v1119
        %v1151 = vmul.f32 %v1115, %v1119
        %v1152 = vadd.f32 %v1144, %v1148
        %v1153 = vadd.f32 %v1145, %v1149
        %v1154 = vadd.f32 %v1146, %v1150
        %v1155 = vadd.f32 %v1147, %v1151
        %v1156 = vld [vmem:[#allocation2 + $0x2] sm:$0x1]
        %v1157 = vld [vmem:[#allocation3 + $0x2] sm:$0x1]
        %s1158 = scalar_lea.vmem %s540, 64 [#allocation8]
        %v1159 = vld [vmem:[%s1158] sm:$0xff]
        %v1160 = vld [vmem:[%s1158 + $0x8] sm:$0xff]
        %v1161 = vld [vmem:[%s1158 + $0x10] sm:$0xff]
        %v1162 = vld [vmem:[%s1158 + $0x18] sm:$0xff]
        %s1163 = scalar_lea.vmem %s549, 64 [#allocation9]
        %v1164 = vld [vmem:[%s1163] sm:$0xff]
        %v1165 = vld [vmem:[%s1163 + $0x8] sm:$0xff]
        %v1166 = vld [vmem:[%s1163 + $0x10] sm:$0xff]
        %v1167 = vld [vmem:[%s1163 + $0x18] sm:$0xff]
        %v1168 = vlaneseq
        %v1169 = vshrl.u32 %v1168, 7
        %v1170 = vsub.s32 0, %v1169
        %v1171 = vrot.slane %v1156, %v1170
        %v1172 = vmul.f32 %v1159, %v1171
        %v1173 = vmul.f32 %v1160, %v1171
        %v1174 = vmul.f32 %v1161, %v1171
        %v1175 = vmul.f32 %v1162, %v1171
        %v1176 = vadd.f32 %v1136, %v1172
        %v1177 = vadd.f32 %v1137, %v1173
        %v1178 = vadd.f32 %v1138, %v1174
        %v1179 = vadd.f32 %v1139, %v1175
        %v1180 = vlaneseq
        %v1181 = vshrl.u32 %v1180, 7
        %v1182 = vsub.s32 0, %v1181
        %v1183 = vrot.slane %v1157, %v1182
        %v1184 = vmul.f32 %v1164, %v1183
        %v1185 = vmul.f32 %v1165, %v1183
        %v1186 = vmul.f32 %v1166, %v1183
        %v1187 = vmul.f32 %v1167, %v1183
        %v1188 = vsub.f32 %v1176, %v1184
        %v1189 = vsub.f32 %v1177, %v1185
        %v1190 = vsub.f32 %v1178, %v1186
        %v1191 = vsub.f32 %v1179, %v1187
        %v1192 = vmul.f32 %v1159, %v1183
        %v1193 = vmul.f32 %v1160, %v1183
        %v1194 = vmul.f32 %v1161, %v1183
        %v1195 = vmul.f32 %v1162, %v1183
        %v1196 = vadd.f32 %v1152, %v1192
        %v1197 = vadd.f32 %v1153, %v1193
        %v1198 = vadd.f32 %v1154, %v1194
        %v1199 = vadd.f32 %v1155, %v1195
        %v1200 = vmul.f32 %v1164, %v1171
        %v1201 = vmul.f32 %v1165, %v1171
        %v1202 = vmul.f32 %v1166, %v1171
        %v1203 = vmul.f32 %v1167, %v1171
        %v1204 = vadd.f32 %v1196, %v1200
        %v1205 = vadd.f32 %v1197, %v1201
        %v1206 = vadd.f32 %v1198, %v1202
        %v1207 = vadd.f32 %v1199, %v1203
        %v1208 = vld [vmem:[#allocation2 + $0x3] sm:$0x1]
        %v1209 = vld [vmem:[#allocation3 + $0x3] sm:$0x1]
        %s1210 = scalar_lea.vmem %s540, 96 [#allocation8]
        %v1211 = vld [vmem:[%s1210] sm:$0xff]
        %v1212 = vld [vmem:[%s1210 + $0x8] sm:$0xff]
        %v1213 = vld [vmem:[%s1210 + $0x10] sm:$0xff]
        %v1214 = vld [vmem:[%s1210 + $0x18] sm:$0xff]
        %s1215 = scalar_lea.vmem %s549, 96 [#allocation9]
        %v1216 = vld [vmem:[%s1215] sm:$0xff]
        %v1217 = vld [vmem:[%s1215 + $0x8] sm:$0xff]
        %v1218 = vld [vmem:[%s1215 + $0x10] sm:$0xff]
        %v1219 = vld [vmem:[%s1215 + $0x18] sm:$0xff]
        %v1220 = vlaneseq
        %v1221 = vshrl.u32 %v1220, 7
        %v1222 = vsub.s32 0, %v1221
        %v1223 = vrot.slane %v1208, %v1222
        %v1224 = vmul.f32 %v1211, %v1223
        %v1225 = vmul.f32 %v1212, %v1223
        %v1226 = vmul.f32 %v1213, %v1223
        %v1227 = vmul.f32 %v1214, %v1223
        %v1228 = vadd.f32 %v1188, %v1224
        %v1229 = vadd.f32 %v1189, %v1225
        %v1230 = vadd.f32 %v1190, %v1226
        %v1231 = vadd.f32 %v1191, %v1227
        %v1232 = vlaneseq
        %v1233 = vshrl.u32 %v1232, 7
        %v1234 = vsub.s32 0, %v1233
        %v1235 = vrot.slane %v1209, %v1234
        %v1236 = vmul.f32 %v1216, %v1235
        %v1237 = vmul.f32 %v1217, %v1235
        %v1238 = vmul.f32 %v1218, %v1235
        %v1239 = vmul.f32 %v1219, %v1235
        %v1240 = vsub.f32 %v1228, %v1236
        %v1241 = vsub.f32 %v1229, %v1237
        %v1242 = vsub.f32 %v1230, %v1238
        %v1243 = vsub.f32 %v1231, %v1239
        %v1244 = vmul.f32 %v1211, %v1235
        %v1245 = vmul.f32 %v1212, %v1235
        %v1246 = vmul.f32 %v1213, %v1235
        %v1247 = vmul.f32 %v1214, %v1235
        %v1248 = vadd.f32 %v1204, %v1244
        %v1249 = vadd.f32 %v1205, %v1245
        %v1250 = vadd.f32 %v1206, %v1246
        %v1251 = vadd.f32 %v1207, %v1247
        %v1252 = vmul.f32 %v1216, %v1223
        %v1253 = vmul.f32 %v1217, %v1223
        %v1254 = vmul.f32 %v1218, %v1223
        %v1255 = vmul.f32 %v1219, %v1223
        %v1256 = vadd.f32 %v1248, %v1252
        %v1257 = vadd.f32 %v1249, %v1253
        %v1258 = vadd.f32 %v1250, %v1254
        %v1259 = vadd.f32 %v1251, %v1255
        %v1260 = vld [vmem:[#allocation2 + $0x4] sm:$0x1]
        %v1261 = vld [vmem:[#allocation3 + $0x4] sm:$0x1]
        %s1262 = scalar_lea.vmem %s540, 128 [#allocation8]
        %v1263 = vld [vmem:[%s1262] sm:$0xff]
        %v1264 = vld [vmem:[%s1262 + $0x8] sm:$0xff]
        %v1265 = vld [vmem:[%s1262 + $0x10] sm:$0xff]
        %v1266 = vld [vmem:[%s1262 + $0x18] sm:$0xff]
        %s1267 = scalar_lea.vmem %s549, 128 [#allocation9]
        %v1268 = vld [vmem:[%s1267] sm:$0xff]
        %v1269 = vld [vmem:[%s1267 + $0x8] sm:$0xff]
        %v1270 = vld [vmem:[%s1267 + $0x10] sm:$0xff]
        %v1271 = vld [vmem:[%s1267 + $0x18] sm:$0xff]
        %v1272 = vlaneseq
        %v1273 = vshrl.u32 %v1272, 7
        %v1274 = vsub.s32 0, %v1273
        %v1275 = vrot.slane %v1260, %v1274
        %v1276 = vmul.f32 %v1263, %v1275
        %v1277 = vmul.f32 %v1264, %v1275
        %v1278 = vmul.f32 %v1265, %v1275
        %v1279 = vmul.f32 %v1266, %v1275
        %v1280 = vadd.f32 %v1240, %v1276
        %v1281 = vadd.f32 %v1241, %v1277
        %v1282 = vadd.f32 %v1242, %v1278
        %v1283 = vadd.f32 %v1243, %v1279
        %v1284 = vlaneseq
        %v1285 = vshrl.u32 %v1284, 7
        %v1286 = vsub.s32 0, %v1285
        %v1287 = vrot.slane %v1261, %v1286
        %v1288 = vmul.f32 %v1268, %v1287
        %v1289 = vmul.f32 %v1269, %v1287
        %v1290 = vmul.f32 %v1270, %v1287
        %v1291 = vmul.f32 %v1271, %v1287
        %v1292 = vsub.f32 %v1280, %v1288
        %v1293 = vsub.f32 %v1281, %v1289
        %v1294 = vsub.f32 %v1282, %v1290
        %v1295 = vsub.f32 %v1283, %v1291
        %v1296 = vmul.f32 %v1263, %v1287
        %v1297 = vmul.f32 %v1264, %v1287
        %v1298 = vmul.f32 %v1265, %v1287
        %v1299 = vmul.f32 %v1266, %v1287
        %v1300 = vadd.f32 %v1256, %v1296
        %v1301 = vadd.f32 %v1257, %v1297
        %v1302 = vadd.f32 %v1258, %v1298
        %v1303 = vadd.f32 %v1259, %v1299
        %v1304 = vmul.f32 %v1268, %v1275
        %v1305 = vmul.f32 %v1269, %v1275
        %v1306 = vmul.f32 %v1270, %v1275
        %v1307 = vmul.f32 %v1271, %v1275
        %v1308 = vadd.f32 %v1300, %v1304
        %v1309 = vadd.f32 %v1301, %v1305
        %v1310 = vadd.f32 %v1302, %v1306
        %v1311 = vadd.f32 %v1303, %v1307
        %v1312 = vld [vmem:[#allocation2 + $0x5] sm:$0x1]
        %v1313 = vld [vmem:[#allocation3 + $0x5] sm:$0x1]
        %s1314 = scalar_lea.vmem %s540, 160 [#allocation8]
        %v1315 = vld [vmem:[%s1314] sm:$0xff]
        %v1316 = vld [vmem:[%s1314 + $0x8] sm:$0xff]
        %v1317 = vld [vmem:[%s1314 + $0x10] sm:$0xff]
        %v1318 = vld [vmem:[%s1314 + $0x18] sm:$0xff]
        %s1319 = scalar_lea.vmem %s549, 160 [#allocation9]
        %v1320 = vld [vmem:[%s1319] sm:$0xff]
        %v1321 = vld [vmem:[%s1319 + $0x8] sm:$0xff]
        %v1322 = vld [vmem:[%s1319 + $0x10] sm:$0xff]
        %v1323 = vld [vmem:[%s1319 + $0x18] sm:$0xff]
        %v1324 = vlaneseq
        %v1325 = vshrl.u32 %v1324, 7
        %v1326 = vsub.s32 0, %v1325
        %v1327 = vrot.slane %v1312, %v1326
        %v1328 = vmul.f32 %v1315, %v1327
        %v1329 = vmul.f32 %v1316, %v1327
        %v1330 = vmul.f32 %v1317, %v1327
        %v1331 = vmul.f32 %v1318, %v1327
        %v1332 = vadd.f32 %v1292, %v1328
        %v1333 = vadd.f32 %v1293, %v1329
        %v1334 = vadd.f32 %v1294, %v1330
        %v1335 = vadd.f32 %v1295, %v1331
        %v1336 = vlaneseq
        %v1337 = vshrl.u32 %v1336, 7
        %v1338 = vsub.s32 0, %v1337
        %v1339 = vrot.slane %v1313, %v1338
        %v1340 = vmul.f32 %v1320, %v1339
        %v1341 = vmul.f32 %v1321, %v1339
        %v1342 = vmul.f32 %v1322, %v1339
        %v1343 = vmul.f32 %v1323, %v1339
        %v1344 = vsub.f32 %v1332, %v1340
        %v1345 = vsub.f32 %v1333, %v1341
        %v1346 = vsub.f32 %v1334, %v1342
        %v1347 = vsub.f32 %v1335, %v1343
        %v1348 = vmul.f32 %v1315, %v1339
        %v1349 = vmul.f32 %v1316, %v1339
        %v1350 = vmul.f32 %v1317, %v1339
        %v1351 = vmul.f32 %v1318, %v1339
        %v1352 = vadd.f32 %v1308, %v1348
        %v1353 = vadd.f32 %v1309, %v1349
        %v1354 = vadd.f32 %v1310, %v1350
        %v1355 = vadd.f32 %v1311, %v1351
        %v1356 = vmul.f32 %v1320, %v1327
        %v1357 = vmul.f32 %v1321, %v1327
        %v1358 = vmul.f32 %v1322, %v1327
        %v1359 = vmul.f32 %v1323, %v1327
        %v1360 = vadd.f32 %v1352, %v1356
        %v1361 = vadd.f32 %v1353, %v1357
        %v1362 = vadd.f32 %v1354, %v1358
        %v1363 = vadd.f32 %v1355, %v1359
        %v1364 = vld [vmem:[#allocation2 + $0x6] sm:$0x1]
        %v1365 = vld [vmem:[#allocation3 + $0x6] sm:$0x1]
        %s1366 = scalar_lea.vmem %s540, 192 [#allocation8]
        %v1367 = vld [vmem:[%s1366] sm:$0xff]
        %v1368 = vld [vmem:[%s1366 + $0x8] sm:$0xff]
        %v1369 = vld [vmem:[%s1366 + $0x10] sm:$0xff]
        %v1370 = vld [vmem:[%s1366 + $0x18] sm:$0xff]
        %s1371 = scalar_lea.vmem %s549, 192 [#allocation9]
        %v1372 = vld [vmem:[%s1371] sm:$0xff]
        %v1373 = vld [vmem:[%s1371 + $0x8] sm:$0xff]
        %v1374 = vld [vmem:[%s1371 + $0x10] sm:$0xff]
        %v1375 = vld [vmem:[%s1371 + $0x18] sm:$0xff]
        %v1376 = vlaneseq
        %v1377 = vshrl.u32 %v1376, 7
        %v1378 = vsub.s32 0, %v1377
        %v1379 = vrot.slane %v1364, %v1378
        %v1380 = vmul.f32 %v1367, %v1379
        %v1381 = vmul.f32 %v1368, %v1379
        %v1382 = vmul.f32 %v1369, %v1379
        %v1383 = vmul.f32 %v1370, %v1379
        %v1384 = vadd.f32 %v1344, %v1380
        %v1385 = vadd.f32 %v1345, %v1381
        %v1386 = vadd.f32 %v1346, %v1382
        %v1387 = vadd.f32 %v1347, %v1383
        %v1388 = vlaneseq
        %v1389 = vshrl.u32 %v1388, 7
        %v1390 = vsub.s32 0, %v1389
        %v1391 = vrot.slane %v1365, %v1390
        %v1392 = vmul.f32 %v1372, %v1391
        %v1393 = vmul.f32 %v1373, %v1391
        %v1394 = vmul.f32 %v1374, %v1391
        %v1395 = vmul.f32 %v1375, %v1391
        %v1396 = vsub.f32 %v1384, %v1392
        %v1397 = vsub.f32 %v1385, %v1393
        %v1398 = vsub.f32 %v1386, %v1394
        %v1399 = vsub.f32 %v1387, %v1395
        %v1400 = vmul.f32 %v1367, %v1391
        %v1401 = vmul.f32 %v1368, %v1391
        %v1402 = vmul.f32 %v1369, %v1391
        %v1403 = vmul.f32 %v1370, %v1391
        %v1404 = vadd.f32 %v1360, %v1400
        %v1405 = vadd.f32 %v1361, %v1401
        %v1406 = vadd.f32 %v1362, %v1402
        %v1407 = vadd.f32 %v1363, %v1403
        %v1408 = vmul.f32 %v1372, %v1379
        %v1409 = vmul.f32 %v1373, %v1379
        %v1410 = vmul.f32 %v1374, %v1379
        %v1411 = vmul.f32 %v1375, %v1379
        %v1412 = vadd.f32 %v1404, %v1408
        %v1413 = vadd.f32 %v1405, %v1409
        %v1414 = vadd.f32 %v1406, %v1410
        %v1415 = vadd.f32 %v1407, %v1411
        %v1416 = vld [vmem:[#allocation2 + $0x7] sm:$0x1]
        %v1417 = vld [vmem:[#allocation3 + $0x7] sm:$0x1]
        %s1418 = scalar_lea.vmem %s540, 224 [#allocation8]
        %v1419 = vld [vmem:[%s1418] sm:$0xff]
        %v1420 = vld [vmem:[%s1418 + $0x8] sm:$0xff]
        %v1421 = vld [vmem:[%s1418 + $0x10] sm:$0xff]
        %v1422 = vld [vmem:[%s1418 + $0x18] sm:$0xff]
        %s1423 = scalar_lea.vmem %s549, 224 [#allocation9]
        %v1424 = vld [vmem:[%s1423] sm:$0xff]
        %v1425 = vld [vmem:[%s1423 + $0x8] sm:$0xff]
        %v1426 = vld [vmem:[%s1423 + $0x10] sm:$0xff]
        %v1427 = vld [vmem:[%s1423 + $0x18] sm:$0xff]
        %v1428 = vlaneseq
        %v1429 = vshrl.u32 %v1428, 7
        %v1430 = vsub.s32 0, %v1429
        %v1431 = vrot.slane %v1416, %v1430
        %v1432 = vmul.f32 %v1419, %v1431
        %v1433 = vmul.f32 %v1420, %v1431
        %v1434 = vmul.f32 %v1421, %v1431
        %v1435 = vmul.f32 %v1422, %v1431
        %v1436 = vadd.f32 %v1396, %v1432
        %v1437 = vadd.f32 %v1397, %v1433
        %v1438 = vadd.f32 %v1398, %v1434
        %v1439 = vadd.f32 %v1399, %v1435
        %v1440 = vlaneseq
        %v1441 = vshrl.u32 %v1440, 7
        %v1442 = vsub.s32 0, %v1441
        %v1443 = vrot.slane %v1417, %v1442
        %v1444 = vmul.f32 %v1424, %v1443
        %v1445 = vmul.f32 %v1425, %v1443
        %v1446 = vmul.f32 %v1426, %v1443
        %v1447 = vmul.f32 %v1427, %v1443
        %v1448 = vsub.f32 %v1436, %v1444
        %v1449 = vsub.f32 %v1437, %v1445
        %v1450 = vsub.f32 %v1438, %v1446
        %v1451 = vsub.f32 %v1439, %v1447
        %v1452 = vmul.f32 %v1419, %v1443
        %v1453 = vmul.f32 %v1420, %v1443
        %v1454 = vmul.f32 %v1421, %v1443
        %v1455 = vmul.f32 %v1422, %v1443
        %v1456 = vadd.f32 %v1412, %v1452
        %v1457 = vadd.f32 %v1413, %v1453
        %v1458 = vadd.f32 %v1414, %v1454
        %v1459 = vadd.f32 %v1415, %v1455
        %v1460 = vmul.f32 %v1424, %v1431
        %v1461 = vmul.f32 %v1425, %v1431
        %v1462 = vmul.f32 %v1426, %v1431
        %v1463 = vmul.f32 %v1427, %v1431
        %v1464 = vadd.f32 %v1456, %v1460
        %v1465 = vadd.f32 %v1457, %v1461
        %v1466 = vadd.f32 %v1458, %v1462
        %v1467 = vadd.f32 %v1459, %v1463
        %v1468 = vld [vmem:[#allocation2 + $0x8] sm:$0x1]
        %v1469 = vld [vmem:[#allocation3 + $0x8] sm:$0x1]
        %s1470 = scalar_lea.vmem %s540, 256 [#allocation8]
        %v1471 = vld [vmem:[%s1470] sm:$0xff]
        %v1472 = vld [vmem:[%s1470 + $0x8] sm:$0xff]
        %v1473 = vld [vmem:[%s1470 + $0x10] sm:$0xff]
        %v1474 = vld [vmem:[%s1470 + $0x18] sm:$0xff]
        %s1475 = scalar_lea.vmem %s549, 256 [#allocation9]
        %v1476 = vld [vmem:[%s1475] sm:$0xff]
        %v1477 = vld [vmem:[%s1475 + $0x8] sm:$0xff]
        %v1478 = vld [vmem:[%s1475 + $0x10] sm:$0xff]
        %v1479 = vld [vmem:[%s1475 + $0x18] sm:$0xff]
        %v1480 = vlaneseq
        %v1481 = vshrl.u32 %v1480, 7
        %v1482 = vsub.s32 0, %v1481
        %v1483 = vrot.slane %v1468, %v1482
        %v1484 = vmul.f32 %v1471, %v1483
        %v1485 = vmul.f32 %v1472, %v1483
        %v1486 = vmul.f32 %v1473, %v1483
        %v1487 = vmul.f32 %v1474, %v1483
        %v1488 = vadd.f32 %v1448, %v1484
        %v1489 = vadd.f32 %v1449, %v1485
        %v1490 = vadd.f32 %v1450, %v1486
        %v1491 = vadd.f32 %v1451, %v1487
        %v1492 = vlaneseq
        %v1493 = vshrl.u32 %v1492, 7
        %v1494 = vsub.s32 0, %v1493
        %v1495 = vrot.slane %v1469, %v1494
        %v1496 = vmul.f32 %v1476, %v1495
        %v1497 = vmul.f32 %v1477, %v1495
        %v1498 = vmul.f32 %v1478, %v1495
        %v1499 = vmul.f32 %v1479, %v1495
        %v1500 = vsub.f32 %v1488, %v1496
        %v1501 = vsub.f32 %v1489, %v1497
        %v1502 = vsub.f32 %v1490, %v1498
        %v1503 = vsub.f32 %v1491, %v1499
        %v1504 = vmul.f32 %v1471, %v1495
        %v1505 = vmul.f32 %v1472, %v1495
        %v1506 = vmul.f32 %v1473, %v1495
        %v1507 = vmul.f32 %v1474, %v1495
        %v1508 = vadd.f32 %v1464, %v1504
        %v1509 = vadd.f32 %v1465, %v1505
        %v1510 = vadd.f32 %v1466, %v1506
        %v1511 = vadd.f32 %v1467, %v1507
        %v1512 = vmul.f32 %v1476, %v1483
        %v1513 = vmul.f32 %v1477, %v1483
        %v1514 = vmul.f32 %v1478, %v1483
        %v1515 = vmul.f32 %v1479, %v1483
        %v1516 = vadd.f32 %v1508, %v1512
        %v1517 = vadd.f32 %v1509, %v1513
        %v1518 = vadd.f32 %v1510, %v1514
        %v1519 = vadd.f32 %v1511, %v1515
        %v1520 = vld [vmem:[#allocation2 + $0x9] sm:$0x1]
        %v1521 = vld [vmem:[#allocation3 + $0x9] sm:$0x1]
        %s1522 = scalar_lea.vmem %s540, 288 [#allocation8]
        %v1523 = vld [vmem:[%s1522] sm:$0xff]
        %v1524 = vld [vmem:[%s1522 + $0x8] sm:$0xff]
        %v1525 = vld [vmem:[%s1522 + $0x10] sm:$0xff]
        %v1526 = vld [vmem:[%s1522 + $0x18] sm:$0xff]
        %s1527 = scalar_lea.vmem %s549, 288 [#allocation9]
        %v1528 = vld [vmem:[%s1527] sm:$0xff]
        %v1529 = vld [vmem:[%s1527 + $0x8] sm:$0xff]
        %v1530 = vld [vmem:[%s1527 + $0x10] sm:$0xff]
        %v1531 = vld [vmem:[%s1527 + $0x18] sm:$0xff]
        %v1532 = vlaneseq
        %v1533 = vshrl.u32 %v1532, 7
        %v1534 = vsub.s32 0, %v1533
        %v1535 = vrot.slane %v1520, %v1534
        %v1536 = vmul.f32 %v1523, %v1535
        %v1537 = vmul.f32 %v1524, %v1535
        %v1538 = vmul.f32 %v1525, %v1535
        %v1539 = vmul.f32 %v1526, %v1535
        %v1540 = vadd.f32 %v1500, %v1536
        %v1541 = vadd.f32 %v1501, %v1537
        %v1542 = vadd.f32 %v1502, %v1538
        %v1543 = vadd.f32 %v1503, %v1539
        %v1544 = vlaneseq
        %v1545 = vshrl.u32 %v1544, 7
        %v1546 = vsub.s32 0, %v1545
        %v1547 = vrot.slane %v1521, %v1546
        %v1548 = vmul.f32 %v1528, %v1547
        %v1549 = vmul.f32 %v1529, %v1547
        %v1550 = vmul.f32 %v1530, %v1547
        %v1551 = vmul.f32 %v1531, %v1547
        %v1552 = vsub.f32 %v1540, %v1548
        %v1553 = vsub.f32 %v1541, %v1549
        %v1554 = vsub.f32 %v1542, %v1550
        %v1555 = vsub.f32 %v1543, %v1551
        %v1556 = vmul.f32 %v1523, %v1547
        %v1557 = vmul.f32 %v1524, %v1547
        %v1558 = vmul.f32 %v1525, %v1547
        %v1559 = vmul.f32 %v1526, %v1547
        %v1560 = vadd.f32 %v1516, %v1556
        %v1561 = vadd.f32 %v1517, %v1557
        %v1562 = vadd.f32 %v1518, %v1558
        %v1563 = vadd.f32 %v1519, %v1559
        %v1564 = vmul.f32 %v1528, %v1535
        %v1565 = vmul.f32 %v1529, %v1535
        %v1566 = vmul.f32 %v1530, %v1535
        %v1567 = vmul.f32 %v1531, %v1535
        %v1568 = vadd.f32 %v1560, %v1564
        %v1569 = vadd.f32 %v1561, %v1565
        %v1570 = vadd.f32 %v1562, %v1566
        %v1571 = vadd.f32 %v1563, %v1567
        %v1572 = vld [vmem:[#allocation2 + $0xa] sm:$0x1]
        %v1573 = vld [vmem:[#allocation3 + $0xa] sm:$0x1]
        %s1574 = scalar_lea.vmem %s540, 320 [#allocation8]
        %v1575 = vld [vmem:[%s1574] sm:$0xff]
        %v1576 = vld [vmem:[%s1574 + $0x8] sm:$0xff]
        %v1577 = vld [vmem:[%s1574 + $0x10] sm:$0xff]
        %v1578 = vld [vmem:[%s1574 + $0x18] sm:$0xff]
        %s1579 = scalar_lea.vmem %s549, 320 [#allocation9]
        %v1580 = vld [vmem:[%s1579] sm:$0xff]
        %v1581 = vld [vmem:[%s1579 + $0x8] sm:$0xff]
        %v1582 = vld [vmem:[%s1579 + $0x10] sm:$0xff]
        %v1583 = vld [vmem:[%s1579 + $0x18] sm:$0xff]
        %v1584 = vlaneseq
        %v1585 = vshrl.u32 %v1584, 7
        %v1586 = vsub.s32 0, %v1585
        %v1587 = vrot.slane %v1572, %v1586
        %v1588 = vmul.f32 %v1575, %v1587
        %v1589 = vmul.f32 %v1576, %v1587
        %v1590 = vmul.f32 %v1577, %v1587
        %v1591 = vmul.f32 %v1578, %v1587
        %v1592 = vadd.f32 %v1552, %v1588
        %v1593 = vadd.f32 %v1553, %v1589
        %v1594 = vadd.f32 %v1554, %v1590
        %v1595 = vadd.f32 %v1555, %v1591
        %v1596 = vlaneseq
        %v1597 = vshrl.u32 %v1596, 7
        %v1598 = vsub.s32 0, %v1597
        %v1599 = vrot.slane %v1573, %v1598
        %v1600 = vmul.f32 %v1580, %v1599
        %v1601 = vmul.f32 %v1581, %v1599
        %v1602 = vmul.f32 %v1582, %v1599
        %v1603 = vmul.f32 %v1583, %v1599
        %v1604 = vsub.f32 %v1592, %v1600
        %v1605 = vsub.f32 %v1593, %v1601
        %v1606 = vsub.f32 %v1594, %v1602
        %v1607 = vsub.f32 %v1595, %v1603
        %v1608 = vmul.f32 %v1575, %v1599
        %v1609 = vmul.f32 %v1576, %v1599
        %v1610 = vmul.f32 %v1577, %v1599
        %v1611 = vmul.f32 %v1578, %v1599
        %v1612 = vadd.f32 %v1568, %v1608
        %v1613 = vadd.f32 %v1569, %v1609
        %v1614 = vadd.f32 %v1570, %v1610
        %v1615 = vadd.f32 %v1571, %v1611
        %v1616 = vmul.f32 %v1580, %v1587
        %v1617 = vmul.f32 %v1581, %v1587
        %v1618 = vmul.f32 %v1582, %v1587
        %v1619 = vmul.f32 %v1583, %v1587
        %v1620 = vadd.f32 %v1612, %v1616
        %v1621 = vadd.f32 %v1613, %v1617
        %v1622 = vadd.f32 %v1614, %v1618
        %v1623 = vadd.f32 %v1615, %v1619
        %v1624 = vld [vmem:[#allocation2 + $0xb] sm:$0x1]
        %v1625 = vld [vmem:[#allocation3 + $0xb] sm:$0x1]
        %s1626 = scalar_lea.vmem %s540, 352 [#allocation8]
        %v1627 = vld [vmem:[%s1626] sm:$0xff]
        %v1628 = vld [vmem:[%s1626 + $0x8] sm:$0xff]
        %v1629 = vld [vmem:[%s1626 + $0x10] sm:$0xff]
        %v1630 = vld [vmem:[%s1626 + $0x18] sm:$0xff]
        %s1631 = scalar_lea.vmem %s549, 352 [#allocation9]
        %v1632 = vld [vmem:[%s1631] sm:$0xff]
        %v1633 = vld [vmem:[%s1631 + $0x8] sm:$0xff]
        %v1634 = vld [vmem:[%s1631 + $0x10] sm:$0xff]
        %v1635 = vld [vmem:[%s1631 + $0x18] sm:$0xff]
        %v1636 = vlaneseq
        %v1637 = vshrl.u32 %v1636, 7
        %v1638 = vsub.s32 0, %v1637
        %v1639 = vrot.slane %v1624, %v1638
        %v1640 = vmul.f32 %v1627, %v1639
        %v1641 = vmul.f32 %v1628, %v1639
        %v1642 = vmul.f32 %v1629, %v1639
        %v1643 = vmul.f32 %v1630, %v1639
        %v1644 = vadd.f32 %v1604, %v1640
        %v1645 = vadd.f32 %v1605, %v1641
        %v1646 = vadd.f32 %v1606, %v1642
        %v1647 = vadd.f32 %v1607, %v1643
        %v1648 = vlaneseq
        %v1649 = vshrl.u32 %v1648, 7
        %v1650 = vsub.s32 0, %v1649
        %v1651 = vrot.slane %v1625, %v1650
        %v1652 = vmul.f32 %v1632, %v1651
        %v1653 = vmul.f32 %v1633, %v1651
        %v1654 = vmul.f32 %v1634, %v1651
        %v1655 = vmul.f32 %v1635, %v1651
        %v1656 = vsub.f32 %v1644, %v1652
        %v1657 = vsub.f32 %v1645, %v1653
        %v1658 = vsub.f32 %v1646, %v1654
        %v1659 = vsub.f32 %v1647, %v1655
        %v1660 = vmul.f32 %v1627, %v1651
        %v1661 = vmul.f32 %v1628, %v1651
        %v1662 = vmul.f32 %v1629, %v1651
        %v1663 = vmul.f32 %v1630, %v1651
        %v1664 = vadd.f32 %v1620, %v1660
        %v1665 = vadd.f32 %v1621, %v1661
        %v1666 = vadd.f32 %v1622, %v1662
        %v1667 = vadd.f32 %v1623, %v1663
        %v1668 = vmul.f32 %v1632, %v1639
        %v1669 = vmul.f32 %v1633, %v1639
        %v1670 = vmul.f32 %v1634, %v1639
        %v1671 = vmul.f32 %v1635, %v1639
        %v1672 = vadd.f32 %v1664, %v1668
        %v1673 = vadd.f32 %v1665, %v1669
        %v1674 = vadd.f32 %v1666, %v1670
        %v1675 = vadd.f32 %v1667, %v1671
        %v1676 = vld [vmem:[#allocation2 + $0xc] sm:$0x1]
        %v1677 = vld [vmem:[#allocation3 + $0xc] sm:$0x1]
        %s1678 = scalar_lea.vmem %s540, 384 [#allocation8]
        %v1679 = vld [vmem:[%s1678] sm:$0xff]
        %v1680 = vld [vmem:[%s1678 + $0x8] sm:$0xff]
        %v1681 = vld [vmem:[%s1678 + $0x10] sm:$0xff]
        %v1682 = vld [vmem:[%s1678 + $0x18] sm:$0xff]
        %s1683 = scalar_lea.vmem %s549, 384 [#allocation9]
        %v1684 = vld [vmem:[%s1683] sm:$0xff]
        %v1685 = vld [vmem:[%s1683 + $0x8] sm:$0xff]
        %v1686 = vld [vmem:[%s1683 + $0x10] sm:$0xff]
        %v1687 = vld [vmem:[%s1683 + $0x18] sm:$0xff]
        %v1688 = vlaneseq
        %v1689 = vshrl.u32 %v1688, 7
        %v1690 = vsub.s32 0, %v1689
        %v1691 = vrot.slane %v1676, %v1690
        %v1692 = vmul.f32 %v1679, %v1691
        %v1693 = vmul.f32 %v1680, %v1691
        %v1694 = vmul.f32 %v1681, %v1691
        %v1695 = vmul.f32 %v1682, %v1691
        %v1696 = vadd.f32 %v1656, %v1692
        %v1697 = vadd.f32 %v1657, %v1693
        %v1698 = vadd.f32 %v1658, %v1694
        %v1699 = vadd.f32 %v1659, %v1695
        %v1700 = vlaneseq
        %v1701 = vshrl.u32 %v1700, 7
        %v1702 = vsub.s32 0, %v1701
        %v1703 = vrot.slane %v1677, %v1702
        %v1704 = vmul.f32 %v1684, %v1703
        %v1705 = vmul.f32 %v1685, %v1703
        %v1706 = vmul.f32 %v1686, %v1703
        %v1707 = vmul.f32 %v1687, %v1703
        %v1708 = vsub.f32 %v1696, %v1704
        %v1709 = vsub.f32 %v1697, %v1705
        %v1710 = vsub.f32 %v1698, %v1706
        %v1711 = vsub.f32 %v1699, %v1707
        %v1712 = vmul.f32 %v1679, %v1703
        %v1713 = vmul.f32 %v1680, %v1703
        %v1714 = vmul.f32 %v1681, %v1703
        %v1715 = vmul.f32 %v1682, %v1703
        %v1716 = vadd.f32 %v1672, %v1712
        %v1717 = vadd.f32 %v1673, %v1713
        %v1718 = vadd.f32 %v1674, %v1714
        %v1719 = vadd.f32 %v1675, %v1715
        %v1720 = vmul.f32 %v1684, %v1691
        %v1721 = vmul.f32 %v1685, %v1691
        %v1722 = vmul.f32 %v1686, %v1691
        %v1723 = vmul.f32 %v1687, %v1691
        %v1724 = vadd.f32 %v1716, %v1720
        %v1725 = vadd.f32 %v1717, %v1721
        %v1726 = vadd.f32 %v1718, %v1722
        %v1727 = vadd.f32 %v1719, %v1723
        %v1728 = vld [vmem:[#allocation2 + $0xd] sm:$0x1]
        %v1729 = vld [vmem:[#allocation3 + $0xd] sm:$0x1]
        %s1730 = scalar_lea.vmem %s540, 416 [#allocation8]
        %v1731 = vld [vmem:[%s1730] sm:$0xff]
        %v1732 = vld [vmem:[%s1730 + $0x8] sm:$0xff]
        %v1733 = vld [vmem:[%s1730 + $0x10] sm:$0xff]
        %v1734 = vld [vmem:[%s1730 + $0x18] sm:$0xff]
        %s1735 = scalar_lea.vmem %s549, 416 [#allocation9]
        %v1736 = vld [vmem:[%s1735] sm:$0xff]
        %v1737 = vld [vmem:[%s1735 + $0x8] sm:$0xff]
        %v1738 = vld [vmem:[%s1735 + $0x10] sm:$0xff]
        %v1739 = vld [vmem:[%s1735 + $0x18] sm:$0xff]
        %v1740 = vlaneseq
        %v1741 = vshrl.u32 %v1740, 7
        %v1742 = vsub.s32 0, %v1741
        %v1743 = vrot.slane %v1728, %v1742
        %v1744 = vmul.f32 %v1731, %v1743
        %v1745 = vmul.f32 %v1732, %v1743
        %v1746 = vmul.f32 %v1733, %v1743
        %v1747 = vmul.f32 %v1734, %v1743
        %v1748 = vadd.f32 %v1708, %v1744
        %v1749 = vadd.f32 %v1709, %v1745
        %v1750 = vadd.f32 %v1710, %v1746
        %v1751 = vadd.f32 %v1711, %v1747
        %v1752 = vlaneseq
        %v1753 = vshrl.u32 %v1752, 7
        %v1754 = vsub.s32 0, %v1753
        %v1755 = vrot.slane %v1729, %v1754
        %v1756 = vmul.f32 %v1736, %v1755
        %v1757 = vmul.f32 %v1737, %v1755
        %v1758 = vmul.f32 %v1738, %v1755
        %v1759 = vmul.f32 %v1739, %v1755
        %v1760 = vsub.f32 %v1748, %v1756
        %v1761 = vsub.f32 %v1749, %v1757
        %v1762 = vsub.f32 %v1750, %v1758
        %v1763 = vsub.f32 %v1751, %v1759
        %v1764 = vmul.f32 %v1731, %v1755
        %v1765 = vmul.f32 %v1732, %v1755
        %v1766 = vmul.f32 %v1733, %v1755
        %v1767 = vmul.f32 %v1734, %v1755
        %v1768 = vadd.f32 %v1724, %v1764
        %v1769 = vadd.f32 %v1725, %v1765
        %v1770 = vadd.f32 %v1726, %v1766
        %v1771 = vadd.f32 %v1727, %v1767
        %v1772 = vmul.f32 %v1736, %v1743
        %v1773 = vmul.f32 %v1737, %v1743
        %v1774 = vmul.f32 %v1738, %v1743
        %v1775 = vmul.f32 %v1739, %v1743
        %v1776 = vadd.f32 %v1768, %v1772
        %v1777 = vadd.f32 %v1769, %v1773
        %v1778 = vadd.f32 %v1770, %v1774
        %v1779 = vadd.f32 %v1771, %v1775
        %v1780 = vld [vmem:[#allocation2 + $0xe] sm:$0x1]
        %v1781 = vld [vmem:[#allocation3 + $0xe] sm:$0x1]
        %s1782 = scalar_lea.vmem %s540, 448 [#allocation8]
        %v1783 = vld [vmem:[%s1782] sm:$0xff]
        %v1784 = vld [vmem:[%s1782 + $0x8] sm:$0xff]
        %v1785 = vld [vmem:[%s1782 + $0x10] sm:$0xff]
        %v1786 = vld [vmem:[%s1782 + $0x18] sm:$0xff]
        %s1787 = scalar_lea.vmem %s549, 448 [#allocation9]
        %v1788 = vld [vmem:[%s1787] sm:$0xff]
        %v1789 = vld [vmem:[%s1787 + $0x8] sm:$0xff]
        %v1790 = vld [vmem:[%s1787 + $0x10] sm:$0xff]
        %v1791 = vld [vmem:[%s1787 + $0x18] sm:$0xff]
        %v1792 = vlaneseq
        %v1793 = vshrl.u32 %v1792, 7
        %v1794 = vsub.s32 0, %v1793
        %v1795 = vrot.slane %v1780, %v1794
        %v1796 = vmul.f32 %v1783, %v1795
        %v1797 = vmul.f32 %v1784, %v1795
        %v1798 = vmul.f32 %v1785, %v1795
        %v1799 = vmul.f32 %v1786, %v1795
        %v1800 = vadd.f32 %v1760, %v1796
        %v1801 = vadd.f32 %v1761, %v1797
        %v1802 = vadd.f32 %v1762, %v1798
        %v1803 = vadd.f32 %v1763, %v1799
        %v1804 = vlaneseq
        %v1805 = vshrl.u32 %v1804, 7
        %v1806 = vsub.s32 0, %v1805
        %v1807 = vrot.slane %v1781, %v1806
        %v1808 = vmul.f32 %v1788, %v1807
        %v1809 = vmul.f32 %v1789, %v1807
        %v1810 = vmul.f32 %v1790, %v1807
        %v1811 = vmul.f32 %v1791, %v1807
        %v1812 = vsub.f32 %v1800, %v1808
        %v1813 = vsub.f32 %v1801, %v1809
        %v1814 = vsub.f32 %v1802, %v1810
        %v1815 = vsub.f32 %v1803, %v1811
        %v1816 = vmul.f32 %v1783, %v1807
        %v1817 = vmul.f32 %v1784, %v1807
        %v1818 = vmul.f32 %v1785, %v1807
        %v1819 = vmul.f32 %v1786, %v1807
        %v1820 = vadd.f32 %v1776, %v1816
        %v1821 = vadd.f32 %v1777, %v1817
        %v1822 = vadd.f32 %v1778, %v1818
        %v1823 = vadd.f32 %v1779, %v1819
        %v1824 = vmul.f32 %v1788, %v1795
        %v1825 = vmul.f32 %v1789, %v1795
        %v1826 = vmul.f32 %v1790, %v1795
        %v1827 = vmul.f32 %v1791, %v1795
        %v1828 = vadd.f32 %v1820, %v1824
        %v1829 = vadd.f32 %v1821, %v1825
        %v1830 = vadd.f32 %v1822, %v1826
        %v1831 = vadd.f32 %v1823, %v1827
        %v1832 = vld [vmem:[#allocation2 + $0xf] sm:$0x1]
        %v1833 = vld [vmem:[#allocation3 + $0xf] sm:$0x1]
        %s1834 = scalar_lea.vmem %s540, 480 [#allocation8]
        %v1835 = vld [vmem:[%s1834] sm:$0xff]
        %v1836 = vld [vmem:[%s1834 + $0x8] sm:$0xff]
        %v1837 = vld [vmem:[%s1834 + $0x10] sm:$0xff]
        %v1838 = vld [vmem:[%s1834 + $0x18] sm:$0xff]
        %s1839 = scalar_lea.vmem %s549, 480 [#allocation9]
        %v1840 = vld [vmem:[%s1839] sm:$0xff]
        %v1841 = vld [vmem:[%s1839 + $0x8] sm:$0xff]
        %v1842 = vld [vmem:[%s1839 + $0x10] sm:$0xff]
        %v1843 = vld [vmem:[%s1839 + $0x18] sm:$0xff]
        %v1844 = vlaneseq
        %v1845 = vshrl.u32 %v1844, 7
        %v1846 = vsub.s32 0, %v1845
        %v1847 = vrot.slane %v1832, %v1846
        %v1848 = vmul.f32 %v1835, %v1847
        %v1849 = vmul.f32 %v1836, %v1847
        %v1850 = vmul.f32 %v1837, %v1847
        %v1851 = vmul.f32 %v1838, %v1847
        %v1852 = vadd.f32 %v1812, %v1848
        %v1853 = vadd.f32 %v1813, %v1849
        %v1854 = vadd.f32 %v1814, %v1850
        %v1855 = vadd.f32 %v1815, %v1851
        %v1856 = vlaneseq
        %v1857 = vshrl.u32 %v1856, 7
        %v1858 = vsub.s32 0, %v1857
        %v1859 = vrot.slane %v1833, %v1858
        %v1860 = vmul.f32 %v1840, %v1859
        %v1861 = vmul.f32 %v1841, %v1859
        %v1862 = vmul.f32 %v1842, %v1859
        %v1863 = vmul.f32 %v1843, %v1859
        %v1864 = vsub.f32 %v1852, %v1860
        %v1865 = vsub.f32 %v1853, %v1861
        %v1866 = vsub.f32 %v1854, %v1862
        %v1867 = vsub.f32 %v1855, %v1863
        %v1868 = vmul.f32 %v1835, %v1859
        %v1869 = vmul.f32 %v1836, %v1859
        %v1870 = vmul.f32 %v1837, %v1859
        %v1871 = vmul.f32 %v1838, %v1859
        %v1872 = vadd.f32 %v1828, %v1868
        %v1873 = vadd.f32 %v1829, %v1869
        %v1874 = vadd.f32 %v1830, %v1870
        %v1875 = vadd.f32 %v1831, %v1871
        %v1876 = vmul.f32 %v1840, %v1847
        %v1877 = vmul.f32 %v1841, %v1847
        %v1878 = vmul.f32 %v1842, %v1847
        %v1879 = vmul.f32 %v1843, %v1847
        %v1880 = vadd.f32 %v1872, %v1876
        %v1881 = vadd.f32 %v1873, %v1877
        %v1882 = vadd.f32 %v1874, %v1878
        %v1883 = vadd.f32 %v1875, %v1879
        %v1884 = vld [vmem:[#allocation2 + $0x10] sm:$0x1]
        %v1885 = vld [vmem:[#allocation3 + $0x10] sm:$0x1]
        %s1886 = scalar_lea.vmem %s540, 512 [#allocation8]
        %v1887 = vld [vmem:[%s1886] sm:$0xff]
        %v1888 = vld [vmem:[%s1886 + $0x8] sm:$0xff]
        %v1889 = vld [vmem:[%s1886 + $0x10] sm:$0xff]
        %v1890 = vld [vmem:[%s1886 + $0x18] sm:$0xff]
        %s1891 = scalar_lea.vmem %s549, 512 [#allocation9]
        %v1892 = vld [vmem:[%s1891] sm:$0xff]
        %v1893 = vld [vmem:[%s1891 + $0x8] sm:$0xff]
        %v1894 = vld [vmem:[%s1891 + $0x10] sm:$0xff]
        %v1895 = vld [vmem:[%s1891 + $0x18] sm:$0xff]
        %v1896 = vlaneseq
        %v1897 = vshrl.u32 %v1896, 7
        %v1898 = vsub.s32 0, %v1897
        %v1899 = vrot.slane %v1884, %v1898
        %v1900 = vmul.f32 %v1887, %v1899
        %v1901 = vmul.f32 %v1888, %v1899
        %v1902 = vmul.f32 %v1889, %v1899
        %v1903 = vmul.f32 %v1890, %v1899
        %v1904 = vadd.f32 %v1864, %v1900
        %v1905 = vadd.f32 %v1865, %v1901
        %v1906 = vadd.f32 %v1866, %v1902
        %v1907 = vadd.f32 %v1867, %v1903
        %v1908 = vlaneseq
        %v1909 = vshrl.u32 %v1908, 7
        %v1910 = vsub.s32 0, %v1909
        %v1911 = vrot.slane %v1885, %v1910
        %v1912 = vmul.f32 %v1892, %v1911
        %v1913 = vmul.f32 %v1893, %v1911
        %v1914 = vmul.f32 %v1894, %v1911
        %v1915 = vmul.f32 %v1895, %v1911
        %v1916 = vsub.f32 %v1904, %v1912
        %v1917 = vsub.f32 %v1905, %v1913
        %v1918 = vsub.f32 %v1906, %v1914
        %v1919 = vsub.f32 %v1907, %v1915
        %v1920 = vmul.f32 %v1887, %v1911
        %v1921 = vmul.f32 %v1888, %v1911
        %v1922 = vmul.f32 %v1889, %v1911
        %v1923 = vmul.f32 %v1890, %v1911
        %v1924 = vadd.f32 %v1880, %v1920
        %v1925 = vadd.f32 %v1881, %v1921
        %v1926 = vadd.f32 %v1882, %v1922
        %v1927 = vadd.f32 %v1883, %v1923
        %v1928 = vmul.f32 %v1892, %v1899
        %v1929 = vmul.f32 %v1893, %v1899
        %v1930 = vmul.f32 %v1894, %v1899
        %v1931 = vmul.f32 %v1895, %v1899
        %v1932 = vadd.f32 %v1924, %v1928
        %v1933 = vadd.f32 %v1925, %v1929
        %v1934 = vadd.f32 %v1926, %v1930
        %v1935 = vadd.f32 %v1927, %v1931
        %v1936 = vld [vmem:[#allocation2 + $0x11] sm:$0x1]
        %v1937 = vld [vmem:[#allocation3 + $0x11] sm:$0x1]
        %s1938 = scalar_lea.vmem %s540, 544 [#allocation8]
        %v1939 = vld [vmem:[%s1938] sm:$0xff]
        %v1940 = vld [vmem:[%s1938 + $0x8] sm:$0xff]
        %v1941 = vld [vmem:[%s1938 + $0x10] sm:$0xff]
        %v1942 = vld [vmem:[%s1938 + $0x18] sm:$0xff]
        %s1943 = scalar_lea.vmem %s549, 544 [#allocation9]
        %v1944 = vld [vmem:[%s1943] sm:$0xff]
        %v1945 = vld [vmem:[%s1943 + $0x8] sm:$0xff]
        %v1946 = vld [vmem:[%s1943 + $0x10] sm:$0xff]
        %v1947 = vld [vmem:[%s1943 + $0x18] sm:$0xff]
        %v1948 = vlaneseq
        %v1949 = vshrl.u32 %v1948, 7
        %v1950 = vsub.s32 0, %v1949
        %v1951 = vrot.slane %v1936, %v1950
        %v1952 = vmul.f32 %v1939, %v1951
        %v1953 = vmul.f32 %v1940, %v1951
        %v1954 = vmul.f32 %v1941, %v1951
        %v1955 = vmul.f32 %v1942, %v1951
        %v1956 = vadd.f32 %v1916, %v1952
        %v1957 = vadd.f32 %v1917, %v1953
        %v1958 = vadd.f32 %v1918, %v1954
        %v1959 = vadd.f32 %v1919, %v1955
        %v1960 = vlaneseq
        %v1961 = vshrl.u32 %v1960, 7
        %v1962 = vsub.s32 0, %v1961
        %v1963 = vrot.slane %v1937, %v1962
        %v1964 = vmul.f32 %v1944, %v1963
        %v1965 = vmul.f32 %v1945, %v1963
        %v1966 = vmul.f32 %v1946, %v1963
        %v1967 = vmul.f32 %v1947, %v1963
        %v1968 = vsub.f32 %v1956, %v1964
        %v1969 = vsub.f32 %v1957, %v1965
        %v1970 = vsub.f32 %v1958, %v1966
        %v1971 = vsub.f32 %v1959, %v1967
        %v1972 = vmul.f32 %v1939, %v1963
        %v1973 = vmul.f32 %v1940, %v1963
        %v1974 = vmul.f32 %v1941, %v1963
        %v1975 = vmul.f32 %v1942, %v1963
        %v1976 = vadd.f32 %v1932, %v1972
        %v1977 = vadd.f32 %v1933, %v1973
        %v1978 = vadd.f32 %v1934, %v1974
        %v1979 = vadd.f32 %v1935, %v1975
        %v1980 = vmul.f32 %v1944, %v1951
        %v1981 = vmul.f32 %v1945, %v1951
        %v1982 = vmul.f32 %v1946, %v1951
        %v1983 = vmul.f32 %v1947, %v1951
        %v1984 = vadd.f32 %v1976, %v1980
        %v1985 = vadd.f32 %v1977, %v1981
        %v1986 = vadd.f32 %v1978, %v1982
        %v1987 = vadd.f32 %v1979, %v1983
        %v1988 = vld [vmem:[#allocation2 + $0x12] sm:$0x1]
        %v1989 = vld [vmem:[#allocation3 + $0x12] sm:$0x1]
        %s1990 = scalar_lea.vmem %s540, 576 [#allocation8]
        %v1991 = vld [vmem:[%s1990] sm:$0xff]
        %v1992 = vld [vmem:[%s1990 + $0x8] sm:$0xff]
        %v1993 = vld [vmem:[%s1990 + $0x10] sm:$0xff]
        %v1994 = vld [vmem:[%s1990 + $0x18] sm:$0xff]
        %s1995 = scalar_lea.vmem %s549, 576 [#allocation9]
        %v1996 = vld [vmem:[%s1995] sm:$0xff]
        %v1997 = vld [vmem:[%s1995 + $0x8] sm:$0xff]
        %v1998 = vld [vmem:[%s1995 + $0x10] sm:$0xff]
        %v1999 = vld [vmem:[%s1995 + $0x18] sm:$0xff]
        %v2000 = vlaneseq
        %v2001 = vshrl.u32 %v2000, 7
        %v2002 = vsub.s32 0, %v2001
        %v2003 = vrot.slane %v1988, %v2002
        %v2004 = vmul.f32 %v1991, %v2003
        %v2005 = vmul.f32 %v1992, %v2003
        %v2006 = vmul.f32 %v1993, %v2003
        %v2007 = vmul.f32 %v1994, %v2003
        %v2008 = vadd.f32 %v1968, %v2004
        %v2009 = vadd.f32 %v1969, %v2005
        %v2010 = vadd.f32 %v1970, %v2006
        %v2011 = vadd.f32 %v1971, %v2007
        %v2012 = vlaneseq
        %v2013 = vshrl.u32 %v2012, 7
        %v2014 = vsub.s32 0, %v2013
        %v2015 = vrot.slane %v1989, %v2014
        %v2016 = vmul.f32 %v1996, %v2015
        %v2017 = vmul.f32 %v1997, %v2015
        %v2018 = vmul.f32 %v1998, %v2015
        %v2019 = vmul.f32 %v1999, %v2015
        %v2020 = vsub.f32 %v2008, %v2016
        %v2021 = vsub.f32 %v2009, %v2017
        %v2022 = vsub.f32 %v2010, %v2018
        %v2023 = vsub.f32 %v2011, %v2019
        %v2024 = vmul.f32 %v1991, %v2015
        %v2025 = vmul.f32 %v1992, %v2015
        %v2026 = vmul.f32 %v1993, %v2015
        %v2027 = vmul.f32 %v1994, %v2015
        %v2028 = vadd.f32 %v1984, %v2024
        %v2029 = vadd.f32 %v1985, %v2025
        %v2030 = vadd.f32 %v1986, %v2026
        %v2031 = vadd.f32 %v1987, %v2027
        %v2032 = vmul.f32 %v1996, %v2003
        %v2033 = vmul.f32 %v1997, %v2003
        %v2034 = vmul.f32 %v1998, %v2003
        %v2035 = vmul.f32 %v1999, %v2003
        %v2036 = vadd.f32 %v2028, %v2032
        %v2037 = vadd.f32 %v2029, %v2033
        %v2038 = vadd.f32 %v2030, %v2034
        %v2039 = vadd.f32 %v2031, %v2035
        %v2040 = vld [vmem:[#allocation2 + $0x13] sm:$0x1]
        %v2041 = vld [vmem:[#allocation3 + $0x13] sm:$0x1]
        %s2042 = scalar_lea.vmem %s540, 608 [#allocation8]
        %v2043 = vld [vmem:[%s2042] sm:$0xff]
        %v2044 = vld [vmem:[%s2042 + $0x8] sm:$0xff]
        %v2045 = vld [vmem:[%s2042 + $0x10] sm:$0xff]
        %v2046 = vld [vmem:[%s2042 + $0x18] sm:$0xff]
        %s2047 = scalar_lea.vmem %s549, 608 [#allocation9]
        %v2048 = vld [vmem:[%s2047] sm:$0xff]
        %v2049 = vld [vmem:[%s2047 + $0x8] sm:$0xff]
        %v2050 = vld [vmem:[%s2047 + $0x10] sm:$0xff]
        %v2051 = vld [vmem:[%s2047 + $0x18] sm:$0xff]
        %v2052 = vlaneseq
        %v2053 = vshrl.u32 %v2052, 7
        %v2054 = vsub.s32 0, %v2053
        %v2055 = vrot.slane %v2040, %v2054
        %v2056 = vmul.f32 %v2043, %v2055
        %v2057 = vmul.f32 %v2044, %v2055
        %v2058 = vmul.f32 %v2045, %v2055
        %v2059 = vmul.f32 %v2046, %v2055
        %v2060 = vadd.f32 %v2020, %v2056
        %v2061 = vadd.f32 %v2021, %v2057
        %v2062 = vadd.f32 %v2022, %v2058
        %v2063 = vadd.f32 %v2023, %v2059
        %v2064 = vlaneseq
        %v2065 = vshrl.u32 %v2064, 7
        %v2066 = vsub.s32 0, %v2065
        %v2067 = vrot.slane %v2041, %v2066
        %v2068 = vmul.f32 %v2048, %v2067
        %v2069 = vmul.f32 %v2049, %v2067
        %v2070 = vmul.f32 %v2050, %v2067
        %v2071 = vmul.f32 %v2051, %v2067
        %v2072 = vsub.f32 %v2060, %v2068
        %v2073 = vsub.f32 %v2061, %v2069
        %v2074 = vsub.f32 %v2062, %v2070
        %v2075 = vsub.f32 %v2063, %v2071
        %v2076 = vmul.f32 %v2043, %v2067
        %v2077 = vmul.f32 %v2044, %v2067
        %v2078 = vmul.f32 %v2045, %v2067
        %v2079 = vmul.f32 %v2046, %v2067
        %v2080 = vadd.f32 %v2036, %v2076
        %v2081 = vadd.f32 %v2037, %v2077
        %v2082 = vadd.f32 %v2038, %v2078
        %v2083 = vadd.f32 %v2039, %v2079
        %v2084 = vmul.f32 %v2048, %v2055
        %v2085 = vmul.f32 %v2049, %v2055
        %v2086 = vmul.f32 %v2050, %v2055
        %v2087 = vmul.f32 %v2051, %v2055
        %v2088 = vadd.f32 %v2080, %v2084
        %v2089 = vadd.f32 %v2081, %v2085
        %v2090 = vadd.f32 %v2082, %v2086
        %v2091 = vadd.f32 %v2083, %v2087
        %v2092 = vld [vmem:[#allocation2 + $0x14] sm:$0x1]
        %v2093 = vld [vmem:[#allocation3 + $0x14] sm:$0x1]
        %s2094 = scalar_lea.vmem %s540, 640 [#allocation8]
        %v2095 = vld [vmem:[%s2094] sm:$0xff]
        %v2096 = vld [vmem:[%s2094 + $0x8] sm:$0xff]
        %v2097 = vld [vmem:[%s2094 + $0x10] sm:$0xff]
        %v2098 = vld [vmem:[%s2094 + $0x18] sm:$0xff]
        %s2099 = scalar_lea.vmem %s549, 640 [#allocation9]
        %v2100 = vld [vmem:[%s2099] sm:$0xff]
        %v2101 = vld [vmem:[%s2099 + $0x8] sm:$0xff]
        %v2102 = vld [vmem:[%s2099 + $0x10] sm:$0xff]
        %v2103 = vld [vmem:[%s2099 + $0x18] sm:$0xff]
        %v2104 = vlaneseq
        %v2105 = vshrl.u32 %v2104, 7
        %v2106 = vsub.s32 0, %v2105
        %v2107 = vrot.slane %v2092, %v2106
        %v2108 = vmul.f32 %v2095, %v2107
        %v2109 = vmul.f32 %v2096, %v2107
        %v2110 = vmul.f32 %v2097, %v2107
        %v2111 = vmul.f32 %v2098, %v2107
        %v2112 = vadd.f32 %v2072, %v2108
        %v2113 = vadd.f32 %v2073, %v2109
        %v2114 = vadd.f32 %v2074, %v2110
        %v2115 = vadd.f32 %v2075, %v2111
        %v2116 = vlaneseq
        %v2117 = vshrl.u32 %v2116, 7
        %v2118 = vsub.s32 0, %v2117
        %v2119 = vrot.slane %v2093, %v2118
        %v2120 = vmul.f32 %v2100, %v2119
        %v2121 = vmul.f32 %v2101, %v2119
        %v2122 = vmul.f32 %v2102, %v2119
        %v2123 = vmul.f32 %v2103, %v2119
        %v2124 = vsub.f32 %v2112, %v2120
        %v2125 = vsub.f32 %v2113, %v2121
        %v2126 = vsub.f32 %v2114, %v2122
        %v2127 = vsub.f32 %v2115, %v2123
        %v2128 = vmul.f32 %v2095, %v2119
        %v2129 = vmul.f32 %v2096, %v2119
        %v2130 = vmul.f32 %v2097, %v2119
        %v2131 = vmul.f32 %v2098, %v2119
        %v2132 = vadd.f32 %v2088, %v2128
        %v2133 = vadd.f32 %v2089, %v2129
        %v2134 = vadd.f32 %v2090, %v2130
        %v2135 = vadd.f32 %v2091, %v2131
        %v2136 = vmul.f32 %v2100, %v2107
        %v2137 = vmul.f32 %v2101, %v2107
        %v2138 = vmul.f32 %v2102, %v2107
        %v2139 = vmul.f32 %v2103, %v2107
        %v2140 = vadd.f32 %v2132, %v2136
        %v2141 = vadd.f32 %v2133, %v2137
        %v2142 = vadd.f32 %v2134, %v2138
        %v2143 = vadd.f32 %v2135, %v2139
        %v2144 = vld [vmem:[#allocation2 + $0x15] sm:$0x1]
        %v2145 = vld [vmem:[#allocation3 + $0x15] sm:$0x1]
        %s2146 = scalar_lea.vmem %s540, 672 [#allocation8]
        %v2147 = vld [vmem:[%s2146] sm:$0xff]
        %v2148 = vld [vmem:[%s2146 + $0x8] sm:$0xff]
        %v2149 = vld [vmem:[%s2146 + $0x10] sm:$0xff]
        %v2150 = vld [vmem:[%s2146 + $0x18] sm:$0xff]
        %s2151 = scalar_lea.vmem %s549, 672 [#allocation9]
        %v2152 = vld [vmem:[%s2151] sm:$0xff]
        %v2153 = vld [vmem:[%s2151 + $0x8] sm:$0xff]
        %v2154 = vld [vmem:[%s2151 + $0x10] sm:$0xff]
        %v2155 = vld [vmem:[%s2151 + $0x18] sm:$0xff]
        %v2156 = vlaneseq
        %v2157 = vshrl.u32 %v2156, 7
        %v2158 = vsub.s32 0, %v2157
        %v2159 = vrot.slane %v2144, %v2158
        %v2160 = vmul.f32 %v2147, %v2159
        %v2161 = vmul.f32 %v2148, %v2159
        %v2162 = vmul.f32 %v2149, %v2159
        %v2163 = vmul.f32 %v2150, %v2159
        %v2164 = vadd.f32 %v2124, %v2160
        %v2165 = vadd.f32 %v2125, %v2161
        %v2166 = vadd.f32 %v2126, %v2162
        %v2167 = vadd.f32 %v2127, %v2163
        %v2168 = vlaneseq
        %v2169 = vshrl.u32 %v2168, 7
        %v2170 = vsub.s32 0, %v2169
        %v2171 = vrot.slane %v2145, %v2170
        %v2172 = vmul.f32 %v2152, %v2171
        %v2173 = vmul.f32 %v2153, %v2171
        %v2174 = vmul.f32 %v2154, %v2171
        %v2175 = vmul.f32 %v2155, %v2171
        %v2176 = vsub.f32 %v2164, %v2172
        %v2177 = vsub.f32 %v2165, %v2173
        %v2178 = vsub.f32 %v2166, %v2174
        %v2179 = vsub.f32 %v2167, %v2175
        %v2180 = vmul.f32 %v2147, %v2171
        %v2181 = vmul.f32 %v2148, %v2171
        %v2182 = vmul.f32 %v2149, %v2171
        %v2183 = vmul.f32 %v2150, %v2171
        %v2184 = vadd.f32 %v2140, %v2180
        %v2185 = vadd.f32 %v2141, %v2181
        %v2186 = vadd.f32 %v2142, %v2182
        %v2187 = vadd.f32 %v2143, %v2183
        %v2188 = vmul.f32 %v2152, %v2159
        %v2189 = vmul.f32 %v2153, %v2159
        %v2190 = vmul.f32 %v2154, %v2159
        %v2191 = vmul.f32 %v2155, %v2159
        %v2192 = vadd.f32 %v2184, %v2188
        %v2193 = vadd.f32 %v2185, %v2189
        %v2194 = vadd.f32 %v2186, %v2190
        %v2195 = vadd.f32 %v2187, %v2191
        %v2196 = vld [vmem:[#allocation2 + $0x16] sm:$0x1]
        %v2197 = vld [vmem:[#allocation3 + $0x16] sm:$0x1]
        %s2198 = scalar_lea.vmem %s540, 704 [#allocation8]
        %v2199 = vld [vmem:[%s2198] sm:$0xff]
        %v2200 = vld [vmem:[%s2198 + $0x8] sm:$0xff]
        %v2201 = vld [vmem:[%s2198 + $0x10] sm:$0xff]
        %v2202 = vld [vmem:[%s2198 + $0x18] sm:$0xff]
        %s2203 = scalar_lea.vmem %s549, 704 [#allocation9]
        %v2204 = vld [vmem:[%s2203] sm:$0xff]
        %v2205 = vld [vmem:[%s2203 + $0x8] sm:$0xff]
        %v2206 = vld [vmem:[%s2203 + $0x10] sm:$0xff]
        %v2207 = vld [vmem:[%s2203 + $0x18] sm:$0xff]
        %v2208 = vlaneseq
        %v2209 = vshrl.u32 %v2208, 7
        %v2210 = vsub.s32 0, %v2209
        %v2211 = vrot.slane %v2196, %v2210
        %v2212 = vmul.f32 %v2199, %v2211
        %v2213 = vmul.f32 %v2200, %v2211
        %v2214 = vmul.f32 %v2201, %v2211
        %v2215 = vmul.f32 %v2202, %v2211
        %v2216 = vadd.f32 %v2176, %v2212
        %v2217 = vadd.f32 %v2177, %v2213
        %v2218 = vadd.f32 %v2178, %v2214
        %v2219 = vadd.f32 %v2179, %v2215
        %v2220 = vlaneseq
        %v2221 = vshrl.u32 %v2220, 7
        %v2222 = vsub.s32 0, %v2221
        %v2223 = vrot.slane %v2197, %v2222
        %v2224 = vmul.f32 %v2204, %v2223
        %v2225 = vmul.f32 %v2205, %v2223
        %v2226 = vmul.f32 %v2206, %v2223
        %v2227 = vmul.f32 %v2207, %v2223
        %v2228 = vsub.f32 %v2216, %v2224
        %v2229 = vsub.f32 %v2217, %v2225
        %v2230 = vsub.f32 %v2218, %v2226
        %v2231 = vsub.f32 %v2219, %v2227
        %v2232 = vmul.f32 %v2199, %v2223
        %v2233 = vmul.f32 %v2200, %v2223
        %v2234 = vmul.f32 %v2201, %v2223
        %v2235 = vmul.f32 %v2202, %v2223
        %v2236 = vadd.f32 %v2192, %v2232
        %v2237 = vadd.f32 %v2193, %v2233
        %v2238 = vadd.f32 %v2194, %v2234
        %v2239 = vadd.f32 %v2195, %v2235
        %v2240 = vmul.f32 %v2204, %v2211
        %v2241 = vmul.f32 %v2205, %v2211
        %v2242 = vmul.f32 %v2206, %v2211
        %v2243 = vmul.f32 %v2207, %v2211
        %v2244 = vadd.f32 %v2236, %v2240
        %v2245 = vadd.f32 %v2237, %v2241
        %v2246 = vadd.f32 %v2238, %v2242
        %v2247 = vadd.f32 %v2239, %v2243
        %v2248 = vld [vmem:[#allocation2 + $0x17] sm:$0x1]
        %v2249 = vld [vmem:[#allocation3 + $0x17] sm:$0x1]
        %s2250 = scalar_lea.vmem %s540, 736 [#allocation8]
        %v2251 = vld [vmem:[%s2250] sm:$0xff]
        %v2252 = vld [vmem:[%s2250 + $0x8] sm:$0xff]
        %v2253 = vld [vmem:[%s2250 + $0x10] sm:$0xff]
        %v2254 = vld [vmem:[%s2250 + $0x18] sm:$0xff]
        %s2255 = scalar_lea.vmem %s549, 736 [#allocation9]
        %v2256 = vld [vmem:[%s2255] sm:$0xff]
        %v2257 = vld [vmem:[%s2255 + $0x8] sm:$0xff]
        %v2258 = vld [vmem:[%s2255 + $0x10] sm:$0xff]
        %v2259 = vld [vmem:[%s2255 + $0x18] sm:$0xff]
        %v2260 = vlaneseq
        %v2261 = vshrl.u32 %v2260, 7
        %v2262 = vsub.s32 0, %v2261
        %v2263 = vrot.slane %v2248, %v2262
        %v2264 = vmul.f32 %v2251, %v2263
        %v2265 = vmul.f32 %v2252, %v2263
        %v2266 = vmul.f32 %v2253, %v2263
        %v2267 = vmul.f32 %v2254, %v2263
        %v2268 = vadd.f32 %v2228, %v2264
        %v2269 = vadd.f32 %v2229, %v2265
        %v2270 = vadd.f32 %v2230, %v2266
        %v2271 = vadd.f32 %v2231, %v2267
        %v2272 = vlaneseq
        %v2273 = vshrl.u32 %v2272, 7
        %v2274 = vsub.s32 0, %v2273
        %v2275 = vrot.slane %v2249, %v2274
        %v2276 = vmul.f32 %v2256, %v2275
        %v2277 = vmul.f32 %v2257, %v2275
        %v2278 = vmul.f32 %v2258, %v2275
        %v2279 = vmul.f32 %v2259, %v2275
        %v2280 = vsub.f32 %v2268, %v2276
        %v2281 = vsub.f32 %v2269, %v2277
        %v2282 = vsub.f32 %v2270, %v2278
        %v2283 = vsub.f32 %v2271, %v2279
        %v2284 = vmul.f32 %v2251, %v2275
        %v2285 = vmul.f32 %v2252, %v2275
        %v2286 = vmul.f32 %v2253, %v2275
        %v2287 = vmul.f32 %v2254, %v2275
        %v2288 = vadd.f32 %v2244, %v2284
        %v2289 = vadd.f32 %v2245, %v2285
        %v2290 = vadd.f32 %v2246, %v2286
        %v2291 = vadd.f32 %v2247, %v2287
        %v2292 = vmul.f32 %v2256, %v2263
        %v2293 = vmul.f32 %v2257, %v2263
        %v2294 = vmul.f32 %v2258, %v2263
        %v2295 = vmul.f32 %v2259, %v2263
        %v2296 = vadd.f32 %v2288, %v2292
        %v2297 = vadd.f32 %v2289, %v2293
        %v2298 = vadd.f32 %v2290, %v2294
        %v2299 = vadd.f32 %v2291, %v2295
        %v2300 = vld [vmem:[#allocation2 + $0x18] sm:$0x1]
        %v2301 = vld [vmem:[#allocation3 + $0x18] sm:$0x1]
        %s2302 = scalar_lea.vmem %s540, 768 [#allocation8]
        %v2303 = vld [vmem:[%s2302] sm:$0xff]
        %v2304 = vld [vmem:[%s2302 + $0x8] sm:$0xff]
        %v2305 = vld [vmem:[%s2302 + $0x10] sm:$0xff]
        %v2306 = vld [vmem:[%s2302 + $0x18] sm:$0xff]
        %s2307 = scalar_lea.vmem %s549, 768 [#allocation9]
        %v2308 = vld [vmem:[%s2307] sm:$0xff]
        %v2309 = vld [vmem:[%s2307 + $0x8] sm:$0xff]
        %v2310 = vld [vmem:[%s2307 + $0x10] sm:$0xff]
        %v2311 = vld [vmem:[%s2307 + $0x18] sm:$0xff]
        %v2312 = vlaneseq
        %v2313 = vshrl.u32 %v2312, 7
        %v2314 = vsub.s32 0, %v2313
        %v2315 = vrot.slane %v2300, %v2314
        %v2316 = vmul.f32 %v2303, %v2315
        %v2317 = vmul.f32 %v2304, %v2315
        %v2318 = vmul.f32 %v2305, %v2315
        %v2319 = vmul.f32 %v2306, %v2315
        %v2320 = vadd.f32 %v2280, %v2316
        %v2321 = vadd.f32 %v2281, %v2317
        %v2322 = vadd.f32 %v2282, %v2318
        %v2323 = vadd.f32 %v2283, %v2319
        %v2324 = vlaneseq
        %v2325 = vshrl.u32 %v2324, 7
        %v2326 = vsub.s32 0, %v2325
        %v2327 = vrot.slane %v2301, %v2326
        %v2328 = vmul.f32 %v2308, %v2327
        %v2329 = vmul.f32 %v2309, %v2327
        %v2330 = vmul.f32 %v2310, %v2327
        %v2331 = vmul.f32 %v2311, %v2327
        %v2332 = vsub.f32 %v2320, %v2328
        %v2333 = vsub.f32 %v2321, %v2329
        %v2334 = vsub.f32 %v2322, %v2330
        %v2335 = vsub.f32 %v2323, %v2331
        %v2336 = vmul.f32 %v2303, %v2327
        %v2337 = vmul.f32 %v2304, %v2327
        %v2338 = vmul.f32 %v2305, %v2327
        %v2339 = vmul.f32 %v2306, %v2327
        %v2340 = vadd.f32 %v2296, %v2336
        %v2341 = vadd.f32 %v2297, %v2337
        %v2342 = vadd.f32 %v2298, %v2338
        %v2343 = vadd.f32 %v2299, %v2339
        %v2344 = vmul.f32 %v2308, %v2315
        %v2345 = vmul.f32 %v2309, %v2315
        %v2346 = vmul.f32 %v2310, %v2315
        %v2347 = vmul.f32 %v2311, %v2315
        %v2348 = vadd.f32 %v2340, %v2344
        %v2349 = vadd.f32 %v2341, %v2345
        %v2350 = vadd.f32 %v2342, %v2346
        %v2351 = vadd.f32 %v2343, %v2347
        %v2352 = vld [vmem:[#allocation2 + $0x19] sm:$0x1]
        %v2353 = vld [vmem:[#allocation3 + $0x19] sm:$0x1]
        %s2354 = scalar_lea.vmem %s540, 800 [#allocation8]
        %v2355 = vld [vmem:[%s2354] sm:$0xff]
        %v2356 = vld [vmem:[%s2354 + $0x8] sm:$0xff]
        %v2357 = vld [vmem:[%s2354 + $0x10] sm:$0xff]
        %v2358 = vld [vmem:[%s2354 + $0x18] sm:$0xff]
        %s2359 = scalar_lea.vmem %s549, 800 [#allocation9]
        %v2360 = vld [vmem:[%s2359] sm:$0xff]
        %v2361 = vld [vmem:[%s2359 + $0x8] sm:$0xff]
        %v2362 = vld [vmem:[%s2359 + $0x10] sm:$0xff]
        %v2363 = vld [vmem:[%s2359 + $0x18] sm:$0xff]
        %v2364 = vlaneseq
        %v2365 = vshrl.u32 %v2364, 7
        %v2366 = vsub.s32 0, %v2365
        %v2367 = vrot.slane %v2352, %v2366
        %v2368 = vmul.f32 %v2355, %v2367
        %v2369 = vmul.f32 %v2356, %v2367
        %v2370 = vmul.f32 %v2357, %v2367
        %v2371 = vmul.f32 %v2358, %v2367
        %v2372 = vadd.f32 %v2332, %v2368
        %v2373 = vadd.f32 %v2333, %v2369
        %v2374 = vadd.f32 %v2334, %v2370
        %v2375 = vadd.f32 %v2335, %v2371
        %v2376 = vlaneseq
        %v2377 = vshrl.u32 %v2376, 7
        %v2378 = vsub.s32 0, %v2377
        %v2379 = vrot.slane %v2353, %v2378
        %v2380 = vmul.f32 %v2360, %v2379
        %v2381 = vmul.f32 %v2361, %v2379
        %v2382 = vmul.f32 %v2362, %v2379
        %v2383 = vmul.f32 %v2363, %v2379
        %v2384 = vsub.f32 %v2372, %v2380
        %v2385 = vsub.f32 %v2373, %v2381
        %v2386 = vsub.f32 %v2374, %v2382
        %v2387 = vsub.f32 %v2375, %v2383
        %v2388 = vmul.f32 %v2355, %v2379
        %v2389 = vmul.f32 %v2356, %v2379
        %v2390 = vmul.f32 %v2357, %v2379
        %v2391 = vmul.f32 %v2358, %v2379
        %v2392 = vadd.f32 %v2348, %v2388
        %v2393 = vadd.f32 %v2349, %v2389
        %v2394 = vadd.f32 %v2350, %v2390
        %v2395 = vadd.f32 %v2351, %v2391
        %v2396 = vmul.f32 %v2360, %v2367
        %v2397 = vmul.f32 %v2361, %v2367
        %v2398 = vmul.f32 %v2362, %v2367
        %v2399 = vmul.f32 %v2363, %v2367
        %v2400 = vadd.f32 %v2392, %v2396
        %v2401 = vadd.f32 %v2393, %v2397
        %v2402 = vadd.f32 %v2394, %v2398
        %v2403 = vadd.f32 %v2395, %v2399
        %v2404 = vld [vmem:[#allocation2 + $0x1a] sm:$0x1]
        %v2405 = vld [vmem:[#allocation3 + $0x1a] sm:$0x1]
        %s2406 = scalar_lea.vmem %s540, 832 [#allocation8]
        %v2407 = vld [vmem:[%s2406] sm:$0xff]
        %v2408 = vld [vmem:[%s2406 + $0x8] sm:$0xff]
        %v2409 = vld [vmem:[%s2406 + $0x10] sm:$0xff]
        %v2410 = vld [vmem:[%s2406 + $0x18] sm:$0xff]
        %s2411 = scalar_lea.vmem %s549, 832 [#allocation9]
        %v2412 = vld [vmem:[%s2411] sm:$0xff]
        %v2413 = vld [vmem:[%s2411 + $0x8] sm:$0xff]
        %v2414 = vld [vmem:[%s2411 + $0x10] sm:$0xff]
        %v2415 = vld [vmem:[%s2411 + $0x18] sm:$0xff]
        %v2416 = vlaneseq
        %v2417 = vshrl.u32 %v2416, 7
        %v2418 = vsub.s32 0, %v2417
        %v2419 = vrot.slane %v2404, %v2418
        %v2420 = vmul.f32 %v2407, %v2419
        %v2421 = vmul.f32 %v2408, %v2419
        %v2422 = vmul.f32 %v2409, %v2419
        %v2423 = vmul.f32 %v2410, %v2419
        %v2424 = vadd.f32 %v2384, %v2420
        %v2425 = vadd.f32 %v2385, %v2421
        %v2426 = vadd.f32 %v2386, %v2422
        %v2427 = vadd.f32 %v2387, %v2423
        %v2428 = vlaneseq
        %v2429 = vshrl.u32 %v2428, 7
        %v2430 = vsub.s32 0, %v2429
        %v2431 = vrot.slane %v2405, %v2430
        %v2432 = vmul.f32 %v2412, %v2431
        %v2433 = vmul.f32 %v2413, %v2431
        %v2434 = vmul.f32 %v2414, %v2431
        %v2435 = vmul.f32 %v2415, %v2431
        %v2436 = vsub.f32 %v2424, %v2432
        %v2437 = vsub.f32 %v2425, %v2433
        %v2438 = vsub.f32 %v2426, %v2434
        %v2439 = vsub.f32 %v2427, %v2435
        %v2440 = vmul.f32 %v2407, %v2431
        %v2441 = vmul.f32 %v2408, %v2431
        %v2442 = vmul.f32 %v2409, %v2431
        %v2443 = vmul.f32 %v2410, %v2431
        %v2444 = vadd.f32 %v2400, %v2440
        %v2445 = vadd.f32 %v2401, %v2441
        %v2446 = vadd.f32 %v2402, %v2442
        %v2447 = vadd.f32 %v2403, %v2443
        %v2448 = vmul.f32 %v2412, %v2419
        %v2449 = vmul.f32 %v2413, %v2419
        %v2450 = vmul.f32 %v2414, %v2419
        %v2451 = vmul.f32 %v2415, %v2419
        %v2452 = vadd.f32 %v2444, %v2448
        %v2453 = vadd.f32 %v2445, %v2449
        %v2454 = vadd.f32 %v2446, %v2450
        %v2455 = vadd.f32 %v2447, %v2451
        %v2456 = vld [vmem:[#allocation2 + $0x1b] sm:$0x1]
        %v2457 = vld [vmem:[#allocation3 + $0x1b] sm:$0x1]
        %s2458 = scalar_lea.vmem %s540, 864 [#allocation8]
        %v2459 = vld [vmem:[%s2458] sm:$0xff]
        %v2460 = vld [vmem:[%s2458 + $0x8] sm:$0xff]
        %v2461 = vld [vmem:[%s2458 + $0x10] sm:$0xff]
        %v2462 = vld [vmem:[%s2458 + $0x18] sm:$0xff]
        %s2463 = scalar_lea.vmem %s549, 864 [#allocation9]
        %v2464 = vld [vmem:[%s2463] sm:$0xff]
        %v2465 = vld [vmem:[%s2463 + $0x8] sm:$0xff]
        %v2466 = vld [vmem:[%s2463 + $0x10] sm:$0xff]
        %v2467 = vld [vmem:[%s2463 + $0x18] sm:$0xff]
        %v2468 = vlaneseq
        %v2469 = vshrl.u32 %v2468, 7
        %v2470 = vsub.s32 0, %v2469
        %v2471 = vrot.slane %v2456, %v2470
        %v2472 = vmul.f32 %v2459, %v2471
        %v2473 = vmul.f32 %v2460, %v2471
        %v2474 = vmul.f32 %v2461, %v2471
        %v2475 = vmul.f32 %v2462, %v2471
        %v2476 = vadd.f32 %v2436, %v2472
        %v2477 = vadd.f32 %v2437, %v2473
        %v2478 = vadd.f32 %v2438, %v2474
        %v2479 = vadd.f32 %v2439, %v2475
        %v2480 = vlaneseq
        %v2481 = vshrl.u32 %v2480, 7
        %v2482 = vsub.s32 0, %v2481
        %v2483 = vrot.slane %v2457, %v2482
        %v2484 = vmul.f32 %v2464, %v2483
        %v2485 = vmul.f32 %v2465, %v2483
        %v2486 = vmul.f32 %v2466, %v2483
        %v2487 = vmul.f32 %v2467, %v2483
        %v2488 = vsub.f32 %v2476, %v2484
        %v2489 = vsub.f32 %v2477, %v2485
        %v2490 = vsub.f32 %v2478, %v2486
        %v2491 = vsub.f32 %v2479, %v2487
        %v2492 = vmul.f32 %v2459, %v2483
        %v2493 = vmul.f32 %v2460, %v2483
        %v2494 = vmul.f32 %v2461, %v2483
        %v2495 = vmul.f32 %v2462, %v2483
        %v2496 = vadd.f32 %v2452, %v2492
        %v2497 = vadd.f32 %v2453, %v2493
        %v2498 = vadd.f32 %v2454, %v2494
        %v2499 = vadd.f32 %v2455, %v2495
        %v2500 = vmul.f32 %v2464, %v2471
        %v2501 = vmul.f32 %v2465, %v2471
        %v2502 = vmul.f32 %v2466, %v2471
        %v2503 = vmul.f32 %v2467, %v2471
        %v2504 = vadd.f32 %v2496, %v2500
        %v2505 = vadd.f32 %v2497, %v2501
        %v2506 = vadd.f32 %v2498, %v2502
        %v2507 = vadd.f32 %v2499, %v2503
        %v2508 = vld [vmem:[#allocation2 + $0x1c] sm:$0x1]
        %v2509 = vld [vmem:[#allocation3 + $0x1c] sm:$0x1]
        %s2510 = scalar_lea.vmem %s540, 896 [#allocation8]
        %v2511 = vld [vmem:[%s2510] sm:$0xff]
        %v2512 = vld [vmem:[%s2510 + $0x8] sm:$0xff]
        %v2513 = vld [vmem:[%s2510 + $0x10] sm:$0xff]
        %v2514 = vld [vmem:[%s2510 + $0x18] sm:$0xff]
        %s2515 = scalar_lea.vmem %s549, 896 [#allocation9]
        %v2516 = vld [vmem:[%s2515] sm:$0xff]
        %v2517 = vld [vmem:[%s2515 + $0x8] sm:$0xff]
        %v2518 = vld [vmem:[%s2515 + $0x10] sm:$0xff]
        %v2519 = vld [vmem:[%s2515 + $0x18] sm:$0xff]
        %v2520 = vlaneseq
        %v2521 = vshrl.u32 %v2520, 7
        %v2522 = vsub.s32 0, %v2521
        %v2523 = vrot.slane %v2508, %v2522
        %v2524 = vmul.f32 %v2511, %v2523
        %v2525 = vmul.f32 %v2512, %v2523
        %v2526 = vmul.f32 %v2513, %v2523
        %v2527 = vmul.f32 %v2514, %v2523
        %v2528 = vadd.f32 %v2488, %v2524
        %v2529 = vadd.f32 %v2489, %v2525
        %v2530 = vadd.f32 %v2490, %v2526
        %v2531 = vadd.f32 %v2491, %v2527
        %v2532 = vlaneseq
        %v2533 = vshrl.u32 %v2532, 7
        %v2534 = vsub.s32 0, %v2533
        %v2535 = vrot.slane %v2509, %v2534
        %v2536 = vmul.f32 %v2516, %v2535
        %v2537 = vmul.f32 %v2517, %v2535
        %v2538 = vmul.f32 %v2518, %v2535
        %v2539 = vmul.f32 %v2519, %v2535
        %v2540 = vsub.f32 %v2528, %v2536
        %v2541 = vsub.f32 %v2529, %v2537
        %v2542 = vsub.f32 %v2530, %v2538
        %v2543 = vsub.f32 %v2531, %v2539
        %v2544 = vmul.f32 %v2511, %v2535
        %v2545 = vmul.f32 %v2512, %v2535
        %v2546 = vmul.f32 %v2513, %v2535
        %v2547 = vmul.f32 %v2514, %v2535
        %v2548 = vadd.f32 %v2504, %v2544
        %v2549 = vadd.f32 %v2505, %v2545
        %v2550 = vadd.f32 %v2506, %v2546
        %v2551 = vadd.f32 %v2507, %v2547
        %v2552 = vmul.f32 %v2516, %v2523
        %v2553 = vmul.f32 %v2517, %v2523
        %v2554 = vmul.f32 %v2518, %v2523
        %v2555 = vmul.f32 %v2519, %v2523
        %v2556 = vadd.f32 %v2548, %v2552
        %v2557 = vadd.f32 %v2549, %v2553
        %v2558 = vadd.f32 %v2550, %v2554
        %v2559 = vadd.f32 %v2551, %v2555
        %v2560 = vld [vmem:[#allocation2 + $0x1d] sm:$0x1]
        %v2561 = vld [vmem:[#allocation3 + $0x1d] sm:$0x1]
        %s2562 = scalar_lea.vmem %s540, 928 [#allocation8]
        %v2563 = vld [vmem:[%s2562] sm:$0xff]
        %v2564 = vld [vmem:[%s2562 + $0x8] sm:$0xff]
        %v2565 = vld [vmem:[%s2562 + $0x10] sm:$0xff]
        %v2566 = vld [vmem:[%s2562 + $0x18] sm:$0xff]
        %s2567 = scalar_lea.vmem %s549, 928 [#allocation9]
        %v2568 = vld [vmem:[%s2567] sm:$0xff]
        %v2569 = vld [vmem:[%s2567 + $0x8] sm:$0xff]
        %v2570 = vld [vmem:[%s2567 + $0x10] sm:$0xff]
        %v2571 = vld [vmem:[%s2567 + $0x18] sm:$0xff]
        %v2572 = vlaneseq
        %v2573 = vshrl.u32 %v2572, 7
        %v2574 = vsub.s32 0, %v2573
        %v2575 = vrot.slane %v2560, %v2574
        %v2576 = vmul.f32 %v2563, %v2575
        %v2577 = vmul.f32 %v2564, %v2575
        %v2578 = vmul.f32 %v2565, %v2575
        %v2579 = vmul.f32 %v2566, %v2575
        %v2580 = vadd.f32 %v2540, %v2576
        %v2581 = vadd.f32 %v2541, %v2577
        %v2582 = vadd.f32 %v2542, %v2578
        %v2583 = vadd.f32 %v2543, %v2579
        %v2584 = vlaneseq
        %v2585 = vshrl.u32 %v2584, 7
        %v2586 = vsub.s32 0, %v2585
        %v2587 = vrot.slane %v2561, %v2586
        %v2588 = vmul.f32 %v2568, %v2587
        %v2589 = vmul.f32 %v2569, %v2587
        %v2590 = vmul.f32 %v2570, %v2587
        %v2591 = vmul.f32 %v2571, %v2587
        %v2592 = vsub.f32 %v2580, %v2588
        %v2593 = vsub.f32 %v2581, %v2589
        %v2594 = vsub.f32 %v2582, %v2590
        %v2595 = vsub.f32 %v2583, %v2591
        %v2596 = vmul.f32 %v2563, %v2587
        %v2597 = vmul.f32 %v2564, %v2587
        %v2598 = vmul.f32 %v2565, %v2587
        %v2599 = vmul.f32 %v2566, %v2587
        %v2600 = vadd.f32 %v2556, %v2596
        %v2601 = vadd.f32 %v2557, %v2597
        %v2602 = vadd.f32 %v2558, %v2598
        %v2603 = vadd.f32 %v2559, %v2599
        %v2604 = vmul.f32 %v2568, %v2575
        %v2605 = vmul.f32 %v2569, %v2575
        %v2606 = vmul.f32 %v2570, %v2575
        %v2607 = vmul.f32 %v2571, %v2575
        %v2608 = vadd.f32 %v2600, %v2604
        %v2609 = vadd.f32 %v2601, %v2605
        %v2610 = vadd.f32 %v2602, %v2606
        %v2611 = vadd.f32 %v2603, %v2607
        %v2612 = vld [vmem:[#allocation2 + $0x1e] sm:$0x1]
        %v2613 = vld [vmem:[#allocation3 + $0x1e] sm:$0x1]
        %s2614 = scalar_lea.vmem %s540, 960 [#allocation8]
        %v2615 = vld [vmem:[%s2614] sm:$0xff]
        %v2616 = vld [vmem:[%s2614 + $0x8] sm:$0xff]
        %v2617 = vld [vmem:[%s2614 + $0x10] sm:$0xff]
        %v2618 = vld [vmem:[%s2614 + $0x18] sm:$0xff]
        %s2619 = scalar_lea.vmem %s549, 960 [#allocation9]
        %v2620 = vld [vmem:[%s2619] sm:$0xff]
        %v2621 = vld [vmem:[%s2619 + $0x8] sm:$0xff]
        %v2622 = vld [vmem:[%s2619 + $0x10] sm:$0xff]
        %v2623 = vld [vmem:[%s2619 + $0x18] sm:$0xff]
        %v2624 = vlaneseq
        %v2625 = vshrl.u32 %v2624, 7
        %v2626 = vsub.s32 0, %v2625
        %v2627 = vrot.slane %v2612, %v2626
        %v2628 = vmul.f32 %v2615, %v2627
        %v2629 = vmul.f32 %v2616, %v2627
        %v2630 = vmul.f32 %v2617, %v2627
        %v2631 = vmul.f32 %v2618, %v2627
        %v2632 = vadd.f32 %v2592, %v2628
        %v2633 = vadd.f32 %v2593, %v2629
        %v2634 = vadd.f32 %v2594, %v2630
        %v2635 = vadd.f32 %v2595, %v2631
        %v2636 = vlaneseq
        %v2637 = vshrl.u32 %v2636, 7
        %v2638 = vsub.s32 0, %v2637
        %v2639 = vrot.slane %v2613, %v2638
        %v2640 = vmul.f32 %v2620, %v2639
        %v2641 = vmul.f32 %v2621, %v2639
        %v2642 = vmul.f32 %v2622, %v2639
        %v2643 = vmul.f32 %v2623, %v2639
        %v2644 = vsub.f32 %v2632, %v2640
        %v2645 = vsub.f32 %v2633, %v2641
        %v2646 = vsub.f32 %v2634, %v2642
        %v2647 = vsub.f32 %v2635, %v2643
        %v2648 = vmul.f32 %v2615, %v2639
        %v2649 = vmul.f32 %v2616, %v2639
        %v2650 = vmul.f32 %v2617, %v2639
        %v2651 = vmul.f32 %v2618, %v2639
        %v2652 = vadd.f32 %v2608, %v2648
        %v2653 = vadd.f32 %v2609, %v2649
        %v2654 = vadd.f32 %v2610, %v2650
        %v2655 = vadd.f32 %v2611, %v2651
        %v2656 = vmul.f32 %v2620, %v2627
        %v2657 = vmul.f32 %v2621, %v2627
        %v2658 = vmul.f32 %v2622, %v2627
        %v2659 = vmul.f32 %v2623, %v2627
        %v2660 = vadd.f32 %v2652, %v2656
        %v2661 = vadd.f32 %v2653, %v2657
        %v2662 = vadd.f32 %v2654, %v2658
        %v2663 = vadd.f32 %v2655, %v2659
        %v2664 = vld [vmem:[#allocation2 + $0x1f] sm:$0x1]
        %v2665 = vld [vmem:[#allocation3 + $0x1f] sm:$0x1]
        %s2666 = scalar_lea.vmem %s540, 992 [#allocation8]
        %v2667 = vld [vmem:[%s2666] sm:$0xff]
        %v2668 = vld [vmem:[%s2666 + $0x8] sm:$0xff]
        %v2669 = vld [vmem:[%s2666 + $0x10] sm:$0xff]
        %v2670 = vld [vmem:[%s2666 + $0x18] sm:$0xff]
        %s2671 = scalar_lea.vmem %s549, 992 [#allocation9]
        %v2672 = vld [vmem:[%s2671] sm:$0xff]
        %v2673 = vld [vmem:[%s2671 + $0x8] sm:$0xff]
        %v2674 = vld [vmem:[%s2671 + $0x10] sm:$0xff]
        %v2675 = vld [vmem:[%s2671 + $0x18] sm:$0xff]
        %v2676 = vlaneseq
        %v2677 = vshrl.u32 %v2676, 7
        %v2678 = vsub.s32 0, %v2677
        %v2679 = vrot.slane %v2664, %v2678
        %v2680 = vmul.f32 %v2667, %v2679
        %v2681 = vmul.f32 %v2668, %v2679
        %v2682 = vmul.f32 %v2669, %v2679
        %v2683 = vmul.f32 %v2670, %v2679
        %v2684 = vadd.f32 %v2644, %v2680
        %v2685 = vadd.f32 %v2645, %v2681
        %v2686 = vadd.f32 %v2646, %v2682
        %v2687 = vadd.f32 %v2647, %v2683
        %v2688 = vlaneseq
        %v2689 = vshrl.u32 %v2688, 7
        %v2690 = vsub.s32 0, %v2689
        %v2691 = vrot.slane %v2665, %v2690
        %v2692 = vmul.f32 %v2672, %v2691
        %v2693 = vmul.f32 %v2673, %v2691
        %v2694 = vmul.f32 %v2674, %v2691
        %v2695 = vmul.f32 %v2675, %v2691
        %v2696 = vsub.f32 %v2684, %v2692
        %v2697 = vsub.f32 %v2685, %v2693
        %v2698 = vsub.f32 %v2686, %v2694
        %v2699 = vsub.f32 %v2687, %v2695
        %v2700 = vmul.f32 %v2667, %v2691
        %v2701 = vmul.f32 %v2668, %v2691
        %v2702 = vmul.f32 %v2669, %v2691
        %v2703 = vmul.f32 %v2670, %v2691
        %v2704 = vadd.f32 %v2660, %v2700
        %v2705 = vadd.f32 %v2661, %v2701
        %v2706 = vadd.f32 %v2662, %v2702
        %v2707 = vadd.f32 %v2663, %v2703
        %v2708 = vmul.f32 %v2672, %v2679
        %v2709 = vmul.f32 %v2673, %v2679
        %v2710 = vmul.f32 %v2674, %v2679
        %v2711 = vmul.f32 %v2675, %v2679
        %v2712 = vadd.f32 %v2704, %v2708
        %v2713 = vadd.f32 %v2705, %v2709
        %v2714 = vadd.f32 %v2706, %v2710
        %v2715 = vadd.f32 %v2707, %v2711
        %v2716 = vld [vmem:[#allocation4] sm:$0xff]
        %v2717 = vld [vmem:[#allocation4 + $0x8] sm:$0xff]
        %v2718 = vld [vmem:[#allocation4 + $0x10] sm:$0xff]
        %v2719 = vld [vmem:[#allocation4 + $0x18] sm:$0xff]
        %v2720 = vld [vmem:[#allocation4 + $0x20] sm:$0xff]
        %v2721 = vld [vmem:[#allocation4 + $0x28] sm:$0xff]
        %v2722 = vld [vmem:[#allocation4 + $0x30] sm:$0xff]
        %v2723 = vld [vmem:[#allocation4 + $0x38] sm:$0xff]
        %v2724 = vld [vmem:[#allocation4 + $0x40] sm:$0xff]
        %v2725 = vld [vmem:[#allocation4 + $0x48] sm:$0xff]
        %v2726 = vld [vmem:[#allocation4 + $0x50] sm:$0xff]
        %v2727 = vld [vmem:[#allocation4 + $0x58] sm:$0xff]
        %v2728 = vld [vmem:[#allocation4 + $0x60] sm:$0xff]
        %v2729 = vld [vmem:[#allocation4 + $0x68] sm:$0xff]
        %v2730 = vld [vmem:[#allocation4 + $0x70] sm:$0xff]
        %v2731 = vld [vmem:[#allocation4 + $0x78] sm:$0xff]
        %v2732 = vld [vmem:[#allocation4 + $0x80] sm:$0xff]
        %v2733 = vld [vmem:[#allocation4 + $0x88] sm:$0xff]
        %v2735 = vsel %vm928, %v2696, 0
        %v2738 = vsel %vm928, %v2697, 0
        %v2741 = vsel %vm928, %v2698, 0
        %v2744 = vsel %vm928, %v2699, 0
        %2746 = vmatprep.subr.mxu0 %v2717
        %2747 = vmatpush1.msra.mxu0 %v2716
        %2748 = vmatprep.subr.mxu0 %v2719
        %2749 = vmatpush1.msra.mxu0 %v2718
        %2750 = vmatprep.subr.mxu0 %v2721
        %2751 = vmatpush1.msra.mxu0 %v2720
        %2752 = vmatprep.subr.mxu0 %v2723
        %2753 = vmatpush1.msra.mxu0 %v2722
        %2754 = vmatprep.subr.mxu0 %v2725
        %2755 = vmatpush1.msra.mxu0 %v2724
        %2756 = vmatprep.subr.mxu0 %v2727
        %2757 = vmatpush1.msra.mxu0 %v2726
        %2758 = vmatprep.subr.mxu0 %v2729
        %2759 = vmatpush1.msra.mxu0 %v2728
        %2760 = vmatprep.subr.mxu0 %v2731
        %2761 = vmatpush1.msra.mxu0 %v2730
        %2762 = vmatprep.subr.mxu0 %v2733
        %2763 = vmatpush1.msra.mxu0 %v2732
        %2764 = vmatprep.subr.mxu0 0.0
        %2765 = vmatpush1.msra.mxu0 0.0
        %2766 = vmatprep.subr.mxu0 0.0
        %2767 = vmatpush1.msra.mxu0 0.0
        %2768 = vmatprep.subr.mxu0 0.0
        %2769 = vmatpush1.msra.mxu0 0.0
        %2770 = vmatprep.subr.mxu0 0.0
        %2771 = vmatpush1.msra.mxu0 0.0
        %2772 = vmatprep.subr.mxu0 0.0
        %2773 = vmatpush1.msra.mxu0 0.0
        %2774 = vmatprep.subr.mxu0 0.0
        %2775 = vmatpush1.msra.mxu0 0.0
        %2776 = vmatprep.subr.mxu0 0.0
        %2777 = vmatpush1.msra.mxu0 0.0
        %2778 = vmatprep.subr.mxu0 0.0
        %2779 = vmatpush1.msra.mxu0 0.0
        %2780 = vmatprep.subr.mxu0 0.0
        %2781 = vmatpush1.msra.mxu0 0.0
        %2782 = vmatprep.subr.mxu0 0.0
        %2783 = vmatpush1.msra.mxu0 0.0
        %2784 = vmatprep.subr.mxu0 0.0
        %2785 = vmatpush1.msra.mxu0 0.0
        %2786 = vmatprep.subr.mxu0 0.0
        %2787 = vmatpush1.msra.mxu0 0.0
        %2788 = vmatprep.subr.mxu0 0.0
        %2789 = vmatpush1.msra.mxu0 0.0
        %2790 = vmatprep.subr.mxu0 0.0
        %2791 = vmatpush1.msra.mxu0 0.0
        %2792 = vmatprep.subr.mxu0 0.0
        %2793 = vmatpush1.msra.mxu0 0.0
        %2794 = vmatprep.subr.mxu0 0.0
        %2795 = vmatpush1.msra.mxu0 0.0
        %2796 = vmatprep.subr.mxu0 0.0
        %2797 = vmatpush1.msra.mxu0 0.0
        %2798 = vmatprep.subr.mxu0 0.0
        %2799 = vmatpush1.msra.mxu0 0.0
        %2800 = vmatprep.subr.mxu0 0.0
        %2801 = vmatpush1.msra.mxu0 0.0
        %2802 = vmatprep.subr.mxu0 0.0
        %2803 = vmatpush1.msra.mxu0 0.0
        %2804 = vmatprep.subr.mxu0 0.0
        %2805 = vmatpush1.msra.mxu0 0.0
        %2806 = vmatprep.subr.mxu0 0.0
        %2807 = vmatpush1.msra.mxu0 0.0
        %2808 = vmatprep.subr.mxu0 0.0
        %2809 = vmatpush1.msra.mxu0 0.0
        %2810 = vmatprep.mubr.f32.mxu0 0.0
        %2811 = vmatmul.mubr.f32.gmra.mrb[0].mxu0 %v2735
        %v2812 = vpop.f32.mrb[0].mxu0
        %v2813 = vadd.f32 0.0, %v2812
        %v2814 = vpop.f32.mrb[0].mxu0
        %v2815 = vadd.f32 0.0, %v2814
        %2816 = vmatprep.mubr.f32.mxu0 0.0
        %2817 = vmatmul.mubr.f32.gmra.mrb[0].mxu0 %v2738
        %v2818 = vpop.f32.mrb[0].mxu0
        %v2819 = vadd.f32 0.0, %v2818
        %v2820 = vpop.f32.mrb[0].mxu0
        %v2821 = vadd.f32 0.0, %v2820
        %2822 = vmatprep.mubr.f32.mxu0 0.0
        %2823 = vmatmul.mubr.f32.gmra.mrb[0].mxu0 %v2741
        %v2824 = vpop.f32.mrb[0].mxu0
        %v2825 = vadd.f32 0.0, %v2824
        %v2826 = vpop.f32.mrb[0].mxu0
        %v2827 = vadd.f32 0.0, %v2826
        %2828 = vmatprep.mubr.f32.mxu0 0.0
        %2829 = vmatmul.mubr.f32.gmra.mrb[0].mxu0 %v2744
        %v2830 = vpop.f32.mrb[0].mxu0
        %v2831 = vadd.f32 0.0, %v2830
        %v2832 = vpop.f32.mrb[0].mxu0
        %v2833 = vadd.f32 0.0, %v2832
        %2834 = vdwg.mxu0
        %v2835 = vld [vmem:[#allocation6] sm:$0xff]
        %v2836 = vld [vmem:[#allocation6 + $0x8] sm:$0xff]
        %v2837 = vld [vmem:[#allocation6 + $0x10] sm:$0xff]
        %v2838 = vld [vmem:[#allocation6 + $0x18] sm:$0xff]
        %v2839 = vld [vmem:[#allocation6 + $0x20] sm:$0xff]
        %v2840 = vld [vmem:[#allocation6 + $0x28] sm:$0xff]
        %v2841 = vld [vmem:[#allocation6 + $0x30] sm:$0xff]
        %v2842 = vld [vmem:[#allocation6 + $0x38] sm:$0xff]
        %v2843 = vld [vmem:[#allocation6 + $0x40] sm:$0xff]
        %v2844 = vld [vmem:[#allocation6 + $0x48] sm:$0xff]
        %v2845 = vld [vmem:[#allocation6 + $0x50] sm:$0xff]
        %v2846 = vld [vmem:[#allocation6 + $0x58] sm:$0xff]
        %v2847 = vld [vmem:[#allocation6 + $0x60] sm:$0xff]
        %v2848 = vld [vmem:[#allocation6 + $0x68] sm:$0xff]
        %v2849 = vld [vmem:[#allocation6 + $0x70] sm:$0xff]
        %v2850 = vld [vmem:[#allocation6 + $0x78] sm:$0xff]
        %v2851 = vld [vmem:[#allocation6 + $0x80] sm:$0xff]
        %v2852 = vld [vmem:[#allocation6 + $0x88] sm:$0xff]
        %v2854 = vsel %vm928, %v2712, 0
        %v2857 = vsel %vm928, %v2713, 0
        %v2860 = vsel %vm928, %v2714, 0
        %v2863 = vsel %vm928, %v2715, 0
        %2865 = vmatprep.subr.mxu0 %v2836
        %2866 = vmatpush1.msra.mxu0 %v2835
        %2867 = vmatprep.subr.mxu0 %v2838
        %2868 = vmatpush1.msra.mxu0 %v2837
        %2869 = vmatprep.subr.mxu0 %v2840
        %2870 = vmatpush1.msra.mxu0 %v2839
        %2871 = vmatprep.subr.mxu0 %v2842
        %2872 = vmatpush1.msra.mxu0 %v2841
        %2873 = vmatprep.subr.mxu0 %v2844
        %2874 = vmatpush1.msra.mxu0 %v2843
        %2875 = vmatprep.subr.mxu0 %v2846
        %2876 = vmatpush1.msra.mxu0 %v2845
        %2877 = vmatprep.subr.mxu0 %v2848
        %2878 = vmatpush1.msra.mxu0 %v2847
        %2879 = vmatprep.subr.mxu0 %v2850
        %2880 = vmatpush1.msra.mxu0 %v2849
        %2881 = vmatprep.subr.mxu0 %v2852
        %2882 = vmatpush1.msra.mxu0 %v2851
        %2883 = vmatprep.subr.mxu0 0.0
        %2884 = vmatpush1.msra.mxu0 0.0
        %2885 = vmatprep.subr.mxu0 0.0
        %2886 = vmatpush1.msra.mxu0 0.0
        %2887 = vmatprep.subr.mxu0 0.0
        %2888 = vmatpush1.msra.mxu0 0.0
        %2889 = vmatprep.subr.mxu0 0.0
        %2890 = vmatpush1.msra.mxu0 0.0
        %2891 = vmatprep.subr.mxu0 0.0
        %2892 = vmatpush1.msra.mxu0 0.0
        %2893 = vmatprep.subr.mxu0 0.0
        %2894 = vmatpush1.msra.mxu0 0.0
        %2895 = vmatprep.subr.mxu0 0.0
        %2896 = vmatpush1.msra.mxu0 0.0
        %2897 = vmatprep.subr.mxu0 0.0
        %2898 = vmatpush1.msra.mxu0 0.0
        %2899 = vmatprep.subr.mxu0 0.0
        %2900 = vmatpush1.msra.mxu0 0.0
        %2901 = vmatprep.subr.mxu0 0.0
        %2902 = vmatpush1.msra.mxu0 0.0
        %2903 = vmatprep.subr.mxu0 0.0
        %2904 = vmatpush1.msra.mxu0 0.0
        %2905 = vmatprep.subr.mxu0 0.0
        %2906 = vmatpush1.msra.mxu0 0.0
        %2907 = vmatprep.subr.mxu0 0.0
        %2908 = vmatpush1.msra.mxu0 0.0
        %2909 = vmatprep.subr.mxu0 0.0
        %2910 = vmatpush1.msra.mxu0 0.0
        %2911 = vmatprep.subr.mxu0 0.0
        %2912 = vmatpush1.msra.mxu0 0.0
        %2913 = vmatprep.subr.mxu0 0.0
        %2914 = vmatpush1.msra.mxu0 0.0
        %2915 = vmatprep.subr.mxu0 0.0
        %2916 = vmatpush1.msra.mxu0 0.0
        %2917 = vmatprep.subr.mxu0 0.0
        %2918 = vmatpush1.msra.mxu0 0.0
        %2919 = vmatprep.subr.mxu0 0.0
        %2920 = vmatpush1.msra.mxu0 0.0
        %2921 = vmatprep.subr.mxu0 0.0
        %2922 = vmatpush1.msra.mxu0 0.0
        %2923 = vmatprep.subr.mxu0 0.0
        %2924 = vmatpush1.msra.mxu0 0.0
        %2925 = vmatprep.subr.mxu0 0.0
        %2926 = vmatpush1.msra.mxu0 0.0
        %2927 = vmatprep.subr.mxu0 0.0
        %2928 = vmatpush1.msra.mxu0 0.0
        %2929 = vmatprep.mubr.f32.mxu0 0.0
        %2930 = vmatmul.mubr.f32.gmra.mrb[0].mxu0 %v2854
        %v2931 = vpop.f32.mrb[0].mxu0
        %v2932 = vadd.f32 0.0, %v2931
        %v2933 = vpop.f32.mrb[0].mxu0
        %v2934 = vadd.f32 0.0, %v2933
        %2935 = vmatprep.mubr.f32.mxu0 0.0
        %2936 = vmatmul.mubr.f32.gmra.mrb[0].mxu0 %v2857
        %v2937 = vpop.f32.mrb[0].mxu0
        %v2938 = vadd.f32 0.0, %v2937
        %v2939 = vpop.f32.mrb[0].mxu0
        %v2940 = vadd.f32 0.0, %v2939
        %2941 = vmatprep.mubr.f32.mxu0 0.0
        %2942 = vmatmul.mubr.f32.gmra.mrb[0].mxu0 %v2860
        %v2943 = vpop.f32.mrb[0].mxu0
        %v2944 = vadd.f32 0.0, %v2943
        %v2945 = vpop.f32.mrb[0].mxu0
        %v2946 = vadd.f32 0.0, %v2945
        %2947 = vmatprep.mubr.f32.mxu0 0.0
        %2948 = vmatmul.mubr.f32.gmra.mrb[0].mxu0 %v2863
        %v2949 = vpop.f32.mrb[0].mxu0
        %v2950 = vadd.f32 0.0, %v2949
        %v2951 = vpop.f32.mrb[0].mxu0
        %v2952 = vadd.f32 0.0, %v2951
        %2953 = vdwg.mxu0
        %v2954 = vsub.f32 %v2813, %v2932
        %v2955 = vsub.f32 %v2815, %v2934
        %v2956 = vsub.f32 %v2819, %v2938
        %v2957 = vsub.f32 %v2821, %v2940
        %v2958 = vsub.f32 %v2825, %v2944
        %v2959 = vsub.f32 %v2827, %v2946
        %v2960 = vsub.f32 %v2831, %v2950
        %v2961 = vsub.f32 %v2833, %v2952
        %v2962 = vld [vmem:[%s558] sm:$0xff]
        %v2963 = vld [vmem:[%s558 + $0x8] sm:$0xff]
        %v2964 = vld [vmem:[%s558 + $0x10] sm:$0xff]
        %v2965 = vld [vmem:[%s558 + $0x18] sm:$0xff]
        %v2966 = vld [vmem:[%s646] sm:$0xff]
        %v2967 = vld [vmem:[%s646 + $0x8] sm:$0xff]
        %v2968 = vld [vmem:[%s646 + $0x10] sm:$0xff]
        %v2969 = vld [vmem:[%s646 + $0x18] sm:$0xff]
        %v2970 = vld [vmem:[%s640] sm:$0x1f]
        %v2971 = vld [vmem:[%s640 + $0x8] sm:$0x1f]
        %vm2972 = vcmask 39936
        %v2974 = vsel %vm2972, %v2966, 0
        %v2977 = vsel %vm2972, %v2967, 0
        %v2980 = vsel %vm2972, %v2968, 0
        %v2983 = vsel %vm2972, %v2969, 0
        %vm2985 = vcmask 1044480
        %v2987 = vsel %vm2985, %v2970, 0
        %v2990 = vsel %vm2985, %v2971, 0
        %2992 = vmatprep.subr.mxu0 %v2990
        %2993 = vmatpush1.msra.mxu0 %v2987
        %2994 = vmatprep.subr.mxu0 0.0
        %2995 = vmatpush1.msra.mxu0 0.0
        %2996 = vmatprep.subr.mxu0 0.0
        %2997 = vmatpush1.msra.mxu0 0.0
        %2998 = vmatprep.subr.mxu0 0.0
        %2999 = vmatpush1.msra.mxu0 0.0
        %3000 = vmatprep.subr.mxu0 0.0
        %3001 = vmatpush1.msra.mxu0 0.0
        %3002 = vmatprep.subr.mxu0 0.0
        %3003 = vmatpush1.msra.mxu0 0.0
        %3004 = vmatprep.subr.mxu0 0.0
        %3005 = vmatpush1.msra.mxu0 0.0
        %3006 = vmatprep.subr.mxu0 0.0
        %3007 = vmatpush1.msra.mxu0 0.0
        %3008 = vmatprep.subr.mxu0 0.0
        %3009 = vmatpush1.msra.mxu0 0.0
        %3010 = vmatprep.subr.mxu0 0.0
        %3011 = vmatpush1.msra.mxu0 0.0
        %3012 = vmatprep.subr.mxu0 0.0
        %3013 = vmatpush1.msra.mxu0 0.0
        %3014 = vmatprep.subr.mxu0 0.0
        %3015 = vmatpush1.msra.mxu0 0.0
        %3016 = vmatprep.subr.mxu0 0.0
        %3017 = vmatpush1.msra.mxu0 0.0
        %3018 = vmatprep.subr.mxu0 0.0
        %3019 = vmatpush1.msra.mxu0 0.0
        %3020 = vmatprep.subr.mxu0 0.0
        %3021 = vmatpush1.msra.mxu0 0.0
        %3022 = vmatprep.subr.mxu0 0.0
        %3023 = vmatpush1.msra.mxu0 0.0
        %3024 = vmatprep.subr.mxu0 0.0
        %3025 = vmatpush1.msra.mxu0 0.0
        %3026 = vmatprep.subr.mxu0 0.0
        %3027 = vmatpush1.msra.mxu0 0.0
        %3028 = vmatprep.subr.mxu0 0.0
        %3029 = vmatpush1.msra.mxu0 0.0
        %3030 = vmatprep.subr.mxu0 0.0
        %3031 = vmatpush1.msra.mxu0 0.0
        %3032 = vmatprep.subr.mxu0 0.0
        %3033 = vmatpush1.msra.mxu0 0.0
        %3034 = vmatprep.subr.mxu0 0.0
        %3035 = vmatpush1.msra.mxu0 0.0
        %3036 = vmatprep.subr.mxu0 0.0
        %3037 = vmatpush1.msra.mxu0 0.0
        %3038 = vmatprep.subr.mxu0 0.0
        %3039 = vmatpush1.msra.mxu0 0.0
        %3040 = vmatprep.subr.mxu0 0.0
        %3041 = vmatpush1.msra.mxu0 0.0
        %3042 = vmatprep.subr.mxu0 0.0
        %3043 = vmatpush1.msra.mxu0 0.0
        %3044 = vmatprep.subr.mxu0 0.0
        %3045 = vmatpush1.msra.mxu0 0.0
        %3046 = vmatprep.subr.mxu0 0.0
        %3047 = vmatpush1.msra.mxu0 0.0
        %3048 = vmatprep.subr.mxu0 0.0
        %3049 = vmatpush1.msra.mxu0 0.0
        %3050 = vmatprep.subr.mxu0 0.0
        %3051 = vmatpush1.msra.mxu0 0.0
        %3052 = vmatprep.subr.mxu0 0.0
        %3053 = vmatpush1.msra.mxu0 0.0
        %3054 = vmatprep.subr.mxu0 0.0
        %3055 = vmatpush1.msra.mxu0 0.0
        %3056 = vmatprep.mubr.f32.mxu0 0.0
        %3057 = vmatmul.mubr.f32.gmra.mrb[0].mxu0 %v2974
        %v3058 = vpop.f32.mrb[0].mxu0
        %v3059 = vadd.f32 0.0, %v3058
        %v3060 = vpop.f32.mrb[0].mxu0
        %v3061 = vadd.f32 0.0, %v3060
        %3062 = vmatprep.mubr.f32.mxu0 0.0
        %3063 = vmatmul.mubr.f32.gmra.mrb[0].mxu0 %v2977
        %v3064 = vpop.f32.mrb[0].mxu0
        %v3065 = vadd.f32 0.0, %v3064
        %v3066 = vpop.f32.mrb[0].mxu0
        %v3067 = vadd.f32 0.0, %v3066
        %3068 = vmatprep.mubr.f32.mxu0 0.0
        %3069 = vmatmul.mubr.f32.gmra.mrb[0].mxu0 %v2980
        %v3070 = vpop.f32.mrb[0].mxu0
        %v3071 = vadd.f32 0.0, %v3070
        %v3072 = vpop.f32.mrb[0].mxu0
        %v3073 = vadd.f32 0.0, %v3072
        %3074 = vmatprep.mubr.f32.mxu0 0.0
        %3075 = vmatmul.mubr.f32.gmra.mrb[0].mxu0 %v2983
        %v3076 = vpop.f32.mrb[0].mxu0
        %v3077 = vadd.f32 0.0, %v3076
        %v3078 = vpop.f32.mrb[0].mxu0
        %v3079 = vadd.f32 0.0, %v3078
        %3080 = vdwg.mxu0
        %vm3081 = vcmask 261120
        %v3083 = vsel %vm3081, %v2962, 0
        %v3086 = vsel %vm3081, %v2963, 0
        %v3089 = vsel %vm3081, %v2964, 0
        %v3092 = vsel %vm3081, %v2965, 0
        %3094 = vmatprep.subr.mxu0 %v804
        %3095 = vmatpush1.msra.mxu0 %v803
        %3096 = vmatprep.subr.mxu0 %v806
        %3097 = vmatpush1.msra.mxu0 %v805
        %3098 = vmatprep.subr.mxu0 %v808
        %3099 = vmatpush1.msra.mxu0 %v807
        %3100 = vmatprep.subr.mxu0 %v810
        %3101 = vmatpush1.msra.mxu0 %v809
        %3102 = vmatprep.subr.mxu0 0.0
        %3103 = vmatpush1.msra.mxu0 0.0
        %3104 = vmatprep.subr.mxu0 0.0
        %3105 = vmatpush1.msra.mxu0 0.0
        %3106 = vmatprep.subr.mxu0 0.0
        %3107 = vmatpush1.msra.mxu0 0.0
        %3108 = vmatprep.subr.mxu0 0.0
        %3109 = vmatpush1.msra.mxu0 0.0
        %3110 = vmatprep.subr.mxu0 0.0
        %3111 = vmatpush1.msra.mxu0 0.0
        %3112 = vmatprep.subr.mxu0 0.0
        %3113 = vmatpush1.msra.mxu0 0.0
        %3114 = vmatprep.subr.mxu0 0.0
        %3115 = vmatpush1.msra.mxu0 0.0
        %3116 = vmatprep.subr.mxu0 0.0
        %3117 = vmatpush1.msra.mxu0 0.0
        %3118 = vmatprep.subr.mxu0 0.0
        %3119 = vmatpush1.msra.mxu0 0.0
        %3120 = vmatprep.subr.mxu0 0.0
        %3121 = vmatpush1.msra.mxu0 0.0
        %3122 = vmatprep.subr.mxu0 0.0
        %3123 = vmatpush1.msra.mxu0 0.0
        %3124 = vmatprep.subr.mxu0 0.0
        %3125 = vmatpush1.msra.mxu0 0.0
        %3126 = vmatprep.subr.mxu0 0.0
        %3127 = vmatpush1.msra.mxu0 0.0
        %3128 = vmatprep.subr.mxu0 0.0
        %3129 = vmatpush1.msra.mxu0 0.0
        %3130 = vmatprep.subr.mxu0 0.0
        %3131 = vmatpush1.msra.mxu0 0.0
        %3132 = vmatprep.subr.mxu0 0.0
        %3133 = vmatpush1.msra.mxu0 0.0
        %3134 = vmatprep.subr.mxu0 0.0
        %3135 = vmatpush1.msra.mxu0 0.0
        %3136 = vmatprep.subr.mxu0 0.0
        %3137 = vmatpush1.msra.mxu0 0.0
        %3138 = vmatprep.subr.mxu0 0.0
        %3139 = vmatpush1.msra.mxu0 0.0
        %3140 = vmatprep.subr.mxu0 0.0
        %3141 = vmatpush1.msra.mxu0 0.0
        %3142 = vmatprep.subr.mxu0 0.0
        %3143 = vmatpush1.msra.mxu0 0.0
        %3144 = vmatprep.subr.mxu0 0.0
        %3145 = vmatpush1.msra.mxu0 0.0
        %3146 = vmatprep.subr.mxu0 0.0
        %3147 = vmatpush1.msra.mxu0 0.0
        %3148 = vmatprep.subr.mxu0 0.0
        %3149 = vmatpush1.msra.mxu0 0.0
        %3150 = vmatprep.subr.mxu0 0.0
        %3151 = vmatpush1.msra.mxu0 0.0
        %3152 = vmatprep.subr.mxu0 0.0
        %3153 = vmatpush1.msra.mxu0 0.0
        %3154 = vmatprep.subr.mxu0 0.0
        %3155 = vmatpush1.msra.mxu0 0.0
        %3156 = vmatprep.subr.mxu0 0.0
        %3157 = vmatpush1.msra.mxu0 0.0
        %3158 = vmatprep.mubr.f32.mxu0 0.0
        %3159 = vmatmul.mubr.f32.gmra.mrb[0].mxu0 %v3083
        %v3160 = vpop.f32.mrb[0].mxu0
        %v3161 = vadd.f32 %v3059, %v3160
        %v3162 = vpop.f32.mrb[0].mxu0
        %v3163 = vadd.f32 %v3061, %v3162
        %3164 = vmatprep.mubr.f32.mxu0 0.0
        %3165 = vmatmul.mubr.f32.gmra.mrb[0].mxu0 %v3086
        %v3166 = vpop.f32.mrb[0].mxu0
        %v3167 = vadd.f32 %v3065, %v3166
        %v3168 = vpop.f32.mrb[0].mxu0
        %v3169 = vadd.f32 %v3067, %v3168
        %3170 = vmatprep.mubr.f32.mxu0 0.0
        %3171 = vmatmul.mubr.f32.gmra.mrb[0].mxu0 %v3089
        %v3172 = vpop.f32.mrb[0].mxu0
        %v3173 = vadd.f32 %v3071, %v3172
        %v3174 = vpop.f32.mrb[0].mxu0
        %v3175 = vadd.f32 %v3073, %v3174
        %3176 = vmatprep.mubr.f32.mxu0 0.0
        %3177 = vmatmul.mubr.f32.gmra.mrb[0].mxu0 %v3092
        %v3178 = vpop.f32.mrb[0].mxu0
        %v3179 = vadd.f32 %v3077, %v3178
        %v3180 = vpop.f32.mrb[0].mxu0
        %v3181 = vadd.f32 %v3079, %v3180
        %3182 = vdwg.mxu0
        %v3183 = vld [vmem:[%s651] sm:$0xff]
        %v3184 = vld [vmem:[%s651 + $0x8] sm:$0xff]
        %v3185 = vld [vmem:[%s651 + $0x10] sm:$0xff]
        %v3186 = vld [vmem:[%s651 + $0x18] sm:$0xff]
        %3188 = vset.pattern.permute.xlu0 0
        %3189 = vperm.xlu0 %3188, %v3183
        %v3190 = vpop.permute.xlu0 %3189
        %3193 = vset.pattern.permute.xlu0 0
        %3194 = vperm.xlu0 %3193, %v3184
        %v3195 = vpop.permute.xlu0 %3194
        %3198 = vset.pattern.permute.xlu0 0
        %3199 = vperm.xlu0 %3198, %v3185
        %v3200 = vpop.permute.xlu0 %3199
        %3203 = vset.pattern.permute.xlu0 0
        %3204 = vperm.xlu0 %3203, %v3186
        %v3205 = vpop.permute.xlu0 %3204
        %v3207 = vadd.f32 %v3161, %v3190
        %v3208 = vadd.f32 %v3163, %v3190
        %v3209 = vadd.f32 %v3167, %v3195
        %v3210 = vadd.f32 %v3169, %v3195
        %v3211 = vadd.f32 %v3173, %v3200
        %v3212 = vadd.f32 %v3175, %v3200
        %v3213 = vadd.f32 %v3179, %v3205
        %v3214 = vadd.f32 %v3181, %v3205
        %v3215 = vadd.f32 %v2954, %v3207
        %v3216 = vadd.f32 %v2955, %v3208
        %v3217 = vadd.f32 %v2956, %v3209
        %v3218 = vadd.f32 %v2957, %v3210
        %v3219 = vadd.f32 %v2958, %v3211
        %v3220 = vadd.f32 %v2959, %v3212
        %v3221 = vadd.f32 %v2960, %v3213
        %v3222 = vadd.f32 %v2961, %v3214
        %v3223 = vmul.f32 %v3215, 0.70710677
        %v3224 = vmul.f32 %v3216, 0.70710677
        %v3225 = vmul.f32 %v3217, 0.70710677
        %v3226 = vmul.f32 %v3218, 0.70710677
        %v3227 = vmul.f32 %v3219, 0.70710677
        %v3228 = vmul.f32 %v3220, 0.70710677
        %v3229 = vmul.f32 %v3221, 0.70710677
        %v3230 = vmul.f32 %v3222, 0.70710677
        %v3231 = vand.u32 2147483647, %v3223
        %v3232 = vand.u32 2147483647, %v3224
        %v3233 = vand.u32 2147483647, %v3225
        %v3234 = vand.u32 2147483647, %v3226
        %v3235 = vand.u32 2147483647, %v3227
        %v3236 = vand.u32 2147483647, %v3228
        %v3237 = vand.u32 2147483647, %v3229
        %v3238 = vand.u32 2147483647, %v3230
        %v3239 = vmul.f32 %v3231, 0.3275911
        %v3240 = vmul.f32 %v3232, 0.3275911
        %v3241 = vmul.f32 %v3233, 0.3275911
        %v3242 = vmul.f32 %v3234, 0.3275911
        %v3243 = vmul.f32 %v3235, 0.3275911
        %v3244 = vmul.f32 %v3236, 0.3275911
        %v3245 = vmul.f32 %v3237, 0.3275911
        %v3246 = vmul.f32 %v3238, 0.3275911
        %v3247 = vadd.f32 %v3239, 1.0
        %v3248 = vadd.f32 %v3240, 1.0
        %v3249 = vadd.f32 %v3241, 1.0
        %v3250 = vadd.f32 %v3242, 1.0
        %v3251 = vadd.f32 %v3243, 1.0
        %v3252 = vadd.f32 %v3244, 1.0
        %v3253 = vadd.f32 %v3245, 1.0
        %v3254 = vadd.f32 %v3246, 1.0
        %v3255 = vrcp.pop %v3247
        %v3256 = vmul.f32 1.0, %v3255
        %v3257 = vrcp.pop %v3248
        %v3258 = vmul.f32 1.0, %v3257
        %v3259 = vrcp.pop %v3249
        %v3260 = vmul.f32 1.0, %v3259
        %v3261 = vrcp.pop %v3250
        %v3262 = vmul.f32 1.0, %v3261
        %v3263 = vrcp.pop %v3251
        %v3264 = vmul.f32 1.0, %v3263
        %v3265 = vrcp.pop %v3252
        %v3266 = vmul.f32 1.0, %v3265
        %v3267 = vrcp.pop %v3253
        %v3268 = vmul.f32 1.0, %v3267
        %v3269 = vrcp.pop %v3254
        %v3270 = vmul.f32 1.0, %v3269
        %v3271 = vmul.f32 %v3256, 1.0614054
        %v3272 = vmul.f32 %v3258, 1.0614054
        %v3273 = vmul.f32 %v3260, 1.0614054
        %v3274 = vmul.f32 %v3262, 1.0614054
        %v3275 = vmul.f32 %v3264, 1.0614054
        %v3276 = vmul.f32 %v3266, 1.0614054
        %v3277 = vmul.f32 %v3268, 1.0614054
        %v3278 = vmul.f32 %v3270, 1.0614054
        %v3279 = vadd.f32 %v3271, -1.4531521
        %v3280 = vadd.f32 %v3272, -1.4531521
        %v3281 = vadd.f32 %v3273, -1.4531521
        %v3282 = vadd.f32 %v3274, -1.4531521
        %v3283 = vadd.f32 %v3275, -1.4531521
        %v3284 = vadd.f32 %v3276, -1.4531521
        %v3285 = vadd.f32 %v3277, -1.4531521
        %v3286 = vadd.f32 %v3278, -1.4531521
        %v3287 = vmul.f32 %v3279, %v3256
        %v3288 = vmul.f32 %v3280, %v3258
        %v3289 = vmul.f32 %v3281, %v3260
        %v3290 = vmul.f32 %v3282, %v3262
        %v3291 = vmul.f32 %v3283, %v3264
        %v3292 = vmul.f32 %v3284, %v3266
        %v3293 = vmul.f32 %v3285, %v3268
        %v3294 = vmul.f32 %v3286, %v3270
        %v3295 = vadd.f32 %v3287, 1.4214138
        %v3296 = vadd.f32 %v3288, 1.4214138
        %v3297 = vadd.f32 %v3289, 1.4214138
        %v3298 = vadd.f32 %v3290, 1.4214138
        %v3299 = vadd.f32 %v3291, 1.4214138
        %v3300 = vadd.f32 %v3292, 1.4214138
        %v3301 = vadd.f32 %v3293, 1.4214138
        %v3302 = vadd.f32 %v3294, 1.4214138
        %v3303 = vmul.f32 %v3295, %v3256
        %v3304 = vmul.f32 %v3296, %v3258
        %v3305 = vmul.f32 %v3297, %v3260
        %v3306 = vmul.f32 %v3298, %v3262
        %v3307 = vmul.f32 %v3299, %v3264
        %v3308 = vmul.f32 %v3300, %v3266
        %v3309 = vmul.f32 %v3301, %v3268
        %v3310 = vmul.f32 %v3302, %v3270
        %v3311 = vadd.f32 %v3303, -0.28449672
        %v3312 = vadd.f32 %v3304, -0.28449672
        %v3313 = vadd.f32 %v3305, -0.28449672
        %v3314 = vadd.f32 %v3306, -0.28449672
        %v3315 = vadd.f32 %v3307, -0.28449672
        %v3316 = vadd.f32 %v3308, -0.28449672
        %v3317 = vadd.f32 %v3309, -0.28449672
        %v3318 = vadd.f32 %v3310, -0.28449672
        %v3319 = vmul.f32 %v3311, %v3256
        %v3320 = vmul.f32 %v3312, %v3258
        %v3321 = vmul.f32 %v3313, %v3260
        %v3322 = vmul.f32 %v3314, %v3262
        %v3323 = vmul.f32 %v3315, %v3264
        %v3324 = vmul.f32 %v3316, %v3266
        %v3325 = vmul.f32 %v3317, %v3268
        %v3326 = vmul.f32 %v3318, %v3270
        %v3327 = vadd.f32 %v3319, 0.2548296
        %v3328 = vadd.f32 %v3320, 0.2548296
        %v3329 = vadd.f32 %v3321, 0.2548296
        %v3330 = vadd.f32 %v3322, 0.2548296
        %v3331 = vadd.f32 %v3323, 0.2548296
        %v3332 = vadd.f32 %v3324, 0.2548296
        %v3333 = vadd.f32 %v3325, 0.2548296
        %v3334 = vadd.f32 %v3326, 0.2548296
        %v3335 = vmul.f32 %v3327, %v3256
        %v3336 = vmul.f32 %v3328, %v3258
        %v3337 = vmul.f32 %v3329, %v3260
        %v3338 = vmul.f32 %v3330, %v3262
        %v3339 = vmul.f32 %v3331, %v3264
        %v3340 = vmul.f32 %v3332, %v3266
        %v3341 = vmul.f32 %v3333, %v3268
        %v3342 = vmul.f32 %v3334, %v3270
        %v3343 = vsub.f32 0.0, %v3231
        %v3344 = vsub.f32 0.0, %v3232
        %v3345 = vsub.f32 0.0, %v3233
        %v3346 = vsub.f32 0.0, %v3234
        %v3347 = vsub.f32 0.0, %v3235
        %v3348 = vsub.f32 0.0, %v3236
        %v3349 = vsub.f32 0.0, %v3237
        %v3350 = vsub.f32 0.0, %v3238
        %v3351 = vmul.f32 %v3343, %v3231
        %v3352 = vmul.f32 %v3344, %v3232
        %v3353 = vmul.f32 %v3345, %v3233
        %v3354 = vmul.f32 %v3346, %v3234
        %v3355 = vmul.f32 %v3347, %v3235
        %v3356 = vmul.f32 %v3348, %v3236
        %v3357 = vmul.f32 %v3349, %v3237
        %v3358 = vmul.f32 %v3350, %v3238
        %v3359 = vmul.f32 %v3351, 1.442695
        %v3360 = vpow.pop %v3359
        %v3361 = vmul.f32 %v3352, 1.442695
        %v3362 = vpow.pop %v3361
        %v3363 = vmul.f32 %v3353, 1.442695
        %v3364 = vpow.pop %v3363
        %v3365 = vmul.f32 %v3354, 1.442695
        %v3366 = vpow.pop %v3365
        %v3367 = vmul.f32 %v3355, 1.442695
        %v3368 = vpow.pop %v3367
        %v3369 = vmul.f32 %v3356, 1.442695
        %v3370 = vpow.pop %v3369
        %v3371 = vmul.f32 %v3357, 1.442695
        %v3372 = vpow.pop %v3371
        %v3373 = vmul.f32 %v3358, 1.442695
        %v3374 = vpow.pop %v3373
        %v3375 = vmul.f32 %v3335, %v3360
        %v3376 = vmul.f32 %v3336, %v3362
        %v3377 = vmul.f32 %v3337, %v3364
        %v3378 = vmul.f32 %v3338, %v3366
        %v3379 = vmul.f32 %v3339, %v3368
        %v3380 = vmul.f32 %v3340, %v3370
        %v3381 = vmul.f32 %v3341, %v3372
        %v3382 = vmul.f32 %v3342, %v3374
        %v3383 = vsub.f32 1.0, %v3375
        %v3384 = vsub.f32 1.0, %v3376
        %v3385 = vsub.f32 1.0, %v3377
        %v3386 = vsub.f32 1.0, %v3378
        %v3387 = vsub.f32 1.0, %v3379
        %v3388 = vsub.f32 1.0, %v3380
        %v3389 = vsub.f32 1.0, %v3381
        %v3390 = vsub.f32 1.0, %v3382
        %vm3391 = vcmp.lt.f32.partialorder %v3223, 0.0
        %vm3392 = vcmp.lt.f32.partialorder %v3224, 0.0
        %vm3393 = vcmp.lt.f32.partialorder %v3225, 0.0
        %vm3394 = vcmp.lt.f32.partialorder %v3226, 0.0
        %vm3395 = vcmp.lt.f32.partialorder %v3227, 0.0
        %vm3396 = vcmp.lt.f32.partialorder %v3228, 0.0
        %vm3397 = vcmp.lt.f32.partialorder %v3229, 0.0
        %vm3398 = vcmp.lt.f32.partialorder %v3230, 0.0
        %v3399 = vsub.f32 0.0, %v3383
        %v3400 = vsub.f32 0.0, %v3384
        %v3401 = vsub.f32 0.0, %v3385
        %v3402 = vsub.f32 0.0, %v3386
        %v3403 = vsub.f32 0.0, %v3387
        %v3404 = vsub.f32 0.0, %v3388
        %v3405 = vsub.f32 0.0, %v3389
        %v3406 = vsub.f32 0.0, %v3390
        %v3407 = vsel %vm3391, %v3399, %v3383
        %v3408 = vsel %vm3392, %v3400, %v3384
        %v3409 = vsel %vm3393, %v3401, %v3385
        %v3410 = vsel %vm3394, %v3402, %v3386
        %v3411 = vsel %vm3395, %v3403, %v3387
        %v3412 = vsel %vm3396, %v3404, %v3388
        %v3413 = vsel %vm3397, %v3405, %v3389
        %v3414 = vsel %vm3398, %v3406, %v3390
        %v3415 = vmul.f32 %v3215, 0.5
        %v3416 = vmul.f32 %v3216, 0.5
        %v3417 = vmul.f32 %v3217, 0.5
        %v3418 = vmul.f32 %v3218, 0.5
        %v3419 = vmul.f32 %v3219, 0.5
        %v3420 = vmul.f32 %v3220, 0.5
        %v3421 = vmul.f32 %v3221, 0.5
        %v3422 = vmul.f32 %v3222, 0.5
        %v3423 = vadd.f32 %v3407, 1.0
        %v3424 = vadd.f32 %v3408, 1.0
        %v3425 = vadd.f32 %v3409, 1.0
        %v3426 = vadd.f32 %v3410, 1.0
        %v3427 = vadd.f32 %v3411, 1.0
        %v3428 = vadd.f32 %v3412, 1.0
        %v3429 = vadd.f32 %v3413, 1.0
        %v3430 = vadd.f32 %v3414, 1.0
        %v3431 = vmul.f32 %v3415, %v3423
        %v3432 = vmul.f32 %v3416, %v3424
        %v3433 = vmul.f32 %v3417, %v3425
        %v3434 = vmul.f32 %v3418, %v3426
        %v3435 = vmul.f32 %v3419, %v3427
        %v3436 = vmul.f32 %v3420, %v3428
        %v3437 = vmul.f32 %v3421, %v3429
        %v3438 = vmul.f32 %v3422, %v3430
        %3439 = vst [vmem:[%s629] sm:$0xff] %v3431
        %3440 = vst [vmem:[%s629 + $0x8] sm:$0xff] %v3432
        %3441 = vst [vmem:[%s629 + $0x10] sm:$0xff] %v3433
        %3442 = vst [vmem:[%s629 + $0x18] sm:$0xff] %v3434
        %3443 = vst [vmem:[%s629 + $0x20] sm:$0xff] %v3435
        %3444 = vst [vmem:[%s629 + $0x28] sm:$0xff] %v3436
        %3445 = vst [vmem:[%s629 + $0x30] sm:$0xff] %v3437
        %3446 = vst [vmem:[%s629 + $0x38] sm:$0xff] %v3438
        %s3447 = sand.u32 %s354, 1
        %s3448 = sand.u32 %s354, 1
        %s3449 = smul.addr %s3448, 64
        %s3450 = scalar_lea.vmem [#allocation11], %s3449
        // Predicated region
        $region97: #{fno2d_forward.2} parent=71 // pred_check
          %p3451 = pneg %p364
        $region98: #{fno2d_forward.2} parent=71 // pred_check_branch
          %3453 = sbr.rel (%p3451) target = $region100
        $region99: #{fno2d_forward.2} parent=71 // pred_region
          %s3454 = smul.u32 2, %s30
          %s3455 = smul.addr %s3454, 8
          %s3456 = scalar_lea.vmem %s13, %s3455
          // Predicated region
          $region101: #{fno2d_forward.2} parent=99 // pred_check
            _
          $region102: #{fno2d_forward.2} parent=99 // pred_check_branch
            %3458 = sbr.rel (0) target = $region104
          $region103: #{fno2d_forward.2} parent=99 // pred_region
            // Predicated region
            $region105: #{fno2d_forward.2} parent=103 // pred_check
              _
            $region106: #{fno2d_forward.2} parent=103 // pred_check_branch
              %3460 = sbr.rel (0) target = $region108
            $region107: #{fno2d_forward.2} parent=103 // pred_region
              loop: start=0, step=1, limit=1
              $region109: #{fno2d_forward.2} parent=107 // loop_pre_header
                _
              $region110: #{fno2d_forward.2} parent=107 // loop_header
                %s3462 = sphi 0, %s3466
                %p3463 = scmp.ge.s32.totalorder %s3462, 1
                %s3467 = sphi %s3450, %s3450
                %s3468 = sphi %s3456, %s3456
              $region111: #{fno2d_forward.2} parent=107 // loop_header_branch
                %3465 = sbr.rel (%p3463) target = $region115
              $region112: #{fno2d_forward.2} parent=107 // loop_body
                %v3469 = vld [vmem:[%s3467] sm:$0xff]
                %3470 = vst [vmem:[%s3468] sm:$0xff] %v3469
                %v3471 = vld [vmem:[%s3467 + $0x8] sm:$0xff]
                %3472 = vst [vmem:[%s3468 + $0x8] sm:$0xff] %v3471
                %v3473 = vld [vmem:[%s3467 + $0x10] sm:$0xff]
                %3474 = vst [vmem:[%s3468 + $0x20] sm:$0xff] %v3473
                %v3475 = vld [vmem:[%s3467 + $0x18] sm:$0xff]
                %3476 = vst [vmem:[%s3468 + $0x28] sm:$0xff] %v3475
                %v3477 = vld [vmem:[%s3467 + $0x20] sm:$0xff]
                %3478 = vst [vmem:[%s3468 + $0x40] sm:$0xff] %v3477
                %v3479 = vld [vmem:[%s3467 + $0x28] sm:$0xff]
                %3480 = vst [vmem:[%s3468 + $0x48] sm:$0xff] %v3479
                %v3481 = vld [vmem:[%s3467 + $0x30] sm:$0xff]
                %3482 = vst [vmem:[%s3468 + $0x60] sm:$0xff] %v3481
                %v3483 = vld [vmem:[%s3467 + $0x38] sm:$0xff]
                %3484 = vst [vmem:[%s3468 + $0x68] sm:$0xff] %v3483
              $region113: #{fno2d_forward.2} parent=107 // loop_footer
                %s3466 = sadd.s32 1, %s3462
              $region114: #{fno2d_forward.2} parent=107 // loop_footer_branch
                %3461 = sbr.rel target = $region110
              $region115: #{fno2d_forward.2} parent=107 // loop_exit
                _
            $region108: #{fno2d_forward.2} parent=103 // pred_fallthru
              _
            // Predicated region
            $region116: #{fno2d_forward.2} parent=103 // pred_check
              _
            $region117: #{fno2d_forward.2} parent=103 // pred_check_branch
              %3486 = sbr.rel target = $region119
            $region118: #{fno2d_forward.2} parent=103 // pred_region
              _
            $region119: #{fno2d_forward.2} parent=103 // pred_fallthru
              _
          $region104: #{fno2d_forward.2} parent=99 // pred_fallthru
            _
          %3487 = vnop
        $region100: #{fno2d_forward.2} parent=71 // pred_fallthru
          _
      $region72: #{fno2d_forward.2} parent=5 // pred_fallthru
        _
      %p3488 = scmp.le.s32.totalorder 2, %s21
      // Predicated region
      $region120: #{fno2d_forward.2} parent=5 // pred_check
        %p3489 = pneg %p3488
      $region121: #{fno2d_forward.2} parent=5 // pred_check_branch
        %3491 = sbr.rel (%p3489) target = $region123
      $region122: #{fno2d_forward.2} parent=5 // pred_region
        %s3492 = ssub.s32 %s21, 2
        // Predicated region
        $region124: #{fno2d_forward.2} parent=122 // pred_check
          %p3493 = pneg %p370
        $region125: #{fno2d_forward.2} parent=122 // pred_check_branch
          %3495 = sbr.rel (%p3493) target = $region127
        $region126: #{fno2d_forward.2} parent=122 // pred_region
          %s3496 = sand.u32 %s355, 1
          %s3497 = sand.u32 %s355, 1
          %s3498 = smul.addr %s3497, 64
          %s3499 = scalar_lea.vmem [#allocation11], %s3498
        $region127: #{fno2d_forward.2} parent=122 // pred_fallthru
          _
      $region123: #{fno2d_forward.2} parent=5 // pred_fallthru
        _
    $region6: #{fno2d_forward.2} parent=1 // loop_footer
      %s25 = sadd.s32 1, %s21
    $region7: #{fno2d_forward.2} parent=1 // loop_footer_branch
      %20 = sbr.rel target = $region3
    $region8: #{fno2d_forward.2} parent=1 // loop_exit
      _
    %3500 = vsyncpa [#allocation5], 1
    %s3501 = scalar_lea.sflag [#allocation5], 1
    %3502 = vsyncpa %s3501, 1
    %3503 = vsyncpa [#allocation7], 1

</llo_original>
